<compile_context>
chip_gen: v5e
topology: v5e:2x2
jax: 0.10.0
libtpu: 0.0.40
codegen_flags: <defaults>
</compile_context>

<pallas_src>
import math

import numpy as np
import jax
import jax.numpy as jnp
from jax.experimental import pallas as pl
from jax.experimental.pallas import tpu as pltpu  # noqa: F401  (kept for TPU backend symmetry)

EPS = 1e-6


def _softmax_last(x):
    m = jnp.max(x, axis=-1, keepdims=True)
    e = jnp.exp(x - m)
    return e / jnp.sum(e, axis=-1, keepdims=True)


# --------------------------------------------------------------------------
# The single Pallas kernel: transition softmax + horizon dist + T-step scan
# --------------------------------------------------------------------------
def _qmdp_forward_kernel(logp_o_ref, logp_u_ref, value_ref, z_ref, b0_ref,
                         trans_logits_ref, tau_b_ref, tau_w_ref,
                         ks_ref, logfact_ref,
                         alpha_b_ref, alpha_pi_ref):
    T = logp_o_ref.shape[0]
    H = value_ref.shape[0]

    # ---- loop-invariant setup (hoisted off the serial belief chain) ------
    trans = _softmax_last(trans_logits_ref[...])           # (B, A, S, S)
    value = value_ref[...]                                 # (H, B, A, S)
    logp_o = logp_o_ref[...]                               # (T, B, S)
    a_all = _softmax_last(logp_u_ref[...])                 # (T, B, A) action posterior

    # horizon distribution: tau = _tau + z @ tau_w^T ; truncated Poisson pdf
    z = z_ref[...]                                         # (B, HY)
    tau = tau_b_ref[...] + jnp.sum(z * tau_w_ref[...], axis=-1, keepdims=True)  # (B, 1)
    m = jnp.maximum(tau, 0.0)                              # numerically stable softplus
    rate = jnp.clip(m + jnp.log(jnp.exp(tau - m) + jnp.exp(-m)), 1e-6, 1e6)
    pois_logp = ks_ref[...] * jnp.log(rate) - rate - logfact_ref[...]            # (B, H)
    hdist = _softmax_last(pois_logp)                       # (B, H)
    # per-horizon weight columns, hoisted (avoids any in-kernel transpose)
    hcols = [hdist[:, h:h + 1] for h in range(H)]          # H x (B, 1)

    # ---- sequential T-step recursion (fully unrolled) ---------------------
    b_cur = b0_ref[...]                                    # (B, S) prior belief
    for t in range(T):
        a_t = a_all[t]                                     # (B, A)
        # update_belief: s_next[n,j] = sum_{k,i} trans[n,k,i,j] * b[n,i] * a[n,k]
        bt = jnp.sum(trans * b_cur[:, None, :, None], axis=2)      # (B, A, S_j)
        s_next = jnp.sum(bt * a_t[:, :, None], axis=1)             # (B, S_j)
        b_cur = _softmax_last(jnp.log(s_next + EPS) + logp_o[t])   # (B, S)
        alpha_b_ref[t] = b_cur

        # plan: q[h,n,k] = sum_i b[n,i] * value[h,n,k,i]
        q = jnp.sum(value * b_cur[None, :, None, :], axis=-1)      # (H, B, A)
        pi = _softmax_last(q)                                      # (H, B, A)
        a_plan = pi[0] * hcols[0]
        for h in range(1, H):
            a_plan = a_plan + pi[h] * hcols[h]
        alpha_pi_ref[t] = a_plan                                   # (B, A)


# --------------------------------------------------------------------------
# Wrapper: hypernet logits in plain (fused) XLA, everything else in Pallas
# --------------------------------------------------------------------------
@jax.jit
def hyper_qmdp_forward(logp_o, logp_u, value, z, b, params):
    T, B, S = logp_o.shape
    A = logp_u.shape[-1]
    H = value.shape[0]

    # hypernet transition logits: tiny matmul, fuses with reshape + add in XLA
    w_off = (z @ params["w_offset_w"].T).reshape(B, A, S, S)
    trans_logits = (w_off + params["w_base"]).astype(jnp.float32)

    # Poisson constants passed as inputs (fixes captured-constant trace error)
    ks = jnp.asarray(np.arange(1, H + 1, dtype=np.float32).reshape(1, H))
    logfact = jnp.asarray(
        np.array([math.lgamma(k + 1.0) for k in range(1, H + 1)],
                 dtype=np.float32).reshape(1, H))

    alpha_b, alpha_pi = pl.pallas_call(
        _qmdp_forward_kernel,
        out_shape=(jax.ShapeDtypeStruct((T, B, S), jnp.float32),
                   jax.ShapeDtypeStruct((T, B, A), jnp.float32)),
    )(logp_o, logp_u, value, z, b, trans_logits,
      params["tau_b"], params["tau_w"], ks, logfact)
    return alpha_b, alpha_pi


# --------------------------------------------------------------------------
# Pure-JAX reference mirroring the PyTorch forward (for verification)
# --------------------------------------------------------------------------
def reference_forward(logp_o, logp_u, value, z, b, params):
    T, B, S = logp_o.shape
    A = logp_u.shape[-1]
    H = value.shape[0]

    w_off = (z @ params["w_offset_w"].T).reshape(B, A, S, S)
    transition = jax.nn.softmax(w_off + params["w_base"], axis=-1)

    tau = params["tau_b"] + z @ params["tau_w"].T                 # (B, 1)
    rate = jnp.clip(jax.nn.softplus(tau), 1e-6, 1e6)
    ks = jnp.arange(1, H + 1, dtype=jnp.float32)
    pois_logp = (ks[None, :] * jnp.log(rate) - rate
                 - jax.scipy.special.gammaln(ks + 1.0)[None, :])
    hdist = jax.nn.softmax(pois_logp, axis=-1)                    # (B, H)

    alpha_a = jax.nn.softmax(logp_u, axis=-1)                     # (T, B, A)
    bs, pis = [], []
    b_cur = b
    for t in range(T):
        s_next = jnp.einsum('nkij,ni,nk->nj', transition, b_cur, alpha_a[t])
        b_cur = jax.nn.softmax(jnp.log(s_next + EPS) + logp_o[t], axis=-1)
        q = jnp.einsum('ni,hnki->hnk', b_cur, value)
        pi = jax.nn.softmax(q, axis=-1)
        pis.append(jnp.einsum('hnk,nh->nk', pi, hdist))
        bs.append(b_cur)
    return jnp.stack(bs), jnp.stack(pis)


if __name__ == "__main__":
    # module hyper-params (rank = 0 parameterization)
    S, A, H, HY = 16, 4, 8, 32          # state_dim, act_dim, horizon, hyper_dim
    B, T = 2, 8                          # batch, sequence length

    key = jax.random.PRNGKey(0)
    k = jax.random.split(key, 10)
    params = {
        # _w: (1, A, S, S), xavier-like scale
        "w_base": jax.random.normal(k[0], (1, A, S, S), jnp.float32)
                  * math.sqrt(2.0 / (S + S)),
        # _tau: (1, 1) uniform(-1, 1)
        "tau_b": jax.random.uniform(k[1], (1, 1), jnp.float32, -1.0, 1.0),
        # _tau_offset.weight: (1, HY), scaled by 0.1
        "tau_w": jax.random.normal(k[2], (1, HY), jnp.float32)
                 * (0.1 / math.sqrt(HY)),
        # _w_offset.weight: (A*S*S, HY), scaled by 0.1
        "w_offset_w": jax.random.normal(k[3], (A * S * S, HY), jnp.float32)
                      * (0.1 / math.sqrt(HY)),
    }

    logp_o = jax.nn.log_softmax(jax.random.normal(k[4], (T, B, S), jnp.float32), axis=-1)
    logp_u = jax.nn.log_softmax(jax.random.normal(k[5], (T, B, A), jnp.float32), axis=-1)
    value = jax.random.normal(k[6], (H, B, A, S), jnp.float32)   # native [H,B,A,S]
    z = jax.random.normal(k[7], (B, HY), jnp.float32)
    b = jax.nn.softmax(jax.random.normal(k[8], (B, S), jnp.float32), axis=-1)

    alpha_b, alpha_pi = hyper_qmdp_forward(logp_o, logp_u, value, z, b, params)
    jax.block_until_ready((alpha_b, alpha_pi))

    ref_b, ref_pi = reference_forward(logp_o, logp_u, value, z, b, params)
    np.testing.assert_allclose(np.asarray(alpha_b), np.asarray(ref_b),
                               rtol=1e-4, atol=1e-5)
    np.testing.assert_allclose(np.asarray(alpha_pi), np.asarray(ref_pi),
                               rtol=1e-4, atol=1e-5)

    print("KERNEL_OK")
</pallas_src>

<mosaic_0001>
module attributes {stable_mosaic.version = 11 : i64} {
  func.func @_qmdp_forward_kernel(%arg0: memref<8x2x16xf32, #tpu.memory_space<vmem>>, %arg1: memref<8x2x4xf32, #tpu.memory_space<vmem>>, %arg2: memref<8x2x4x16xf32, #tpu.memory_space<vmem>>, %arg3: memref<2x32xf32, #tpu.memory_space<vmem>>, %arg4: memref<2x16xf32, #tpu.memory_space<vmem>>, %arg5: memref<2x4x16x16xf32, #tpu.memory_space<vmem>>, %arg6: memref<1x1xf32, #tpu.memory_space<vmem>>, %arg7: memref<1x32xf32, #tpu.memory_space<vmem>>, %arg8: memref<1x8xf32, #tpu.memory_space<vmem>>, %arg9: memref<1x8xf32, #tpu.memory_space<vmem>>, %arg10: memref<8x2x16xf32, #tpu.memory_space<vmem>>, %arg11: memref<8x2x4xf32, #tpu.memory_space<vmem>>) attributes {dimension_semantics = [], scalar_prefetch = 0 : i64, scratch_operands = 0 : i64, tpu.core_type = #tpu.core_type<tc>} {
    %c0 = arith.constant 0 : index
    %c0_0 = arith.constant 0 : index
    %c0_1 = arith.constant 0 : index
    %c0_2 = arith.constant 0 : index
    %0 = vector.load %arg5[%c0, %c0_0, %c0_1, %c0_2] : memref<2x4x16x16xf32, #tpu.memory_space<vmem>>, vector<2x4x16x16xf32>
    %cst = arith.constant dense<0xFF800000> : vector<2x4x16xf32>
    %1 = vector.multi_reduction <maximumf>, %0, %cst [3] : vector<2x4x16x16xf32> to vector<2x4x16xf32>
    %2 = vector.shape_cast %1 : vector<2x4x16xf32> to vector<2x4x16x1xf32>
    %3 = vector.broadcast %2 : vector<2x4x16x1xf32> to vector<2x4x16x16xf32>
    %4 = arith.subf %0, %3 : vector<2x4x16x16xf32>
    %5 = math.exp %4 : vector<2x4x16x16xf32>
    %cst_3 = arith.constant dense<0.000000e+00> : vector<2x4x16xf32>
    %6 = vector.multi_reduction <add>, %5, %cst_3 [3] : vector<2x4x16x16xf32> to vector<2x4x16xf32>
    %7 = vector.shape_cast %6 : vector<2x4x16xf32> to vector<2x4x16x1xf32>
    %8 = vector.broadcast %7 : vector<2x4x16x1xf32> to vector<2x4x16x16xf32>
    %9 = arith.divf %5, %8 : vector<2x4x16x16xf32>
    %c0_4 = arith.constant 0 : index
    %c0_5 = arith.constant 0 : index
    %c0_6 = arith.constant 0 : index
    %c0_7 = arith.constant 0 : index
    %10 = vector.load %arg2[%c0_4, %c0_5, %c0_6, %c0_7] : memref<8x2x4x16xf32, #tpu.memory_space<vmem>>, vector<8x2x4x16xf32>
    %c0_8 = arith.constant 0 : index
    %c0_9 = arith.constant 0 : index
    %c0_10 = arith.constant 0 : index
    %11 = vector.load %arg0[%c0_8, %c0_9, %c0_10] : memref<8x2x16xf32, #tpu.memory_space<vmem>>, vector<8x2x16xf32>
    %c0_11 = arith.constant 0 : index
    %c0_12 = arith.constant 0 : index
    %c0_13 = arith.constant 0 : index
    %12 = vector.load %arg1[%c0_11, %c0_12, %c0_13] : memref<8x2x4xf32, #tpu.memory_space<vmem>>, vector<8x2x4xf32>
    %cst_14 = arith.constant dense<0xFF800000> : vector<8x2xf32>
    %13 = vector.multi_reduction <maximumf>, %12, %cst_14 [2] : vector<8x2x4xf32> to vector<8x2xf32>
    %14 = vector.shape_cast %13 : vector<8x2xf32> to vector<8x2x1xf32>
    %15 = vector.broadcast %14 : vector<8x2x1xf32> to vector<8x2x4xf32>
    %16 = arith.subf %12, %15 : vector<8x2x4xf32>
    %17 = math.exp %16 : vector<8x2x4xf32>
    %cst_15 = arith.constant dense<0.000000e+00> : vector<8x2xf32>
    %18 = vector.multi_reduction <add>, %17, %cst_15 [2] : vector<8x2x4xf32> to vector<8x2xf32>
    %19 = vector.shape_cast %18 : vector<8x2xf32> to vector<8x2x1xf32>
    %20 = vector.broadcast %19 : vector<8x2x1xf32> to vector<8x2x4xf32>
    %21 = arith.divf %17, %20 : vector<8x2x4xf32>
    %c0_16 = arith.constant 0 : index
    %c0_17 = arith.constant 0 : index
    %22 = vector.load %arg3[%c0_16, %c0_17] : memref<2x32xf32, #tpu.memory_space<vmem>>, vector<2x32xf32>
    %c0_18 = arith.constant 0 : index
    %c0_19 = arith.constant 0 : index
    %23 = vector.load %arg6[%c0_18, %c0_19] : memref<1x1xf32, #tpu.memory_space<vmem>>, vector<1x1xf32>
    %c0_20 = arith.constant 0 : index
    %c0_21 = arith.constant 0 : index
    %24 = vector.load %arg7[%c0_20, %c0_21] : memref<1x32xf32, #tpu.memory_space<vmem>>, vector<1x32xf32>
    %25 = vector.broadcast %24 : vector<1x32xf32> to vector<2x32xf32>
    %26 = arith.mulf %22, %25 : vector<2x32xf32>
    %cst_22 = arith.constant dense<0.000000e+00> : vector<2xf32>
    %27 = vector.multi_reduction <add>, %26, %cst_22 [1] : vector<2x32xf32> to vector<2xf32>
    %28 = vector.shape_cast %27 : vector<2xf32> to vector<2x1xf32>
    %29 = vector.broadcast %23 : vector<1x1xf32> to vector<2x1xf32>
    %30 = arith.addf %29, %28 : vector<2x1xf32>
    %cst_23 = arith.constant 0.000000e+00 : f32
    %31 = vector.broadcast %cst_23 : f32 to vector<2x1xf32>
    %32 = arith.maximumf %30, %31 : vector<2x1xf32>
    %33 = arith.subf %30, %32 : vector<2x1xf32>
    %34 = math.exp %33 : vector<2x1xf32>
    %cst_24 = arith.constant 0.000000e+00 : f32
    %35 = vector.broadcast %cst_24 : f32 to vector<2x1xf32>
    %36 = arith.subf %35, %32 : vector<2x1xf32>
    %37 = math.exp %36 : vector<2x1xf32>
    %38 = arith.addf %34, %37 : vector<2x1xf32>
    %39 = math.log %38 : vector<2x1xf32>
    %40 = arith.addf %32, %39 : vector<2x1xf32>
    %cst_25 = arith.constant 9.99999997E-7 : f32
    %cst_26 = arith.constant 1.000000e+06 : f32
    %41 = vector.broadcast %cst_25 : f32 to vector<2x1xf32>
    %42 = arith.maximumf %41, %40 : vector<2x1xf32>
    %43 = vector.broadcast %cst_26 : f32 to vector<2x1xf32>
    %44 = arith.minimumf %43, %42 : vector<2x1xf32>
    %c0_27 = arith.constant 0 : index
    %c0_28 = arith.constant 0 : index
    %45 = vector.load %arg8[%c0_27, %c0_28] : memref<1x8xf32, #tpu.memory_space<vmem>>, vector<1x8xf32>
    %46 = math.log %44 : vector<2x1xf32>
    %47 = vector.broadcast %45 : vector<1x8xf32> to vector<2x8xf32>
    %48 = vector.broadcast %46 : vector<2x1xf32> to vector<2x8xf32>
    %49 = arith.mulf %47, %48 : vector<2x8xf32>
    %50 = vector.broadcast %44 : vector<2x1xf32> to vector<2x8xf32>
    %51 = arith.subf %49, %50 : vector<2x8xf32>
    %c0_29 = arith.constant 0 : index
    %c0_30 = arith.constant 0 : index
    %52 = vector.load %arg9[%c0_29, %c0_30] : memref<1x8xf32, #tpu.memory_space<vmem>>, vector<1x8xf32>
    %53 = vector.broadcast %52 : vector<1x8xf32> to vector<2x8xf32>
    %54 = arith.subf %51, %53 : vector<2x8xf32>
    %cst_31 = arith.constant dense<0xFF800000> : vector<2xf32>
    %55 = vector.multi_reduction <maximumf>, %54, %cst_31 [1] : vector<2x8xf32> to vector<2xf32>
    %56 = vector.shape_cast %55 : vector<2xf32> to vector<2x1xf32>
    %57 = vector.broadcast %56 : vector<2x1xf32> to vector<2x8xf32>
    %58 = arith.subf %54, %57 : vector<2x8xf32>
    %59 = math.exp %58 : vector<2x8xf32>
    %cst_32 = arith.constant dense<0.000000e+00> : vector<2xf32>
    %60 = vector.multi_reduction <add>, %59, %cst_32 [1] : vector<2x8xf32> to vector<2xf32>
    %61 = vector.shape_cast %60 : vector<2xf32> to vector<2x1xf32>
    %62 = vector.broadcast %61 : vector<2x1xf32> to vector<2x8xf32>
    %63 = arith.divf %59, %62 : vector<2x8xf32>
    %64 = vector.extract_strided_slice %63 {offsets = [0, 0], sizes = [2, 1], strides = [1, 1]} : vector<2x8xf32> to vector<2x1xf32>
    %65 = vector.extract_strided_slice %63 {offsets = [0, 1], sizes = [2, 1], strides = [1, 1]} : vector<2x8xf32> to vector<2x1xf32>
    %66 = vector.extract_strided_slice %63 {offsets = [0, 2], sizes = [2, 1], strides = [1, 1]} : vector<2x8xf32> to vector<2x1xf32>
    %67 = vector.extract_strided_slice %63 {offsets = [0, 3], sizes = [2, 1], strides = [1, 1]} : vector<2x8xf32> to vector<2x1xf32>
    %68 = vector.extract_strided_slice %63 {offsets = [0, 4], sizes = [2, 1], strides = [1, 1]} : vector<2x8xf32> to vector<2x1xf32>
    %69 = vector.extract_strided_slice %63 {offsets = [0, 5], sizes = [2, 1], strides = [1, 1]} : vector<2x8xf32> to vector<2x1xf32>
    %70 = vector.extract_strided_slice %63 {offsets = [0, 6], sizes = [2, 1], strides = [1, 1]} : vector<2x8xf32> to vector<2x1xf32>
    %71 = vector.extract_strided_slice %63 {offsets = [0, 7], sizes = [2, 1], strides = [1, 1]} : vector<2x8xf32> to vector<2x1xf32>
    %c0_33 = arith.constant 0 : index
    %c0_34 = arith.constant 0 : index
    %72 = vector.load %arg4[%c0_33, %c0_34] : memref<2x16xf32, #tpu.memory_space<vmem>>, vector<2x16xf32>
    %73 = vector.extract_strided_slice %21 {offsets = [0, 0, 0], sizes = [1, 2, 4], strides = [1, 1, 1]} : vector<8x2x4xf32> to vector<1x2x4xf32>
    %74 = vector.shape_cast %73 : vector<1x2x4xf32> to vector<2x4xf32>
    %75 = vector.shape_cast %72 : vector<2x16xf32> to vector<2x1x16x1xf32>
    %76 = vector.broadcast %75 : vector<2x1x16x1xf32> to vector<2x4x16x16xf32>
    %77 = arith.mulf %9, %76 : vector<2x4x16x16xf32>
    %cst_35 = arith.constant dense<0.000000e+00> : vector<2x4x16xf32>
    %78 = vector.multi_reduction <add>, %77, %cst_35 [2] : vector<2x4x16x16xf32> to vector<2x4x16xf32>
    %79 = vector.shape_cast %74 : vector<2x4xf32> to vector<2x4x1xf32>
    %80 = vector.broadcast %79 : vector<2x4x1xf32> to vector<2x4x16xf32>
    %81 = arith.mulf %78, %80 : vector<2x4x16xf32>
    %cst_36 = arith.constant dense<0.000000e+00> : vector<2x16xf32>
    %82 = vector.multi_reduction <add>, %81, %cst_36 [1] : vector<2x4x16xf32> to vector<2x16xf32>
    %cst_37 = arith.constant 9.99999997E-7 : f32
    %83 = vector.broadcast %cst_37 : f32 to vector<2x16xf32>
    %84 = arith.addf %82, %83 : vector<2x16xf32>
    %85 = math.log %84 : vector<2x16xf32>
    %86 = vector.extract_strided_slice %11 {offsets = [0, 0, 0], sizes = [1, 2, 16], strides = [1, 1, 1]} : vector<8x2x16xf32> to vector<1x2x16xf32>
    %87 = vector.shape_cast %86 : vector<1x2x16xf32> to vector<2x16xf32>
    %88 = arith.addf %85, %87 : vector<2x16xf32>
    %cst_38 = arith.constant dense<0xFF800000> : vector<2xf32>
    %89 = vector.multi_reduction <maximumf>, %88, %cst_38 [1] : vector<2x16xf32> to vector<2xf32>
    %90 = vector.shape_cast %89 : vector<2xf32> to vector<2x1xf32>
    %91 = vector.broadcast %90 : vector<2x1xf32> to vector<2x16xf32>
    %92 = arith.subf %88, %91 : vector<2x16xf32>
    %93 = math.exp %92 : vector<2x16xf32>
    %cst_39 = arith.constant dense<0.000000e+00> : vector<2xf32>
    %94 = vector.multi_reduction <add>, %93, %cst_39 [1] : vector<2x16xf32> to vector<2xf32>
    %95 = vector.shape_cast %94 : vector<2xf32> to vector<2x1xf32>
    %96 = vector.broadcast %95 : vector<2x1xf32> to vector<2x16xf32>
    %97 = arith.divf %93, %96 : vector<2x16xf32>
    %c0_40 = arith.constant 0 : index
    %c0_41 = arith.constant 0 : index
    %c0_42 = arith.constant 0 : index
    %98 = vector.load %arg10[%c0_40, %c0_41, %c0_42] : memref<8x2x16xf32, #tpu.memory_space<vmem>>, vector<1x2x16xf32>
    %99 = vector.shape_cast %98 : vector<1x2x16xf32> to vector<2x16xf32>
    %100 = vector.shape_cast %97 : vector<2x16xf32> to vector<1x2x16xf32>
    tpu.vector_store %arg10[%c0_40, %c0_41, %c0_42], %100 {strides = array<i32>} : memref<8x2x16xf32, #tpu.memory_space<vmem>>, vector<1x2x16xf32>,
    %101 = vector.shape_cast %97 : vector<2x16xf32> to vector<1x2x1x16xf32>
    %102 = vector.broadcast %101 : vector<1x2x1x16xf32> to vector<8x2x4x16xf32>
    %103 = arith.mulf %10, %102 : vector<8x2x4x16xf32>
    %cst_43 = arith.constant dense<0.000000e+00> : vector<8x2x4xf32>
    %104 = vector.multi_reduction <add>, %103, %cst_43 [3] : vector<8x2x4x16xf32> to vector<8x2x4xf32>
    %cst_44 = arith.constant dense<0xFF800000> : vector<8x2xf32>
    %105 = vector.multi_reduction <maximumf>, %104, %cst_44 [2] : vector<8x2x4xf32> to vector<8x2xf32>
    %106 = vector.shape_cast %105 : vector<8x2xf32> to vector<8x2x1xf32>
    %107 = vector.broadcast %106 : vector<8x2x1xf32> to vector<8x2x4xf32>
    %108 = arith.subf %104, %107 : vector<8x2x4xf32>
    %109 = math.exp %108 : vector<8x2x4xf32>
    %cst_45 = arith.constant dense<0.000000e+00> : vector<8x2xf32>
    %110 = vector.multi_reduction <add>, %109, %cst_45 [2] : vector<8x2x4xf32> to vector<8x2xf32>
    %111 = vector.shape_cast %110 : vector<8x2xf32> to vector<8x2x1xf32>
    %112 = vector.broadcast %111 : vector<8x2x1xf32> to vector<8x2x4xf32>
    %113 = arith.divf %109, %112 : vector<8x2x4xf32>
    %114 = vector.extract_strided_slice %113 {offsets = [0, 0, 0], sizes = [1, 2, 4], strides = [1, 1, 1]} : vector<8x2x4xf32> to vector<1x2x4xf32>
    %115 = vector.shape_cast %114 : vector<1x2x4xf32> to vector<2x4xf32>
    %116 = vector.broadcast %64 : vector<2x1xf32> to vector<2x4xf32>
    %117 = arith.mulf %115, %116 : vector<2x4xf32>
    %118 = vector.extract_strided_slice %113 {offsets = [1, 0, 0], sizes = [1, 2, 4], strides = [1, 1, 1]} : vector<8x2x4xf32> to vector<1x2x4xf32>
    %119 = vector.shape_cast %118 : vector<1x2x4xf32> to vector<2x4xf32>
    %120 = vector.broadcast %65 : vector<2x1xf32> to vector<2x4xf32>
    %121 = arith.mulf %119, %120 : vector<2x4xf32>
    %122 = arith.addf %117, %121 : vector<2x4xf32>
    %123 = vector.extract_strided_slice %113 {offsets = [2, 0, 0], sizes = [1, 2, 4], strides = [1, 1, 1]} : vector<8x2x4xf32> to vector<1x2x4xf32>
    %124 = vector.shape_cast %123 : vector<1x2x4xf32> to vector<2x4xf32>
    %125 = vector.broadcast %66 : vector<2x1xf32> to vector<2x4xf32>
    %126 = arith.mulf %124, %125 : vector<2x4xf32>
    %127 = arith.addf %122, %126 : vector<2x4xf32>
    %128 = vector.extract_strided_slice %113 {offsets = [3, 0, 0], sizes = [1, 2, 4], strides = [1, 1, 1]} : vector<8x2x4xf32> to vector<1x2x4xf32>
    %129 = vector.shape_cast %128 : vector<1x2x4xf32> to vector<2x4xf32>
    %130 = vector.broadcast %67 : vector<2x1xf32> to vector<2x4xf32>
    %131 = arith.mulf %129, %130 : vector<2x4xf32>
    %132 = arith.addf %127, %131 : vector<2x4xf32>
    %133 = vector.extract_strided_slice %113 {offsets = [4, 0, 0], sizes = [1, 2, 4], strides = [1, 1, 1]} : vector<8x2x4xf32> to vector<1x2x4xf32>
    %134 = vector.shape_cast %133 : vector<1x2x4xf32> to vector<2x4xf32>
    %135 = vector.broadcast %68 : vector<2x1xf32> to vector<2x4xf32>
    %136 = arith.mulf %134, %135 : vector<2x4xf32>
    %137 = arith.addf %132, %136 : vector<2x4xf32>
    %138 = vector.extract_strided_slice %113 {offsets = [5, 0, 0], sizes = [1, 2, 4], strides = [1, 1, 1]} : vector<8x2x4xf32> to vector<1x2x4xf32>
    %139 = vector.shape_cast %138 : vector<1x2x4xf32> to vector<2x4xf32>
    %140 = vector.broadcast %69 : vector<2x1xf32> to vector<2x4xf32>
    %141 = arith.mulf %139, %140 : vector<2x4xf32>
    %142 = arith.addf %137, %141 : vector<2x4xf32>
    %143 = vector.extract_strided_slice %113 {offsets = [6, 0, 0], sizes = [1, 2, 4], strides = [1, 1, 1]} : vector<8x2x4xf32> to vector<1x2x4xf32>
    %144 = vector.shape_cast %143 : vector<1x2x4xf32> to vector<2x4xf32>
    %145 = vector.broadcast %70 : vector<2x1xf32> to vector<2x4xf32>
    %146 = arith.mulf %144, %145 : vector<2x4xf32>
    %147 = arith.addf %142, %146 : vector<2x4xf32>
    %148 = vector.extract_strided_slice %113 {offsets = [7, 0, 0], sizes = [1, 2, 4], strides = [1, 1, 1]} : vector<8x2x4xf32> to vector<1x2x4xf32>
    %149 = vector.shape_cast %148 : vector<1x2x4xf32> to vector<2x4xf32>
    %150 = vector.broadcast %71 : vector<2x1xf32> to vector<2x4xf32>
    %151 = arith.mulf %149, %150 : vector<2x4xf32>
    %152 = arith.addf %147, %151 : vector<2x4xf32>
    %c0_46 = arith.constant 0 : index
    %c0_47 = arith.constant 0 : index
    %c0_48 = arith.constant 0 : index
    %153 = vector.load %arg11[%c0_46, %c0_47, %c0_48] : memref<8x2x4xf32, #tpu.memory_space<vmem>>, vector<1x2x4xf32>
    %154 = vector.shape_cast %153 : vector<1x2x4xf32> to vector<2x4xf32>
    %155 = vector.shape_cast %152 : vector<2x4xf32> to vector<1x2x4xf32>
    tpu.vector_store %arg11[%c0_46, %c0_47, %c0_48], %155 {strides = array<i32>} : memref<8x2x4xf32, #tpu.memory_space<vmem>>, vector<1x2x4xf32>,
    %156 = vector.extract_strided_slice %21 {offsets = [1, 0, 0], sizes = [1, 2, 4], strides = [1, 1, 1]} : vector<8x2x4xf32> to vector<1x2x4xf32>
    %157 = vector.shape_cast %156 : vector<1x2x4xf32> to vector<2x4xf32>
    %158 = vector.shape_cast %97 : vector<2x16xf32> to vector<2x1x16x1xf32>
    %159 = vector.broadcast %158 : vector<2x1x16x1xf32> to vector<2x4x16x16xf32>
    %160 = arith.mulf %9, %159 : vector<2x4x16x16xf32>
    %cst_49 = arith.constant dense<0.000000e+00> : vector<2x4x16xf32>
    %161 = vector.multi_reduction <add>, %160, %cst_49 [2] : vector<2x4x16x16xf32> to vector<2x4x16xf32>
    %162 = vector.shape_cast %157 : vector<2x4xf32> to vector<2x4x1xf32>
    %163 = vector.broadcast %162 : vector<2x4x1xf32> to vector<2x4x16xf32>
    %164 = arith.mulf %161, %163 : vector<2x4x16xf32>
    %cst_50 = arith.constant dense<0.000000e+00> : vector<2x16xf32>
    %165 = vector.multi_reduction <add>, %164, %cst_50 [1] : vector<2x4x16xf32> to vector<2x16xf32>
    %cst_51 = arith.constant 9.99999997E-7 : f32
    %166 = vector.broadcast %cst_51 : f32 to vector<2x16xf32>
    %167 = arith.addf %165, %166 : vector<2x16xf32>
    %168 = math.log %167 : vector<2x16xf32>
    %169 = vector.extract_strided_slice %11 {offsets = [1, 0, 0], sizes = [1, 2, 16], strides = [1, 1, 1]} : vector<8x2x16xf32> to vector<1x2x16xf32>
    %170 = vector.shape_cast %169 : vector<1x2x16xf32> to vector<2x16xf32>
    %171 = arith.addf %168, %170 : vector<2x16xf32>
    %cst_52 = arith.constant dense<0xFF800000> : vector<2xf32>
    %172 = vector.multi_reduction <maximumf>, %171, %cst_52 [1] : vector<2x16xf32> to vector<2xf32>
    %173 = vector.shape_cast %172 : vector<2xf32> to vector<2x1xf32>
    %174 = vector.broadcast %173 : vector<2x1xf32> to vector<2x16xf32>
    %175 = arith.subf %171, %174 : vector<2x16xf32>
    %176 = math.exp %175 : vector<2x16xf32>
    %cst_53 = arith.constant dense<0.000000e+00> : vector<2xf32>
    %177 = vector.multi_reduction <add>, %176, %cst_53 [1] : vector<2x16xf32> to vector<2xf32>
    %178 = vector.shape_cast %177 : vector<2xf32> to vector<2x1xf32>
    %179 = vector.broadcast %178 : vector<2x1xf32> to vector<2x16xf32>
    %180 = arith.divf %176, %179 : vector<2x16xf32>
    %c1 = arith.constant 1 : index
    %c0_54 = arith.constant 0 : index
    %c0_55 = arith.constant 0 : index
    %181 = vector.load %arg10[%c1, %c0_54, %c0_55] : memref<8x2x16xf32, #tpu.memory_space<vmem>>, vector<1x2x16xf32>
    %182 = vector.shape_cast %181 : vector<1x2x16xf32> to vector<2x16xf32>
    %183 = vector.shape_cast %180 : vector<2x16xf32> to vector<1x2x16xf32>
    tpu.vector_store %arg10[%c1, %c0_54, %c0_55], %183 {strides = array<i32>} : memref<8x2x16xf32, #tpu.memory_space<vmem>>, vector<1x2x16xf32>,
    %184 = vector.shape_cast %180 : vector<2x16xf32> to vector<1x2x1x16xf32>
    %185 = vector.broadcast %184 : vector<1x2x1x16xf32> to vector<8x2x4x16xf32>
    %186 = arith.mulf %10, %185 : vector<8x2x4x16xf32>
    %cst_56 = arith.constant dense<0.000000e+00> : vector<8x2x4xf32>
    %187 = vector.multi_reduction <add>, %186, %cst_56 [3] : vector<8x2x4x16xf32> to vector<8x2x4xf32>
    %cst_57 = arith.constant dense<0xFF800000> : vector<8x2xf32>
    %188 = vector.multi_reduction <maximumf>, %187, %cst_57 [2] : vector<8x2x4xf32> to vector<8x2xf32>
    %189 = vector.shape_cast %188 : vector<8x2xf32> to vector<8x2x1xf32>
    %190 = vector.broadcast %189 : vector<8x2x1xf32> to vector<8x2x4xf32>
    %191 = arith.subf %187, %190 : vector<8x2x4xf32>
    %192 = math.exp %191 : vector<8x2x4xf32>
    %cst_58 = arith.constant dense<0.000000e+00> : vector<8x2xf32>
    %193 = vector.multi_reduction <add>, %192, %cst_58 [2] : vector<8x2x4xf32> to vector<8x2xf32>
    %194 = vector.shape_cast %193 : vector<8x2xf32> to vector<8x2x1xf32>
    %195 = vector.broadcast %194 : vector<8x2x1xf32> to vector<8x2x4xf32>
    %196 = arith.divf %192, %195 : vector<8x2x4xf32>
    %197 = vector.extract_strided_slice %196 {offsets = [0, 0, 0], sizes = [1, 2, 4], strides = [1, 1, 1]} : vector<8x2x4xf32> to vector<1x2x4xf32>
    %198 = vector.shape_cast %197 : vector<1x2x4xf32> to vector<2x4xf32>
    %199 = vector.broadcast %64 : vector<2x1xf32> to vector<2x4xf32>
    %200 = arith.mulf %198, %199 : vector<2x4xf32>
    %201 = vector.extract_strided_slice %196 {offsets = [1, 0, 0], sizes = [1, 2, 4], strides = [1, 1, 1]} : vector<8x2x4xf32> to vector<1x2x4xf32>
    %202 = vector.shape_cast %201 : vector<1x2x4xf32> to vector<2x4xf32>
    %203 = vector.broadcast %65 : vector<2x1xf32> to vector<2x4xf32>
    %204 = arith.mulf %202, %203 : vector<2x4xf32>
    %205 = arith.addf %200, %204 : vector<2x4xf32>
    %206 = vector.extract_strided_slice %196 {offsets = [2, 0, 0], sizes = [1, 2, 4], strides = [1, 1, 1]} : vector<8x2x4xf32> to vector<1x2x4xf32>
    %207 = vector.shape_cast %206 : vector<1x2x4xf32> to vector<2x4xf32>
    %208 = vector.broadcast %66 : vector<2x1xf32> to vector<2x4xf32>
    %209 = arith.mulf %207, %208 : vector<2x4xf32>
    %210 = arith.addf %205, %209 : vector<2x4xf32>
    %211 = vector.extract_strided_slice %196 {offsets = [3, 0, 0], sizes = [1, 2, 4], strides = [1, 1, 1]} : vector<8x2x4xf32> to vector<1x2x4xf32>
    %212 = vector.shape_cast %211 : vector<1x2x4xf32> to vector<2x4xf32>
    %213 = vector.broadcast %67 : vector<2x1xf32> to vector<2x4xf32>
    %214 = arith.mulf %212, %213 : vector<2x4xf32>
    %215 = arith.addf %210, %214 : vector<2x4xf32>
    %216 = vector.extract_strided_slice %196 {offsets = [4, 0, 0], sizes = [1, 2, 4], strides = [1, 1, 1]} : vector<8x2x4xf32> to vector<1x2x4xf32>
    %217 = vector.shape_cast %216 : vector<1x2x4xf32> to vector<2x4xf32>
    %218 = vector.broadcast %68 : vector<2x1xf32> to vector<2x4xf32>
    %219 = arith.mulf %217, %218 : vector<2x4xf32>
    %220 = arith.addf %215, %219 : vector<2x4xf32>
    %221 = vector.extract_strided_slice %196 {offsets = [5, 0, 0], sizes = [1, 2, 4], strides = [1, 1, 1]} : vector<8x2x4xf32> to vector<1x2x4xf32>
    %222 = vector.shape_cast %221 : vector<1x2x4xf32> to vector<2x4xf32>
    %223 = vector.broadcast %69 : vector<2x1xf32> to vector<2x4xf32>
    %224 = arith.mulf %222, %223 : vector<2x4xf32>
    %225 = arith.addf %220, %224 : vector<2x4xf32>
    %226 = vector.extract_strided_slice %196 {offsets = [6, 0, 0], sizes = [1, 2, 4], strides = [1, 1, 1]} : vector<8x2x4xf32> to vector<1x2x4xf32>
    %227 = vector.shape_cast %226 : vector<1x2x4xf32> to vector<2x4xf32>
    %228 = vector.broadcast %70 : vector<2x1xf32> to vector<2x4xf32>
    %229 = arith.mulf %227, %228 : vector<2x4xf32>
    %230 = arith.addf %225, %229 : vector<2x4xf32>
    %231 = vector.extract_strided_slice %196 {offsets = [7, 0, 0], sizes = [1, 2, 4], strides = [1, 1, 1]} : vector<8x2x4xf32> to vector<1x2x4xf32>
    %232 = vector.shape_cast %231 : vector<1x2x4xf32> to vector<2x4xf32>
    %233 = vector.broadcast %71 : vector<2x1xf32> to vector<2x4xf32>
    %234 = arith.mulf %232, %233 : vector<2x4xf32>
    %235 = arith.addf %230, %234 : vector<2x4xf32>
    %c1_59 = arith.constant 1 : index
    %c0_60 = arith.constant 0 : index
    %c0_61 = arith.constant 0 : index
    %236 = vector.load %arg11[%c1_59, %c0_60, %c0_61] : memref<8x2x4xf32, #tpu.memory_space<vmem>>, vector<1x2x4xf32>
    %237 = vector.shape_cast %236 : vector<1x2x4xf32> to vector<2x4xf32>
    %238 = vector.shape_cast %235 : vector<2x4xf32> to vector<1x2x4xf32>
    tpu.vector_store %arg11[%c1_59, %c0_60, %c0_61], %238 {strides = array<i32>} : memref<8x2x4xf32, #tpu.memory_space<vmem>>, vector<1x2x4xf32>,
    %239 = vector.extract_strided_slice %21 {offsets = [2, 0, 0], sizes = [1, 2, 4], strides = [1, 1, 1]} : vector<8x2x4xf32> to vector<1x2x4xf32>
    %240 = vector.shape_cast %239 : vector<1x2x4xf32> to vector<2x4xf32>
    %241 = vector.shape_cast %180 : vector<2x16xf32> to vector<2x1x16x1xf32>
    %242 = vector.broadcast %241 : vector<2x1x16x1xf32> to vector<2x4x16x16xf32>
    %243 = arith.mulf %9, %242 : vector<2x4x16x16xf32>
    %cst_62 = arith.constant dense<0.000000e+00> : vector<2x4x16xf32>
    %244 = vector.multi_reduction <add>, %243, %cst_62 [2] : vector<2x4x16x16xf32> to vector<2x4x16xf32>
    %245 = vector.shape_cast %240 : vector<2x4xf32> to vector<2x4x1xf32>
    %246 = vector.broadcast %245 : vector<2x4x1xf32> to vector<2x4x16xf32>
    %247 = arith.mulf %244, %246 : vector<2x4x16xf32>
    %cst_63 = arith.constant dense<0.000000e+00> : vector<2x16xf32>
    %248 = vector.multi_reduction <add>, %247, %cst_63 [1] : vector<2x4x16xf32> to vector<2x16xf32>
    %cst_64 = arith.constant 9.99999997E-7 : f32
    %249 = vector.broadcast %cst_64 : f32 to vector<2x16xf32>
    %250 = arith.addf %248, %249 : vector<2x16xf32>
    %251 = math.log %250 : vector<2x16xf32>
    %252 = vector.extract_strided_slice %11 {offsets = [2, 0, 0], sizes = [1, 2, 16], strides = [1, 1, 1]} : vector<8x2x16xf32> to vector<1x2x16xf32>
    %253 = vector.shape_cast %252 : vector<1x2x16xf32> to vector<2x16xf32>
    %254 = arith.addf %251, %253 : vector<2x16xf32>
    %cst_65 = arith.constant dense<0xFF800000> : vector<2xf32>
    %255 = vector.multi_reduction <maximumf>, %254, %cst_65 [1] : vector<2x16xf32> to vector<2xf32>
    %256 = vector.shape_cast %255 : vector<2xf32> to vector<2x1xf32>
    %257 = vector.broadcast %256 : vector<2x1xf32> to vector<2x16xf32>
    %258 = arith.subf %254, %257 : vector<2x16xf32>
    %259 = math.exp %258 : vector<2x16xf32>
    %cst_66 = arith.constant dense<0.000000e+00> : vector<2xf32>
    %260 = vector.multi_reduction <add>, %259, %cst_66 [1] : vector<2x16xf32> to vector<2xf32>
    %261 = vector.shape_cast %260 : vector<2xf32> to vector<2x1xf32>
    %262 = vector.broadcast %261 : vector<2x1xf32> to vector<2x16xf32>
    %263 = arith.divf %259, %262 : vector<2x16xf32>
    %c2 = arith.constant 2 : index
    %c0_67 = arith.constant 0 : index
    %c0_68 = arith.constant 0 : index
    %264 = vector.load %arg10[%c2, %c0_67, %c0_68] : memref<8x2x16xf32, #tpu.memory_space<vmem>>, vector<1x2x16xf32>
    %265 = vector.shape_cast %264 : vector<1x2x16xf32> to vector<2x16xf32>
    %266 = vector.shape_cast %263 : vector<2x16xf32> to vector<1x2x16xf32>
    tpu.vector_store %arg10[%c2, %c0_67, %c0_68], %266 {strides = array<i32>} : memref<8x2x16xf32, #tpu.memory_space<vmem>>, vector<1x2x16xf32>,
    %267 = vector.shape_cast %263 : vector<2x16xf32> to vector<1x2x1x16xf32>
    %268 = vector.broadcast %267 : vector<1x2x1x16xf32> to vector<8x2x4x16xf32>
    %269 = arith.mulf %10, %268 : vector<8x2x4x16xf32>
    %cst_69 = arith.constant dense<0.000000e+00> : vector<8x2x4xf32>
    %270 = vector.multi_reduction <add>, %269, %cst_69 [3] : vector<8x2x4x16xf32> to vector<8x2x4xf32>
    %cst_70 = arith.constant dense<0xFF800000> : vector<8x2xf32>
    %271 = vector.multi_reduction <maximumf>, %270, %cst_70 [2] : vector<8x2x4xf32> to vector<8x2xf32>
    %272 = vector.shape_cast %271 : vector<8x2xf32> to vector<8x2x1xf32>
    %273 = vector.broadcast %272 : vector<8x2x1xf32> to vector<8x2x4xf32>
    %274 = arith.subf %270, %273 : vector<8x2x4xf32>
    %275 = math.exp %274 : vector<8x2x4xf32>
    %cst_71 = arith.constant dense<0.000000e+00> : vector<8x2xf32>
    %276 = vector.multi_reduction <add>, %275, %cst_71 [2] : vector<8x2x4xf32> to vector<8x2xf32>
    %277 = vector.shape_cast %276 : vector<8x2xf32> to vector<8x2x1xf32>
    %278 = vector.broadcast %277 : vector<8x2x1xf32> to vector<8x2x4xf32>
    %279 = arith.divf %275, %278 : vector<8x2x4xf32>
    %280 = vector.extract_strided_slice %279 {offsets = [0, 0, 0], sizes = [1, 2, 4], strides = [1, 1, 1]} : vector<8x2x4xf32> to vector<1x2x4xf32>
    %281 = vector.shape_cast %280 : vector<1x2x4xf32> to vector<2x4xf32>
    %282 = vector.broadcast %64 : vector<2x1xf32> to vector<2x4xf32>
    %283 = arith.mulf %281, %282 : vector<2x4xf32>
    %284 = vector.extract_strided_slice %279 {offsets = [1, 0, 0], sizes = [1, 2, 4], strides = [1, 1, 1]} : vector<8x2x4xf32> to vector<1x2x4xf32>
    %285 = vector.shape_cast %284 : vector<1x2x4xf32> to vector<2x4xf32>
    %286 = vector.broadcast %65 : vector<2x1xf32> to vector<2x4xf32>
    %287 = arith.mulf %285, %286 : vector<2x4xf32>
    %288 = arith.addf %283, %287 : vector<2x4xf32>
    %289 = vector.extract_strided_slice %279 {offsets = [2, 0, 0], sizes = [1, 2, 4], strides = [1, 1, 1]} : vector<8x2x4xf32> to vector<1x2x4xf32>
    %290 = vector.shape_cast %289 : vector<1x2x4xf32> to vector<2x4xf32>
    %291 = vector.broadcast %66 : vector<2x1xf32> to vector<2x4xf32>
    %292 = arith.mulf %290, %291 : vector<2x4xf32>
    %293 = arith.addf %288, %292 : vector<2x4xf32>
    %294 = vector.extract_strided_slice %279 {offsets = [3, 0, 0], sizes = [1, 2, 4], strides = [1, 1, 1]} : vector<8x2x4xf32> to vector<1x2x4xf32>
    %295 = vector.shape_cast %294 : vector<1x2x4xf32> to vector<2x4xf32>
    %296 = vector.broadcast %67 : vector<2x1xf32> to vector<2x4xf32>
    %297 = arith.mulf %295, %296 : vector<2x4xf32>
    %298 = arith.addf %293, %297 : vector<2x4xf32>
    %299 = vector.extract_strided_slice %279 {offsets = [4, 0, 0], sizes = [1, 2, 4], strides = [1, 1, 1]} : vector<8x2x4xf32> to vector<1x2x4xf32>
    %300 = vector.shape_cast %299 : vector<1x2x4xf32> to vector<2x4xf32>
    %301 = vector.broadcast %68 : vector<2x1xf32> to vector<2x4xf32>
    %302 = arith.mulf %300, %301 : vector<2x4xf32>
    %303 = arith.addf %298, %302 : vector<2x4xf32>
    %304 = vector.extract_strided_slice %279 {offsets = [5, 0, 0], sizes = [1, 2, 4], strides = [1, 1, 1]} : vector<8x2x4xf32> to vector<1x2x4xf32>
    %305 = vector.shape_cast %304 : vector<1x2x4xf32> to vector<2x4xf32>
    %306 = vector.broadcast %69 : vector<2x1xf32> to vector<2x4xf32>
    %307 = arith.mulf %305, %306 : vector<2x4xf32>
    %308 = arith.addf %303, %307 : vector<2x4xf32>
    %309 = vector.extract_strided_slice %279 {offsets = [6, 0, 0], sizes = [1, 2, 4], strides = [1, 1, 1]} : vector<8x2x4xf32> to vector<1x2x4xf32>
    %310 = vector.shape_cast %309 : vector<1x2x4xf32> to vector<2x4xf32>
    %311 = vector.broadcast %70 : vector<2x1xf32> to vector<2x4xf32>
    %312 = arith.mulf %310, %311 : vector<2x4xf32>
    %313 = arith.addf %308, %312 : vector<2x4xf32>
    %314 = vector.extract_strided_slice %279 {offsets = [7, 0, 0], sizes = [1, 2, 4], strides = [1, 1, 1]} : vector<8x2x4xf32> to vector<1x2x4xf32>
    %315 = vector.shape_cast %314 : vector<1x2x4xf32> to vector<2x4xf32>
    %316 = vector.broadcast %71 : vector<2x1xf32> to vector<2x4xf32>
    %317 = arith.mulf %315, %316 : vector<2x4xf32>
    %318 = arith.addf %313, %317 : vector<2x4xf32>
    %c2_72 = arith.constant 2 : index
    %c0_73 = arith.constant 0 : index
    %c0_74 = arith.constant 0 : index
    %319 = vector.load %arg11[%c2_72, %c0_73, %c0_74] : memref<8x2x4xf32, #tpu.memory_space<vmem>>, vector<1x2x4xf32>
    %320 = vector.shape_cast %319 : vector<1x2x4xf32> to vector<2x4xf32>
    %321 = vector.shape_cast %318 : vector<2x4xf32> to vector<1x2x4xf32>
    tpu.vector_store %arg11[%c2_72, %c0_73, %c0_74], %321 {strides = array<i32>} : memref<8x2x4xf32, #tpu.memory_space<vmem>>, vector<1x2x4xf32>,
    %322 = vector.extract_strided_slice %21 {offsets = [3, 0, 0], sizes = [1, 2, 4], strides = [1, 1, 1]} : vector<8x2x4xf32> to vector<1x2x4xf32>
    %323 = vector.shape_cast %322 : vector<1x2x4xf32> to vector<2x4xf32>
    %324 = vector.shape_cast %263 : vector<2x16xf32> to vector<2x1x16x1xf32>
    %325 = vector.broadcast %324 : vector<2x1x16x1xf32> to vector<2x4x16x16xf32>
    %326 = arith.mulf %9, %325 : vector<2x4x16x16xf32>
    %cst_75 = arith.constant dense<0.000000e+00> : vector<2x4x16xf32>
    %327 = vector.multi_reduction <add>, %326, %cst_75 [2] : vector<2x4x16x16xf32> to vector<2x4x16xf32>
    %328 = vector.shape_cast %323 : vector<2x4xf32> to vector<2x4x1xf32>
    %329 = vector.broadcast %328 : vector<2x4x1xf32> to vector<2x4x16xf32>
    %330 = arith.mulf %327, %329 : vector<2x4x16xf32>
    %cst_76 = arith.constant dense<0.000000e+00> : vector<2x16xf32>
    %331 = vector.multi_reduction <add>, %330, %cst_76 [1] : vector<2x4x16xf32> to vector<2x16xf32>
    %cst_77 = arith.constant 9.99999997E-7 : f32
    %332 = vector.broadcast %cst_77 : f32 to vector<2x16xf32>
    %333 = arith.addf %331, %332 : vector<2x16xf32>
    %334 = math.log %333 : vector<2x16xf32>
    %335 = vector.extract_strided_slice %11 {offsets = [3, 0, 0], sizes = [1, 2, 16], strides = [1, 1, 1]} : vector<8x2x16xf32> to vector<1x2x16xf32>
    %336 = vector.shape_cast %335 : vector<1x2x16xf32> to vector<2x16xf32>
    %337 = arith.addf %334, %336 : vector<2x16xf32>
    %cst_78 = arith.constant dense<0xFF800000> : vector<2xf32>
    %338 = vector.multi_reduction <maximumf>, %337, %cst_78 [1] : vector<2x16xf32> to vector<2xf32>
    %339 = vector.shape_cast %338 : vector<2xf32> to vector<2x1xf32>
    %340 = vector.broadcast %339 : vector<2x1xf32> to vector<2x16xf32>
    %341 = arith.subf %337, %340 : vector<2x16xf32>
    %342 = math.exp %341 : vector<2x16xf32>
    %cst_79 = arith.constant dense<0.000000e+00> : vector<2xf32>
    %343 = vector.multi_reduction <add>, %342, %cst_79 [1] : vector<2x16xf32> to vector<2xf32>
    %344 = vector.shape_cast %343 : vector<2xf32> to vector<2x1xf32>
    %345 = vector.broadcast %344 : vector<2x1xf32> to vector<2x16xf32>
    %346 = arith.divf %342, %345 : vector<2x16xf32>
    %c3 = arith.constant 3 : index
    %c0_80 = arith.constant 0 : index
    %c0_81 = arith.constant 0 : index
    %347 = vector.load %arg10[%c3, %c0_80, %c0_81] : memref<8x2x16xf32, #tpu.memory_space<vmem>>, vector<1x2x16xf32>
    %348 = vector.shape_cast %347 : vector<1x2x16xf32> to vector<2x16xf32>
    %349 = vector.shape_cast %346 : vector<2x16xf32> to vector<1x2x16xf32>
    tpu.vector_store %arg10[%c3, %c0_80, %c0_81], %349 {strides = array<i32>} : memref<8x2x16xf32, #tpu.memory_space<vmem>>, vector<1x2x16xf32>,
    %350 = vector.shape_cast %346 : vector<2x16xf32> to vector<1x2x1x16xf32>
    %351 = vector.broadcast %350 : vector<1x2x1x16xf32> to vector<8x2x4x16xf32>
    %352 = arith.mulf %10, %351 : vector<8x2x4x16xf32>
    %cst_82 = arith.constant dense<0.000000e+00> : vector<8x2x4xf32>
    %353 = vector.multi_reduction <add>, %352, %cst_82 [3] : vector<8x2x4x16xf32> to vector<8x2x4xf32>
    %cst_83 = arith.constant dense<0xFF800000> : vector<8x2xf32>
    %354 = vector.multi_reduction <maximumf>, %353, %cst_83 [2] : vector<8x2x4xf32> to vector<8x2xf32>
    %355 = vector.shape_cast %354 : vector<8x2xf32> to vector<8x2x1xf32>
    %356 = vector.broadcast %355 : vector<8x2x1xf32> to vector<8x2x4xf32>
    %357 = arith.subf %353, %356 : vector<8x2x4xf32>
    %358 = math.exp %357 : vector<8x2x4xf32>
    %cst_84 = arith.constant dense<0.000000e+00> : vector<8x2xf32>
    %359 = vector.multi_reduction <add>, %358, %cst_84 [2] : vector<8x2x4xf32> to vector<8x2xf32>
    %360 = vector.shape_cast %359 : vector<8x2xf32> to vector<8x2x1xf32>
    %361 = vector.broadcast %360 : vector<8x2x1xf32> to vector<8x2x4xf32>
    %362 = arith.divf %358, %361 : vector<8x2x4xf32>
    %363 = vector.extract_strided_slice %362 {offsets = [0, 0, 0], sizes = [1, 2, 4], strides = [1, 1, 1]} : vector<8x2x4xf32> to vector<1x2x4xf32>
    %364 = vector.shape_cast %363 : vector<1x2x4xf32> to vector<2x4xf32>
    %365 = vector.broadcast %64 : vector<2x1xf32> to vector<2x4xf32>
    %366 = arith.mulf %364, %365 : vector<2x4xf32>
    %367 = vector.extract_strided_slice %362 {offsets = [1, 0, 0], sizes = [1, 2, 4], strides = [1, 1, 1]} : vector<8x2x4xf32> to vector<1x2x4xf32>
    %368 = vector.shape_cast %367 : vector<1x2x4xf32> to vector<2x4xf32>
    %369 = vector.broadcast %65 : vector<2x1xf32> to vector<2x4xf32>
    %370 = arith.mulf %368, %369 : vector<2x4xf32>
    %371 = arith.addf %366, %370 : vector<2x4xf32>
    %372 = vector.extract_strided_slice %362 {offsets = [2, 0, 0], sizes = [1, 2, 4], strides = [1, 1, 1]} : vector<8x2x4xf32> to vector<1x2x4xf32>
    %373 = vector.shape_cast %372 : vector<1x2x4xf32> to vector<2x4xf32>
    %374 = vector.broadcast %66 : vector<2x1xf32> to vector<2x4xf32>
    %375 = arith.mulf %373, %374 : vector<2x4xf32>
    %376 = arith.addf %371, %375 : vector<2x4xf32>
    %377 = vector.extract_strided_slice %362 {offsets = [3, 0, 0], sizes = [1, 2, 4], strides = [1, 1, 1]} : vector<8x2x4xf32> to vector<1x2x4xf32>
    %378 = vector.shape_cast %377 : vector<1x2x4xf32> to vector<2x4xf32>
    %379 = vector.broadcast %67 : vector<2x1xf32> to vector<2x4xf32>
    %380 = arith.mulf %378, %379 : vector<2x4xf32>
    %381 = arith.addf %376, %380 : vector<2x4xf32>
    %382 = vector.extract_strided_slice %362 {offsets = [4, 0, 0], sizes = [1, 2, 4], strides = [1, 1, 1]} : vector<8x2x4xf32> to vector<1x2x4xf32>
    %383 = vector.shape_cast %382 : vector<1x2x4xf32> to vector<2x4xf32>
    %384 = vector.broadcast %68 : vector<2x1xf32> to vector<2x4xf32>
    %385 = arith.mulf %383, %384 : vector<2x4xf32>
    %386 = arith.addf %381, %385 : vector<2x4xf32>
    %387 = vector.extract_strided_slice %362 {offsets = [5, 0, 0], sizes = [1, 2, 4], strides = [1, 1, 1]} : vector<8x2x4xf32> to vector<1x2x4xf32>
    %388 = vector.shape_cast %387 : vector<1x2x4xf32> to vector<2x4xf32>
    %389 = vector.broadcast %69 : vector<2x1xf32> to vector<2x4xf32>
    %390 = arith.mulf %388, %389 : vector<2x4xf32>
    %391 = arith.addf %386, %390 : vector<2x4xf32>
    %392 = vector.extract_strided_slice %362 {offsets = [6, 0, 0], sizes = [1, 2, 4], strides = [1, 1, 1]} : vector<8x2x4xf32> to vector<1x2x4xf32>
    %393 = vector.shape_cast %392 : vector<1x2x4xf32> to vector<2x4xf32>
    %394 = vector.broadcast %70 : vector<2x1xf32> to vector<2x4xf32>
    %395 = arith.mulf %393, %394 : vector<2x4xf32>
    %396 = arith.addf %391, %395 : vector<2x4xf32>
    %397 = vector.extract_strided_slice %362 {offsets = [7, 0, 0], sizes = [1, 2, 4], strides = [1, 1, 1]} : vector<8x2x4xf32> to vector<1x2x4xf32>
    %398 = vector.shape_cast %397 : vector<1x2x4xf32> to vector<2x4xf32>
    %399 = vector.broadcast %71 : vector<2x1xf32> to vector<2x4xf32>
    %400 = arith.mulf %398, %399 : vector<2x4xf32>
    %401 = arith.addf %396, %400 : vector<2x4xf32>
    %c3_85 = arith.constant 3 : index
    %c0_86 = arith.constant 0 : index
    %c0_87 = arith.constant 0 : index
    %402 = vector.load %arg11[%c3_85, %c0_86, %c0_87] : memref<8x2x4xf32, #tpu.memory_space<vmem>>, vector<1x2x4xf32>
    %403 = vector.shape_cast %402 : vector<1x2x4xf32> to vector<2x4xf32>
    %404 = vector.shape_cast %401 : vector<2x4xf32> to vector<1x2x4xf32>
    tpu.vector_store %arg11[%c3_85, %c0_86, %c0_87], %404 {strides = array<i32>} : memref<8x2x4xf32, #tpu.memory_space<vmem>>, vector<1x2x4xf32>,
    %405 = vector.extract_strided_slice %21 {offsets = [4, 0, 0], sizes = [1, 2, 4], strides = [1, 1, 1]} : vector<8x2x4xf32> to vector<1x2x4xf32>
    %406 = vector.shape_cast %405 : vector<1x2x4xf32> to vector<2x4xf32>
    %407 = vector.shape_cast %346 : vector<2x16xf32> to vector<2x1x16x1xf32>
    %408 = vector.broadcast %407 : vector<2x1x16x1xf32> to vector<2x4x16x16xf32>
    %409 = arith.mulf %9, %408 : vector<2x4x16x16xf32>
    %cst_88 = arith.constant dense<0.000000e+00> : vector<2x4x16xf32>
    %410 = vector.multi_reduction <add>, %409, %cst_88 [2] : vector<2x4x16x16xf32> to vector<2x4x16xf32>
    %411 = vector.shape_cast %406 : vector<2x4xf32> to vector<2x4x1xf32>
    %412 = vector.broadcast %411 : vector<2x4x1xf32> to vector<2x4x16xf32>
    %413 = arith.mulf %410, %412 : vector<2x4x16xf32>
    %cst_89 = arith.constant dense<0.000000e+00> : vector<2x16xf32>
    %414 = vector.multi_reduction <add>, %413, %cst_89 [1] : vector<2x4x16xf32> to vector<2x16xf32>
    %cst_90 = arith.constant 9.99999997E-7 : f32
    %415 = vector.broadcast %cst_90 : f32 to vector<2x16xf32>
    %416 = arith.addf %414, %415 : vector<2x16xf32>
    %417 = math.log %416 : vector<2x16xf32>
    %418 = vector.extract_strided_slice %11 {offsets = [4, 0, 0], sizes = [1, 2, 16], strides = [1, 1, 1]} : vector<8x2x16xf32> to vector<1x2x16xf32>
    %419 = vector.shape_cast %418 : vector<1x2x16xf32> to vector<2x16xf32>
    %420 = arith.addf %417, %419 : vector<2x16xf32>
    %cst_91 = arith.constant dense<0xFF800000> : vector<2xf32>
    %421 = vector.multi_reduction <maximumf>, %420, %cst_91 [1] : vector<2x16xf32> to vector<2xf32>
    %422 = vector.shape_cast %421 : vector<2xf32> to vector<2x1xf32>
    %423 = vector.broadcast %422 : vector<2x1xf32> to vector<2x16xf32>
    %424 = arith.subf %420, %423 : vector<2x16xf32>
    %425 = math.exp %424 : vector<2x16xf32>
    %cst_92 = arith.constant dense<0.000000e+00> : vector<2xf32>
    %426 = vector.multi_reduction <add>, %425, %cst_92 [1] : vector<2x16xf32> to vector<2xf32>
    %427 = vector.shape_cast %426 : vector<2xf32> to vector<2x1xf32>
    %428 = vector.broadcast %427 : vector<2x1xf32> to vector<2x16xf32>
    %429 = arith.divf %425, %428 : vector<2x16xf32>
    %c4 = arith.constant 4 : index
    %c0_93 = arith.constant 0 : index
    %c0_94 = arith.constant 0 : index
    %430 = vector.load %arg10[%c4, %c0_93, %c0_94] : memref<8x2x16xf32, #tpu.memory_space<vmem>>, vector<1x2x16xf32>
    %431 = vector.shape_cast %430 : vector<1x2x16xf32> to vector<2x16xf32>
    %432 = vector.shape_cast %429 : vector<2x16xf32> to vector<1x2x16xf32>
    tpu.vector_store %arg10[%c4, %c0_93, %c0_94], %432 {strides = array<i32>} : memref<8x2x16xf32, #tpu.memory_space<vmem>>, vector<1x2x16xf32>,
    %433 = vector.shape_cast %429 : vector<2x16xf32> to vector<1x2x1x16xf32>
    %434 = vector.broadcast %433 : vector<1x2x1x16xf32> to vector<8x2x4x16xf32>
    %435 = arith.mulf %10, %434 : vector<8x2x4x16xf32>
    %cst_95 = arith.constant dense<0.000000e+00> : vector<8x2x4xf32>
    %436 = vector.multi_reduction <add>, %435, %cst_95 [3] : vector<8x2x4x16xf32> to vector<8x2x4xf32>
    %cst_96 = arith.constant dense<0xFF800000> : vector<8x2xf32>
    %437 = vector.multi_reduction <maximumf>, %436, %cst_96 [2] : vector<8x2x4xf32> to vector<8x2xf32>
    %438 = vector.shape_cast %437 : vector<8x2xf32> to vector<8x2x1xf32>
    %439 = vector.broadcast %438 : vector<8x2x1xf32> to vector<8x2x4xf32>
    %440 = arith.subf %436, %439 : vector<8x2x4xf32>
    %441 = math.exp %440 : vector<8x2x4xf32>
    %cst_97 = arith.constant dense<0.000000e+00> : vector<8x2xf32>
    %442 = vector.multi_reduction <add>, %441, %cst_97 [2] : vector<8x2x4xf32> to vector<8x2xf32>
    %443 = vector.shape_cast %442 : vector<8x2xf32> to vector<8x2x1xf32>
    %444 = vector.broadcast %443 : vector<8x2x1xf32> to vector<8x2x4xf32>
    %445 = arith.divf %441, %444 : vector<8x2x4xf32>
    %446 = vector.extract_strided_slice %445 {offsets = [0, 0, 0], sizes = [1, 2, 4], strides = [1, 1, 1]} : vector<8x2x4xf32> to vector<1x2x4xf32>
    %447 = vector.shape_cast %446 : vector<1x2x4xf32> to vector<2x4xf32>
    %448 = vector.broadcast %64 : vector<2x1xf32> to vector<2x4xf32>
    %449 = arith.mulf %447, %448 : vector<2x4xf32>
    %450 = vector.extract_strided_slice %445 {offsets = [1, 0, 0], sizes = [1, 2, 4], strides = [1, 1, 1]} : vector<8x2x4xf32> to vector<1x2x4xf32>
    %451 = vector.shape_cast %450 : vector<1x2x4xf32> to vector<2x4xf32>
    %452 = vector.broadcast %65 : vector<2x1xf32> to vector<2x4xf32>
    %453 = arith.mulf %451, %452 : vector<2x4xf32>
    %454 = arith.addf %449, %453 : vector<2x4xf32>
    %455 = vector.extract_strided_slice %445 {offsets = [2, 0, 0], sizes = [1, 2, 4], strides = [1, 1, 1]} : vector<8x2x4xf32> to vector<1x2x4xf32>
    %456 = vector.shape_cast %455 : vector<1x2x4xf32> to vector<2x4xf32>
    %457 = vector.broadcast %66 : vector<2x1xf32> to vector<2x4xf32>
    %458 = arith.mulf %456, %457 : vector<2x4xf32>
    %459 = arith.addf %454, %458 : vector<2x4xf32>
    %460 = vector.extract_strided_slice %445 {offsets = [3, 0, 0], sizes = [1, 2, 4], strides = [1, 1, 1]} : vector<8x2x4xf32> to vector<1x2x4xf32>
    %461 = vector.shape_cast %460 : vector<1x2x4xf32> to vector<2x4xf32>
    %462 = vector.broadcast %67 : vector<2x1xf32> to vector<2x4xf32>
    %463 = arith.mulf %461, %462 : vector<2x4xf32>
    %464 = arith.addf %459, %463 : vector<2x4xf32>
    %465 = vector.extract_strided_slice %445 {offsets = [4, 0, 0], sizes = [1, 2, 4], strides = [1, 1, 1]} : vector<8x2x4xf32> to vector<1x2x4xf32>
    %466 = vector.shape_cast %465 : vector<1x2x4xf32> to vector<2x4xf32>
    %467 = vector.broadcast %68 : vector<2x1xf32> to vector<2x4xf32>
    %468 = arith.mulf %466, %467 : vector<2x4xf32>
    %469 = arith.addf %464, %468 : vector<2x4xf32>
    %470 = vector.extract_strided_slice %445 {offsets = [5, 0, 0], sizes = [1, 2, 4], strides = [1, 1, 1]} : vector<8x2x4xf32> to vector<1x2x4xf32>
    %471 = vector.shape_cast %470 : vector<1x2x4xf32> to vector<2x4xf32>
    %472 = vector.broadcast %69 : vector<2x1xf32> to vector<2x4xf32>
    %473 = arith.mulf %471, %472 : vector<2x4xf32>
    %474 = arith.addf %469, %473 : vector<2x4xf32>
    %475 = vector.extract_strided_slice %445 {offsets = [6, 0, 0], sizes = [1, 2, 4], strides = [1, 1, 1]} : vector<8x2x4xf32> to vector<1x2x4xf32>
    %476 = vector.shape_cast %475 : vector<1x2x4xf32> to vector<2x4xf32>
    %477 = vector.broadcast %70 : vector<2x1xf32> to vector<2x4xf32>
    %478 = arith.mulf %476, %477 : vector<2x4xf32>
    %479 = arith.addf %474, %478 : vector<2x4xf32>
    %480 = vector.extract_strided_slice %445 {offsets = [7, 0, 0], sizes = [1, 2, 4], strides = [1, 1, 1]} : vector<8x2x4xf32> to vector<1x2x4xf32>
    %481 = vector.shape_cast %480 : vector<1x2x4xf32> to vector<2x4xf32>
    %482 = vector.broadcast %71 : vector<2x1xf32> to vector<2x4xf32>
    %483 = arith.mulf %481, %482 : vector<2x4xf32>
    %484 = arith.addf %479, %483 : vector<2x4xf32>
    %c4_98 = arith.constant 4 : index
    %c0_99 = arith.constant 0 : index
    %c0_100 = arith.constant 0 : index
    %485 = vector.load %arg11[%c4_98, %c0_99, %c0_100] : memref<8x2x4xf32, #tpu.memory_space<vmem>>, vector<1x2x4xf32>
    %486 = vector.shape_cast %485 : vector<1x2x4xf32> to vector<2x4xf32>
    %487 = vector.shape_cast %484 : vector<2x4xf32> to vector<1x2x4xf32>
    tpu.vector_store %arg11[%c4_98, %c0_99, %c0_100], %487 {strides = array<i32>} : memref<8x2x4xf32, #tpu.memory_space<vmem>>, vector<1x2x4xf32>,
    %488 = vector.extract_strided_slice %21 {offsets = [5, 0, 0], sizes = [1, 2, 4], strides = [1, 1, 1]} : vector<8x2x4xf32> to vector<1x2x4xf32>
    %489 = vector.shape_cast %488 : vector<1x2x4xf32> to vector<2x4xf32>
    %490 = vector.shape_cast %429 : vector<2x16xf32> to vector<2x1x16x1xf32>
    %491 = vector.broadcast %490 : vector<2x1x16x1xf32> to vector<2x4x16x16xf32>
    %492 = arith.mulf %9, %491 : vector<2x4x16x16xf32>
    %cst_101 = arith.constant dense<0.000000e+00> : vector<2x4x16xf32>
    %493 = vector.multi_reduction <add>, %492, %cst_101 [2] : vector<2x4x16x16xf32> to vector<2x4x16xf32>
    %494 = vector.shape_cast %489 : vector<2x4xf32> to vector<2x4x1xf32>
    %495 = vector.broadcast %494 : vector<2x4x1xf32> to vector<2x4x16xf32>
    %496 = arith.mulf %493, %495 : vector<2x4x16xf32>
    %cst_102 = arith.constant dense<0.000000e+00> : vector<2x16xf32>
    %497 = vector.multi_reduction <add>, %496, %cst_102 [1] : vector<2x4x16xf32> to vector<2x16xf32>
    %cst_103 = arith.constant 9.99999997E-7 : f32
    %498 = vector.broadcast %cst_103 : f32 to vector<2x16xf32>
    %499 = arith.addf %497, %498 : vector<2x16xf32>
    %500 = math.log %499 : vector<2x16xf32>
    %501 = vector.extract_strided_slice %11 {offsets = [5, 0, 0], sizes = [1, 2, 16], strides = [1, 1, 1]} : vector<8x2x16xf32> to vector<1x2x16xf32>
    %502 = vector.shape_cast %501 : vector<1x2x16xf32> to vector<2x16xf32>
    %503 = arith.addf %500, %502 : vector<2x16xf32>
    %cst_104 = arith.constant dense<0xFF800000> : vector<2xf32>
    %504 = vector.multi_reduction <maximumf>, %503, %cst_104 [1] : vector<2x16xf32> to vector<2xf32>
    %505 = vector.shape_cast %504 : vector<2xf32> to vector<2x1xf32>
    %506 = vector.broadcast %505 : vector<2x1xf32> to vector<2x16xf32>
    %507 = arith.subf %503, %506 : vector<2x16xf32>
    %508 = math.exp %507 : vector<2x16xf32>
    %cst_105 = arith.constant dense<0.000000e+00> : vector<2xf32>
    %509 = vector.multi_reduction <add>, %508, %cst_105 [1] : vector<2x16xf32> to vector<2xf32>
    %510 = vector.shape_cast %509 : vector<2xf32> to vector<2x1xf32>
    %511 = vector.broadcast %510 : vector<2x1xf32> to vector<2x16xf32>
    %512 = arith.divf %508, %511 : vector<2x16xf32>
    %c5 = arith.constant 5 : index
    %c0_106 = arith.constant 0 : index
    %c0_107 = arith.constant 0 : index
    %513 = vector.load %arg10[%c5, %c0_106, %c0_107] : memref<8x2x16xf32, #tpu.memory_space<vmem>>, vector<1x2x16xf32>
    %514 = vector.shape_cast %513 : vector<1x2x16xf32> to vector<2x16xf32>
    %515 = vector.shape_cast %512 : vector<2x16xf32> to vector<1x2x16xf32>
    tpu.vector_store %arg10[%c5, %c0_106, %c0_107], %515 {strides = array<i32>} : memref<8x2x16xf32, #tpu.memory_space<vmem>>, vector<1x2x16xf32>,
    %516 = vector.shape_cast %512 : vector<2x16xf32> to vector<1x2x1x16xf32>
    %517 = vector.broadcast %516 : vector<1x2x1x16xf32> to vector<8x2x4x16xf32>
    %518 = arith.mulf %10, %517 : vector<8x2x4x16xf32>
    %cst_108 = arith.constant dense<0.000000e+00> : vector<8x2x4xf32>
    %519 = vector.multi_reduction <add>, %518, %cst_108 [3] : vector<8x2x4x16xf32> to vector<8x2x4xf32>
    %cst_109 = arith.constant dense<0xFF800000> : vector<8x2xf32>
    %520 = vector.multi_reduction <maximumf>, %519, %cst_109 [2] : vector<8x2x4xf32> to vector<8x2xf32>
    %521 = vector.shape_cast %520 : vector<8x2xf32> to vector<8x2x1xf32>
    %522 = vector.broadcast %521 : vector<8x2x1xf32> to vector<8x2x4xf32>
    %523 = arith.subf %519, %522 : vector<8x2x4xf32>
    %524 = math.exp %523 : vector<8x2x4xf32>
    %cst_110 = arith.constant dense<0.000000e+00> : vector<8x2xf32>
    %525 = vector.multi_reduction <add>, %524, %cst_110 [2] : vector<8x2x4xf32> to vector<8x2xf32>
    %526 = vector.shape_cast %525 : vector<8x2xf32> to vector<8x2x1xf32>
    %527 = vector.broadcast %526 : vector<8x2x1xf32> to vector<8x2x4xf32>
    %528 = arith.divf %524, %527 : vector<8x2x4xf32>
    %529 = vector.extract_strided_slice %528 {offsets = [0, 0, 0], sizes = [1, 2, 4], strides = [1, 1, 1]} : vector<8x2x4xf32> to vector<1x2x4xf32>
    %530 = vector.shape_cast %529 : vector<1x2x4xf32> to vector<2x4xf32>
    %531 = vector.broadcast %64 : vector<2x1xf32> to vector<2x4xf32>
    %532 = arith.mulf %530, %531 : vector<2x4xf32>
    %533 = vector.extract_strided_slice %528 {offsets = [1, 0, 0], sizes = [1, 2, 4], strides = [1, 1, 1]} : vector<8x2x4xf32> to vector<1x2x4xf32>
    %534 = vector.shape_cast %533 : vector<1x2x4xf32> to vector<2x4xf32>
    %535 = vector.broadcast %65 : vector<2x1xf32> to vector<2x4xf32>
    %536 = arith.mulf %534, %535 : vector<2x4xf32>
    %537 = arith.addf %532, %536 : vector<2x4xf32>
    %538 = vector.extract_strided_slice %528 {offsets = [2, 0, 0], sizes = [1, 2, 4], strides = [1, 1, 1]} : vector<8x2x4xf32> to vector<1x2x4xf32>
    %539 = vector.shape_cast %538 : vector<1x2x4xf32> to vector<2x4xf32>
    %540 = vector.broadcast %66 : vector<2x1xf32> to vector<2x4xf32>
    %541 = arith.mulf %539, %540 : vector<2x4xf32>
    %542 = arith.addf %537, %541 : vector<2x4xf32>
    %543 = vector.extract_strided_slice %528 {offsets = [3, 0, 0], sizes = [1, 2, 4], strides = [1, 1, 1]} : vector<8x2x4xf32> to vector<1x2x4xf32>
    %544 = vector.shape_cast %543 : vector<1x2x4xf32> to vector<2x4xf32>
    %545 = vector.broadcast %67 : vector<2x1xf32> to vector<2x4xf32>
    %546 = arith.mulf %544, %545 : vector<2x4xf32>
    %547 = arith.addf %542, %546 : vector<2x4xf32>
    %548 = vector.extract_strided_slice %528 {offsets = [4, 0, 0], sizes = [1, 2, 4], strides = [1, 1, 1]} : vector<8x2x4xf32> to vector<1x2x4xf32>
    %549 = vector.shape_cast %548 : vector<1x2x4xf32> to vector<2x4xf32>
    %550 = vector.broadcast %68 : vector<2x1xf32> to vector<2x4xf32>
    %551 = arith.mulf %549, %550 : vector<2x4xf32>
    %552 = arith.addf %547, %551 : vector<2x4xf32>
    %553 = vector.extract_strided_slice %528 {offsets = [5, 0, 0], sizes = [1, 2, 4], strides = [1, 1, 1]} : vector<8x2x4xf32> to vector<1x2x4xf32>
    %554 = vector.shape_cast %553 : vector<1x2x4xf32> to vector<2x4xf32>
    %555 = vector.broadcast %69 : vector<2x1xf32> to vector<2x4xf32>
    %556 = arith.mulf %554, %555 : vector<2x4xf32>
    %557 = arith.addf %552, %556 : vector<2x4xf32>
    %558 = vector.extract_strided_slice %528 {offsets = [6, 0, 0], sizes = [1, 2, 4], strides = [1, 1, 1]} : vector<8x2x4xf32> to vector<1x2x4xf32>
    %559 = vector.shape_cast %558 : vector<1x2x4xf32> to vector<2x4xf32>
    %560 = vector.broadcast %70 : vector<2x1xf32> to vector<2x4xf32>
    %561 = arith.mulf %559, %560 : vector<2x4xf32>
    %562 = arith.addf %557, %561 : vector<2x4xf32>
    %563 = vector.extract_strided_slice %528 {offsets = [7, 0, 0], sizes = [1, 2, 4], strides = [1, 1, 1]} : vector<8x2x4xf32> to vector<1x2x4xf32>
    %564 = vector.shape_cast %563 : vector<1x2x4xf32> to vector<2x4xf32>
    %565 = vector.broadcast %71 : vector<2x1xf32> to vector<2x4xf32>
    %566 = arith.mulf %564, %565 : vector<2x4xf32>
    %567 = arith.addf %562, %566 : vector<2x4xf32>
    %c5_111 = arith.constant 5 : index
    %c0_112 = arith.constant 0 : index
    %c0_113 = arith.constant 0 : index
    %568 = vector.load %arg11[%c5_111, %c0_112, %c0_113] : memref<8x2x4xf32, #tpu.memory_space<vmem>>, vector<1x2x4xf32>
    %569 = vector.shape_cast %568 : vector<1x2x4xf32> to vector<2x4xf32>
    %570 = vector.shape_cast %567 : vector<2x4xf32> to vector<1x2x4xf32>
    tpu.vector_store %arg11[%c5_111, %c0_112, %c0_113], %570 {strides = array<i32>} : memref<8x2x4xf32, #tpu.memory_space<vmem>>, vector<1x2x4xf32>,
    %571 = vector.extract_strided_slice %21 {offsets = [6, 0, 0], sizes = [1, 2, 4], strides = [1, 1, 1]} : vector<8x2x4xf32> to vector<1x2x4xf32>
    %572 = vector.shape_cast %571 : vector<1x2x4xf32> to vector<2x4xf32>
    %573 = vector.shape_cast %512 : vector<2x16xf32> to vector<2x1x16x1xf32>
    %574 = vector.broadcast %573 : vector<2x1x16x1xf32> to vector<2x4x16x16xf32>
    %575 = arith.mulf %9, %574 : vector<2x4x16x16xf32>
    %cst_114 = arith.constant dense<0.000000e+00> : vector<2x4x16xf32>
    %576 = vector.multi_reduction <add>, %575, %cst_114 [2] : vector<2x4x16x16xf32> to vector<2x4x16xf32>
    %577 = vector.shape_cast %572 : vector<2x4xf32> to vector<2x4x1xf32>
    %578 = vector.broadcast %577 : vector<2x4x1xf32> to vector<2x4x16xf32>
    %579 = arith.mulf %576, %578 : vector<2x4x16xf32>
    %cst_115 = arith.constant dense<0.000000e+00> : vector<2x16xf32>
    %580 = vector.multi_reduction <add>, %579, %cst_115 [1] : vector<2x4x16xf32> to vector<2x16xf32>
    %cst_116 = arith.constant 9.99999997E-7 : f32
    %581 = vector.broadcast %cst_116 : f32 to vector<2x16xf32>
    %582 = arith.addf %580, %581 : vector<2x16xf32>
    %583 = math.log %582 : vector<2x16xf32>
    %584 = vector.extract_strided_slice %11 {offsets = [6, 0, 0], sizes = [1, 2, 16], strides = [1, 1, 1]} : vector<8x2x16xf32> to vector<1x2x16xf32>
    %585 = vector.shape_cast %584 : vector<1x2x16xf32> to vector<2x16xf32>
    %586 = arith.addf %583, %585 : vector<2x16xf32>
    %cst_117 = arith.constant dense<0xFF800000> : vector<2xf32>
    %587 = vector.multi_reduction <maximumf>, %586, %cst_117 [1] : vector<2x16xf32> to vector<2xf32>
    %588 = vector.shape_cast %587 : vector<2xf32> to vector<2x1xf32>
    %589 = vector.broadcast %588 : vector<2x1xf32> to vector<2x16xf32>
    %590 = arith.subf %586, %589 : vector<2x16xf32>
    %591 = math.exp %590 : vector<2x16xf32>
    %cst_118 = arith.constant dense<0.000000e+00> : vector<2xf32>
    %592 = vector.multi_reduction <add>, %591, %cst_118 [1] : vector<2x16xf32> to vector<2xf32>
    %593 = vector.shape_cast %592 : vector<2xf32> to vector<2x1xf32>
    %594 = vector.broadcast %593 : vector<2x1xf32> to vector<2x16xf32>
    %595 = arith.divf %591, %594 : vector<2x16xf32>
    %c6 = arith.constant 6 : index
    %c0_119 = arith.constant 0 : index
    %c0_120 = arith.constant 0 : index
    %596 = vector.load %arg10[%c6, %c0_119, %c0_120] : memref<8x2x16xf32, #tpu.memory_space<vmem>>, vector<1x2x16xf32>
    %597 = vector.shape_cast %596 : vector<1x2x16xf32> to vector<2x16xf32>
    %598 = vector.shape_cast %595 : vector<2x16xf32> to vector<1x2x16xf32>
    tpu.vector_store %arg10[%c6, %c0_119, %c0_120], %598 {strides = array<i32>} : memref<8x2x16xf32, #tpu.memory_space<vmem>>, vector<1x2x16xf32>,
    %599 = vector.shape_cast %595 : vector<2x16xf32> to vector<1x2x1x16xf32>
    %600 = vector.broadcast %599 : vector<1x2x1x16xf32> to vector<8x2x4x16xf32>
    %601 = arith.mulf %10, %600 : vector<8x2x4x16xf32>
    %cst_121 = arith.constant dense<0.000000e+00> : vector<8x2x4xf32>
    %602 = vector.multi_reduction <add>, %601, %cst_121 [3] : vector<8x2x4x16xf32> to vector<8x2x4xf32>
    %cst_122 = arith.constant dense<0xFF800000> : vector<8x2xf32>
    %603 = vector.multi_reduction <maximumf>, %602, %cst_122 [2] : vector<8x2x4xf32> to vector<8x2xf32>
    %604 = vector.shape_cast %603 : vector<8x2xf32> to vector<8x2x1xf32>
    %605 = vector.broadcast %604 : vector<8x2x1xf32> to vector<8x2x4xf32>
    %606 = arith.subf %602, %605 : vector<8x2x4xf32>
    %607 = math.exp %606 : vector<8x2x4xf32>
    %cst_123 = arith.constant dense<0.000000e+00> : vector<8x2xf32>
    %608 = vector.multi_reduction <add>, %607, %cst_123 [2] : vector<8x2x4xf32> to vector<8x2xf32>
    %609 = vector.shape_cast %608 : vector<8x2xf32> to vector<8x2x1xf32>
    %610 = vector.broadcast %609 : vector<8x2x1xf32> to vector<8x2x4xf32>
    %611 = arith.divf %607, %610 : vector<8x2x4xf32>
    %612 = vector.extract_strided_slice %611 {offsets = [0, 0, 0], sizes = [1, 2, 4], strides = [1, 1, 1]} : vector<8x2x4xf32> to vector<1x2x4xf32>
    %613 = vector.shape_cast %612 : vector<1x2x4xf32> to vector<2x4xf32>
    %614 = vector.broadcast %64 : vector<2x1xf32> to vector<2x4xf32>
    %615 = arith.mulf %613, %614 : vector<2x4xf32>
    %616 = vector.extract_strided_slice %611 {offsets = [1, 0, 0], sizes = [1, 2, 4], strides = [1, 1, 1]} : vector<8x2x4xf32> to vector<1x2x4xf32>
    %617 = vector.shape_cast %616 : vector<1x2x4xf32> to vector<2x4xf32>
    %618 = vector.broadcast %65 : vector<2x1xf32> to vector<2x4xf32>
    %619 = arith.mulf %617, %618 : vector<2x4xf32>
    %620 = arith.addf %615, %619 : vector<2x4xf32>
    %621 = vector.extract_strided_slice %611 {offsets = [2, 0, 0], sizes = [1, 2, 4], strides = [1, 1, 1]} : vector<8x2x4xf32> to vector<1x2x4xf32>
    %622 = vector.shape_cast %621 : vector<1x2x4xf32> to vector<2x4xf32>
    %623 = vector.broadcast %66 : vector<2x1xf32> to vector<2x4xf32>
    %624 = arith.mulf %622, %623 : vector<2x4xf32>
    %625 = arith.addf %620, %624 : vector<2x4xf32>
    %626 = vector.extract_strided_slice %611 {offsets = [3, 0, 0], sizes = [1, 2, 4], strides = [1, 1, 1]} : vector<8x2x4xf32> to vector<1x2x4xf32>
    %627 = vector.shape_cast %626 : vector<1x2x4xf32> to vector<2x4xf32>
    %628 = vector.broadcast %67 : vector<2x1xf32> to vector<2x4xf32>
    %629 = arith.mulf %627, %628 : vector<2x4xf32>
    %630 = arith.addf %625, %629 : vector<2x4xf32>
    %631 = vector.extract_strided_slice %611 {offsets = [4, 0, 0], sizes = [1, 2, 4], strides = [1, 1, 1]} : vector<8x2x4xf32> to vector<1x2x4xf32>
    %632 = vector.shape_cast %631 : vector<1x2x4xf32> to vector<2x4xf32>
    %633 = vector.broadcast %68 : vector<2x1xf32> to vector<2x4xf32>
    %634 = arith.mulf %632, %633 : vector<2x4xf32>
    %635 = arith.addf %630, %634 : vector<2x4xf32>
    %636 = vector.extract_strided_slice %611 {offsets = [5, 0, 0], sizes = [1, 2, 4], strides = [1, 1, 1]} : vector<8x2x4xf32> to vector<1x2x4xf32>
    %637 = vector.shape_cast %636 : vector<1x2x4xf32> to vector<2x4xf32>
    %638 = vector.broadcast %69 : vector<2x1xf32> to vector<2x4xf32>
    %639 = arith.mulf %637, %638 : vector<2x4xf32>
    %640 = arith.addf %635, %639 : vector<2x4xf32>
    %641 = vector.extract_strided_slice %611 {offsets = [6, 0, 0], sizes = [1, 2, 4], strides = [1, 1, 1]} : vector<8x2x4xf32> to vector<1x2x4xf32>
    %642 = vector.shape_cast %641 : vector<1x2x4xf32> to vector<2x4xf32>
    %643 = vector.broadcast %70 : vector<2x1xf32> to vector<2x4xf32>
    %644 = arith.mulf %642, %643 : vector<2x4xf32>
    %645 = arith.addf %640, %644 : vector<2x4xf32>
    %646 = vector.extract_strided_slice %611 {offsets = [7, 0, 0], sizes = [1, 2, 4], strides = [1, 1, 1]} : vector<8x2x4xf32> to vector<1x2x4xf32>
    %647 = vector.shape_cast %646 : vector<1x2x4xf32> to vector<2x4xf32>
    %648 = vector.broadcast %71 : vector<2x1xf32> to vector<2x4xf32>
    %649 = arith.mulf %647, %648 : vector<2x4xf32>
    %650 = arith.addf %645, %649 : vector<2x4xf32>
    %c6_124 = arith.constant 6 : index
    %c0_125 = arith.constant 0 : index
    %c0_126 = arith.constant 0 : index
    %651 = vector.load %arg11[%c6_124, %c0_125, %c0_126] : memref<8x2x4xf32, #tpu.memory_space<vmem>>, vector<1x2x4xf32>
    %652 = vector.shape_cast %651 : vector<1x2x4xf32> to vector<2x4xf32>
    %653 = vector.shape_cast %650 : vector<2x4xf32> to vector<1x2x4xf32>
    tpu.vector_store %arg11[%c6_124, %c0_125, %c0_126], %653 {strides = array<i32>} : memref<8x2x4xf32, #tpu.memory_space<vmem>>, vector<1x2x4xf32>,
    %654 = vector.extract_strided_slice %21 {offsets = [7, 0, 0], sizes = [1, 2, 4], strides = [1, 1, 1]} : vector<8x2x4xf32> to vector<1x2x4xf32>
    %655 = vector.shape_cast %654 : vector<1x2x4xf32> to vector<2x4xf32>
    %656 = vector.shape_cast %595 : vector<2x16xf32> to vector<2x1x16x1xf32>
    %657 = vector.broadcast %656 : vector<2x1x16x1xf32> to vector<2x4x16x16xf32>
    %658 = arith.mulf %9, %657 : vector<2x4x16x16xf32>
    %cst_127 = arith.constant dense<0.000000e+00> : vector<2x4x16xf32>
    %659 = vector.multi_reduction <add>, %658, %cst_127 [2] : vector<2x4x16x16xf32> to vector<2x4x16xf32>
    %660 = vector.shape_cast %655 : vector<2x4xf32> to vector<2x4x1xf32>
    %661 = vector.broadcast %660 : vector<2x4x1xf32> to vector<2x4x16xf32>
    %662 = arith.mulf %659, %661 : vector<2x4x16xf32>
    %cst_128 = arith.constant dense<0.000000e+00> : vector<2x16xf32>
    %663 = vector.multi_reduction <add>, %662, %cst_128 [1] : vector<2x4x16xf32> to vector<2x16xf32>
    %cst_129 = arith.constant 9.99999997E-7 : f32
    %664 = vector.broadcast %cst_129 : f32 to vector<2x16xf32>
    %665 = arith.addf %663, %664 : vector<2x16xf32>
    %666 = math.log %665 : vector<2x16xf32>
    %667 = vector.extract_strided_slice %11 {offsets = [7, 0, 0], sizes = [1, 2, 16], strides = [1, 1, 1]} : vector<8x2x16xf32> to vector<1x2x16xf32>
    %668 = vector.shape_cast %667 : vector<1x2x16xf32> to vector<2x16xf32>
    %669 = arith.addf %666, %668 : vector<2x16xf32>
    %cst_130 = arith.constant dense<0xFF800000> : vector<2xf32>
    %670 = vector.multi_reduction <maximumf>, %669, %cst_130 [1] : vector<2x16xf32> to vector<2xf32>
    %671 = vector.shape_cast %670 : vector<2xf32> to vector<2x1xf32>
    %672 = vector.broadcast %671 : vector<2x1xf32> to vector<2x16xf32>
    %673 = arith.subf %669, %672 : vector<2x16xf32>
    %674 = math.exp %673 : vector<2x16xf32>
    %cst_131 = arith.constant dense<0.000000e+00> : vector<2xf32>
    %675 = vector.multi_reduction <add>, %674, %cst_131 [1] : vector<2x16xf32> to vector<2xf32>
    %676 = vector.shape_cast %675 : vector<2xf32> to vector<2x1xf32>
    %677 = vector.broadcast %676 : vector<2x1xf32> to vector<2x16xf32>
    %678 = arith.divf %674, %677 : vector<2x16xf32>
    %c7 = arith.constant 7 : index
    %c0_132 = arith.constant 0 : index
    %c0_133 = arith.constant 0 : index
    %679 = vector.load %arg10[%c7, %c0_132, %c0_133] : memref<8x2x16xf32, #tpu.memory_space<vmem>>, vector<1x2x16xf32>
    %680 = vector.shape_cast %679 : vector<1x2x16xf32> to vector<2x16xf32>
    %681 = vector.shape_cast %678 : vector<2x16xf32> to vector<1x2x16xf32>
    tpu.vector_store %arg10[%c7, %c0_132, %c0_133], %681 {strides = array<i32>} : memref<8x2x16xf32, #tpu.memory_space<vmem>>, vector<1x2x16xf32>,
    %682 = vector.shape_cast %678 : vector<2x16xf32> to vector<1x2x1x16xf32>
    %683 = vector.broadcast %682 : vector<1x2x1x16xf32> to vector<8x2x4x16xf32>
    %684 = arith.mulf %10, %683 : vector<8x2x4x16xf32>
    %cst_134 = arith.constant dense<0.000000e+00> : vector<8x2x4xf32>
    %685 = vector.multi_reduction <add>, %684, %cst_134 [3] : vector<8x2x4x16xf32> to vector<8x2x4xf32>
    %cst_135 = arith.constant dense<0xFF800000> : vector<8x2xf32>
    %686 = vector.multi_reduction <maximumf>, %685, %cst_135 [2] : vector<8x2x4xf32> to vector<8x2xf32>
    %687 = vector.shape_cast %686 : vector<8x2xf32> to vector<8x2x1xf32>
    %688 = vector.broadcast %687 : vector<8x2x1xf32> to vector<8x2x4xf32>
    %689 = arith.subf %685, %688 : vector<8x2x4xf32>
    %690 = math.exp %689 : vector<8x2x4xf32>
    %cst_136 = arith.constant dense<0.000000e+00> : vector<8x2xf32>
    %691 = vector.multi_reduction <add>, %690, %cst_136 [2] : vector<8x2x4xf32> to vector<8x2xf32>
    %692 = vector.shape_cast %691 : vector<8x2xf32> to vector<8x2x1xf32>
    %693 = vector.broadcast %692 : vector<8x2x1xf32> to vector<8x2x4xf32>
    %694 = arith.divf %690, %693 : vector<8x2x4xf32>
    %695 = vector.extract_strided_slice %694 {offsets = [0, 0, 0], sizes = [1, 2, 4], strides = [1, 1, 1]} : vector<8x2x4xf32> to vector<1x2x4xf32>
    %696 = vector.shape_cast %695 : vector<1x2x4xf32> to vector<2x4xf32>
    %697 = vector.broadcast %64 : vector<2x1xf32> to vector<2x4xf32>
    %698 = arith.mulf %696, %697 : vector<2x4xf32>
    %699 = vector.extract_strided_slice %694 {offsets = [1, 0, 0], sizes = [1, 2, 4], strides = [1, 1, 1]} : vector<8x2x4xf32> to vector<1x2x4xf32>
    %700 = vector.shape_cast %699 : vector<1x2x4xf32> to vector<2x4xf32>
    %701 = vector.broadcast %65 : vector<2x1xf32> to vector<2x4xf32>
    %702 = arith.mulf %700, %701 : vector<2x4xf32>
    %703 = arith.addf %698, %702 : vector<2x4xf32>
    %704 = vector.extract_strided_slice %694 {offsets = [2, 0, 0], sizes = [1, 2, 4], strides = [1, 1, 1]} : vector<8x2x4xf32> to vector<1x2x4xf32>
    %705 = vector.shape_cast %704 : vector<1x2x4xf32> to vector<2x4xf32>
    %706 = vector.broadcast %66 : vector<2x1xf32> to vector<2x4xf32>
    %707 = arith.mulf %705, %706 : vector<2x4xf32>
    %708 = arith.addf %703, %707 : vector<2x4xf32>
    %709 = vector.extract_strided_slice %694 {offsets = [3, 0, 0], sizes = [1, 2, 4], strides = [1, 1, 1]} : vector<8x2x4xf32> to vector<1x2x4xf32>
    %710 = vector.shape_cast %709 : vector<1x2x4xf32> to vector<2x4xf32>
    %711 = vector.broadcast %67 : vector<2x1xf32> to vector<2x4xf32>
    %712 = arith.mulf %710, %711 : vector<2x4xf32>
    %713 = arith.addf %708, %712 : vector<2x4xf32>
    %714 = vector.extract_strided_slice %694 {offsets = [4, 0, 0], sizes = [1, 2, 4], strides = [1, 1, 1]} : vector<8x2x4xf32> to vector<1x2x4xf32>
    %715 = vector.shape_cast %714 : vector<1x2x4xf32> to vector<2x4xf32>
    %716 = vector.broadcast %68 : vector<2x1xf32> to vector<2x4xf32>
    %717 = arith.mulf %715, %716 : vector<2x4xf32>
    %718 = arith.addf %713, %717 : vector<2x4xf32>
    %719 = vector.extract_strided_slice %694 {offsets = [5, 0, 0], sizes = [1, 2, 4], strides = [1, 1, 1]} : vector<8x2x4xf32> to vector<1x2x4xf32>
    %720 = vector.shape_cast %719 : vector<1x2x4xf32> to vector<2x4xf32>
    %721 = vector.broadcast %69 : vector<2x1xf32> to vector<2x4xf32>
    %722 = arith.mulf %720, %721 : vector<2x4xf32>
    %723 = arith.addf %718, %722 : vector<2x4xf32>
    %724 = vector.extract_strided_slice %694 {offsets = [6, 0, 0], sizes = [1, 2, 4], strides = [1, 1, 1]} : vector<8x2x4xf32> to vector<1x2x4xf32>
    %725 = vector.shape_cast %724 : vector<1x2x4xf32> to vector<2x4xf32>
    %726 = vector.broadcast %70 : vector<2x1xf32> to vector<2x4xf32>
    %727 = arith.mulf %725, %726 : vector<2x4xf32>
    %728 = arith.addf %723, %727 : vector<2x4xf32>
    %729 = vector.extract_strided_slice %694 {offsets = [7, 0, 0], sizes = [1, 2, 4], strides = [1, 1, 1]} : vector<8x2x4xf32> to vector<1x2x4xf32>
    %730 = vector.shape_cast %729 : vector<1x2x4xf32> to vector<2x4xf32>
    %731 = vector.broadcast %71 : vector<2x1xf32> to vector<2x4xf32>
    %732 = arith.mulf %730, %731 : vector<2x4xf32>
    %733 = arith.addf %728, %732 : vector<2x4xf32>
    %c7_137 = arith.constant 7 : index
    %c0_138 = arith.constant 0 : index
    %c0_139 = arith.constant 0 : index
    %734 = vector.load %arg11[%c7_137, %c0_138, %c0_139] : memref<8x2x4xf32, #tpu.memory_space<vmem>>, vector<1x2x4xf32>
    %735 = vector.shape_cast %734 : vector<1x2x4xf32> to vector<2x4xf32>
    %736 = vector.shape_cast %733 : vector<2x4xf32> to vector<1x2x4xf32>
    tpu.vector_store %arg11[%c7_137, %c0_138, %c0_139], %736 {strides = array<i32>} : memref<8x2x4xf32, #tpu.memory_space<vmem>>, vector<1x2x4xf32>,
    return
  }
}

</mosaic_0001>

<llo_original>
// kernel: hyper_qmdp_forward.1
$region0: #{hyper_qmdp_forward.1}
  #allocation0 [shape = 'u32[]', space=smem, size = 0x4, offset = 0x4, fixed_abs, tag = 'smem constant byte address 0x4 - core index']
  #allocation1 [shape = 'u32[72,128]{1,0:T(1,128)}', space=vmem, size = 0x9000, scoped, tag = 'internal scratch']
  #allocation2 [shape = 'f32[1,1]{1,0:T(1,128)S(1)}', space=vmem, size = 0x200, scoped, tag = 'scoped memory for hyper_qmdp_forward.1']
  %s0 = inlined_call_operand.vmem [shape: f32[8,2,16], index: 0, kind: input, shape index: {}]
  %s1 = inlined_call_operand.vmem [shape: f32[8,2,4], index: 1, kind: input, shape index: {}]
  %s2 = inlined_call_operand.vmem [shape: f32[8,2,4,16], index: 2, kind: input, shape index: {}]
  %s3 = inlined_call_operand.vmem [shape: f32[2,32], index: 3, kind: input, shape index: {}]
  %s4 = inlined_call_operand.vmem [shape: f32[2,16], index: 4, kind: input, shape index: {}]
  %s5 = inlined_call_operand.vmem [shape: f32[2,4,16,16], index: 5, kind: input, shape index: {}]
  %s6 = inlined_call_operand.<no memory space> [shape: f32[1,1], index: 6, kind: input, shape index: {}]
  %s7 = inlined_call_operand.vmem [shape: f32[1,32], index: 7, kind: input, shape index: {}]
  %s8 = inlined_call_operand.vmem [shape: f32[1,8], index: 8, kind: input, shape index: {}]
  %s9 = inlined_call_operand.vmem [shape: f32[1,8], index: 9, kind: input, shape index: {}]
  %s10 = inlined_call_operand.hbm [shape: f32[8,2,16], index: 10, kind: output, shape index: {0}]
  %s11 = inlined_call_operand.vmem [shape: f32[8,2,4], index: 11, kind: output, shape index: {1}]
  %12 = xla_tuple %s10, %s11
  %s13 = sld [smem:[#allocation0]]
  $region58: #{hyper_qmdp_forward.1} parent=0
    _
  %s15 = ssub.s32 1, %s13
  %s16 = scalar_select 0, %s15, %s13
  %v17 = vstv %s6
  %18 = vst [vmem:[#allocation2] sm:$0x1] %v17
  $region1: #{hyper_qmdp_forward.1} parent=0
    #allocation3 [shape = 'u8[8192]{0}', space=vmem, size = 0x2000, scoped, tag = 'output window, operand 0, single buffered']
    #allocation4 [shape = 's32[1]{0}', space=sflag, size = 0x4, scoped, tag = 'scoped memory for hyper_qmdp_forward.1']
    %19 = vsyncpa [#allocation4], 0
    // Predicated region
    $region2: #{hyper_qmdp_forward.1} parent=1 // pred_check
      _
    $region3: #{hyper_qmdp_forward.1} parent=1 // pred_check_branch
      %21 = sbr.rel (0) target = $region5
    $region4: #{hyper_qmdp_forward.1} parent=1 // pred_region
      _
    $region5: #{hyper_qmdp_forward.1} parent=1 // pred_fallthru
      _
    // Predicated region
    $region6: #{hyper_qmdp_forward.1} parent=1 // pred_check
      _
    $region7: #{hyper_qmdp_forward.1} parent=1 // pred_check_branch
      %23 = sbr.rel (0) target = $region9
    $region8: #{hyper_qmdp_forward.1} parent=1 // pred_region
      _
    $region9: #{hyper_qmdp_forward.1} parent=1 // pred_fallthru
      _
    // Predicated region
    $region10: #{hyper_qmdp_forward.1} parent=1 // pred_check
      _
    $region11: #{hyper_qmdp_forward.1} parent=1 // pred_check_branch
      %25 = sbr.rel (0) target = $region13
    $region12: #{hyper_qmdp_forward.1} parent=1 // pred_region
      _
    $region13: #{hyper_qmdp_forward.1} parent=1 // pred_fallthru
      _
    // Predicated region
    $region14: #{hyper_qmdp_forward.1} parent=1 // pred_check
      _
    $region15: #{hyper_qmdp_forward.1} parent=1 // pred_check_branch
      %27 = sbr.rel (0) target = $region17
    $region16: #{hyper_qmdp_forward.1} parent=1 // pred_region
      _
    $region17: #{hyper_qmdp_forward.1} parent=1 // pred_fallthru
      _
    // Predicated region
    $region18: #{hyper_qmdp_forward.1} parent=1 // pred_check
      _
    $region19: #{hyper_qmdp_forward.1} parent=1 // pred_check_branch
      %29 = sbr.rel (0) target = $region21
    $region20: #{hyper_qmdp_forward.1} parent=1 // pred_region
      _
    $region21: #{hyper_qmdp_forward.1} parent=1 // pred_fallthru
      _
    // Predicated region
    $region22: #{hyper_qmdp_forward.1} parent=1 // pred_check
      _
    $region23: #{hyper_qmdp_forward.1} parent=1 // pred_check_branch
      %31 = sbr.rel (0) target = $region25
    $region24: #{hyper_qmdp_forward.1} parent=1 // pred_region
      _
    $region25: #{hyper_qmdp_forward.1} parent=1 // pred_fallthru
      _
    // Predicated region
    $region26: #{hyper_qmdp_forward.1} parent=1 // pred_check
      _
    $region27: #{hyper_qmdp_forward.1} parent=1 // pred_check_branch
      %33 = sbr.rel (0) target = $region29
    $region28: #{hyper_qmdp_forward.1} parent=1 // pred_region
      _
    $region29: #{hyper_qmdp_forward.1} parent=1 // pred_fallthru
      _
    // Predicated region
    $region30: #{hyper_qmdp_forward.1} parent=1 // pred_check
      _
    $region31: #{hyper_qmdp_forward.1} parent=1 // pred_check_branch
      %35 = sbr.rel (0) target = $region33
    $region32: #{hyper_qmdp_forward.1} parent=1 // pred_region
      _
    $region33: #{hyper_qmdp_forward.1} parent=1 // pred_fallthru
      _
    // Predicated region
    $region34: #{hyper_qmdp_forward.1} parent=1 // pred_check
      _
    $region35: #{hyper_qmdp_forward.1} parent=1 // pred_check_branch
      %37 = sbr.rel (0) target = $region37
    $region36: #{hyper_qmdp_forward.1} parent=1 // pred_region
      _
    $region37: #{hyper_qmdp_forward.1} parent=1 // pred_fallthru
      _
    // Predicated region
    $region38: #{hyper_qmdp_forward.1} parent=1 // pred_check
      _
    $region39: #{hyper_qmdp_forward.1} parent=1 // pred_check_branch
      %39 = sbr.rel (0) target = $region41
    $region40: #{hyper_qmdp_forward.1} parent=1 // pred_region
      _
    $region41: #{hyper_qmdp_forward.1} parent=1 // pred_fallthru
      _
    %v40 = vld [vmem:[%s5] sm:$0xff]
    %v41 = vld [vmem:[%s5 + $0x8] sm:$0xff]
    %v42 = vld [vmem:[%s5 + $0x10] sm:$0xff]
    %v43 = vld [vmem:[%s5 + $0x18] sm:$0xff]
    %v44 = vld [vmem:[%s5 + $0x20] sm:$0xff]
    %v45 = vld [vmem:[%s5 + $0x28] sm:$0xff]
    %v46 = vld [vmem:[%s5 + $0x30] sm:$0xff]
    %v47 = vld [vmem:[%s5 + $0x38] sm:$0xff]
    %v48 = vld [vmem:[%s5 + $0x40] sm:$0xff]
    %v49 = vld [vmem:[%s5 + $0x48] sm:$0xff]
    %v50 = vld [vmem:[%s5 + $0x50] sm:$0xff]
    %v51 = vld [vmem:[%s5 + $0x58] sm:$0xff]
    %v52 = vld [vmem:[%s5 + $0x60] sm:$0xff]
    %v53 = vld [vmem:[%s5 + $0x68] sm:$0xff]
    %v54 = vld [vmem:[%s5 + $0x70] sm:$0xff]
    %v55 = vld [vmem:[%s5 + $0x78] sm:$0xff]
    %vm56 = vcmask 130048
    %v57 = vsel %vm56, %v40, -inf
    %58 = vmax.xlane.f32.xlu0 %v57
    %v59 = vpop.xlane.xlu0 %58
    %v60 = vsel %vm56, %v41, -inf
    %61 = vmax.xlane.f32.xlu0 %v60
    %v62 = vpop.xlane.xlu0 %61
    %v63 = vsel %vm56, %v42, -inf
    %64 = vmax.xlane.f32.xlu0 %v63
    %v65 = vpop.xlane.xlu0 %64
    %v66 = vsel %vm56, %v43, -inf
    %67 = vmax.xlane.f32.xlu0 %v66
    %v68 = vpop.xlane.xlu0 %67
    %v69 = vsel %vm56, %v44, -inf
    %70 = vmax.xlane.f32.xlu0 %v69
    %v71 = vpop.xlane.xlu0 %70
    %v72 = vsel %vm56, %v45, -inf
    %73 = vmax.xlane.f32.xlu0 %v72
    %v74 = vpop.xlane.xlu0 %73
    %v75 = vsel %vm56, %v46, -inf
    %76 = vmax.xlane.f32.xlu0 %v75
    %v77 = vpop.xlane.xlu0 %76
    %v78 = vsel %vm56, %v47, -inf
    %79 = vmax.xlane.f32.xlu0 %v78
    %v80 = vpop.xlane.xlu0 %79
    %v81 = vsel %vm56, %v48, -inf
    %82 = vmax.xlane.f32.xlu0 %v81
    %v83 = vpop.xlane.xlu0 %82
    %v84 = vsel %vm56, %v49, -inf
    %85 = vmax.xlane.f32.xlu0 %v84
    %v86 = vpop.xlane.xlu0 %85
    %v87 = vsel %vm56, %v50, -inf
    %88 = vmax.xlane.f32.xlu0 %v87
    %v89 = vpop.xlane.xlu0 %88
    %v90 = vsel %vm56, %v51, -inf
    %91 = vmax.xlane.f32.xlu0 %v90
    %v92 = vpop.xlane.xlu0 %91
    %v93 = vsel %vm56, %v52, -inf
    %94 = vmax.xlane.f32.xlu0 %v93
    %v95 = vpop.xlane.xlu0 %94
    %v96 = vsel %vm56, %v53, -inf
    %97 = vmax.xlane.f32.xlu0 %v96
    %v98 = vpop.xlane.xlu0 %97
    %v99 = vsel %vm56, %v54, -inf
    %100 = vmax.xlane.f32.xlu0 %v99
    %v101 = vpop.xlane.xlu0 %100
    %v102 = vsel %vm56, %v55, -inf
    %103 = vmax.xlane.f32.xlu0 %v102
    %v104 = vpop.xlane.xlu0 %103
    %v105 = vsub.f32 %v40, %v59
    %v106 = vsub.f32 %v41, %v62
    %v107 = vsub.f32 %v42, %v65
    %v108 = vsub.f32 %v43, %v68
    %v109 = vsub.f32 %v44, %v71
    %v110 = vsub.f32 %v45, %v74
    %v111 = vsub.f32 %v46, %v77
    %v112 = vsub.f32 %v47, %v80
    %v113 = vsub.f32 %v48, %v83
    %v114 = vsub.f32 %v49, %v86
    %v115 = vsub.f32 %v50, %v89
    %v116 = vsub.f32 %v51, %v92
    %v117 = vsub.f32 %v52, %v95
    %v118 = vsub.f32 %v53, %v98
    %v119 = vsub.f32 %v54, %v101
    %v120 = vsub.f32 %v55, %v104
    %v121 = vmul.f32 %v105, 1.442695
    %v122 = vpow.pop %v121
    %v123 = vmul.f32 %v106, 1.442695
    %v124 = vpow.pop %v123
    %v125 = vmul.f32 %v107, 1.442695
    %v126 = vpow.pop %v125
    %v127 = vmul.f32 %v108, 1.442695
    %v128 = vpow.pop %v127
    %v129 = vmul.f32 %v109, 1.442695
    %v130 = vpow.pop %v129
    %v131 = vmul.f32 %v110, 1.442695
    %v132 = vpow.pop %v131
    %v133 = vmul.f32 %v111, 1.442695
    %v134 = vpow.pop %v133
    %v135 = vmul.f32 %v112, 1.442695
    %v136 = vpow.pop %v135
    %v137 = vmul.f32 %v113, 1.442695
    %v138 = vpow.pop %v137
    %v139 = vmul.f32 %v114, 1.442695
    %v140 = vpow.pop %v139
    %v141 = vmul.f32 %v115, 1.442695
    %v142 = vpow.pop %v141
    %v143 = vmul.f32 %v116, 1.442695
    %v144 = vpow.pop %v143
    %v145 = vmul.f32 %v117, 1.442695
    %v146 = vpow.pop %v145
    %v147 = vmul.f32 %v118, 1.442695
    %v148 = vpow.pop %v147
    %v149 = vmul.f32 %v119, 1.442695
    %v150 = vpow.pop %v149
    %v151 = vmul.f32 %v120, 1.442695
    %v152 = vpow.pop %v151
    %v153 = vsel %vm56, %v122, 0.0
    %154 = vadd.xlane.f32.xlu0 %v153
    %v155 = vpop.xlane.xlu0 %154
    %v156 = vsel %vm56, %v124, 0.0
    %157 = vadd.xlane.f32.xlu0 %v156
    %v158 = vpop.xlane.xlu0 %157
    %v159 = vsel %vm56, %v126, 0.0
    %160 = vadd.xlane.f32.xlu0 %v159
    %v161 = vpop.xlane.xlu0 %160
    %v162 = vsel %vm56, %v128, 0.0
    %163 = vadd.xlane.f32.xlu0 %v162
    %v164 = vpop.xlane.xlu0 %163
    %v165 = vsel %vm56, %v130, 0.0
    %166 = vadd.xlane.f32.xlu0 %v165
    %v167 = vpop.xlane.xlu0 %166
    %v168 = vsel %vm56, %v132, 0.0
    %169 = vadd.xlane.f32.xlu0 %v168
    %v170 = vpop.xlane.xlu0 %169
    %v171 = vsel %vm56, %v134, 0.0
    %172 = vadd.xlane.f32.xlu0 %v171
    %v173 = vpop.xlane.xlu0 %172
    %v174 = vsel %vm56, %v136, 0.0
    %175 = vadd.xlane.f32.xlu0 %v174
    %v176 = vpop.xlane.xlu0 %175
    %v177 = vsel %vm56, %v138, 0.0
    %178 = vadd.xlane.f32.xlu0 %v177
    %v179 = vpop.xlane.xlu0 %178
    %v180 = vsel %vm56, %v140, 0.0
    %181 = vadd.xlane.f32.xlu0 %v180
    %v182 = vpop.xlane.xlu0 %181
    %v183 = vsel %vm56, %v142, 0.0
    %184 = vadd.xlane.f32.xlu0 %v183
    %v185 = vpop.xlane.xlu0 %184
    %v186 = vsel %vm56, %v144, 0.0
    %187 = vadd.xlane.f32.xlu0 %v186
    %v188 = vpop.xlane.xlu0 %187
    %v189 = vsel %vm56, %v146, 0.0
    %190 = vadd.xlane.f32.xlu0 %v189
    %v191 = vpop.xlane.xlu0 %190
    %v192 = vsel %vm56, %v148, 0.0
    %193 = vadd.xlane.f32.xlu0 %v192
    %v194 = vpop.xlane.xlu0 %193
    %v195 = vsel %vm56, %v150, 0.0
    %196 = vadd.xlane.f32.xlu0 %v195
    %v197 = vpop.xlane.xlu0 %196
    %v198 = vsel %vm56, %v152, 0.0
    %199 = vadd.xlane.f32.xlu0 %v198
    %v200 = vpop.xlane.xlu0 %199
    %v201 = vrcp.pop %v155
    %v202 = vmul.f32 %v155, %v201
    %v203 = vsub.f32 1.0, %v202
    %v204 = vmul.f32 %v201, %v203
    %v205 = vadd.f32 %v201, %v204
    %vm206 = vweird.f32 %v155
    %vm207 = vweird.f32 %v201
    %vm208 = vmor %vm206, %vm207
    %v209 = vsel %vm208, %v201, %v205
    %v210 = vand.u32 2147483647, %v155
    %vm211 = vcmp.eq.f32.partialorder %v210, 8.507059e+37
    %v212 = vand.u32 %v155, 2147483648
    %v213 = vor.u32 1.1754944e-38, %v212
    %v214 = vsel %vm211, %v213, %v209
    %v215 = vmul.f32 %v122, %v214
    %v216 = vrcp.pop %v158
    %v217 = vmul.f32 %v158, %v216
    %v218 = vsub.f32 1.0, %v217
    %v219 = vmul.f32 %v216, %v218
    %v220 = vadd.f32 %v216, %v219
    %vm221 = vweird.f32 %v158
    %vm222 = vweird.f32 %v216
    %vm223 = vmor %vm221, %vm222
    %v224 = vsel %vm223, %v216, %v220
    %v225 = vand.u32 2147483647, %v158
    %vm226 = vcmp.eq.f32.partialorder %v225, 8.507059e+37
    %v227 = vand.u32 %v158, 2147483648
    %v228 = vor.u32 1.1754944e-38, %v227
    %v229 = vsel %vm226, %v228, %v224
    %v230 = vmul.f32 %v124, %v229
    %v231 = vrcp.pop %v161
    %v232 = vmul.f32 %v161, %v231
    %v233 = vsub.f32 1.0, %v232
    %v234 = vmul.f32 %v231, %v233
    %v235 = vadd.f32 %v231, %v234
    %vm236 = vweird.f32 %v161
    %vm237 = vweird.f32 %v231
    %vm238 = vmor %vm236, %vm237
    %v239 = vsel %vm238, %v231, %v235
    %v240 = vand.u32 2147483647, %v161
    %vm241 = vcmp.eq.f32.partialorder %v240, 8.507059e+37
    %v242 = vand.u32 %v161, 2147483648
    %v243 = vor.u32 1.1754944e-38, %v242
    %v244 = vsel %vm241, %v243, %v239
    %v245 = vmul.f32 %v126, %v244
    %v246 = vrcp.pop %v164
    %v247 = vmul.f32 %v164, %v246
    %v248 = vsub.f32 1.0, %v247
    %v249 = vmul.f32 %v246, %v248
    %v250 = vadd.f32 %v246, %v249
    %vm251 = vweird.f32 %v164
    %vm252 = vweird.f32 %v246
    %vm253 = vmor %vm251, %vm252
    %v254 = vsel %vm253, %v246, %v250
    %v255 = vand.u32 2147483647, %v164
    %vm256 = vcmp.eq.f32.partialorder %v255, 8.507059e+37
    %v257 = vand.u32 %v164, 2147483648
    %v258 = vor.u32 1.1754944e-38, %v257
    %v259 = vsel %vm256, %v258, %v254
    %v260 = vmul.f32 %v128, %v259
    %v261 = vrcp.pop %v167
    %v262 = vmul.f32 %v167, %v261
    %v263 = vsub.f32 1.0, %v262
    %v264 = vmul.f32 %v261, %v263
    %v265 = vadd.f32 %v261, %v264
    %vm266 = vweird.f32 %v167
    %vm267 = vweird.f32 %v261
    %vm268 = vmor %vm266, %vm267
    %v269 = vsel %vm268, %v261, %v265
    %v270 = vand.u32 2147483647, %v167
    %vm271 = vcmp.eq.f32.partialorder %v270, 8.507059e+37
    %v272 = vand.u32 %v167, 2147483648
    %v273 = vor.u32 1.1754944e-38, %v272
    %v274 = vsel %vm271, %v273, %v269
    %v275 = vmul.f32 %v130, %v274
    %v276 = vrcp.pop %v170
    %v277 = vmul.f32 %v170, %v276
    %v278 = vsub.f32 1.0, %v277
    %v279 = vmul.f32 %v276, %v278
    %v280 = vadd.f32 %v276, %v279
    %vm281 = vweird.f32 %v170
    %vm282 = vweird.f32 %v276
    %vm283 = vmor %vm281, %vm282
    %v284 = vsel %vm283, %v276, %v280
    %v285 = vand.u32 2147483647, %v170
    %vm286 = vcmp.eq.f32.partialorder %v285, 8.507059e+37
    %v287 = vand.u32 %v170, 2147483648
    %v288 = vor.u32 1.1754944e-38, %v287
    %v289 = vsel %vm286, %v288, %v284
    %v290 = vmul.f32 %v132, %v289
    %v291 = vrcp.pop %v173
    %v292 = vmul.f32 %v173, %v291
    %v293 = vsub.f32 1.0, %v292
    %v294 = vmul.f32 %v291, %v293
    %v295 = vadd.f32 %v291, %v294
    %vm296 = vweird.f32 %v173
    %vm297 = vweird.f32 %v291
    %vm298 = vmor %vm296, %vm297
    %v299 = vsel %vm298, %v291, %v295
    %v300 = vand.u32 2147483647, %v173
    %vm301 = vcmp.eq.f32.partialorder %v300, 8.507059e+37
    %v302 = vand.u32 %v173, 2147483648
    %v303 = vor.u32 1.1754944e-38, %v302
    %v304 = vsel %vm301, %v303, %v299
    %v305 = vmul.f32 %v134, %v304
    %v306 = vrcp.pop %v176
    %v307 = vmul.f32 %v176, %v306
    %v308 = vsub.f32 1.0, %v307
    %v309 = vmul.f32 %v306, %v308
    %v310 = vadd.f32 %v306, %v309
    %vm311 = vweird.f32 %v176
    %vm312 = vweird.f32 %v306
    %vm313 = vmor %vm311, %vm312
    %v314 = vsel %vm313, %v306, %v310
    %v315 = vand.u32 2147483647, %v176
    %vm316 = vcmp.eq.f32.partialorder %v315, 8.507059e+37
    %v317 = vand.u32 %v176, 2147483648
    %v318 = vor.u32 1.1754944e-38, %v317
    %v319 = vsel %vm316, %v318, %v314
    %v320 = vmul.f32 %v136, %v319
    %v321 = vrcp.pop %v179
    %v322 = vmul.f32 %v179, %v321
    %v323 = vsub.f32 1.0, %v322
    %v324 = vmul.f32 %v321, %v323
    %v325 = vadd.f32 %v321, %v324
    %vm326 = vweird.f32 %v179
    %vm327 = vweird.f32 %v321
    %vm328 = vmor %vm326, %vm327
    %v329 = vsel %vm328, %v321, %v325
    %v330 = vand.u32 2147483647, %v179
    %vm331 = vcmp.eq.f32.partialorder %v330, 8.507059e+37
    %v332 = vand.u32 %v179, 2147483648
    %v333 = vor.u32 1.1754944e-38, %v332
    %v334 = vsel %vm331, %v333, %v329
    %v335 = vmul.f32 %v138, %v334
    %v336 = vrcp.pop %v182
    %v337 = vmul.f32 %v182, %v336
    %v338 = vsub.f32 1.0, %v337
    %v339 = vmul.f32 %v336, %v338
    %v340 = vadd.f32 %v336, %v339
    %vm341 = vweird.f32 %v182
    %vm342 = vweird.f32 %v336
    %vm343 = vmor %vm341, %vm342
    %v344 = vsel %vm343, %v336, %v340
    %v345 = vand.u32 2147483647, %v182
    %vm346 = vcmp.eq.f32.partialorder %v345, 8.507059e+37
    %v347 = vand.u32 %v182, 2147483648
    %v348 = vor.u32 1.1754944e-38, %v347
    %v349 = vsel %vm346, %v348, %v344
    %v350 = vmul.f32 %v140, %v349
    %v351 = vrcp.pop %v185
    %v352 = vmul.f32 %v185, %v351
    %v353 = vsub.f32 1.0, %v352
    %v354 = vmul.f32 %v351, %v353
    %v355 = vadd.f32 %v351, %v354
    %vm356 = vweird.f32 %v185
    %vm357 = vweird.f32 %v351
    %vm358 = vmor %vm356, %vm357
    %v359 = vsel %vm358, %v351, %v355
    %v360 = vand.u32 2147483647, %v185
    %vm361 = vcmp.eq.f32.partialorder %v360, 8.507059e+37
    %v362 = vand.u32 %v185, 2147483648
    %v363 = vor.u32 1.1754944e-38, %v362
    %v364 = vsel %vm361, %v363, %v359
    %v365 = vmul.f32 %v142, %v364
    %v366 = vrcp.pop %v188
    %v367 = vmul.f32 %v188, %v366
    %v368 = vsub.f32 1.0, %v367
    %v369 = vmul.f32 %v366, %v368
    %v370 = vadd.f32 %v366, %v369
    %vm371 = vweird.f32 %v188
    %vm372 = vweird.f32 %v366
    %vm373 = vmor %vm371, %vm372
    %v374 = vsel %vm373, %v366, %v370
    %v375 = vand.u32 2147483647, %v188
    %vm376 = vcmp.eq.f32.partialorder %v375, 8.507059e+37
    %v377 = vand.u32 %v188, 2147483648
    %v378 = vor.u32 1.1754944e-38, %v377
    %v379 = vsel %vm376, %v378, %v374
    %v380 = vmul.f32 %v144, %v379
    %v381 = vrcp.pop %v191
    %v382 = vmul.f32 %v191, %v381
    %v383 = vsub.f32 1.0, %v382
    %v384 = vmul.f32 %v381, %v383
    %v385 = vadd.f32 %v381, %v384
    %vm386 = vweird.f32 %v191
    %vm387 = vweird.f32 %v381
    %vm388 = vmor %vm386, %vm387
    %v389 = vsel %vm388, %v381, %v385
    %v390 = vand.u32 2147483647, %v191
    %vm391 = vcmp.eq.f32.partialorder %v390, 8.507059e+37
    %v392 = vand.u32 %v191, 2147483648
    %v393 = vor.u32 1.1754944e-38, %v392
    %v394 = vsel %vm391, %v393, %v389
    %v395 = vmul.f32 %v146, %v394
    %v396 = vrcp.pop %v194
    %v397 = vmul.f32 %v194, %v396
    %v398 = vsub.f32 1.0, %v397
    %v399 = vmul.f32 %v396, %v398
    %v400 = vadd.f32 %v396, %v399
    %vm401 = vweird.f32 %v194
    %vm402 = vweird.f32 %v396
    %vm403 = vmor %vm401, %vm402
    %v404 = vsel %vm403, %v396, %v400
    %v405 = vand.u32 2147483647, %v194
    %vm406 = vcmp.eq.f32.partialorder %v405, 8.507059e+37
    %v407 = vand.u32 %v194, 2147483648
    %v408 = vor.u32 1.1754944e-38, %v407
    %v409 = vsel %vm406, %v408, %v404
    %v410 = vmul.f32 %v148, %v409
    %v411 = vrcp.pop %v197
    %v412 = vmul.f32 %v197, %v411
    %v413 = vsub.f32 1.0, %v412
    %v414 = vmul.f32 %v411, %v413
    %v415 = vadd.f32 %v411, %v414
    %vm416 = vweird.f32 %v197
    %vm417 = vweird.f32 %v411
    %vm418 = vmor %vm416, %vm417
    %v419 = vsel %vm418, %v411, %v415
    %v420 = vand.u32 2147483647, %v197
    %vm421 = vcmp.eq.f32.partialorder %v420, 8.507059e+37
    %v422 = vand.u32 %v197, 2147483648
    %v423 = vor.u32 1.1754944e-38, %v422
    %v424 = vsel %vm421, %v423, %v419
    %v425 = vmul.f32 %v150, %v424
    %v426 = vrcp.pop %v200
    %v427 = vmul.f32 %v200, %v426
    %v428 = vsub.f32 1.0, %v427
    %v429 = vmul.f32 %v426, %v428
    %v430 = vadd.f32 %v426, %v429
    %vm431 = vweird.f32 %v200
    %vm432 = vweird.f32 %v426
    %vm433 = vmor %vm431, %vm432
    %v434 = vsel %vm433, %v426, %v430
    %v435 = vand.u32 2147483647, %v200
    %vm436 = vcmp.eq.f32.partialorder %v435, 8.507059e+37
    %v437 = vand.u32 %v200, 2147483648
    %v438 = vor.u32 1.1754944e-38, %v437
    %v439 = vsel %vm436, %v438, %v434
    %v440 = vmul.f32 %v152, %v439
    %v441 = vld [vmem:[%s2] sm:$0xf]
    %v442 = vld [vmem:[%s2 + $0x4] sm:$0xf]
    %v443 = vld [vmem:[%s2 + $0x8] sm:$0xf]
    %v444 = vld [vmem:[%s2 + $0xc] sm:$0xf]
    %v445 = vld [vmem:[%s2 + $0x10] sm:$0xf]
    %v446 = vld [vmem:[%s2 + $0x14] sm:$0xf]
    %v447 = vld [vmem:[%s2 + $0x18] sm:$0xf]
    %v448 = vld [vmem:[%s2 + $0x1c] sm:$0xf]
    %v449 = vld [vmem:[%s2 + $0x20] sm:$0xf]
    %v450 = vld [vmem:[%s2 + $0x24] sm:$0xf]
    %v451 = vld [vmem:[%s2 + $0x28] sm:$0xf]
    %v452 = vld [vmem:[%s2 + $0x2c] sm:$0xf]
    %v453 = vld [vmem:[%s2 + $0x30] sm:$0xf]
    %v454 = vld [vmem:[%s2 + $0x34] sm:$0xf]
    %v455 = vld [vmem:[%s2 + $0x38] sm:$0xf]
    %v456 = vld [vmem:[%s2 + $0x3c] sm:$0xf]
    %v457 = vld [vmem:[%s0] sm:$0x3]
    %v458 = vld [vmem:[%s0 + $0x2] sm:$0x3]
    %v459 = vld [vmem:[%s0 + $0x4] sm:$0x3]
    %v460 = vld [vmem:[%s0 + $0x6] sm:$0x3]
    %v461 = vld [vmem:[%s0 + $0x8] sm:$0x3]
    %v462 = vld [vmem:[%s0 + $0xa] sm:$0x3]
    %v463 = vld [vmem:[%s0 + $0xc] sm:$0x3]
    %v464 = vld [vmem:[%s0 + $0xe] sm:$0x3]
    %v465 = vld [vmem:[%s1] sm:$0x3]
    %v466 = vld [vmem:[%s1 + $0x2] sm:$0x3]
    %v467 = vld [vmem:[%s1 + $0x4] sm:$0x3]
    %v468 = vld [vmem:[%s1 + $0x6] sm:$0x3]
    %v469 = vld [vmem:[%s1 + $0x8] sm:$0x3]
    %v470 = vld [vmem:[%s1 + $0xa] sm:$0x3]
    %v471 = vld [vmem:[%s1 + $0xc] sm:$0x3]
    %v472 = vld [vmem:[%s1 + $0xe] sm:$0x3]
    %vm473 = vcmask 25600
    %v474 = vsel %vm473, %v465, -inf
    %475 = vmax.xlane.f32.xlu0 %v474
    %v476 = vpop.xlane.xlu0 %475
    %v477 = vsel %vm473, %v466, -inf
    %478 = vmax.xlane.f32.xlu0 %v477
    %v479 = vpop.xlane.xlu0 %478
    %v480 = vsel %vm473, %v467, -inf
    %481 = vmax.xlane.f32.xlu0 %v480
    %v482 = vpop.xlane.xlu0 %481
    %v483 = vsel %vm473, %v468, -inf
    %484 = vmax.xlane.f32.xlu0 %v483
    %v485 = vpop.xlane.xlu0 %484
    %v486 = vsel %vm473, %v469, -inf
    %487 = vmax.xlane.f32.xlu0 %v486
    %v488 = vpop.xlane.xlu0 %487
    %v489 = vsel %vm473, %v470, -inf
    %490 = vmax.xlane.f32.xlu0 %v489
    %v491 = vpop.xlane.xlu0 %490
    %v492 = vsel %vm473, %v471, -inf
    %493 = vmax.xlane.f32.xlu0 %v492
    %v494 = vpop.xlane.xlu0 %493
    %v495 = vsel %vm473, %v472, -inf
    %496 = vmax.xlane.f32.xlu0 %v495
    %v497 = vpop.xlane.xlu0 %496
    %v498 = vsub.f32 %v465, %v476
    %v499 = vsub.f32 %v466, %v479
    %v500 = vsub.f32 %v467, %v482
    %v501 = vsub.f32 %v468, %v485
    %v502 = vsub.f32 %v469, %v488
    %v503 = vsub.f32 %v470, %v491
    %v504 = vsub.f32 %v471, %v494
    %v505 = vsub.f32 %v472, %v497
    %v506 = vmul.f32 %v498, 1.442695
    %v507 = vpow.pop %v506
    %v508 = vmul.f32 %v499, 1.442695
    %v509 = vpow.pop %v508
    %v510 = vmul.f32 %v500, 1.442695
    %v511 = vpow.pop %v510
    %v512 = vmul.f32 %v501, 1.442695
    %v513 = vpow.pop %v512
    %v514 = vmul.f32 %v502, 1.442695
    %v515 = vpow.pop %v514
    %v516 = vmul.f32 %v503, 1.442695
    %v517 = vpow.pop %v516
    %v518 = vmul.f32 %v504, 1.442695
    %v519 = vpow.pop %v518
    %v520 = vmul.f32 %v505, 1.442695
    %v521 = vpow.pop %v520
    %v522 = vsel %vm473, %v507, 0.0
    %523 = vadd.xlane.f32.xlu0 %v522
    %v524 = vpop.xlane.xlu0 %523
    %v525 = vsel %vm473, %v509, 0.0
    %526 = vadd.xlane.f32.xlu0 %v525
    %v527 = vpop.xlane.xlu0 %526
    %v528 = vsel %vm473, %v511, 0.0
    %529 = vadd.xlane.f32.xlu0 %v528
    %v530 = vpop.xlane.xlu0 %529
    %v531 = vsel %vm473, %v513, 0.0
    %532 = vadd.xlane.f32.xlu0 %v531
    %v533 = vpop.xlane.xlu0 %532
    %v534 = vsel %vm473, %v515, 0.0
    %535 = vadd.xlane.f32.xlu0 %v534
    %v536 = vpop.xlane.xlu0 %535
    %v537 = vsel %vm473, %v517, 0.0
    %538 = vadd.xlane.f32.xlu0 %v537
    %v539 = vpop.xlane.xlu0 %538
    %v540 = vsel %vm473, %v519, 0.0
    %541 = vadd.xlane.f32.xlu0 %v540
    %v542 = vpop.xlane.xlu0 %541
    %v543 = vsel %vm473, %v521, 0.0
    %544 = vadd.xlane.f32.xlu0 %v543
    %v545 = vpop.xlane.xlu0 %544
    %v546 = vrcp.pop %v524
    %v547 = vmul.f32 %v524, %v546
    %v548 = vsub.f32 1.0, %v547
    %v549 = vmul.f32 %v546, %v548
    %v550 = vadd.f32 %v546, %v549
    %vm551 = vweird.f32 %v524
    %vm552 = vweird.f32 %v546
    %vm553 = vmor %vm551, %vm552
    %v554 = vsel %vm553, %v546, %v550
    %v555 = vand.u32 2147483647, %v524
    %vm556 = vcmp.eq.f32.partialorder %v555, 8.507059e+37
    %v557 = vand.u32 %v524, 2147483648
    %v558 = vor.u32 1.1754944e-38, %v557
    %v559 = vsel %vm556, %v558, %v554
    %v560 = vmul.f32 %v507, %v559
    %v561 = vrcp.pop %v527
    %v562 = vmul.f32 %v527, %v561
    %v563 = vsub.f32 1.0, %v562
    %v564 = vmul.f32 %v561, %v563
    %v565 = vadd.f32 %v561, %v564
    %vm566 = vweird.f32 %v527
    %vm567 = vweird.f32 %v561
    %vm568 = vmor %vm566, %vm567
    %v569 = vsel %vm568, %v561, %v565
    %v570 = vand.u32 2147483647, %v527
    %vm571 = vcmp.eq.f32.partialorder %v570, 8.507059e+37
    %v572 = vand.u32 %v527, 2147483648
    %v573 = vor.u32 1.1754944e-38, %v572
    %v574 = vsel %vm571, %v573, %v569
    %v575 = vmul.f32 %v509, %v574
    %v576 = vrcp.pop %v530
    %v577 = vmul.f32 %v530, %v576
    %v578 = vsub.f32 1.0, %v577
    %v579 = vmul.f32 %v576, %v578
    %v580 = vadd.f32 %v576, %v579
    %vm581 = vweird.f32 %v530
    %vm582 = vweird.f32 %v576
    %vm583 = vmor %vm581, %vm582
    %v584 = vsel %vm583, %v576, %v580
    %v585 = vand.u32 2147483647, %v530
    %vm586 = vcmp.eq.f32.partialorder %v585, 8.507059e+37
    %v587 = vand.u32 %v530, 2147483648
    %v588 = vor.u32 1.1754944e-38, %v587
    %v589 = vsel %vm586, %v588, %v584
    %v590 = vmul.f32 %v511, %v589
    %v591 = vrcp.pop %v533
    %v592 = vmul.f32 %v533, %v591
    %v593 = vsub.f32 1.0, %v592
    %v594 = vmul.f32 %v591, %v593
    %v595 = vadd.f32 %v591, %v594
    %vm596 = vweird.f32 %v533
    %vm597 = vweird.f32 %v591
    %vm598 = vmor %vm596, %vm597
    %v599 = vsel %vm598, %v591, %v595
    %v600 = vand.u32 2147483647, %v533
    %vm601 = vcmp.eq.f32.partialorder %v600, 8.507059e+37
    %v602 = vand.u32 %v533, 2147483648
    %v603 = vor.u32 1.1754944e-38, %v602
    %v604 = vsel %vm601, %v603, %v599
    %v605 = vmul.f32 %v513, %v604
    %v606 = vrcp.pop %v536
    %v607 = vmul.f32 %v536, %v606
    %v608 = vsub.f32 1.0, %v607
    %v609 = vmul.f32 %v606, %v608
    %v610 = vadd.f32 %v606, %v609
    %vm611 = vweird.f32 %v536
    %vm612 = vweird.f32 %v606
    %vm613 = vmor %vm611, %vm612
    %v614 = vsel %vm613, %v606, %v610
    %v615 = vand.u32 2147483647, %v536
    %vm616 = vcmp.eq.f32.partialorder %v615, 8.507059e+37
    %v617 = vand.u32 %v536, 2147483648
    %v618 = vor.u32 1.1754944e-38, %v617
    %v619 = vsel %vm616, %v618, %v614
    %v620 = vmul.f32 %v515, %v619
    %v621 = vrcp.pop %v539
    %v622 = vmul.f32 %v539, %v621
    %v623 = vsub.f32 1.0, %v622
    %v624 = vmul.f32 %v621, %v623
    %v625 = vadd.f32 %v621, %v624
    %vm626 = vweird.f32 %v539
    %vm627 = vweird.f32 %v621
    %vm628 = vmor %vm626, %vm627
    %v629 = vsel %vm628, %v621, %v625
    %v630 = vand.u32 2147483647, %v539
    %vm631 = vcmp.eq.f32.partialorder %v630, 8.507059e+37
    %v632 = vand.u32 %v539, 2147483648
    %v633 = vor.u32 1.1754944e-38, %v632
    %v634 = vsel %vm631, %v633, %v629
    %v635 = vmul.f32 %v517, %v634
    %v636 = vrcp.pop %v542
    %v637 = vmul.f32 %v542, %v636
    %v638 = vsub.f32 1.0, %v637
    %v639 = vmul.f32 %v636, %v638
    %v640 = vadd.f32 %v636, %v639
    %vm641 = vweird.f32 %v542
    %vm642 = vweird.f32 %v636
    %vm643 = vmor %vm641, %vm642
    %v644 = vsel %vm643, %v636, %v640
    %v645 = vand.u32 2147483647, %v542
    %vm646 = vcmp.eq.f32.partialorder %v645, 8.507059e+37
    %v647 = vand.u32 %v542, 2147483648
    %v648 = vor.u32 1.1754944e-38, %v647
    %v649 = vsel %vm646, %v648, %v644
    %v650 = vmul.f32 %v519, %v649
    %v651 = vrcp.pop %v545
    %v652 = vmul.f32 %v545, %v651
    %v653 = vsub.f32 1.0, %v652
    %v654 = vmul.f32 %v651, %v653
    %v655 = vadd.f32 %v651, %v654
    %vm656 = vweird.f32 %v545
    %vm657 = vweird.f32 %v651
    %vm658 = vmor %vm656, %vm657
    %v659 = vsel %vm658, %v651, %v655
    %v660 = vand.u32 2147483647, %v545
    %vm661 = vcmp.eq.f32.partialorder %v660, 8.507059e+37
    %v662 = vand.u32 %v545, 2147483648
    %v663 = vor.u32 1.1754944e-38, %v662
    %v664 = vsel %vm661, %v663, %v659
    %v665 = vmul.f32 %v521, %v664
    %v666 = vld [vmem:[%s3] sm:$0x3]
    %v667 = vld [vmem:[#allocation2] sm:$0x1]
    %v668 = vld [vmem:[%s7] sm:$0x1]
    %v670 = vperm.slane %v668, 0
    %v672 = vmul.f32 %v666, %v670
    %vm673 = vcmask 254976
    %v674 = vsel %vm673, %v672, 0.0
    %675 = vadd.xlane.f32.xlu0 %v674
    %v676 = vpop.xlane.xlu0 %675
    %v678 = vperm.slane %v667, 0
    %v680 = vadd.f32 %v678, %v676
    %v681 = vmax.f32 %v680, 0.0
    %v682 = vsub.f32 %v680, %v681
    %v683 = vmul.f32 %v682, 1.442695
    %v684 = vpow.pop %v683
    %v685 = vsub.f32 0.0, %v681
    %v686 = vmul.f32 %v685, 1.442695
    %v687 = vpow.pop %v686
    %v688 = vadd.f32 %v684, %v687
    %v689 = vlog2.pop %v688
    %v690 = vmul.f32 %v689, 0.6931472
    %v691 = vadd.f32 %v681, %v690
    %v692 = vmax.f32 %v691, 1e-06
    %v693 = vmin.f32 %v692, 1000000.0
    %v694 = vld [vmem:[%s8] sm:$0x1]
    %v695 = vlog2.pop %v693
    %v696 = vmul.f32 %v695, 0.6931472
    %v698 = vperm.slane %v694, 0
    %701 = vset.pattern.permute.xlu0 0
    %702 = vperm.xlu0 %701, %v696
    %v703 = vpop.permute.xlu0 %702
    %v705 = vmul.f32 %v698, %v703
    %707 = vset.pattern.permute.xlu0 0
    %708 = vperm.xlu0 %707, %v693
    %v709 = vpop.permute.xlu0 %708
    %v711 = vsub.f32 %v705, %v709
    %v712 = vld [vmem:[%s9] sm:$0x1]
    %v714 = vperm.slane %v712, 0
    %v716 = vsub.f32 %v711, %v714
    %vm717 = vcmask 58368
    %v718 = vsel %vm717, %v716, -inf
    %719 = vmax.xlane.f32.xlu0 %v718
    %v720 = vpop.xlane.xlu0 %719
    %v721 = vsub.f32 %v716, %v720
    %v722 = vmul.f32 %v721, 1.442695
    %v723 = vpow.pop %v722
    %v724 = vsel %vm717, %v723, 0.0
    %725 = vadd.xlane.f32.xlu0 %v724
    %v726 = vpop.xlane.xlu0 %725
    %v727 = vrcp.pop %v726
    %v728 = vmul.f32 %v726, %v727
    %v729 = vsub.f32 1.0, %v728
    %v730 = vmul.f32 %v727, %v729
    %v731 = vadd.f32 %v727, %v730
    %vm732 = vweird.f32 %v726
    %vm733 = vweird.f32 %v727
    %vm734 = vmor %vm732, %vm733
    %v735 = vsel %vm734, %v727, %v731
    %v736 = vand.u32 2147483647, %v726
    %vm737 = vcmp.eq.f32.partialorder %v736, 8.507059e+37
    %v738 = vand.u32 %v726, 2147483648
    %v739 = vor.u32 1.1754944e-38, %v738
    %v740 = vsel %vm737, %v739, %v735
    %v741 = vmul.f32 %v723, %v740
    %v742 = vld [vmem:[%s4] sm:$0x3]
    %v743 = vperm.slane %v742, 0
    %v744 = vlaneseq
    %v745 = vshrl.u32 %v744, 7
    %747 = vset.pattern.permute.xlu0 %v745
    %748 = vperm.xlu0 %747, %v743
    %v749 = vpop.permute.xlu0 %748
    %v750 = vlaneseq
    %v751 = vshrl.u32 %v750, 7
    %v752 = vadd.s32 %v751, 8
    %753 = vset.pattern.permute.xlu0 %v752
    %754 = vperm.xlu0 %753, %v743
    %v755 = vpop.permute.xlu0 %754
    %v756 = vperm.slane %v742, 1
    %v757 = vlaneseq
    %v758 = vshrl.u32 %v757, 7
    %760 = vset.pattern.permute.xlu0 %v758
    %761 = vperm.xlu0 %760, %v756
    %v762 = vpop.permute.xlu0 %761
    %v763 = vlaneseq
    %v764 = vshrl.u32 %v763, 7
    %v765 = vadd.s32 %v764, 8
    %766 = vset.pattern.permute.xlu0 %v765
    %767 = vperm.xlu0 %766, %v756
    %v768 = vpop.permute.xlu0 %767
    %v769 = vmul.f32 %v215, %v749
    %v770 = vmul.f32 %v230, %v755
    %v771 = vmul.f32 %v245, %v749
    %v772 = vmul.f32 %v260, %v755
    %v773 = vmul.f32 %v275, %v749
    %v774 = vmul.f32 %v290, %v755
    %v775 = vmul.f32 %v305, %v749
    %v776 = vmul.f32 %v320, %v755
    %v777 = vmul.f32 %v335, %v762
    %v778 = vmul.f32 %v350, %v768
    %v779 = vmul.f32 %v365, %v762
    %v780 = vmul.f32 %v380, %v768
    %v781 = vmul.f32 %v395, %v762
    %v782 = vmul.f32 %v410, %v768
    %v783 = vmul.f32 %v425, %v762
    %v784 = vmul.f32 %v440, %v768
    %v785 = vsel %vm56, %v769, 0.0
    %v786 = vsel %vm56, %v770, 0.0
    %v787 = vadd.f32 %v785, %v786
    %v788 = vrot.slane %v787, 4
    %v789 = vadd.f32 %v787, %v788
    %v790 = vrot.slane %v789, 2
    %v791 = vadd.f32 %v789, %v790
    %v792 = vrot.slane %v791, 1
    %v793 = vadd.f32 %v791, %v792
    %v794 = vsel %vm56, %v771, 0.0
    %v795 = vsel %vm56, %v772, 0.0
    %v796 = vadd.f32 %v794, %v795
    %v797 = vrot.slane %v796, 4
    %v798 = vadd.f32 %v796, %v797
    %v799 = vrot.slane %v798, 2
    %v800 = vadd.f32 %v798, %v799
    %v801 = vrot.slane %v800, 1
    %v802 = vadd.f32 %v800, %v801
    %v803 = vsel %vm56, %v773, 0.0
    %v804 = vsel %vm56, %v774, 0.0
    %v805 = vadd.f32 %v803, %v804
    %v806 = vrot.slane %v805, 4
    %v807 = vadd.f32 %v805, %v806
    %v808 = vrot.slane %v807, 2
    %v809 = vadd.f32 %v807, %v808
    %v810 = vrot.slane %v809, 1
    %v811 = vadd.f32 %v809, %v810
    %v812 = vsel %vm56, %v775, 0.0
    %v813 = vsel %vm56, %v776, 0.0
    %v814 = vadd.f32 %v812, %v813
    %v815 = vrot.slane %v814, 4
    %v816 = vadd.f32 %v814, %v815
    %v817 = vrot.slane %v816, 2
    %v818 = vadd.f32 %v816, %v817
    %v819 = vrot.slane %v818, 1
    %v820 = vadd.f32 %v818, %v819
    %v821 = vsel %vm56, %v777, 0.0
    %v822 = vsel %vm56, %v778, 0.0
    %v823 = vadd.f32 %v821, %v822
    %v824 = vrot.slane %v823, 4
    %v825 = vadd.f32 %v823, %v824
    %v826 = vrot.slane %v825, 2
    %v827 = vadd.f32 %v825, %v826
    %v828 = vrot.slane %v827, 1
    %v829 = vadd.f32 %v827, %v828
    %v830 = vsel %vm56, %v779, 0.0
    %v831 = vsel %vm56, %v780, 0.0
    %v832 = vadd.f32 %v830, %v831
    %v833 = vrot.slane %v832, 4
    %v834 = vadd.f32 %v832, %v833
    %v835 = vrot.slane %v834, 2
    %v836 = vadd.f32 %v834, %v835
    %v837 = vrot.slane %v836, 1
    %v838 = vadd.f32 %v836, %v837
    %v839 = vsel %vm56, %v781, 0.0
    %v840 = vsel %vm56, %v782, 0.0
    %v841 = vadd.f32 %v839, %v840
    %v842 = vrot.slane %v841, 4
    %v843 = vadd.f32 %v841, %v842
    %v844 = vrot.slane %v843, 2
    %v845 = vadd.f32 %v843, %v844
    %v846 = vrot.slane %v845, 1
    %v847 = vadd.f32 %v845, %v846
    %v848 = vsel %vm56, %v783, 0.0
    %v849 = vsel %vm56, %v784, 0.0
    %v850 = vadd.f32 %v848, %v849
    %v851 = vrot.slane %v850, 4
    %v852 = vadd.f32 %v850, %v851
    %v853 = vrot.slane %v852, 2
    %v854 = vadd.f32 %v852, %v853
    %v855 = vrot.slane %v854, 1
    %v856 = vadd.f32 %v854, %v855
    %v857 = vperm.slane %v560, 0
    %v858 = vlaneseq
    %v859 = vshrl.u32 %v858, 7
    %861 = vset.pattern.permute.xlu0 %v859
    %862 = vperm.xlu0 %861, %v857
    %v863 = vpop.permute.xlu0 %862
    %v864 = vperm.slane %v560, 1
    %v865 = vlaneseq
    %v866 = vshrl.u32 %v865, 7
    %868 = vset.pattern.permute.xlu0 %v866
    %869 = vperm.xlu0 %868, %v864
    %v870 = vpop.permute.xlu0 %869
    %v873 = vrot.slane %v863, 1
    %v874 = vrot.slane %v863, 2
    %v875 = vrot.slane %v863, 3
    %v876 = vrot.slane %v870, 1
    %v877 = vrot.slane %v870, 2
    %v878 = vrot.slane %v870, 3
    %v887 = vmul.f32 %v793, %v863
    %v888 = vmul.f32 %v802, %v873
    %v889 = vmul.f32 %v811, %v874
    %v890 = vmul.f32 %v820, %v875
    %v891 = vmul.f32 %v829, %v870
    %v892 = vmul.f32 %v838, %v876
    %v893 = vmul.f32 %v847, %v877
    %v894 = vmul.f32 %v856, %v878
    %v903 = vrot.slane %v888, 7
    %vm904 = vcmask 1041409
    %v905 = vsel %vm904, %v903, %v887
    %v906 = vrot.slane %v889, 6
    %vm907 = vcmask 1042434
    %v908 = vsel %vm907, %v906, %v905
    %v909 = vrot.slane %v890, 5
    %vm910 = vcmask 1043459
    %v911 = vsel %vm910, %v909, %v908
    %v912 = vrot.slane %v892, 7
    %v913 = vsel %vm904, %v912, %v891
    %v914 = vrot.slane %v893, 6
    %v915 = vsel %vm907, %v914, %v913
    %v916 = vrot.slane %v894, 5
    %v917 = vsel %vm910, %v916, %v915
    %vm920 = vcmask 125952
    %v921 = vsel %vm920, %v911, 0.0
    %v922 = vrot.slane %v921, 4
    %v923 = vadd.f32 %v921, %v922
    %v924 = vrot.slane %v923, 2
    %v925 = vadd.f32 %v923, %v924
    %v926 = vrot.slane %v925, 1
    %v927 = vadd.f32 %v925, %v926
    %v928 = vsel %vm920, %v917, 0.0
    %v929 = vrot.slane %v928, 4
    %v930 = vadd.f32 %v928, %v929
    %v931 = vrot.slane %v930, 2
    %v932 = vadd.f32 %v930, %v931
    %v933 = vrot.slane %v932, 1
    %v934 = vadd.f32 %v932, %v933
    %v935 = vadd.f32 %v927, 1e-06
    %v936 = vadd.f32 %v934, 1e-06
    %v937 = vlog2.pop %v935
    %v938 = vmul.f32 %v937, 0.6931472
    %v939 = vlog2.pop %v936
    %v940 = vmul.f32 %v939, 0.6931472
    %v942 = vrot.slane %v457, 1
    %v945 = vadd.f32 %v938, %v457
    %v946 = vadd.f32 %v940, %v942
    %v949 = vrot.slane %v946, 7
    %v950 = vsel %vm904, %v949, %v945
    %vm952 = vcmask 123904
    %v953 = vsel %vm952, %v950, -inf
    %954 = vmax.xlane.f32.xlu0 %v953
    %v955 = vpop.xlane.xlu0 %954
    %v957 = vrot.slane %v955, 1
    %v960 = vsub.f32 %v945, %v955
    %v961 = vsub.f32 %v946, %v957
    %v962 = vmul.f32 %v960, 1.442695
    %v963 = vpow.pop %v962
    %v964 = vmul.f32 %v961, 1.442695
    %v965 = vpow.pop %v964
    %v968 = vrot.slane %v965, 7
    %v969 = vsel %vm904, %v968, %v963
    %v971 = vsel %vm952, %v969, 0.0
    %972 = vadd.xlane.f32.xlu0 %v971
    %v973 = vpop.xlane.xlu0 %972
    %v975 = vrot.slane %v973, 1
    %v978 = vrcp.pop %v973
    %v979 = vmul.f32 %v973, %v978
    %v980 = vsub.f32 1.0, %v979
    %v981 = vmul.f32 %v978, %v980
    %v982 = vadd.f32 %v978, %v981
    %vm983 = vweird.f32 %v973
    %vm984 = vweird.f32 %v978
    %vm985 = vmor %vm983, %vm984
    %v986 = vsel %vm985, %v978, %v982
    %v987 = vand.u32 2147483647, %v973
    %vm988 = vcmp.eq.f32.partialorder %v987, 8.507059e+37
    %v989 = vand.u32 %v973, 2147483648
    %v990 = vor.u32 1.1754944e-38, %v989
    %v991 = vsel %vm988, %v990, %v986
    %v992 = vmul.f32 %v963, %v991
    %v993 = vrcp.pop %v975
    %v994 = vmul.f32 %v975, %v993
    %v995 = vsub.f32 1.0, %v994
    %v996 = vmul.f32 %v993, %v995
    %v997 = vadd.f32 %v993, %v996
    %vm998 = vweird.f32 %v975
    %vm999 = vweird.f32 %v993
    %vm1000 = vmor %vm998, %vm999
    %v1001 = vsel %vm1000, %v993, %v997
    %v1002 = vand.u32 2147483647, %v975
    %vm1003 = vcmp.eq.f32.partialorder %v1002, 8.507059e+37
    %v1004 = vand.u32 %v975, 2147483648
    %v1005 = vor.u32 1.1754944e-38, %v1004
    %v1006 = vsel %vm1003, %v1005, %v1001
    %v1007 = vmul.f32 %v965, %v1006
    %v1010 = vrot.slane %v1007, 7
    %v1011 = vsel %vm904, %v1010, %v992
    %1013 = vst.msk [vmem:[#allocation3] sm:$0x3] %vm952, %v1011
    %v1014 = vperm.slane %v992, 0
    %v1015 = vperm.slane %v1007, 0
    %v1016 = vmul.f32 %v441, %v1014
    %v1017 = vmul.f32 %v442, %v1015
    %v1018 = vmul.f32 %v443, %v1014
    %v1019 = vmul.f32 %v444, %v1015
    %v1020 = vmul.f32 %v445, %v1014
    %v1021 = vmul.f32 %v446, %v1015
    %v1022 = vmul.f32 %v447, %v1014
    %v1023 = vmul.f32 %v448, %v1015
    %v1024 = vmul.f32 %v449, %v1014
    %v1025 = vmul.f32 %v450, %v1015
    %v1026 = vmul.f32 %v451, %v1014
    %v1027 = vmul.f32 %v452, %v1015
    %v1028 = vmul.f32 %v453, %v1014
    %v1029 = vmul.f32 %v454, %v1015
    %v1030 = vmul.f32 %v455, %v1014
    %v1031 = vmul.f32 %v456, %v1015
    %v1032 = vsel %vm920, %v1016, 0.0
    %1033 = vadd.xlane.f32.xlu0 %v1032
    %v1034 = vpop.xlane.xlu0 %1033
    %v1035 = vsel %vm920, %v1017, 0.0
    %1036 = vadd.xlane.f32.xlu0 %v1035
    %v1037 = vpop.xlane.xlu0 %1036
    %v1038 = vsel %vm920, %v1018, 0.0
    %1039 = vadd.xlane.f32.xlu0 %v1038
    %v1040 = vpop.xlane.xlu0 %1039
    %v1041 = vsel %vm920, %v1019, 0.0
    %1042 = vadd.xlane.f32.xlu0 %v1041
    %v1043 = vpop.xlane.xlu0 %1042
    %v1044 = vsel %vm920, %v1020, 0.0
    %1045 = vadd.xlane.f32.xlu0 %v1044
    %v1046 = vpop.xlane.xlu0 %1045
    %v1047 = vsel %vm920, %v1021, 0.0
    %1048 = vadd.xlane.f32.xlu0 %v1047
    %v1049 = vpop.xlane.xlu0 %1048
    %v1050 = vsel %vm920, %v1022, 0.0
    %1051 = vadd.xlane.f32.xlu0 %v1050
    %v1052 = vpop.xlane.xlu0 %1051
    %v1053 = vsel %vm920, %v1023, 0.0
    %1054 = vadd.xlane.f32.xlu0 %v1053
    %v1055 = vpop.xlane.xlu0 %1054
    %v1056 = vsel %vm920, %v1024, 0.0
    %1057 = vadd.xlane.f32.xlu0 %v1056
    %v1058 = vpop.xlane.xlu0 %1057
    %v1059 = vsel %vm920, %v1025, 0.0
    %1060 = vadd.xlane.f32.xlu0 %v1059
    %v1061 = vpop.xlane.xlu0 %1060
    %v1062 = vsel %vm920, %v1026, 0.0
    %1063 = vadd.xlane.f32.xlu0 %v1062
    %v1064 = vpop.xlane.xlu0 %1063
    %v1065 = vsel %vm920, %v1027, 0.0
    %1066 = vadd.xlane.f32.xlu0 %v1065
    %v1067 = vpop.xlane.xlu0 %1066
    %v1068 = vsel %vm920, %v1028, 0.0
    %1069 = vadd.xlane.f32.xlu0 %v1068
    %v1070 = vpop.xlane.xlu0 %1069
    %v1071 = vsel %vm920, %v1029, 0.0
    %1072 = vadd.xlane.f32.xlu0 %v1071
    %v1073 = vpop.xlane.xlu0 %1072
    %v1074 = vsel %vm920, %v1030, 0.0
    %1075 = vadd.xlane.f32.xlu0 %v1074
    %v1076 = vpop.xlane.xlu0 %1075
    %v1077 = vsel %vm920, %v1031, 0.0
    %1078 = vadd.xlane.f32.xlu0 %v1077
    %v1079 = vpop.xlane.xlu0 %1078
    %v1096 = vlaneseq
    %v1097 = vand.u32 %v1096, 127
    %v1098 = vperm.slane %v1034, %v1097
    %v1099 = vperm.slane %v1037, %v1097
    %v1100 = vperm.slane %v1040, %v1097
    %v1101 = vperm.slane %v1043, %v1097
    %v1102 = vperm.slane %v1046, %v1097
    %v1103 = vperm.slane %v1049, %v1097
    %v1104 = vperm.slane %v1052, %v1097
    %v1105 = vperm.slane %v1055, %v1097
    %v1106 = vperm.slane %v1058, %v1097
    %v1107 = vperm.slane %v1061, %v1097
    %v1108 = vperm.slane %v1064, %v1097
    %v1109 = vperm.slane %v1067, %v1097
    %v1110 = vperm.slane %v1070, %v1097
    %v1111 = vperm.slane %v1073, %v1097
    %v1112 = vperm.slane %v1076, %v1097
    %v1113 = vperm.slane %v1079, %v1097
    %v1114 = vsel %vm904, %v1099, %v1098
    %v1115 = vsel %vm904, %v1101, %v1100
    %v1116 = vsel %vm904, %v1103, %v1102
    %v1117 = vsel %vm904, %v1105, %v1104
    %v1118 = vsel %vm904, %v1107, %v1106
    %v1119 = vsel %vm904, %v1109, %v1108
    %v1120 = vsel %vm904, %v1111, %v1110
    %v1121 = vsel %vm904, %v1113, %v1112
    %v1130 = vsel %vm473, %v1114, -inf
    %1131 = vmax.xlane.f32.xlu0 %v1130
    %v1132 = vpop.xlane.xlu0 %1131
    %v1133 = vsel %vm473, %v1115, -inf
    %1134 = vmax.xlane.f32.xlu0 %v1133
    %v1135 = vpop.xlane.xlu0 %1134
    %v1136 = vsel %vm473, %v1116, -inf
    %1137 = vmax.xlane.f32.xlu0 %v1136
    %v1138 = vpop.xlane.xlu0 %1137
    %v1139 = vsel %vm473, %v1117, -inf
    %1140 = vmax.xlane.f32.xlu0 %v1139
    %v1141 = vpop.xlane.xlu0 %1140
    %v1142 = vsel %vm473, %v1118, -inf
    %1143 = vmax.xlane.f32.xlu0 %v1142
    %v1144 = vpop.xlane.xlu0 %1143
    %v1145 = vsel %vm473, %v1119, -inf
    %1146 = vmax.xlane.f32.xlu0 %v1145
    %v1147 = vpop.xlane.xlu0 %1146
    %v1148 = vsel %vm473, %v1120, -inf
    %1149 = vmax.xlane.f32.xlu0 %v1148
    %v1150 = vpop.xlane.xlu0 %1149
    %v1151 = vsel %vm473, %v1121, -inf
    %1152 = vmax.xlane.f32.xlu0 %v1151
    %v1153 = vpop.xlane.xlu0 %1152
    %v1162 = vperm.slane %v1132, 0
    %v1163 = vperm.slane %v1132, 1
    %v1164 = vperm.slane %v1135, 0
    %v1165 = vperm.slane %v1135, 1
    %v1166 = vperm.slane %v1138, 0
    %v1167 = vperm.slane %v1138, 1
    %v1168 = vperm.slane %v1141, 0
    %v1169 = vperm.slane %v1141, 1
    %v1170 = vperm.slane %v1144, 0
    %v1171 = vperm.slane %v1144, 1
    %v1172 = vperm.slane %v1147, 0
    %v1173 = vperm.slane %v1147, 1
    %v1174 = vperm.slane %v1150, 0
    %v1175 = vperm.slane %v1150, 1
    %v1176 = vperm.slane %v1153, 0
    %v1177 = vperm.slane %v1153, 1
    %v1194 = vsub.f32 %v1034, %v1162
    %v1195 = vsub.f32 %v1037, %v1163
    %v1196 = vsub.f32 %v1040, %v1164
    %v1197 = vsub.f32 %v1043, %v1165
    %v1198 = vsub.f32 %v1046, %v1166
    %v1199 = vsub.f32 %v1049, %v1167
    %v1200 = vsub.f32 %v1052, %v1168
    %v1201 = vsub.f32 %v1055, %v1169
    %v1202 = vsub.f32 %v1058, %v1170
    %v1203 = vsub.f32 %v1061, %v1171
    %v1204 = vsub.f32 %v1064, %v1172
    %v1205 = vsub.f32 %v1067, %v1173
    %v1206 = vsub.f32 %v1070, %v1174
    %v1207 = vsub.f32 %v1073, %v1175
    %v1208 = vsub.f32 %v1076, %v1176
    %v1209 = vsub.f32 %v1079, %v1177
    %v1210 = vmul.f32 %v1194, 1.442695
    %v1211 = vpow.pop %v1210
    %v1212 = vmul.f32 %v1195, 1.442695
    %v1213 = vpow.pop %v1212
    %v1214 = vmul.f32 %v1196, 1.442695
    %v1215 = vpow.pop %v1214
    %v1216 = vmul.f32 %v1197, 1.442695
    %v1217 = vpow.pop %v1216
    %v1218 = vmul.f32 %v1198, 1.442695
    %v1219 = vpow.pop %v1218
    %v1220 = vmul.f32 %v1199, 1.442695
    %v1221 = vpow.pop %v1220
    %v1222 = vmul.f32 %v1200, 1.442695
    %v1223 = vpow.pop %v1222
    %v1224 = vmul.f32 %v1201, 1.442695
    %v1225 = vpow.pop %v1224
    %v1226 = vmul.f32 %v1202, 1.442695
    %v1227 = vpow.pop %v1226
    %v1228 = vmul.f32 %v1203, 1.442695
    %v1229 = vpow.pop %v1228
    %v1230 = vmul.f32 %v1204, 1.442695
    %v1231 = vpow.pop %v1230
    %v1232 = vmul.f32 %v1205, 1.442695
    %v1233 = vpow.pop %v1232
    %v1234 = vmul.f32 %v1206, 1.442695
    %v1235 = vpow.pop %v1234
    %v1236 = vmul.f32 %v1207, 1.442695
    %v1237 = vpow.pop %v1236
    %v1238 = vmul.f32 %v1208, 1.442695
    %v1239 = vpow.pop %v1238
    %v1240 = vmul.f32 %v1209, 1.442695
    %v1241 = vpow.pop %v1240
    %1258 = vset.pattern.permute.xlu0 0
    %1259 = vperm.xlu0 %1258, %v1211
    %v1260 = vpop.permute.xlu0 %1259
    %1261 = vset.pattern.permute.xlu0 0
    %1262 = vperm.xlu0 %1261, %v1213
    %v1263 = vpop.permute.xlu0 %1262
    %1264 = vset.pattern.permute.xlu0 0
    %1265 = vperm.xlu0 %1264, %v1215
    %v1266 = vpop.permute.xlu0 %1265
    %1267 = vset.pattern.permute.xlu0 0
    %1268 = vperm.xlu0 %1267, %v1217
    %v1269 = vpop.permute.xlu0 %1268
    %1270 = vset.pattern.permute.xlu0 0
    %1271 = vperm.xlu0 %1270, %v1219
    %v1272 = vpop.permute.xlu0 %1271
    %1273 = vset.pattern.permute.xlu0 0
    %1274 = vperm.xlu0 %1273, %v1221
    %v1275 = vpop.permute.xlu0 %1274
    %1276 = vset.pattern.permute.xlu0 0
    %1277 = vperm.xlu0 %1276, %v1223
    %v1278 = vpop.permute.xlu0 %1277
    %1279 = vset.pattern.permute.xlu0 0
    %1280 = vperm.xlu0 %1279, %v1225
    %v1281 = vpop.permute.xlu0 %1280
    %1282 = vset.pattern.permute.xlu0 0
    %1283 = vperm.xlu0 %1282, %v1227
    %v1284 = vpop.permute.xlu0 %1283
    %1285 = vset.pattern.permute.xlu0 0
    %1286 = vperm.xlu0 %1285, %v1229
    %v1287 = vpop.permute.xlu0 %1286
    %1288 = vset.pattern.permute.xlu0 0
    %1289 = vperm.xlu0 %1288, %v1231
    %v1290 = vpop.permute.xlu0 %1289
    %1291 = vset.pattern.permute.xlu0 0
    %1292 = vperm.xlu0 %1291, %v1233
    %v1293 = vpop.permute.xlu0 %1292
    %1294 = vset.pattern.permute.xlu0 0
    %1295 = vperm.xlu0 %1294, %v1235
    %v1296 = vpop.permute.xlu0 %1295
    %1297 = vset.pattern.permute.xlu0 0
    %1298 = vperm.xlu0 %1297, %v1237
    %v1299 = vpop.permute.xlu0 %1298
    %1300 = vset.pattern.permute.xlu0 0
    %1301 = vperm.xlu0 %1300, %v1239
    %v1302 = vpop.permute.xlu0 %1301
    %1303 = vset.pattern.permute.xlu0 0
    %1304 = vperm.xlu0 %1303, %v1241
    %v1305 = vpop.permute.xlu0 %1304
    %v1306 = vperm.slane %v1260, %v1097
    %v1307 = vperm.slane %v1263, %v1097
    %v1308 = vperm.slane %v1266, %v1097
    %v1309 = vperm.slane %v1269, %v1097
    %v1310 = vperm.slane %v1272, %v1097
    %v1311 = vperm.slane %v1275, %v1097
    %v1312 = vperm.slane %v1278, %v1097
    %v1313 = vperm.slane %v1281, %v1097
    %v1314 = vperm.slane %v1284, %v1097
    %v1315 = vperm.slane %v1287, %v1097
    %v1316 = vperm.slane %v1290, %v1097
    %v1317 = vperm.slane %v1293, %v1097
    %v1318 = vperm.slane %v1296, %v1097
    %v1319 = vperm.slane %v1299, %v1097
    %v1320 = vperm.slane %v1302, %v1097
    %v1321 = vperm.slane %v1305, %v1097
    %v1322 = vsel %vm904, %v1307, %v1306
    %v1323 = vsel %vm904, %v1309, %v1308
    %v1324 = vsel %vm904, %v1311, %v1310
    %v1325 = vsel %vm904, %v1313, %v1312
    %v1326 = vsel %vm904, %v1315, %v1314
    %v1327 = vsel %vm904, %v1317, %v1316
    %v1328 = vsel %vm904, %v1319, %v1318
    %v1329 = vsel %vm904, %v1321, %v1320
    %v1338 = vsel %vm473, %v1322, 0.0
    %1339 = vadd.xlane.f32.xlu0 %v1338
    %v1340 = vpop.xlane.xlu0 %1339
    %v1341 = vsel %vm473, %v1323, 0.0
    %1342 = vadd.xlane.f32.xlu0 %v1341
    %v1343 = vpop.xlane.xlu0 %1342
    %v1344 = vsel %vm473, %v1324, 0.0
    %1345 = vadd.xlane.f32.xlu0 %v1344
    %v1346 = vpop.xlane.xlu0 %1345
    %v1347 = vsel %vm473, %v1325, 0.0
    %1348 = vadd.xlane.f32.xlu0 %v1347
    %v1349 = vpop.xlane.xlu0 %1348
    %v1350 = vsel %vm473, %v1326, 0.0
    %1351 = vadd.xlane.f32.xlu0 %v1350
    %v1352 = vpop.xlane.xlu0 %1351
    %v1353 = vsel %vm473, %v1327, 0.0
    %1354 = vadd.xlane.f32.xlu0 %v1353
    %v1355 = vpop.xlane.xlu0 %1354
    %v1356 = vsel %vm473, %v1328, 0.0
    %1357 = vadd.xlane.f32.xlu0 %v1356
    %v1358 = vpop.xlane.xlu0 %1357
    %v1359 = vsel %vm473, %v1329, 0.0
    %1360 = vadd.xlane.f32.xlu0 %v1359
    %v1361 = vpop.xlane.xlu0 %1360
    %v1370 = vperm.slane %v1340, 0
    %v1371 = vperm.slane %v1340, 1
    %v1372 = vperm.slane %v1343, 0
    %v1373 = vperm.slane %v1343, 1
    %v1374 = vperm.slane %v1346, 0
    %v1375 = vperm.slane %v1346, 1
    %v1376 = vperm.slane %v1349, 0
    %v1377 = vperm.slane %v1349, 1
    %v1378 = vperm.slane %v1352, 0
    %v1379 = vperm.slane %v1352, 1
    %v1380 = vperm.slane %v1355, 0
    %v1381 = vperm.slane %v1355, 1
    %v1382 = vperm.slane %v1358, 0
    %v1383 = vperm.slane %v1358, 1
    %v1384 = vperm.slane %v1361, 0
    %v1385 = vperm.slane %v1361, 1
    %v1402 = vrcp.pop %v1370
    %v1403 = vmul.f32 %v1370, %v1402
    %v1404 = vsub.f32 1.0, %v1403
    %v1405 = vmul.f32 %v1402, %v1404
    %v1406 = vadd.f32 %v1402, %v1405
    %vm1407 = vweird.f32 %v1370
    %vm1408 = vweird.f32 %v1402
    %vm1409 = vmor %vm1407, %vm1408
    %v1410 = vsel %vm1409, %v1402, %v1406
    %v1411 = vand.u32 2147483647, %v1370
    %vm1412 = vcmp.eq.f32.partialorder %v1411, 8.507059e+37
    %v1413 = vand.u32 %v1370, 2147483648
    %v1414 = vor.u32 1.1754944e-38, %v1413
    %v1415 = vsel %vm1412, %v1414, %v1410
    %v1416 = vmul.f32 %v1211, %v1415
    %v1417 = vrcp.pop %v1371
    %v1418 = vmul.f32 %v1371, %v1417
    %v1419 = vsub.f32 1.0, %v1418
    %v1420 = vmul.f32 %v1417, %v1419
    %v1421 = vadd.f32 %v1417, %v1420
    %vm1422 = vweird.f32 %v1371
    %vm1423 = vweird.f32 %v1417
    %vm1424 = vmor %vm1422, %vm1423
    %v1425 = vsel %vm1424, %v1417, %v1421
    %v1426 = vand.u32 2147483647, %v1371
    %vm1427 = vcmp.eq.f32.partialorder %v1426, 8.507059e+37
    %v1428 = vand.u32 %v1371, 2147483648
    %v1429 = vor.u32 1.1754944e-38, %v1428
    %v1430 = vsel %vm1427, %v1429, %v1425
    %v1431 = vmul.f32 %v1213, %v1430
    %v1432 = vrcp.pop %v1372
    %v1433 = vmul.f32 %v1372, %v1432
    %v1434 = vsub.f32 1.0, %v1433
    %v1435 = vmul.f32 %v1432, %v1434
    %v1436 = vadd.f32 %v1432, %v1435
    %vm1437 = vweird.f32 %v1372
    %vm1438 = vweird.f32 %v1432
    %vm1439 = vmor %vm1437, %vm1438
    %v1440 = vsel %vm1439, %v1432, %v1436
    %v1441 = vand.u32 2147483647, %v1372
    %vm1442 = vcmp.eq.f32.partialorder %v1441, 8.507059e+37
    %v1443 = vand.u32 %v1372, 2147483648
    %v1444 = vor.u32 1.1754944e-38, %v1443
    %v1445 = vsel %vm1442, %v1444, %v1440
    %v1446 = vmul.f32 %v1215, %v1445
    %v1447 = vrcp.pop %v1373
    %v1448 = vmul.f32 %v1373, %v1447
    %v1449 = vsub.f32 1.0, %v1448
    %v1450 = vmul.f32 %v1447, %v1449
    %v1451 = vadd.f32 %v1447, %v1450
    %vm1452 = vweird.f32 %v1373
    %vm1453 = vweird.f32 %v1447
    %vm1454 = vmor %vm1452, %vm1453
    %v1455 = vsel %vm1454, %v1447, %v1451
    %v1456 = vand.u32 2147483647, %v1373
    %vm1457 = vcmp.eq.f32.partialorder %v1456, 8.507059e+37
    %v1458 = vand.u32 %v1373, 2147483648
    %v1459 = vor.u32 1.1754944e-38, %v1458
    %v1460 = vsel %vm1457, %v1459, %v1455
    %v1461 = vmul.f32 %v1217, %v1460
    %v1462 = vrcp.pop %v1374
    %v1463 = vmul.f32 %v1374, %v1462
    %v1464 = vsub.f32 1.0, %v1463
    %v1465 = vmul.f32 %v1462, %v1464
    %v1466 = vadd.f32 %v1462, %v1465
    %vm1467 = vweird.f32 %v1374
    %vm1468 = vweird.f32 %v1462
    %vm1469 = vmor %vm1467, %vm1468
    %v1470 = vsel %vm1469, %v1462, %v1466
    %v1471 = vand.u32 2147483647, %v1374
    %vm1472 = vcmp.eq.f32.partialorder %v1471, 8.507059e+37
    %v1473 = vand.u32 %v1374, 2147483648
    %v1474 = vor.u32 1.1754944e-38, %v1473
    %v1475 = vsel %vm1472, %v1474, %v1470
    %v1476 = vmul.f32 %v1219, %v1475
    %v1477 = vrcp.pop %v1375
    %v1478 = vmul.f32 %v1375, %v1477
    %v1479 = vsub.f32 1.0, %v1478
    %v1480 = vmul.f32 %v1477, %v1479
    %v1481 = vadd.f32 %v1477, %v1480
    %vm1482 = vweird.f32 %v1375
    %vm1483 = vweird.f32 %v1477
    %vm1484 = vmor %vm1482, %vm1483
    %v1485 = vsel %vm1484, %v1477, %v1481
    %v1486 = vand.u32 2147483647, %v1375
    %vm1487 = vcmp.eq.f32.partialorder %v1486, 8.507059e+37
    %v1488 = vand.u32 %v1375, 2147483648
    %v1489 = vor.u32 1.1754944e-38, %v1488
    %v1490 = vsel %vm1487, %v1489, %v1485
    %v1491 = vmul.f32 %v1221, %v1490
    %v1492 = vrcp.pop %v1376
    %v1493 = vmul.f32 %v1376, %v1492
    %v1494 = vsub.f32 1.0, %v1493
    %v1495 = vmul.f32 %v1492, %v1494
    %v1496 = vadd.f32 %v1492, %v1495
    %vm1497 = vweird.f32 %v1376
    %vm1498 = vweird.f32 %v1492
    %vm1499 = vmor %vm1497, %vm1498
    %v1500 = vsel %vm1499, %v1492, %v1496
    %v1501 = vand.u32 2147483647, %v1376
    %vm1502 = vcmp.eq.f32.partialorder %v1501, 8.507059e+37
    %v1503 = vand.u32 %v1376, 2147483648
    %v1504 = vor.u32 1.1754944e-38, %v1503
    %v1505 = vsel %vm1502, %v1504, %v1500
    %v1506 = vmul.f32 %v1223, %v1505
    %v1507 = vrcp.pop %v1377
    %v1508 = vmul.f32 %v1377, %v1507
    %v1509 = vsub.f32 1.0, %v1508
    %v1510 = vmul.f32 %v1507, %v1509
    %v1511 = vadd.f32 %v1507, %v1510
    %vm1512 = vweird.f32 %v1377
    %vm1513 = vweird.f32 %v1507
    %vm1514 = vmor %vm1512, %vm1513
    %v1515 = vsel %vm1514, %v1507, %v1511
    %v1516 = vand.u32 2147483647, %v1377
    %vm1517 = vcmp.eq.f32.partialorder %v1516, 8.507059e+37
    %v1518 = vand.u32 %v1377, 2147483648
    %v1519 = vor.u32 1.1754944e-38, %v1518
    %v1520 = vsel %vm1517, %v1519, %v1515
    %v1521 = vmul.f32 %v1225, %v1520
    %v1522 = vrcp.pop %v1378
    %v1523 = vmul.f32 %v1378, %v1522
    %v1524 = vsub.f32 1.0, %v1523
    %v1525 = vmul.f32 %v1522, %v1524
    %v1526 = vadd.f32 %v1522, %v1525
    %vm1527 = vweird.f32 %v1378
    %vm1528 = vweird.f32 %v1522
    %vm1529 = vmor %vm1527, %vm1528
    %v1530 = vsel %vm1529, %v1522, %v1526
    %v1531 = vand.u32 2147483647, %v1378
    %vm1532 = vcmp.eq.f32.partialorder %v1531, 8.507059e+37
    %v1533 = vand.u32 %v1378, 2147483648
    %v1534 = vor.u32 1.1754944e-38, %v1533
    %v1535 = vsel %vm1532, %v1534, %v1530
    %v1536 = vmul.f32 %v1227, %v1535
    %v1537 = vrcp.pop %v1379
    %v1538 = vmul.f32 %v1379, %v1537
    %v1539 = vsub.f32 1.0, %v1538
    %v1540 = vmul.f32 %v1537, %v1539
    %v1541 = vadd.f32 %v1537, %v1540
    %vm1542 = vweird.f32 %v1379
    %vm1543 = vweird.f32 %v1537
    %vm1544 = vmor %vm1542, %vm1543
    %v1545 = vsel %vm1544, %v1537, %v1541
    %v1546 = vand.u32 2147483647, %v1379
    %vm1547 = vcmp.eq.f32.partialorder %v1546, 8.507059e+37
    %v1548 = vand.u32 %v1379, 2147483648
    %v1549 = vor.u32 1.1754944e-38, %v1548
    %v1550 = vsel %vm1547, %v1549, %v1545
    %v1551 = vmul.f32 %v1229, %v1550
    %v1552 = vrcp.pop %v1380
    %v1553 = vmul.f32 %v1380, %v1552
    %v1554 = vsub.f32 1.0, %v1553
    %v1555 = vmul.f32 %v1552, %v1554
    %v1556 = vadd.f32 %v1552, %v1555
    %vm1557 = vweird.f32 %v1380
    %vm1558 = vweird.f32 %v1552
    %vm1559 = vmor %vm1557, %vm1558
    %v1560 = vsel %vm1559, %v1552, %v1556
    %v1561 = vand.u32 2147483647, %v1380
    %vm1562 = vcmp.eq.f32.partialorder %v1561, 8.507059e+37
    %v1563 = vand.u32 %v1380, 2147483648
    %v1564 = vor.u32 1.1754944e-38, %v1563
    %v1565 = vsel %vm1562, %v1564, %v1560
    %v1566 = vmul.f32 %v1231, %v1565
    %v1567 = vrcp.pop %v1381
    %v1568 = vmul.f32 %v1381, %v1567
    %v1569 = vsub.f32 1.0, %v1568
    %v1570 = vmul.f32 %v1567, %v1569
    %v1571 = vadd.f32 %v1567, %v1570
    %vm1572 = vweird.f32 %v1381
    %vm1573 = vweird.f32 %v1567
    %vm1574 = vmor %vm1572, %vm1573
    %v1575 = vsel %vm1574, %v1567, %v1571
    %v1576 = vand.u32 2147483647, %v1381
    %vm1577 = vcmp.eq.f32.partialorder %v1576, 8.507059e+37
    %v1578 = vand.u32 %v1381, 2147483648
    %v1579 = vor.u32 1.1754944e-38, %v1578
    %v1580 = vsel %vm1577, %v1579, %v1575
    %v1581 = vmul.f32 %v1233, %v1580
    %v1582 = vrcp.pop %v1382
    %v1583 = vmul.f32 %v1382, %v1582
    %v1584 = vsub.f32 1.0, %v1583
    %v1585 = vmul.f32 %v1582, %v1584
    %v1586 = vadd.f32 %v1582, %v1585
    %vm1587 = vweird.f32 %v1382
    %vm1588 = vweird.f32 %v1582
    %vm1589 = vmor %vm1587, %vm1588
    %v1590 = vsel %vm1589, %v1582, %v1586
    %v1591 = vand.u32 2147483647, %v1382
    %vm1592 = vcmp.eq.f32.partialorder %v1591, 8.507059e+37
    %v1593 = vand.u32 %v1382, 2147483648
    %v1594 = vor.u32 1.1754944e-38, %v1593
    %v1595 = vsel %vm1592, %v1594, %v1590
    %v1596 = vmul.f32 %v1235, %v1595
    %v1597 = vrcp.pop %v1383
    %v1598 = vmul.f32 %v1383, %v1597
    %v1599 = vsub.f32 1.0, %v1598
    %v1600 = vmul.f32 %v1597, %v1599
    %v1601 = vadd.f32 %v1597, %v1600
    %vm1602 = vweird.f32 %v1383
    %vm1603 = vweird.f32 %v1597
    %vm1604 = vmor %vm1602, %vm1603
    %v1605 = vsel %vm1604, %v1597, %v1601
    %v1606 = vand.u32 2147483647, %v1383
    %vm1607 = vcmp.eq.f32.partialorder %v1606, 8.507059e+37
    %v1608 = vand.u32 %v1383, 2147483648
    %v1609 = vor.u32 1.1754944e-38, %v1608
    %v1610 = vsel %vm1607, %v1609, %v1605
    %v1611 = vmul.f32 %v1237, %v1610
    %v1612 = vrcp.pop %v1384
    %v1613 = vmul.f32 %v1384, %v1612
    %v1614 = vsub.f32 1.0, %v1613
    %v1615 = vmul.f32 %v1612, %v1614
    %v1616 = vadd.f32 %v1612, %v1615
    %vm1617 = vweird.f32 %v1384
    %vm1618 = vweird.f32 %v1612
    %vm1619 = vmor %vm1617, %vm1618
    %v1620 = vsel %vm1619, %v1612, %v1616
    %v1621 = vand.u32 2147483647, %v1384
    %vm1622 = vcmp.eq.f32.partialorder %v1621, 8.507059e+37
    %v1623 = vand.u32 %v1384, 2147483648
    %v1624 = vor.u32 1.1754944e-38, %v1623
    %v1625 = vsel %vm1622, %v1624, %v1620
    %v1626 = vmul.f32 %v1239, %v1625
    %v1627 = vrcp.pop %v1385
    %v1628 = vmul.f32 %v1385, %v1627
    %v1629 = vsub.f32 1.0, %v1628
    %v1630 = vmul.f32 %v1627, %v1629
    %v1631 = vadd.f32 %v1627, %v1630
    %vm1632 = vweird.f32 %v1385
    %vm1633 = vweird.f32 %v1627
    %vm1634 = vmor %vm1632, %vm1633
    %v1635 = vsel %vm1634, %v1627, %v1631
    %v1636 = vand.u32 2147483647, %v1385
    %vm1637 = vcmp.eq.f32.partialorder %v1636, 8.507059e+37
    %v1638 = vand.u32 %v1385, 2147483648
    %v1639 = vor.u32 1.1754944e-38, %v1638
    %v1640 = vsel %vm1637, %v1639, %v1635
    %v1641 = vmul.f32 %v1241, %v1640
    %1643 = vset.pattern.permute.xlu0 0
    %1644 = vperm.xlu0 %1643, %v741
    %v1645 = vpop.permute.xlu0 %1644
    %v1646 = vperm.slane %v1645, 0
    %v1647 = vperm.slane %v1645, 1
    %v1650 = vmul.f32 %v1416, %v1646
    %v1651 = vmul.f32 %v1431, %v1647
    %1652 = vset.pattern.permute.xlu0 1
    %1653 = vperm.xlu0 %1652, %v741
    %v1654 = vpop.permute.xlu0 %1653
    %v1655 = vperm.slane %v1654, 0
    %v1656 = vperm.slane %v1654, 1
    %v1659 = vmul.f32 %v1446, %v1655
    %v1660 = vmul.f32 %v1461, %v1656
    %v1661 = vadd.f32 %v1650, %v1659
    %v1662 = vadd.f32 %v1651, %v1660
    %1663 = vset.pattern.permute.xlu0 2
    %1664 = vperm.xlu0 %1663, %v741
    %v1665 = vpop.permute.xlu0 %1664
    %v1666 = vperm.slane %v1665, 0
    %v1667 = vperm.slane %v1665, 1
    %v1670 = vmul.f32 %v1476, %v1666
    %v1671 = vmul.f32 %v1491, %v1667
    %v1672 = vadd.f32 %v1661, %v1670
    %v1673 = vadd.f32 %v1662, %v1671
    %1674 = vset.pattern.permute.xlu0 3
    %1675 = vperm.xlu0 %1674, %v741
    %v1676 = vpop.permute.xlu0 %1675
    %v1677 = vperm.slane %v1676, 0
    %v1678 = vperm.slane %v1676, 1
    %v1681 = vmul.f32 %v1506, %v1677
    %v1682 = vmul.f32 %v1521, %v1678
    %v1683 = vadd.f32 %v1672, %v1681
    %v1684 = vadd.f32 %v1673, %v1682
    %1685 = vset.pattern.permute.xlu0 4
    %1686 = vperm.xlu0 %1685, %v741
    %v1687 = vpop.permute.xlu0 %1686
    %v1688 = vperm.slane %v1687, 0
    %v1689 = vperm.slane %v1687, 1
    %v1692 = vmul.f32 %v1536, %v1688
    %v1693 = vmul.f32 %v1551, %v1689
    %v1694 = vadd.f32 %v1683, %v1692
    %v1695 = vadd.f32 %v1684, %v1693
    %1696 = vset.pattern.permute.xlu0 5
    %1697 = vperm.xlu0 %1696, %v741
    %v1698 = vpop.permute.xlu0 %1697
    %v1699 = vperm.slane %v1698, 0
    %v1700 = vperm.slane %v1698, 1
    %v1703 = vmul.f32 %v1566, %v1699
    %v1704 = vmul.f32 %v1581, %v1700
    %v1705 = vadd.f32 %v1694, %v1703
    %v1706 = vadd.f32 %v1695, %v1704
    %1707 = vset.pattern.permute.xlu0 6
    %1708 = vperm.xlu0 %1707, %v741
    %v1709 = vpop.permute.xlu0 %1708
    %v1710 = vperm.slane %v1709, 0
    %v1711 = vperm.slane %v1709, 1
    %v1714 = vmul.f32 %v1596, %v1710
    %v1715 = vmul.f32 %v1611, %v1711
    %v1716 = vadd.f32 %v1705, %v1714
    %v1717 = vadd.f32 %v1706, %v1715
    %1718 = vset.pattern.permute.xlu0 7
    %1719 = vperm.xlu0 %1718, %v741
    %v1720 = vpop.permute.xlu0 %1719
    %v1721 = vperm.slane %v1720, 0
    %v1722 = vperm.slane %v1720, 1
    %v1725 = vmul.f32 %v1626, %v1721
    %v1726 = vmul.f32 %v1641, %v1722
    %v1727 = vadd.f32 %v1716, %v1725
    %v1728 = vadd.f32 %v1717, %v1726
    %1731 = vset.pattern.permute.xlu0 0
    %1732 = vperm.xlu0 %1731, %v1727
    %v1733 = vpop.permute.xlu0 %1732
    %1734 = vset.pattern.permute.xlu0 0
    %1735 = vperm.xlu0 %1734, %v1728
    %v1736 = vpop.permute.xlu0 %1735
    %v1737 = vperm.slane %v1733, %v1097
    %v1738 = vperm.slane %v1736, %v1097
    %v1739 = vsel %vm904, %v1738, %v1737
    %1741 = vst.msk [vmem:[%s11] sm:$0x3] %vm473, %v1739
    %v1742 = vlaneseq
    %v1743 = vshrl.u32 %v1742, 7
    %1745 = vset.pattern.permute.xlu0 %v1743
    %1746 = vperm.xlu0 %1745, %v1014
    %v1747 = vpop.permute.xlu0 %1746
    %v1748 = vlaneseq
    %v1749 = vshrl.u32 %v1748, 7
    %v1750 = vadd.s32 %v1749, 8
    %1751 = vset.pattern.permute.xlu0 %v1750
    %1752 = vperm.xlu0 %1751, %v1014
    %v1753 = vpop.permute.xlu0 %1752
    %v1754 = vlaneseq
    %v1755 = vshrl.u32 %v1754, 7
    %1757 = vset.pattern.permute.xlu0 %v1755
    %1758 = vperm.xlu0 %1757, %v1015
    %v1759 = vpop.permute.xlu0 %1758
    %v1760 = vlaneseq
    %v1761 = vshrl.u32 %v1760, 7
    %v1762 = vadd.s32 %v1761, 8
    %1763 = vset.pattern.permute.xlu0 %v1762
    %1764 = vperm.xlu0 %1763, %v1015
    %v1765 = vpop.permute.xlu0 %1764
    %v1766 = vmul.f32 %v215, %v1747
    %v1767 = vmul.f32 %v230, %v1753
    %v1768 = vmul.f32 %v245, %v1747
    %v1769 = vmul.f32 %v260, %v1753
    %v1770 = vmul.f32 %v275, %v1747
    %v1771 = vmul.f32 %v290, %v1753
    %v1772 = vmul.f32 %v305, %v1747
    %v1773 = vmul.f32 %v320, %v1753
    %v1774 = vmul.f32 %v335, %v1759
    %v1775 = vmul.f32 %v350, %v1765
    %v1776 = vmul.f32 %v365, %v1759
    %v1777 = vmul.f32 %v380, %v1765
    %v1778 = vmul.f32 %v395, %v1759
    %v1779 = vmul.f32 %v410, %v1765
    %v1780 = vmul.f32 %v425, %v1759
    %v1781 = vmul.f32 %v440, %v1765
    %v1782 = vsel %vm56, %v1766, 0.0
    %v1783 = vsel %vm56, %v1767, 0.0
    %v1784 = vadd.f32 %v1782, %v1783
    %v1785 = vrot.slane %v1784, 4
    %v1786 = vadd.f32 %v1784, %v1785
    %v1787 = vrot.slane %v1786, 2
    %v1788 = vadd.f32 %v1786, %v1787
    %v1789 = vrot.slane %v1788, 1
    %v1790 = vadd.f32 %v1788, %v1789
    %v1791 = vsel %vm56, %v1768, 0.0
    %v1792 = vsel %vm56, %v1769, 0.0
    %v1793 = vadd.f32 %v1791, %v1792
    %v1794 = vrot.slane %v1793, 4
    %v1795 = vadd.f32 %v1793, %v1794
    %v1796 = vrot.slane %v1795, 2
    %v1797 = vadd.f32 %v1795, %v1796
    %v1798 = vrot.slane %v1797, 1
    %v1799 = vadd.f32 %v1797, %v1798
    %v1800 = vsel %vm56, %v1770, 0.0
    %v1801 = vsel %vm56, %v1771, 0.0
    %v1802 = vadd.f32 %v1800, %v1801
    %v1803 = vrot.slane %v1802, 4
    %v1804 = vadd.f32 %v1802, %v1803
    %v1805 = vrot.slane %v1804, 2
    %v1806 = vadd.f32 %v1804, %v1805
    %v1807 = vrot.slane %v1806, 1
    %v1808 = vadd.f32 %v1806, %v1807
    %v1809 = vsel %vm56, %v1772, 0.0
    %v1810 = vsel %vm56, %v1773, 0.0
    %v1811 = vadd.f32 %v1809, %v1810
    %v1812 = vrot.slane %v1811, 4
    %v1813 = vadd.f32 %v1811, %v1812
    %v1814 = vrot.slane %v1813, 2
    %v1815 = vadd.f32 %v1813, %v1814
    %v1816 = vrot.slane %v1815, 1
    %v1817 = vadd.f32 %v1815, %v1816
    %v1818 = vsel %vm56, %v1774, 0.0
    %v1819 = vsel %vm56, %v1775, 0.0
    %v1820 = vadd.f32 %v1818, %v1819
    %v1821 = vrot.slane %v1820, 4
    %v1822 = vadd.f32 %v1820, %v1821
    %v1823 = vrot.slane %v1822, 2
    %v1824 = vadd.f32 %v1822, %v1823
    %v1825 = vrot.slane %v1824, 1
    %v1826 = vadd.f32 %v1824, %v1825
    %v1827 = vsel %vm56, %v1776, 0.0
    %v1828 = vsel %vm56, %v1777, 0.0
    %v1829 = vadd.f32 %v1827, %v1828
    %v1830 = vrot.slane %v1829, 4
    %v1831 = vadd.f32 %v1829, %v1830
    %v1832 = vrot.slane %v1831, 2
    %v1833 = vadd.f32 %v1831, %v1832
    %v1834 = vrot.slane %v1833, 1
    %v1835 = vadd.f32 %v1833, %v1834
    %v1836 = vsel %vm56, %v1778, 0.0
    %v1837 = vsel %vm56, %v1779, 0.0
    %v1838 = vadd.f32 %v1836, %v1837
    %v1839 = vrot.slane %v1838, 4
    %v1840 = vadd.f32 %v1838, %v1839
    %v1841 = vrot.slane %v1840, 2
    %v1842 = vadd.f32 %v1840, %v1841
    %v1843 = vrot.slane %v1842, 1
    %v1844 = vadd.f32 %v1842, %v1843
    %v1845 = vsel %vm56, %v1780, 0.0
    %v1846 = vsel %vm56, %v1781, 0.0
    %v1847 = vadd.f32 %v1845, %v1846
    %v1848 = vrot.slane %v1847, 4
    %v1849 = vadd.f32 %v1847, %v1848
    %v1850 = vrot.slane %v1849, 2
    %v1851 = vadd.f32 %v1849, %v1850
    %v1852 = vrot.slane %v1851, 1
    %v1853 = vadd.f32 %v1851, %v1852
    %v1854 = vperm.slane %v575, 0
    %v1855 = vlaneseq
    %v1856 = vshrl.u32 %v1855, 7
    %1858 = vset.pattern.permute.xlu0 %v1856
    %1859 = vperm.xlu0 %1858, %v1854
    %v1860 = vpop.permute.xlu0 %1859
    %v1861 = vperm.slane %v575, 1
    %v1862 = vlaneseq
    %v1863 = vshrl.u32 %v1862, 7
    %1865 = vset.pattern.permute.xlu0 %v1863
    %1866 = vperm.xlu0 %1865, %v1861
    %v1867 = vpop.permute.xlu0 %1866
    %v1870 = vrot.slane %v1860, 1
    %v1871 = vrot.slane %v1860, 2
    %v1872 = vrot.slane %v1860, 3
    %v1873 = vrot.slane %v1867, 1
    %v1874 = vrot.slane %v1867, 2
    %v1875 = vrot.slane %v1867, 3
    %v1884 = vmul.f32 %v1790, %v1860
    %v1885 = vmul.f32 %v1799, %v1870
    %v1886 = vmul.f32 %v1808, %v1871
    %v1887 = vmul.f32 %v1817, %v1872
    %v1888 = vmul.f32 %v1826, %v1867
    %v1889 = vmul.f32 %v1835, %v1873
    %v1890 = vmul.f32 %v1844, %v1874
    %v1891 = vmul.f32 %v1853, %v1875
    %v1900 = vrot.slane %v1885, 7
    %v1901 = vsel %vm904, %v1900, %v1884
    %v1902 = vrot.slane %v1886, 6
    %v1903 = vsel %vm907, %v1902, %v1901
    %v1904 = vrot.slane %v1887, 5
    %v1905 = vsel %vm910, %v1904, %v1903
    %v1906 = vrot.slane %v1889, 7
    %v1907 = vsel %vm904, %v1906, %v1888
    %v1908 = vrot.slane %v1890, 6
    %v1909 = vsel %vm907, %v1908, %v1907
    %v1910 = vrot.slane %v1891, 5
    %v1911 = vsel %vm910, %v1910, %v1909
    %v1914 = vsel %vm920, %v1905, 0.0
    %v1915 = vrot.slane %v1914, 4
    %v1916 = vadd.f32 %v1914, %v1915
    %v1917 = vrot.slane %v1916, 2
    %v1918 = vadd.f32 %v1916, %v1917
    %v1919 = vrot.slane %v1918, 1
    %v1920 = vadd.f32 %v1918, %v1919
    %v1921 = vsel %vm920, %v1911, 0.0
    %v1922 = vrot.slane %v1921, 4
    %v1923 = vadd.f32 %v1921, %v1922
    %v1924 = vrot.slane %v1923, 2
    %v1925 = vadd.f32 %v1923, %v1924
    %v1926 = vrot.slane %v1925, 1
    %v1927 = vadd.f32 %v1925, %v1926
    %v1928 = vadd.f32 %v1920, 1e-06
    %v1929 = vadd.f32 %v1927, 1e-06
    %v1930 = vlog2.pop %v1928
    %v1931 = vmul.f32 %v1930, 0.6931472
    %v1932 = vlog2.pop %v1929
    %v1933 = vmul.f32 %v1932, 0.6931472
    %v1935 = vrot.slane %v458, 1
    %v1938 = vadd.f32 %v1931, %v458
    %v1939 = vadd.f32 %v1933, %v1935
    %v1942 = vrot.slane %v1939, 7
    %v1943 = vsel %vm904, %v1942, %v1938
    %v1945 = vsel %vm952, %v1943, -inf
    %1946 = vmax.xlane.f32.xlu0 %v1945
    %v1947 = vpop.xlane.xlu0 %1946
    %v1949 = vrot.slane %v1947, 1
    %v1952 = vsub.f32 %v1938, %v1947
    %v1953 = vsub.f32 %v1939, %v1949
    %v1954 = vmul.f32 %v1952, 1.442695
    %v1955 = vpow.pop %v1954
    %v1956 = vmul.f32 %v1953, 1.442695
    %v1957 = vpow.pop %v1956
    %v1960 = vrot.slane %v1957, 7
    %v1961 = vsel %vm904, %v1960, %v1955
    %v1963 = vsel %vm952, %v1961, 0.0
    %1964 = vadd.xlane.f32.xlu0 %v1963
    %v1965 = vpop.xlane.xlu0 %1964
    %v1967 = vrot.slane %v1965, 1
    %v1970 = vrcp.pop %v1965
    %v1971 = vmul.f32 %v1965, %v1970
    %v1972 = vsub.f32 1.0, %v1971
    %v1973 = vmul.f32 %v1970, %v1972
    %v1974 = vadd.f32 %v1970, %v1973
    %vm1975 = vweird.f32 %v1965
    %vm1976 = vweird.f32 %v1970
    %vm1977 = vmor %vm1975, %vm1976
    %v1978 = vsel %vm1977, %v1970, %v1974
    %v1979 = vand.u32 2147483647, %v1965
    %vm1980 = vcmp.eq.f32.partialorder %v1979, 8.507059e+37
    %v1981 = vand.u32 %v1965, 2147483648
    %v1982 = vor.u32 1.1754944e-38, %v1981
    %v1983 = vsel %vm1980, %v1982, %v1978
    %v1984 = vmul.f32 %v1955, %v1983
    %v1985 = vrcp.pop %v1967
    %v1986 = vmul.f32 %v1967, %v1985
    %v1987 = vsub.f32 1.0, %v1986
    %v1988 = vmul.f32 %v1985, %v1987
    %v1989 = vadd.f32 %v1985, %v1988
    %vm1990 = vweird.f32 %v1967
    %vm1991 = vweird.f32 %v1985
    %vm1992 = vmor %vm1990, %vm1991
    %v1993 = vsel %vm1992, %v1985, %v1989
    %v1994 = vand.u32 2147483647, %v1967
    %vm1995 = vcmp.eq.f32.partialorder %v1994, 8.507059e+37
    %v1996 = vand.u32 %v1967, 2147483648
    %v1997 = vor.u32 1.1754944e-38, %v1996
    %v1998 = vsel %vm1995, %v1997, %v1993
    %v1999 = vmul.f32 %v1957, %v1998
    %v2002 = vrot.slane %v1999, 7
    %v2003 = vsel %vm904, %v2002, %v1984
    %s2005 = scalar_lea.vmem [#allocation3], 2
    %2006 = vst.msk [vmem:[%s2005] sm:$0x3] %vm952, %v2003
    %v2007 = vperm.slane %v1984, 0
    %v2008 = vperm.slane %v1999, 0
    %v2009 = vmul.f32 %v441, %v2007
    %v2010 = vmul.f32 %v442, %v2008
    %v2011 = vmul.f32 %v443, %v2007
    %v2012 = vmul.f32 %v444, %v2008
    %v2013 = vmul.f32 %v445, %v2007
    %v2014 = vmul.f32 %v446, %v2008
    %v2015 = vmul.f32 %v447, %v2007
    %v2016 = vmul.f32 %v448, %v2008
    %v2017 = vmul.f32 %v449, %v2007
    %v2018 = vmul.f32 %v450, %v2008
    %v2019 = vmul.f32 %v451, %v2007
    %v2020 = vmul.f32 %v452, %v2008
    %v2021 = vmul.f32 %v453, %v2007
    %v2022 = vmul.f32 %v454, %v2008
    %v2023 = vmul.f32 %v455, %v2007
    %v2024 = vmul.f32 %v456, %v2008
    %v2025 = vsel %vm920, %v2009, 0.0
    %2026 = vadd.xlane.f32.xlu0 %v2025
    %v2027 = vpop.xlane.xlu0 %2026
    %v2028 = vsel %vm920, %v2010, 0.0
    %2029 = vadd.xlane.f32.xlu0 %v2028
    %v2030 = vpop.xlane.xlu0 %2029
    %v2031 = vsel %vm920, %v2011, 0.0
    %2032 = vadd.xlane.f32.xlu0 %v2031
    %v2033 = vpop.xlane.xlu0 %2032
    %v2034 = vsel %vm920, %v2012, 0.0
    %2035 = vadd.xlane.f32.xlu0 %v2034
    %v2036 = vpop.xlane.xlu0 %2035
    %v2037 = vsel %vm920, %v2013, 0.0
    %2038 = vadd.xlane.f32.xlu0 %v2037
    %v2039 = vpop.xlane.xlu0 %2038
    %v2040 = vsel %vm920, %v2014, 0.0
    %2041 = vadd.xlane.f32.xlu0 %v2040
    %v2042 = vpop.xlane.xlu0 %2041
    %v2043 = vsel %vm920, %v2015, 0.0
    %2044 = vadd.xlane.f32.xlu0 %v2043
    %v2045 = vpop.xlane.xlu0 %2044
    %v2046 = vsel %vm920, %v2016, 0.0
    %2047 = vadd.xlane.f32.xlu0 %v2046
    %v2048 = vpop.xlane.xlu0 %2047
    %v2049 = vsel %vm920, %v2017, 0.0
    %2050 = vadd.xlane.f32.xlu0 %v2049
    %v2051 = vpop.xlane.xlu0 %2050
    %v2052 = vsel %vm920, %v2018, 0.0
    %2053 = vadd.xlane.f32.xlu0 %v2052
    %v2054 = vpop.xlane.xlu0 %2053
    %v2055 = vsel %vm920, %v2019, 0.0
    %2056 = vadd.xlane.f32.xlu0 %v2055
    %v2057 = vpop.xlane.xlu0 %2056
    %v2058 = vsel %vm920, %v2020, 0.0
    %2059 = vadd.xlane.f32.xlu0 %v2058
    %v2060 = vpop.xlane.xlu0 %2059
    %v2061 = vsel %vm920, %v2021, 0.0
    %2062 = vadd.xlane.f32.xlu0 %v2061
    %v2063 = vpop.xlane.xlu0 %2062
    %v2064 = vsel %vm920, %v2022, 0.0
    %2065 = vadd.xlane.f32.xlu0 %v2064
    %v2066 = vpop.xlane.xlu0 %2065
    %v2067 = vsel %vm920, %v2023, 0.0
    %2068 = vadd.xlane.f32.xlu0 %v2067
    %v2069 = vpop.xlane.xlu0 %2068
    %v2070 = vsel %vm920, %v2024, 0.0
    %2071 = vadd.xlane.f32.xlu0 %v2070
    %v2072 = vpop.xlane.xlu0 %2071
    %v2089 = vperm.slane %v2027, %v1097
    %v2090 = vperm.slane %v2030, %v1097
    %v2091 = vperm.slane %v2033, %v1097
    %v2092 = vperm.slane %v2036, %v1097
    %v2093 = vperm.slane %v2039, %v1097
    %v2094 = vperm.slane %v2042, %v1097
    %v2095 = vperm.slane %v2045, %v1097
    %v2096 = vperm.slane %v2048, %v1097
    %v2097 = vperm.slane %v2051, %v1097
    %v2098 = vperm.slane %v2054, %v1097
    %v2099 = vperm.slane %v2057, %v1097
    %v2100 = vperm.slane %v2060, %v1097
    %v2101 = vperm.slane %v2063, %v1097
    %v2102 = vperm.slane %v2066, %v1097
    %v2103 = vperm.slane %v2069, %v1097
    %v2104 = vperm.slane %v2072, %v1097
    %v2105 = vsel %vm904, %v2090, %v2089
    %v2106 = vsel %vm904, %v2092, %v2091
    %v2107 = vsel %vm904, %v2094, %v2093
    %v2108 = vsel %vm904, %v2096, %v2095
    %v2109 = vsel %vm904, %v2098, %v2097
    %v2110 = vsel %vm904, %v2100, %v2099
    %v2111 = vsel %vm904, %v2102, %v2101
    %v2112 = vsel %vm904, %v2104, %v2103
    %v2121 = vsel %vm473, %v2105, -inf
    %2122 = vmax.xlane.f32.xlu0 %v2121
    %v2123 = vpop.xlane.xlu0 %2122
    %v2124 = vsel %vm473, %v2106, -inf
    %2125 = vmax.xlane.f32.xlu0 %v2124
    %v2126 = vpop.xlane.xlu0 %2125
    %v2127 = vsel %vm473, %v2107, -inf
    %2128 = vmax.xlane.f32.xlu0 %v2127
    %v2129 = vpop.xlane.xlu0 %2128
    %v2130 = vsel %vm473, %v2108, -inf
    %2131 = vmax.xlane.f32.xlu0 %v2130
    %v2132 = vpop.xlane.xlu0 %2131
    %v2133 = vsel %vm473, %v2109, -inf
    %2134 = vmax.xlane.f32.xlu0 %v2133
    %v2135 = vpop.xlane.xlu0 %2134
    %v2136 = vsel %vm473, %v2110, -inf
    %2137 = vmax.xlane.f32.xlu0 %v2136
    %v2138 = vpop.xlane.xlu0 %2137
    %v2139 = vsel %vm473, %v2111, -inf
    %2140 = vmax.xlane.f32.xlu0 %v2139
    %v2141 = vpop.xlane.xlu0 %2140
    %v2142 = vsel %vm473, %v2112, -inf
    %2143 = vmax.xlane.f32.xlu0 %v2142
    %v2144 = vpop.xlane.xlu0 %2143
    %v2153 = vperm.slane %v2123, 0
    %v2154 = vperm.slane %v2123, 1
    %v2155 = vperm.slane %v2126, 0
    %v2156 = vperm.slane %v2126, 1
    %v2157 = vperm.slane %v2129, 0
    %v2158 = vperm.slane %v2129, 1
    %v2159 = vperm.slane %v2132, 0
    %v2160 = vperm.slane %v2132, 1
    %v2161 = vperm.slane %v2135, 0
    %v2162 = vperm.slane %v2135, 1
    %v2163 = vperm.slane %v2138, 0
    %v2164 = vperm.slane %v2138, 1
    %v2165 = vperm.slane %v2141, 0
    %v2166 = vperm.slane %v2141, 1
    %v2167 = vperm.slane %v2144, 0
    %v2168 = vperm.slane %v2144, 1
    %v2185 = vsub.f32 %v2027, %v2153
    %v2186 = vsub.f32 %v2030, %v2154
    %v2187 = vsub.f32 %v2033, %v2155
    %v2188 = vsub.f32 %v2036, %v2156
    %v2189 = vsub.f32 %v2039, %v2157
    %v2190 = vsub.f32 %v2042, %v2158
    %v2191 = vsub.f32 %v2045, %v2159
    %v2192 = vsub.f32 %v2048, %v2160
    %v2193 = vsub.f32 %v2051, %v2161
    %v2194 = vsub.f32 %v2054, %v2162
    %v2195 = vsub.f32 %v2057, %v2163
    %v2196 = vsub.f32 %v2060, %v2164
    %v2197 = vsub.f32 %v2063, %v2165
    %v2198 = vsub.f32 %v2066, %v2166
    %v2199 = vsub.f32 %v2069, %v2167
    %v2200 = vsub.f32 %v2072, %v2168
    %v2201 = vmul.f32 %v2185, 1.442695
    %v2202 = vpow.pop %v2201
    %v2203 = vmul.f32 %v2186, 1.442695
    %v2204 = vpow.pop %v2203
    %v2205 = vmul.f32 %v2187, 1.442695
    %v2206 = vpow.pop %v2205
    %v2207 = vmul.f32 %v2188, 1.442695
    %v2208 = vpow.pop %v2207
    %v2209 = vmul.f32 %v2189, 1.442695
    %v2210 = vpow.pop %v2209
    %v2211 = vmul.f32 %v2190, 1.442695
    %v2212 = vpow.pop %v2211
    %v2213 = vmul.f32 %v2191, 1.442695
    %v2214 = vpow.pop %v2213
    %v2215 = vmul.f32 %v2192, 1.442695
    %v2216 = vpow.pop %v2215
    %v2217 = vmul.f32 %v2193, 1.442695
    %v2218 = vpow.pop %v2217
    %v2219 = vmul.f32 %v2194, 1.442695
    %v2220 = vpow.pop %v2219
    %v2221 = vmul.f32 %v2195, 1.442695
    %v2222 = vpow.pop %v2221
    %v2223 = vmul.f32 %v2196, 1.442695
    %v2224 = vpow.pop %v2223
    %v2225 = vmul.f32 %v2197, 1.442695
    %v2226 = vpow.pop %v2225
    %v2227 = vmul.f32 %v2198, 1.442695
    %v2228 = vpow.pop %v2227
    %v2229 = vmul.f32 %v2199, 1.442695
    %v2230 = vpow.pop %v2229
    %v2231 = vmul.f32 %v2200, 1.442695
    %v2232 = vpow.pop %v2231
    %2249 = vset.pattern.permute.xlu0 0
    %2250 = vperm.xlu0 %2249, %v2202
    %v2251 = vpop.permute.xlu0 %2250
    %2252 = vset.pattern.permute.xlu0 0
    %2253 = vperm.xlu0 %2252, %v2204
    %v2254 = vpop.permute.xlu0 %2253
    %2255 = vset.pattern.permute.xlu0 0
    %2256 = vperm.xlu0 %2255, %v2206
    %v2257 = vpop.permute.xlu0 %2256
    %2258 = vset.pattern.permute.xlu0 0
    %2259 = vperm.xlu0 %2258, %v2208
    %v2260 = vpop.permute.xlu0 %2259
    %2261 = vset.pattern.permute.xlu0 0
    %2262 = vperm.xlu0 %2261, %v2210
    %v2263 = vpop.permute.xlu0 %2262
    %2264 = vset.pattern.permute.xlu0 0
    %2265 = vperm.xlu0 %2264, %v2212
    %v2266 = vpop.permute.xlu0 %2265
    %2267 = vset.pattern.permute.xlu0 0
    %2268 = vperm.xlu0 %2267, %v2214
    %v2269 = vpop.permute.xlu0 %2268
    %2270 = vset.pattern.permute.xlu0 0
    %2271 = vperm.xlu0 %2270, %v2216
    %v2272 = vpop.permute.xlu0 %2271
    %2273 = vset.pattern.permute.xlu0 0
    %2274 = vperm.xlu0 %2273, %v2218
    %v2275 = vpop.permute.xlu0 %2274
    %2276 = vset.pattern.permute.xlu0 0
    %2277 = vperm.xlu0 %2276, %v2220
    %v2278 = vpop.permute.xlu0 %2277
    %2279 = vset.pattern.permute.xlu0 0
    %2280 = vperm.xlu0 %2279, %v2222
    %v2281 = vpop.permute.xlu0 %2280
    %2282 = vset.pattern.permute.xlu0 0
    %2283 = vperm.xlu0 %2282, %v2224
    %v2284 = vpop.permute.xlu0 %2283
    %2285 = vset.pattern.permute.xlu0 0
    %2286 = vperm.xlu0 %2285, %v2226
    %v2287 = vpop.permute.xlu0 %2286
    %2288 = vset.pattern.permute.xlu0 0
    %2289 = vperm.xlu0 %2288, %v2228
    %v2290 = vpop.permute.xlu0 %2289
    %2291 = vset.pattern.permute.xlu0 0
    %2292 = vperm.xlu0 %2291, %v2230
    %v2293 = vpop.permute.xlu0 %2292
    %2294 = vset.pattern.permute.xlu0 0
    %2295 = vperm.xlu0 %2294, %v2232
    %v2296 = vpop.permute.xlu0 %2295
    %v2297 = vperm.slane %v2251, %v1097
    %v2298 = vperm.slane %v2254, %v1097
    %v2299 = vperm.slane %v2257, %v1097
    %v2300 = vperm.slane %v2260, %v1097
    %v2301 = vperm.slane %v2263, %v1097
    %v2302 = vperm.slane %v2266, %v1097
    %v2303 = vperm.slane %v2269, %v1097
    %v2304 = vperm.slane %v2272, %v1097
    %v2305 = vperm.slane %v2275, %v1097
    %v2306 = vperm.slane %v2278, %v1097
    %v2307 = vperm.slane %v2281, %v1097
    %v2308 = vperm.slane %v2284, %v1097
    %v2309 = vperm.slane %v2287, %v1097
    %v2310 = vperm.slane %v2290, %v1097
    %v2311 = vperm.slane %v2293, %v1097
    %v2312 = vperm.slane %v2296, %v1097
    %v2313 = vsel %vm904, %v2298, %v2297
    %v2314 = vsel %vm904, %v2300, %v2299
    %v2315 = vsel %vm904, %v2302, %v2301
    %v2316 = vsel %vm904, %v2304, %v2303
    %v2317 = vsel %vm904, %v2306, %v2305
    %v2318 = vsel %vm904, %v2308, %v2307
    %v2319 = vsel %vm904, %v2310, %v2309
    %v2320 = vsel %vm904, %v2312, %v2311
    %v2329 = vsel %vm473, %v2313, 0.0
    %2330 = vadd.xlane.f32.xlu0 %v2329
    %v2331 = vpop.xlane.xlu0 %2330
    %v2332 = vsel %vm473, %v2314, 0.0
    %2333 = vadd.xlane.f32.xlu0 %v2332
    %v2334 = vpop.xlane.xlu0 %2333
    %v2335 = vsel %vm473, %v2315, 0.0
    %2336 = vadd.xlane.f32.xlu0 %v2335
    %v2337 = vpop.xlane.xlu0 %2336
    %v2338 = vsel %vm473, %v2316, 0.0
    %2339 = vadd.xlane.f32.xlu0 %v2338
    %v2340 = vpop.xlane.xlu0 %2339
    %v2341 = vsel %vm473, %v2317, 0.0
    %2342 = vadd.xlane.f32.xlu0 %v2341
    %v2343 = vpop.xlane.xlu0 %2342
    %v2344 = vsel %vm473, %v2318, 0.0
    %2345 = vadd.xlane.f32.xlu0 %v2344
    %v2346 = vpop.xlane.xlu0 %2345
    %v2347 = vsel %vm473, %v2319, 0.0
    %2348 = vadd.xlane.f32.xlu0 %v2347
    %v2349 = vpop.xlane.xlu0 %2348
    %v2350 = vsel %vm473, %v2320, 0.0
    %2351 = vadd.xlane.f32.xlu0 %v2350
    %v2352 = vpop.xlane.xlu0 %2351
    %v2361 = vperm.slane %v2331, 0
    %v2362 = vperm.slane %v2331, 1
    %v2363 = vperm.slane %v2334, 0
    %v2364 = vperm.slane %v2334, 1
    %v2365 = vperm.slane %v2337, 0
    %v2366 = vperm.slane %v2337, 1
    %v2367 = vperm.slane %v2340, 0
    %v2368 = vperm.slane %v2340, 1
    %v2369 = vperm.slane %v2343, 0
    %v2370 = vperm.slane %v2343, 1
    %v2371 = vperm.slane %v2346, 0
    %v2372 = vperm.slane %v2346, 1
    %v2373 = vperm.slane %v2349, 0
    %v2374 = vperm.slane %v2349, 1
    %v2375 = vperm.slane %v2352, 0
    %v2376 = vperm.slane %v2352, 1
    %v2393 = vrcp.pop %v2361
    %v2394 = vmul.f32 %v2361, %v2393
    %v2395 = vsub.f32 1.0, %v2394
    %v2396 = vmul.f32 %v2393, %v2395
    %v2397 = vadd.f32 %v2393, %v2396
    %vm2398 = vweird.f32 %v2361
    %vm2399 = vweird.f32 %v2393
    %vm2400 = vmor %vm2398, %vm2399
    %v2401 = vsel %vm2400, %v2393, %v2397
    %v2402 = vand.u32 2147483647, %v2361
    %vm2403 = vcmp.eq.f32.partialorder %v2402, 8.507059e+37
    %v2404 = vand.u32 %v2361, 2147483648
    %v2405 = vor.u32 1.1754944e-38, %v2404
    %v2406 = vsel %vm2403, %v2405, %v2401
    %v2407 = vmul.f32 %v2202, %v2406
    %v2408 = vrcp.pop %v2362
    %v2409 = vmul.f32 %v2362, %v2408
    %v2410 = vsub.f32 1.0, %v2409
    %v2411 = vmul.f32 %v2408, %v2410
    %v2412 = vadd.f32 %v2408, %v2411
    %vm2413 = vweird.f32 %v2362
    %vm2414 = vweird.f32 %v2408
    %vm2415 = vmor %vm2413, %vm2414
    %v2416 = vsel %vm2415, %v2408, %v2412
    %v2417 = vand.u32 2147483647, %v2362
    %vm2418 = vcmp.eq.f32.partialorder %v2417, 8.507059e+37
    %v2419 = vand.u32 %v2362, 2147483648
    %v2420 = vor.u32 1.1754944e-38, %v2419
    %v2421 = vsel %vm2418, %v2420, %v2416
    %v2422 = vmul.f32 %v2204, %v2421
    %v2423 = vrcp.pop %v2363
    %v2424 = vmul.f32 %v2363, %v2423
    %v2425 = vsub.f32 1.0, %v2424
    %v2426 = vmul.f32 %v2423, %v2425
    %v2427 = vadd.f32 %v2423, %v2426
    %vm2428 = vweird.f32 %v2363
    %vm2429 = vweird.f32 %v2423
    %vm2430 = vmor %vm2428, %vm2429
    %v2431 = vsel %vm2430, %v2423, %v2427
    %v2432 = vand.u32 2147483647, %v2363
    %vm2433 = vcmp.eq.f32.partialorder %v2432, 8.507059e+37
    %v2434 = vand.u32 %v2363, 2147483648
    %v2435 = vor.u32 1.1754944e-38, %v2434
    %v2436 = vsel %vm2433, %v2435, %v2431
    %v2437 = vmul.f32 %v2206, %v2436
    %v2438 = vrcp.pop %v2364
    %v2439 = vmul.f32 %v2364, %v2438
    %v2440 = vsub.f32 1.0, %v2439
    %v2441 = vmul.f32 %v2438, %v2440
    %v2442 = vadd.f32 %v2438, %v2441
    %vm2443 = vweird.f32 %v2364
    %vm2444 = vweird.f32 %v2438
    %vm2445 = vmor %vm2443, %vm2444
    %v2446 = vsel %vm2445, %v2438, %v2442
    %v2447 = vand.u32 2147483647, %v2364
    %vm2448 = vcmp.eq.f32.partialorder %v2447, 8.507059e+37
    %v2449 = vand.u32 %v2364, 2147483648
    %v2450 = vor.u32 1.1754944e-38, %v2449
    %v2451 = vsel %vm2448, %v2450, %v2446
    %v2452 = vmul.f32 %v2208, %v2451
    %v2453 = vrcp.pop %v2365
    %v2454 = vmul.f32 %v2365, %v2453
    %v2455 = vsub.f32 1.0, %v2454
    %v2456 = vmul.f32 %v2453, %v2455
    %v2457 = vadd.f32 %v2453, %v2456
    %vm2458 = vweird.f32 %v2365
    %vm2459 = vweird.f32 %v2453
    %vm2460 = vmor %vm2458, %vm2459
    %v2461 = vsel %vm2460, %v2453, %v2457
    %v2462 = vand.u32 2147483647, %v2365
    %vm2463 = vcmp.eq.f32.partialorder %v2462, 8.507059e+37
    %v2464 = vand.u32 %v2365, 2147483648
    %v2465 = vor.u32 1.1754944e-38, %v2464
    %v2466 = vsel %vm2463, %v2465, %v2461
    %v2467 = vmul.f32 %v2210, %v2466
    %v2468 = vrcp.pop %v2366
    %v2469 = vmul.f32 %v2366, %v2468
    %v2470 = vsub.f32 1.0, %v2469
    %v2471 = vmul.f32 %v2468, %v2470
    %v2472 = vadd.f32 %v2468, %v2471
    %vm2473 = vweird.f32 %v2366
    %vm2474 = vweird.f32 %v2468
    %vm2475 = vmor %vm2473, %vm2474
    %v2476 = vsel %vm2475, %v2468, %v2472
    %v2477 = vand.u32 2147483647, %v2366
    %vm2478 = vcmp.eq.f32.partialorder %v2477, 8.507059e+37
    %v2479 = vand.u32 %v2366, 2147483648
    %v2480 = vor.u32 1.1754944e-38, %v2479
    %v2481 = vsel %vm2478, %v2480, %v2476
    %v2482 = vmul.f32 %v2212, %v2481
    %v2483 = vrcp.pop %v2367
    %v2484 = vmul.f32 %v2367, %v2483
    %v2485 = vsub.f32 1.0, %v2484
    %v2486 = vmul.f32 %v2483, %v2485
    %v2487 = vadd.f32 %v2483, %v2486
    %vm2488 = vweird.f32 %v2367
    %vm2489 = vweird.f32 %v2483
    %vm2490 = vmor %vm2488, %vm2489
    %v2491 = vsel %vm2490, %v2483, %v2487
    %v2492 = vand.u32 2147483647, %v2367
    %vm2493 = vcmp.eq.f32.partialorder %v2492, 8.507059e+37
    %v2494 = vand.u32 %v2367, 2147483648
    %v2495 = vor.u32 1.1754944e-38, %v2494
    %v2496 = vsel %vm2493, %v2495, %v2491
    %v2497 = vmul.f32 %v2214, %v2496
    %v2498 = vrcp.pop %v2368
    %v2499 = vmul.f32 %v2368, %v2498
    %v2500 = vsub.f32 1.0, %v2499
    %v2501 = vmul.f32 %v2498, %v2500
    %v2502 = vadd.f32 %v2498, %v2501
    %vm2503 = vweird.f32 %v2368
    %vm2504 = vweird.f32 %v2498
    %vm2505 = vmor %vm2503, %vm2504
    %v2506 = vsel %vm2505, %v2498, %v2502
    %v2507 = vand.u32 2147483647, %v2368
    %vm2508 = vcmp.eq.f32.partialorder %v2507, 8.507059e+37
    %v2509 = vand.u32 %v2368, 2147483648
    %v2510 = vor.u32 1.1754944e-38, %v2509
    %v2511 = vsel %vm2508, %v2510, %v2506
    %v2512 = vmul.f32 %v2216, %v2511
    %v2513 = vrcp.pop %v2369
    %v2514 = vmul.f32 %v2369, %v2513
    %v2515 = vsub.f32 1.0, %v2514
    %v2516 = vmul.f32 %v2513, %v2515
    %v2517 = vadd.f32 %v2513, %v2516
    %vm2518 = vweird.f32 %v2369
    %vm2519 = vweird.f32 %v2513
    %vm2520 = vmor %vm2518, %vm2519
    %v2521 = vsel %vm2520, %v2513, %v2517
    %v2522 = vand.u32 2147483647, %v2369
    %vm2523 = vcmp.eq.f32.partialorder %v2522, 8.507059e+37
    %v2524 = vand.u32 %v2369, 2147483648
    %v2525 = vor.u32 1.1754944e-38, %v2524
    %v2526 = vsel %vm2523, %v2525, %v2521
    %v2527 = vmul.f32 %v2218, %v2526
    %v2528 = vrcp.pop %v2370
    %v2529 = vmul.f32 %v2370, %v2528
    %v2530 = vsub.f32 1.0, %v2529
    %v2531 = vmul.f32 %v2528, %v2530
    %v2532 = vadd.f32 %v2528, %v2531
    %vm2533 = vweird.f32 %v2370
    %vm2534 = vweird.f32 %v2528
    %vm2535 = vmor %vm2533, %vm2534
    %v2536 = vsel %vm2535, %v2528, %v2532
    %v2537 = vand.u32 2147483647, %v2370
    %vm2538 = vcmp.eq.f32.partialorder %v2537, 8.507059e+37
    %v2539 = vand.u32 %v2370, 2147483648
    %v2540 = vor.u32 1.1754944e-38, %v2539
    %v2541 = vsel %vm2538, %v2540, %v2536
    %v2542 = vmul.f32 %v2220, %v2541
    %v2543 = vrcp.pop %v2371
    %v2544 = vmul.f32 %v2371, %v2543
    %v2545 = vsub.f32 1.0, %v2544
    %v2546 = vmul.f32 %v2543, %v2545
    %v2547 = vadd.f32 %v2543, %v2546
    %vm2548 = vweird.f32 %v2371
    %vm2549 = vweird.f32 %v2543
    %vm2550 = vmor %vm2548, %vm2549
    %v2551 = vsel %vm2550, %v2543, %v2547
    %v2552 = vand.u32 2147483647, %v2371
    %vm2553 = vcmp.eq.f32.partialorder %v2552, 8.507059e+37
    %v2554 = vand.u32 %v2371, 2147483648
    %v2555 = vor.u32 1.1754944e-38, %v2554
    %v2556 = vsel %vm2553, %v2555, %v2551
    %v2557 = vmul.f32 %v2222, %v2556
    %v2558 = vrcp.pop %v2372
    %v2559 = vmul.f32 %v2372, %v2558
    %v2560 = vsub.f32 1.0, %v2559
    %v2561 = vmul.f32 %v2558, %v2560
    %v2562 = vadd.f32 %v2558, %v2561
    %vm2563 = vweird.f32 %v2372
    %vm2564 = vweird.f32 %v2558
    %vm2565 = vmor %vm2563, %vm2564
    %v2566 = vsel %vm2565, %v2558, %v2562
    %v2567 = vand.u32 2147483647, %v2372
    %vm2568 = vcmp.eq.f32.partialorder %v2567, 8.507059e+37
    %v2569 = vand.u32 %v2372, 2147483648
    %v2570 = vor.u32 1.1754944e-38, %v2569
    %v2571 = vsel %vm2568, %v2570, %v2566
    %v2572 = vmul.f32 %v2224, %v2571
    %v2573 = vrcp.pop %v2373
    %v2574 = vmul.f32 %v2373, %v2573
    %v2575 = vsub.f32 1.0, %v2574
    %v2576 = vmul.f32 %v2573, %v2575
    %v2577 = vadd.f32 %v2573, %v2576
    %vm2578 = vweird.f32 %v2373
    %vm2579 = vweird.f32 %v2573
    %vm2580 = vmor %vm2578, %vm2579
    %v2581 = vsel %vm2580, %v2573, %v2577
    %v2582 = vand.u32 2147483647, %v2373
    %vm2583 = vcmp.eq.f32.partialorder %v2582, 8.507059e+37
    %v2584 = vand.u32 %v2373, 2147483648
    %v2585 = vor.u32 1.1754944e-38, %v2584
    %v2586 = vsel %vm2583, %v2585, %v2581
    %v2587 = vmul.f32 %v2226, %v2586
    %v2588 = vrcp.pop %v2374
    %v2589 = vmul.f32 %v2374, %v2588
    %v2590 = vsub.f32 1.0, %v2589
    %v2591 = vmul.f32 %v2588, %v2590
    %v2592 = vadd.f32 %v2588, %v2591
    %vm2593 = vweird.f32 %v2374
    %vm2594 = vweird.f32 %v2588
    %vm2595 = vmor %vm2593, %vm2594
    %v2596 = vsel %vm2595, %v2588, %v2592
    %v2597 = vand.u32 2147483647, %v2374
    %vm2598 = vcmp.eq.f32.partialorder %v2597, 8.507059e+37
    %v2599 = vand.u32 %v2374, 2147483648
    %v2600 = vor.u32 1.1754944e-38, %v2599
    %v2601 = vsel %vm2598, %v2600, %v2596
    %v2602 = vmul.f32 %v2228, %v2601
    %v2603 = vrcp.pop %v2375
    %v2604 = vmul.f32 %v2375, %v2603
    %v2605 = vsub.f32 1.0, %v2604
    %v2606 = vmul.f32 %v2603, %v2605
    %v2607 = vadd.f32 %v2603, %v2606
    %vm2608 = vweird.f32 %v2375
    %vm2609 = vweird.f32 %v2603
    %vm2610 = vmor %vm2608, %vm2609
    %v2611 = vsel %vm2610, %v2603, %v2607
    %v2612 = vand.u32 2147483647, %v2375
    %vm2613 = vcmp.eq.f32.partialorder %v2612, 8.507059e+37
    %v2614 = vand.u32 %v2375, 2147483648
    %v2615 = vor.u32 1.1754944e-38, %v2614
    %v2616 = vsel %vm2613, %v2615, %v2611
    %v2617 = vmul.f32 %v2230, %v2616
    %v2618 = vrcp.pop %v2376
    %v2619 = vmul.f32 %v2376, %v2618
    %v2620 = vsub.f32 1.0, %v2619
    %v2621 = vmul.f32 %v2618, %v2620
    %v2622 = vadd.f32 %v2618, %v2621
    %vm2623 = vweird.f32 %v2376
    %vm2624 = vweird.f32 %v2618
    %vm2625 = vmor %vm2623, %vm2624
    %v2626 = vsel %vm2625, %v2618, %v2622
    %v2627 = vand.u32 2147483647, %v2376
    %vm2628 = vcmp.eq.f32.partialorder %v2627, 8.507059e+37
    %v2629 = vand.u32 %v2376, 2147483648
    %v2630 = vor.u32 1.1754944e-38, %v2629
    %v2631 = vsel %vm2628, %v2630, %v2626
    %v2632 = vmul.f32 %v2232, %v2631
    %v2633 = vmul.f32 %v2407, %v1646
    %v2634 = vmul.f32 %v2422, %v1647
    %v2635 = vmul.f32 %v2437, %v1655
    %v2636 = vmul.f32 %v2452, %v1656
    %v2637 = vadd.f32 %v2633, %v2635
    %v2638 = vadd.f32 %v2634, %v2636
    %v2639 = vmul.f32 %v2467, %v1666
    %v2640 = vmul.f32 %v2482, %v1667
    %v2641 = vadd.f32 %v2637, %v2639
    %v2642 = vadd.f32 %v2638, %v2640
    %v2643 = vmul.f32 %v2497, %v1677
    %v2644 = vmul.f32 %v2512, %v1678
    %v2645 = vadd.f32 %v2641, %v2643
    %v2646 = vadd.f32 %v2642, %v2644
    %v2647 = vmul.f32 %v2527, %v1688
    %v2648 = vmul.f32 %v2542, %v1689
    %v2649 = vadd.f32 %v2645, %v2647
    %v2650 = vadd.f32 %v2646, %v2648
    %v2651 = vmul.f32 %v2557, %v1699
    %v2652 = vmul.f32 %v2572, %v1700
    %v2653 = vadd.f32 %v2649, %v2651
    %v2654 = vadd.f32 %v2650, %v2652
    %v2655 = vmul.f32 %v2587, %v1710
    %v2656 = vmul.f32 %v2602, %v1711
    %v2657 = vadd.f32 %v2653, %v2655
    %v2658 = vadd.f32 %v2654, %v2656
    %v2659 = vmul.f32 %v2617, %v1721
    %v2660 = vmul.f32 %v2632, %v1722
    %v2661 = vadd.f32 %v2657, %v2659
    %v2662 = vadd.f32 %v2658, %v2660
    %2665 = vset.pattern.permute.xlu0 0
    %2666 = vperm.xlu0 %2665, %v2661
    %v2667 = vpop.permute.xlu0 %2666
    %2668 = vset.pattern.permute.xlu0 0
    %2669 = vperm.xlu0 %2668, %v2662
    %v2670 = vpop.permute.xlu0 %2669
    %v2671 = vperm.slane %v2667, %v1097
    %v2672 = vperm.slane %v2670, %v1097
    %v2673 = vsel %vm904, %v2672, %v2671
    %s2675 = scalar_lea.vmem %s11, 2
    %2676 = vst.msk [vmem:[%s2675] sm:$0x3] %vm473, %v2673
    %v2677 = vlaneseq
    %v2678 = vshrl.u32 %v2677, 7
    %2680 = vset.pattern.permute.xlu0 %v2678
    %2681 = vperm.xlu0 %2680, %v2007
    %v2682 = vpop.permute.xlu0 %2681
    %v2683 = vlaneseq
    %v2684 = vshrl.u32 %v2683, 7
    %v2685 = vadd.s32 %v2684, 8
    %2686 = vset.pattern.permute.xlu0 %v2685
    %2687 = vperm.xlu0 %2686, %v2007
    %v2688 = vpop.permute.xlu0 %2687
    %v2689 = vlaneseq
    %v2690 = vshrl.u32 %v2689, 7
    %2692 = vset.pattern.permute.xlu0 %v2690
    %2693 = vperm.xlu0 %2692, %v2008
    %v2694 = vpop.permute.xlu0 %2693
    %v2695 = vlaneseq
    %v2696 = vshrl.u32 %v2695, 7
    %v2697 = vadd.s32 %v2696, 8
    %2698 = vset.pattern.permute.xlu0 %v2697
    %2699 = vperm.xlu0 %2698, %v2008
    %v2700 = vpop.permute.xlu0 %2699
    %v2701 = vmul.f32 %v215, %v2682
    %v2702 = vmul.f32 %v230, %v2688
    %v2703 = vmul.f32 %v245, %v2682
    %v2704 = vmul.f32 %v260, %v2688
    %v2705 = vmul.f32 %v275, %v2682
    %v2706 = vmul.f32 %v290, %v2688
    %v2707 = vmul.f32 %v305, %v2682
    %v2708 = vmul.f32 %v320, %v2688
    %v2709 = vmul.f32 %v335, %v2694
    %v2710 = vmul.f32 %v350, %v2700
    %v2711 = vmul.f32 %v365, %v2694
    %v2712 = vmul.f32 %v380, %v2700
    %v2713 = vmul.f32 %v395, %v2694
    %v2714 = vmul.f32 %v410, %v2700
    %v2715 = vmul.f32 %v425, %v2694
    %v2716 = vmul.f32 %v440, %v2700
    %v2717 = vsel %vm56, %v2701, 0.0
    %v2718 = vsel %vm56, %v2702, 0.0
    %v2719 = vadd.f32 %v2717, %v2718
    %v2720 = vrot.slane %v2719, 4
    %v2721 = vadd.f32 %v2719, %v2720
    %v2722 = vrot.slane %v2721, 2
    %v2723 = vadd.f32 %v2721, %v2722
    %v2724 = vrot.slane %v2723, 1
    %v2725 = vadd.f32 %v2723, %v2724
    %v2726 = vsel %vm56, %v2703, 0.0
    %v2727 = vsel %vm56, %v2704, 0.0
    %v2728 = vadd.f32 %v2726, %v2727
    %v2729 = vrot.slane %v2728, 4
    %v2730 = vadd.f32 %v2728, %v2729
    %v2731 = vrot.slane %v2730, 2
    %v2732 = vadd.f32 %v2730, %v2731
    %v2733 = vrot.slane %v2732, 1
    %v2734 = vadd.f32 %v2732, %v2733
    %v2735 = vsel %vm56, %v2705, 0.0
    %v2736 = vsel %vm56, %v2706, 0.0
    %v2737 = vadd.f32 %v2735, %v2736
    %v2738 = vrot.slane %v2737, 4
    %v2739 = vadd.f32 %v2737, %v2738
    %v2740 = vrot.slane %v2739, 2
    %v2741 = vadd.f32 %v2739, %v2740
    %v2742 = vrot.slane %v2741, 1
    %v2743 = vadd.f32 %v2741, %v2742
    %v2744 = vsel %vm56, %v2707, 0.0
    %v2745 = vsel %vm56, %v2708, 0.0
    %v2746 = vadd.f32 %v2744, %v2745
    %v2747 = vrot.slane %v2746, 4
    %v2748 = vadd.f32 %v2746, %v2747
    %v2749 = vrot.slane %v2748, 2
    %v2750 = vadd.f32 %v2748, %v2749
    %v2751 = vrot.slane %v2750, 1
    %v2752 = vadd.f32 %v2750, %v2751
    %v2753 = vsel %vm56, %v2709, 0.0
    %v2754 = vsel %vm56, %v2710, 0.0
    %v2755 = vadd.f32 %v2753, %v2754
    %v2756 = vrot.slane %v2755, 4
    %v2757 = vadd.f32 %v2755, %v2756
    %v2758 = vrot.slane %v2757, 2
    %v2759 = vadd.f32 %v2757, %v2758
    %v2760 = vrot.slane %v2759, 1
    %v2761 = vadd.f32 %v2759, %v2760
    %v2762 = vsel %vm56, %v2711, 0.0
    %v2763 = vsel %vm56, %v2712, 0.0
    %v2764 = vadd.f32 %v2762, %v2763
    %v2765 = vrot.slane %v2764, 4
    %v2766 = vadd.f32 %v2764, %v2765
    %v2767 = vrot.slane %v2766, 2
    %v2768 = vadd.f32 %v2766, %v2767
    %v2769 = vrot.slane %v2768, 1
    %v2770 = vadd.f32 %v2768, %v2769
    %v2771 = vsel %vm56, %v2713, 0.0
    %v2772 = vsel %vm56, %v2714, 0.0
    %v2773 = vadd.f32 %v2771, %v2772
    %v2774 = vrot.slane %v2773, 4
    %v2775 = vadd.f32 %v2773, %v2774
    %v2776 = vrot.slane %v2775, 2
    %v2777 = vadd.f32 %v2775, %v2776
    %v2778 = vrot.slane %v2777, 1
    %v2779 = vadd.f32 %v2777, %v2778
    %v2780 = vsel %vm56, %v2715, 0.0
    %v2781 = vsel %vm56, %v2716, 0.0
    %v2782 = vadd.f32 %v2780, %v2781
    %v2783 = vrot.slane %v2782, 4
    %v2784 = vadd.f32 %v2782, %v2783
    %v2785 = vrot.slane %v2784, 2
    %v2786 = vadd.f32 %v2784, %v2785
    %v2787 = vrot.slane %v2786, 1
    %v2788 = vadd.f32 %v2786, %v2787
    %v2789 = vperm.slane %v590, 0
    %v2790 = vlaneseq
    %v2791 = vshrl.u32 %v2790, 7
    %2793 = vset.pattern.permute.xlu0 %v2791
    %2794 = vperm.xlu0 %2793, %v2789
    %v2795 = vpop.permute.xlu0 %2794
    %v2796 = vperm.slane %v590, 1
    %v2797 = vlaneseq
    %v2798 = vshrl.u32 %v2797, 7
    %2800 = vset.pattern.permute.xlu0 %v2798
    %2801 = vperm.xlu0 %2800, %v2796
    %v2802 = vpop.permute.xlu0 %2801
    %v2805 = vrot.slane %v2795, 1
    %v2806 = vrot.slane %v2795, 2
    %v2807 = vrot.slane %v2795, 3
    %v2808 = vrot.slane %v2802, 1
    %v2809 = vrot.slane %v2802, 2
    %v2810 = vrot.slane %v2802, 3
    %v2819 = vmul.f32 %v2725, %v2795
    %v2820 = vmul.f32 %v2734, %v2805
    %v2821 = vmul.f32 %v2743, %v2806
    %v2822 = vmul.f32 %v2752, %v2807
    %v2823 = vmul.f32 %v2761, %v2802
    %v2824 = vmul.f32 %v2770, %v2808
    %v2825 = vmul.f32 %v2779, %v2809
    %v2826 = vmul.f32 %v2788, %v2810
    %v2835 = vrot.slane %v2820, 7
    %v2836 = vsel %vm904, %v2835, %v2819
    %v2837 = vrot.slane %v2821, 6
    %v2838 = vsel %vm907, %v2837, %v2836
    %v2839 = vrot.slane %v2822, 5
    %v2840 = vsel %vm910, %v2839, %v2838
    %v2841 = vrot.slane %v2824, 7
    %v2842 = vsel %vm904, %v2841, %v2823
    %v2843 = vrot.slane %v2825, 6
    %v2844 = vsel %vm907, %v2843, %v2842
    %v2845 = vrot.slane %v2826, 5
    %v2846 = vsel %vm910, %v2845, %v2844
    %v2849 = vsel %vm920, %v2840, 0.0
    %v2850 = vrot.slane %v2849, 4
    %v2851 = vadd.f32 %v2849, %v2850
    %v2852 = vrot.slane %v2851, 2
    %v2853 = vadd.f32 %v2851, %v2852
    %v2854 = vrot.slane %v2853, 1
    %v2855 = vadd.f32 %v2853, %v2854
    %v2856 = vsel %vm920, %v2846, 0.0
    %v2857 = vrot.slane %v2856, 4
    %v2858 = vadd.f32 %v2856, %v2857
    %v2859 = vrot.slane %v2858, 2
    %v2860 = vadd.f32 %v2858, %v2859
    %v2861 = vrot.slane %v2860, 1
    %v2862 = vadd.f32 %v2860, %v2861
    %v2863 = vadd.f32 %v2855, 1e-06
    %v2864 = vadd.f32 %v2862, 1e-06
    %v2865 = vlog2.pop %v2863
    %v2866 = vmul.f32 %v2865, 0.6931472
    %v2867 = vlog2.pop %v2864
    %v2868 = vmul.f32 %v2867, 0.6931472
    %v2870 = vrot.slane %v459, 1
    %v2873 = vadd.f32 %v2866, %v459
    %v2874 = vadd.f32 %v2868, %v2870
    %v2877 = vrot.slane %v2874, 7
    %v2878 = vsel %vm904, %v2877, %v2873
    %v2880 = vsel %vm952, %v2878, -inf
    %2881 = vmax.xlane.f32.xlu0 %v2880
    %v2882 = vpop.xlane.xlu0 %2881
    %v2884 = vrot.slane %v2882, 1
    %v2887 = vsub.f32 %v2873, %v2882
    %v2888 = vsub.f32 %v2874, %v2884
    %v2889 = vmul.f32 %v2887, 1.442695
    %v2890 = vpow.pop %v2889
    %v2891 = vmul.f32 %v2888, 1.442695
    %v2892 = vpow.pop %v2891
    %v2895 = vrot.slane %v2892, 7
    %v2896 = vsel %vm904, %v2895, %v2890
    %v2898 = vsel %vm952, %v2896, 0.0
    %2899 = vadd.xlane.f32.xlu0 %v2898
    %v2900 = vpop.xlane.xlu0 %2899
    %v2902 = vrot.slane %v2900, 1
    %v2905 = vrcp.pop %v2900
    %v2906 = vmul.f32 %v2900, %v2905
    %v2907 = vsub.f32 1.0, %v2906
    %v2908 = vmul.f32 %v2905, %v2907
    %v2909 = vadd.f32 %v2905, %v2908
    %vm2910 = vweird.f32 %v2900
    %vm2911 = vweird.f32 %v2905
    %vm2912 = vmor %vm2910, %vm2911
    %v2913 = vsel %vm2912, %v2905, %v2909
    %v2914 = vand.u32 2147483647, %v2900
    %vm2915 = vcmp.eq.f32.partialorder %v2914, 8.507059e+37
    %v2916 = vand.u32 %v2900, 2147483648
    %v2917 = vor.u32 1.1754944e-38, %v2916
    %v2918 = vsel %vm2915, %v2917, %v2913
    %v2919 = vmul.f32 %v2890, %v2918
    %v2920 = vrcp.pop %v2902
    %v2921 = vmul.f32 %v2902, %v2920
    %v2922 = vsub.f32 1.0, %v2921
    %v2923 = vmul.f32 %v2920, %v2922
    %v2924 = vadd.f32 %v2920, %v2923
    %vm2925 = vweird.f32 %v2902
    %vm2926 = vweird.f32 %v2920
    %vm2927 = vmor %vm2925, %vm2926
    %v2928 = vsel %vm2927, %v2920, %v2924
    %v2929 = vand.u32 2147483647, %v2902
    %vm2930 = vcmp.eq.f32.partialorder %v2929, 8.507059e+37
    %v2931 = vand.u32 %v2902, 2147483648
    %v2932 = vor.u32 1.1754944e-38, %v2931
    %v2933 = vsel %vm2930, %v2932, %v2928
    %v2934 = vmul.f32 %v2892, %v2933
    %v2937 = vrot.slane %v2934, 7
    %v2938 = vsel %vm904, %v2937, %v2919
    %s2940 = scalar_lea.vmem [#allocation3], 4
    %2941 = vst.msk [vmem:[%s2940] sm:$0x3] %vm952, %v2938
    %v2942 = vperm.slane %v2919, 0
    %v2943 = vperm.slane %v2934, 0
    %v2944 = vmul.f32 %v441, %v2942
    %v2945 = vmul.f32 %v442, %v2943
    %v2946 = vmul.f32 %v443, %v2942
    %v2947 = vmul.f32 %v444, %v2943
    %v2948 = vmul.f32 %v445, %v2942
    %v2949 = vmul.f32 %v446, %v2943
    %v2950 = vmul.f32 %v447, %v2942
    %v2951 = vmul.f32 %v448, %v2943
    %v2952 = vmul.f32 %v449, %v2942
    %v2953 = vmul.f32 %v450, %v2943
    %v2954 = vmul.f32 %v451, %v2942
    %v2955 = vmul.f32 %v452, %v2943
    %v2956 = vmul.f32 %v453, %v2942
    %v2957 = vmul.f32 %v454, %v2943
    %v2958 = vmul.f32 %v455, %v2942
    %v2959 = vmul.f32 %v456, %v2943
    %v2960 = vsel %vm920, %v2944, 0.0
    %2961 = vadd.xlane.f32.xlu0 %v2960
    %v2962 = vpop.xlane.xlu0 %2961
    %v2963 = vsel %vm920, %v2945, 0.0
    %2964 = vadd.xlane.f32.xlu0 %v2963
    %v2965 = vpop.xlane.xlu0 %2964
    %v2966 = vsel %vm920, %v2946, 0.0
    %2967 = vadd.xlane.f32.xlu0 %v2966
    %v2968 = vpop.xlane.xlu0 %2967
    %v2969 = vsel %vm920, %v2947, 0.0
    %2970 = vadd.xlane.f32.xlu0 %v2969
    %v2971 = vpop.xlane.xlu0 %2970
    %v2972 = vsel %vm920, %v2948, 0.0
    %2973 = vadd.xlane.f32.xlu0 %v2972
    %v2974 = vpop.xlane.xlu0 %2973
    %v2975 = vsel %vm920, %v2949, 0.0
    %2976 = vadd.xlane.f32.xlu0 %v2975
    %v2977 = vpop.xlane.xlu0 %2976
    %v2978 = vsel %vm920, %v2950, 0.0
    %2979 = vadd.xlane.f32.xlu0 %v2978
    %v2980 = vpop.xlane.xlu0 %2979
    %v2981 = vsel %vm920, %v2951, 0.0
    %2982 = vadd.xlane.f32.xlu0 %v2981
    %v2983 = vpop.xlane.xlu0 %2982
    %v2984 = vsel %vm920, %v2952, 0.0
    %2985 = vadd.xlane.f32.xlu0 %v2984
    %v2986 = vpop.xlane.xlu0 %2985
    %v2987 = vsel %vm920, %v2953, 0.0
    %2988 = vadd.xlane.f32.xlu0 %v2987
    %v2989 = vpop.xlane.xlu0 %2988
    %v2990 = vsel %vm920, %v2954, 0.0
    %2991 = vadd.xlane.f32.xlu0 %v2990
    %v2992 = vpop.xlane.xlu0 %2991
    %v2993 = vsel %vm920, %v2955, 0.0
    %2994 = vadd.xlane.f32.xlu0 %v2993
    %v2995 = vpop.xlane.xlu0 %2994
    %v2996 = vsel %vm920, %v2956, 0.0
    %2997 = vadd.xlane.f32.xlu0 %v2996
    %v2998 = vpop.xlane.xlu0 %2997
    %v2999 = vsel %vm920, %v2957, 0.0
    %3000 = vadd.xlane.f32.xlu0 %v2999
    %v3001 = vpop.xlane.xlu0 %3000
    %v3002 = vsel %vm920, %v2958, 0.0
    %3003 = vadd.xlane.f32.xlu0 %v3002
    %v3004 = vpop.xlane.xlu0 %3003
    %v3005 = vsel %vm920, %v2959, 0.0
    %3006 = vadd.xlane.f32.xlu0 %v3005
    %v3007 = vpop.xlane.xlu0 %3006
    %v3024 = vperm.slane %v2962, %v1097
    %v3025 = vperm.slane %v2965, %v1097
    %v3026 = vperm.slane %v2968, %v1097
    %v3027 = vperm.slane %v2971, %v1097
    %v3028 = vperm.slane %v2974, %v1097
    %v3029 = vperm.slane %v2977, %v1097
    %v3030 = vperm.slane %v2980, %v1097
    %v3031 = vperm.slane %v2983, %v1097
    %v3032 = vperm.slane %v2986, %v1097
    %v3033 = vperm.slane %v2989, %v1097
    %v3034 = vperm.slane %v2992, %v1097
    %v3035 = vperm.slane %v2995, %v1097
    %v3036 = vperm.slane %v2998, %v1097
    %v3037 = vperm.slane %v3001, %v1097
    %v3038 = vperm.slane %v3004, %v1097
    %v3039 = vperm.slane %v3007, %v1097
    %v3040 = vsel %vm904, %v3025, %v3024
    %v3041 = vsel %vm904, %v3027, %v3026
    %v3042 = vsel %vm904, %v3029, %v3028
    %v3043 = vsel %vm904, %v3031, %v3030
    %v3044 = vsel %vm904, %v3033, %v3032
    %v3045 = vsel %vm904, %v3035, %v3034
    %v3046 = vsel %vm904, %v3037, %v3036
    %v3047 = vsel %vm904, %v3039, %v3038
    %v3056 = vsel %vm473, %v3040, -inf
    %3057 = vmax.xlane.f32.xlu0 %v3056
    %v3058 = vpop.xlane.xlu0 %3057
    %v3059 = vsel %vm473, %v3041, -inf
    %3060 = vmax.xlane.f32.xlu0 %v3059
    %v3061 = vpop.xlane.xlu0 %3060
    %v3062 = vsel %vm473, %v3042, -inf
    %3063 = vmax.xlane.f32.xlu0 %v3062
    %v3064 = vpop.xlane.xlu0 %3063
    %v3065 = vsel %vm473, %v3043, -inf
    %3066 = vmax.xlane.f32.xlu0 %v3065
    %v3067 = vpop.xlane.xlu0 %3066
    %v3068 = vsel %vm473, %v3044, -inf
    %3069 = vmax.xlane.f32.xlu0 %v3068
    %v3070 = vpop.xlane.xlu0 %3069
    %v3071 = vsel %vm473, %v3045, -inf
    %3072 = vmax.xlane.f32.xlu0 %v3071
    %v3073 = vpop.xlane.xlu0 %3072
    %v3074 = vsel %vm473, %v3046, -inf
    %3075 = vmax.xlane.f32.xlu0 %v3074
    %v3076 = vpop.xlane.xlu0 %3075
    %v3077 = vsel %vm473, %v3047, -inf
    %3078 = vmax.xlane.f32.xlu0 %v3077
    %v3079 = vpop.xlane.xlu0 %3078
    %v3088 = vperm.slane %v3058, 0
    %v3089 = vperm.slane %v3058, 1
    %v3090 = vperm.slane %v3061, 0
    %v3091 = vperm.slane %v3061, 1
    %v3092 = vperm.slane %v3064, 0
    %v3093 = vperm.slane %v3064, 1
    %v3094 = vperm.slane %v3067, 0
    %v3095 = vperm.slane %v3067, 1
    %v3096 = vperm.slane %v3070, 0
    %v3097 = vperm.slane %v3070, 1
    %v3098 = vperm.slane %v3073, 0
    %v3099 = vperm.slane %v3073, 1
    %v3100 = vperm.slane %v3076, 0
    %v3101 = vperm.slane %v3076, 1
    %v3102 = vperm.slane %v3079, 0
    %v3103 = vperm.slane %v3079, 1
    %v3120 = vsub.f32 %v2962, %v3088
    %v3121 = vsub.f32 %v2965, %v3089
    %v3122 = vsub.f32 %v2968, %v3090
    %v3123 = vsub.f32 %v2971, %v3091
    %v3124 = vsub.f32 %v2974, %v3092
    %v3125 = vsub.f32 %v2977, %v3093
    %v3126 = vsub.f32 %v2980, %v3094
    %v3127 = vsub.f32 %v2983, %v3095
    %v3128 = vsub.f32 %v2986, %v3096
    %v3129 = vsub.f32 %v2989, %v3097
    %v3130 = vsub.f32 %v2992, %v3098
    %v3131 = vsub.f32 %v2995, %v3099
    %v3132 = vsub.f32 %v2998, %v3100
    %v3133 = vsub.f32 %v3001, %v3101
    %v3134 = vsub.f32 %v3004, %v3102
    %v3135 = vsub.f32 %v3007, %v3103
    %v3136 = vmul.f32 %v3120, 1.442695
    %v3137 = vpow.pop %v3136
    %v3138 = vmul.f32 %v3121, 1.442695
    %v3139 = vpow.pop %v3138
    %v3140 = vmul.f32 %v3122, 1.442695
    %v3141 = vpow.pop %v3140
    %v3142 = vmul.f32 %v3123, 1.442695
    %v3143 = vpow.pop %v3142
    %v3144 = vmul.f32 %v3124, 1.442695
    %v3145 = vpow.pop %v3144
    %v3146 = vmul.f32 %v3125, 1.442695
    %v3147 = vpow.pop %v3146
    %v3148 = vmul.f32 %v3126, 1.442695
    %v3149 = vpow.pop %v3148
    %v3150 = vmul.f32 %v3127, 1.442695
    %v3151 = vpow.pop %v3150
    %v3152 = vmul.f32 %v3128, 1.442695
    %v3153 = vpow.pop %v3152
    %v3154 = vmul.f32 %v3129, 1.442695
    %v3155 = vpow.pop %v3154
    %v3156 = vmul.f32 %v3130, 1.442695
    %v3157 = vpow.pop %v3156
    %v3158 = vmul.f32 %v3131, 1.442695
    %v3159 = vpow.pop %v3158
    %v3160 = vmul.f32 %v3132, 1.442695
    %v3161 = vpow.pop %v3160
    %v3162 = vmul.f32 %v3133, 1.442695
    %v3163 = vpow.pop %v3162
    %v3164 = vmul.f32 %v3134, 1.442695
    %v3165 = vpow.pop %v3164
    %v3166 = vmul.f32 %v3135, 1.442695
    %v3167 = vpow.pop %v3166
    %3184 = vset.pattern.permute.xlu0 0
    %3185 = vperm.xlu0 %3184, %v3137
    %v3186 = vpop.permute.xlu0 %3185
    %3187 = vset.pattern.permute.xlu0 0
    %3188 = vperm.xlu0 %3187, %v3139
    %v3189 = vpop.permute.xlu0 %3188
    %3190 = vset.pattern.permute.xlu0 0
    %3191 = vperm.xlu0 %3190, %v3141
    %v3192 = vpop.permute.xlu0 %3191
    %3193 = vset.pattern.permute.xlu0 0
    %3194 = vperm.xlu0 %3193, %v3143
    %v3195 = vpop.permute.xlu0 %3194
    %3196 = vset.pattern.permute.xlu0 0
    %3197 = vperm.xlu0 %3196, %v3145
    %v3198 = vpop.permute.xlu0 %3197
    %3199 = vset.pattern.permute.xlu0 0
    %3200 = vperm.xlu0 %3199, %v3147
    %v3201 = vpop.permute.xlu0 %3200
    %3202 = vset.pattern.permute.xlu0 0
    %3203 = vperm.xlu0 %3202, %v3149
    %v3204 = vpop.permute.xlu0 %3203
    %3205 = vset.pattern.permute.xlu0 0
    %3206 = vperm.xlu0 %3205, %v3151
    %v3207 = vpop.permute.xlu0 %3206
    %3208 = vset.pattern.permute.xlu0 0
    %3209 = vperm.xlu0 %3208, %v3153
    %v3210 = vpop.permute.xlu0 %3209
    %3211 = vset.pattern.permute.xlu0 0
    %3212 = vperm.xlu0 %3211, %v3155
    %v3213 = vpop.permute.xlu0 %3212
    %3214 = vset.pattern.permute.xlu0 0
    %3215 = vperm.xlu0 %3214, %v3157
    %v3216 = vpop.permute.xlu0 %3215
    %3217 = vset.pattern.permute.xlu0 0
    %3218 = vperm.xlu0 %3217, %v3159
    %v3219 = vpop.permute.xlu0 %3218
    %3220 = vset.pattern.permute.xlu0 0
    %3221 = vperm.xlu0 %3220, %v3161
    %v3222 = vpop.permute.xlu0 %3221
    %3223 = vset.pattern.permute.xlu0 0
    %3224 = vperm.xlu0 %3223, %v3163
    %v3225 = vpop.permute.xlu0 %3224
    %3226 = vset.pattern.permute.xlu0 0
    %3227 = vperm.xlu0 %3226, %v3165
    %v3228 = vpop.permute.xlu0 %3227
    %3229 = vset.pattern.permute.xlu0 0
    %3230 = vperm.xlu0 %3229, %v3167
    %v3231 = vpop.permute.xlu0 %3230
    %v3232 = vperm.slane %v3186, %v1097
    %v3233 = vperm.slane %v3189, %v1097
    %v3234 = vperm.slane %v3192, %v1097
    %v3235 = vperm.slane %v3195, %v1097
    %v3236 = vperm.slane %v3198, %v1097
    %v3237 = vperm.slane %v3201, %v1097
    %v3238 = vperm.slane %v3204, %v1097
    %v3239 = vperm.slane %v3207, %v1097
    %v3240 = vperm.slane %v3210, %v1097
    %v3241 = vperm.slane %v3213, %v1097
    %v3242 = vperm.slane %v3216, %v1097
    %v3243 = vperm.slane %v3219, %v1097
    %v3244 = vperm.slane %v3222, %v1097
    %v3245 = vperm.slane %v3225, %v1097
    %v3246 = vperm.slane %v3228, %v1097
    %v3247 = vperm.slane %v3231, %v1097
    %v3248 = vsel %vm904, %v3233, %v3232
    %v3249 = vsel %vm904, %v3235, %v3234
    %v3250 = vsel %vm904, %v3237, %v3236
    %v3251 = vsel %vm904, %v3239, %v3238
    %v3252 = vsel %vm904, %v3241, %v3240
    %v3253 = vsel %vm904, %v3243, %v3242
    %v3254 = vsel %vm904, %v3245, %v3244
    %v3255 = vsel %vm904, %v3247, %v3246
    %v3264 = vsel %vm473, %v3248, 0.0
    %3265 = vadd.xlane.f32.xlu0 %v3264
    %v3266 = vpop.xlane.xlu0 %3265
    %v3267 = vsel %vm473, %v3249, 0.0
    %3268 = vadd.xlane.f32.xlu0 %v3267
    %v3269 = vpop.xlane.xlu0 %3268
    %v3270 = vsel %vm473, %v3250, 0.0
    %3271 = vadd.xlane.f32.xlu0 %v3270
    %v3272 = vpop.xlane.xlu0 %3271
    %v3273 = vsel %vm473, %v3251, 0.0
    %3274 = vadd.xlane.f32.xlu0 %v3273
    %v3275 = vpop.xlane.xlu0 %3274
    %v3276 = vsel %vm473, %v3252, 0.0
    %3277 = vadd.xlane.f32.xlu0 %v3276
    %v3278 = vpop.xlane.xlu0 %3277
    %v3279 = vsel %vm473, %v3253, 0.0
    %3280 = vadd.xlane.f32.xlu0 %v3279
    %v3281 = vpop.xlane.xlu0 %3280
    %v3282 = vsel %vm473, %v3254, 0.0
    %3283 = vadd.xlane.f32.xlu0 %v3282
    %v3284 = vpop.xlane.xlu0 %3283
    %v3285 = vsel %vm473, %v3255, 0.0
    %3286 = vadd.xlane.f32.xlu0 %v3285
    %v3287 = vpop.xlane.xlu0 %3286
    %v3296 = vperm.slane %v3266, 0
    %v3297 = vperm.slane %v3266, 1
    %v3298 = vperm.slane %v3269, 0
    %v3299 = vperm.slane %v3269, 1
    %v3300 = vperm.slane %v3272, 0
    %v3301 = vperm.slane %v3272, 1
    %v3302 = vperm.slane %v3275, 0
    %v3303 = vperm.slane %v3275, 1
    %v3304 = vperm.slane %v3278, 0
    %v3305 = vperm.slane %v3278, 1
    %v3306 = vperm.slane %v3281, 0
    %v3307 = vperm.slane %v3281, 1
    %v3308 = vperm.slane %v3284, 0
    %v3309 = vperm.slane %v3284, 1
    %v3310 = vperm.slane %v3287, 0
    %v3311 = vperm.slane %v3287, 1
    %v3328 = vrcp.pop %v3296
    %v3329 = vmul.f32 %v3296, %v3328
    %v3330 = vsub.f32 1.0, %v3329
    %v3331 = vmul.f32 %v3328, %v3330
    %v3332 = vadd.f32 %v3328, %v3331
    %vm3333 = vweird.f32 %v3296
    %vm3334 = vweird.f32 %v3328
    %vm3335 = vmor %vm3333, %vm3334
    %v3336 = vsel %vm3335, %v3328, %v3332
    %v3337 = vand.u32 2147483647, %v3296
    %vm3338 = vcmp.eq.f32.partialorder %v3337, 8.507059e+37
    %v3339 = vand.u32 %v3296, 2147483648
    %v3340 = vor.u32 1.1754944e-38, %v3339
    %v3341 = vsel %vm3338, %v3340, %v3336
    %v3342 = vmul.f32 %v3137, %v3341
    %v3343 = vrcp.pop %v3297
    %v3344 = vmul.f32 %v3297, %v3343
    %v3345 = vsub.f32 1.0, %v3344
    %v3346 = vmul.f32 %v3343, %v3345
    %v3347 = vadd.f32 %v3343, %v3346
    %vm3348 = vweird.f32 %v3297
    %vm3349 = vweird.f32 %v3343
    %vm3350 = vmor %vm3348, %vm3349
    %v3351 = vsel %vm3350, %v3343, %v3347
    %v3352 = vand.u32 2147483647, %v3297
    %vm3353 = vcmp.eq.f32.partialorder %v3352, 8.507059e+37
    %v3354 = vand.u32 %v3297, 2147483648
    %v3355 = vor.u32 1.1754944e-38, %v3354
    %v3356 = vsel %vm3353, %v3355, %v3351
    %v3357 = vmul.f32 %v3139, %v3356
    %v3358 = vrcp.pop %v3298
    %v3359 = vmul.f32 %v3298, %v3358
    %v3360 = vsub.f32 1.0, %v3359
    %v3361 = vmul.f32 %v3358, %v3360
    %v3362 = vadd.f32 %v3358, %v3361
    %vm3363 = vweird.f32 %v3298
    %vm3364 = vweird.f32 %v3358
    %vm3365 = vmor %vm3363, %vm3364
    %v3366 = vsel %vm3365, %v3358, %v3362
    %v3367 = vand.u32 2147483647, %v3298
    %vm3368 = vcmp.eq.f32.partialorder %v3367, 8.507059e+37
    %v3369 = vand.u32 %v3298, 2147483648
    %v3370 = vor.u32 1.1754944e-38, %v3369
    %v3371 = vsel %vm3368, %v3370, %v3366
    %v3372 = vmul.f32 %v3141, %v3371
    %v3373 = vrcp.pop %v3299
    %v3374 = vmul.f32 %v3299, %v3373
    %v3375 = vsub.f32 1.0, %v3374
    %v3376 = vmul.f32 %v3373, %v3375
    %v3377 = vadd.f32 %v3373, %v3376
    %vm3378 = vweird.f32 %v3299
    %vm3379 = vweird.f32 %v3373
    %vm3380 = vmor %vm3378, %vm3379
    %v3381 = vsel %vm3380, %v3373, %v3377
    %v3382 = vand.u32 2147483647, %v3299
    %vm3383 = vcmp.eq.f32.partialorder %v3382, 8.507059e+37
    %v3384 = vand.u32 %v3299, 2147483648
    %v3385 = vor.u32 1.1754944e-38, %v3384
    %v3386 = vsel %vm3383, %v3385, %v3381
    %v3387 = vmul.f32 %v3143, %v3386
    %v3388 = vrcp.pop %v3300
    %v3389 = vmul.f32 %v3300, %v3388
    %v3390 = vsub.f32 1.0, %v3389
    %v3391 = vmul.f32 %v3388, %v3390
    %v3392 = vadd.f32 %v3388, %v3391
    %vm3393 = vweird.f32 %v3300
    %vm3394 = vweird.f32 %v3388
    %vm3395 = vmor %vm3393, %vm3394
    %v3396 = vsel %vm3395, %v3388, %v3392
    %v3397 = vand.u32 2147483647, %v3300
    %vm3398 = vcmp.eq.f32.partialorder %v3397, 8.507059e+37
    %v3399 = vand.u32 %v3300, 2147483648
    %v3400 = vor.u32 1.1754944e-38, %v3399
    %v3401 = vsel %vm3398, %v3400, %v3396
    %v3402 = vmul.f32 %v3145, %v3401
    %v3403 = vrcp.pop %v3301
    %v3404 = vmul.f32 %v3301, %v3403
    %v3405 = vsub.f32 1.0, %v3404
    %v3406 = vmul.f32 %v3403, %v3405
    %v3407 = vadd.f32 %v3403, %v3406
    %vm3408 = vweird.f32 %v3301
    %vm3409 = vweird.f32 %v3403
    %vm3410 = vmor %vm3408, %vm3409
    %v3411 = vsel %vm3410, %v3403, %v3407
    %v3412 = vand.u32 2147483647, %v3301
    %vm3413 = vcmp.eq.f32.partialorder %v3412, 8.507059e+37
    %v3414 = vand.u32 %v3301, 2147483648
    %v3415 = vor.u32 1.1754944e-38, %v3414
    %v3416 = vsel %vm3413, %v3415, %v3411
    %v3417 = vmul.f32 %v3147, %v3416
    %v3418 = vrcp.pop %v3302
    %v3419 = vmul.f32 %v3302, %v3418
    %v3420 = vsub.f32 1.0, %v3419
    %v3421 = vmul.f32 %v3418, %v3420
    %v3422 = vadd.f32 %v3418, %v3421
    %vm3423 = vweird.f32 %v3302
    %vm3424 = vweird.f32 %v3418
    %vm3425 = vmor %vm3423, %vm3424
    %v3426 = vsel %vm3425, %v3418, %v3422
    %v3427 = vand.u32 2147483647, %v3302
    %vm3428 = vcmp.eq.f32.partialorder %v3427, 8.507059e+37
    %v3429 = vand.u32 %v3302, 2147483648
    %v3430 = vor.u32 1.1754944e-38, %v3429
    %v3431 = vsel %vm3428, %v3430, %v3426
    %v3432 = vmul.f32 %v3149, %v3431
    %v3433 = vrcp.pop %v3303
    %v3434 = vmul.f32 %v3303, %v3433
    %v3435 = vsub.f32 1.0, %v3434
    %v3436 = vmul.f32 %v3433, %v3435
    %v3437 = vadd.f32 %v3433, %v3436
    %vm3438 = vweird.f32 %v3303
    %vm3439 = vweird.f32 %v3433
    %vm3440 = vmor %vm3438, %vm3439
    %v3441 = vsel %vm3440, %v3433, %v3437
    %v3442 = vand.u32 2147483647, %v3303
    %vm3443 = vcmp.eq.f32.partialorder %v3442, 8.507059e+37
    %v3444 = vand.u32 %v3303, 2147483648
    %v3445 = vor.u32 1.1754944e-38, %v3444
    %v3446 = vsel %vm3443, %v3445, %v3441
    %v3447 = vmul.f32 %v3151, %v3446
    %v3448 = vrcp.pop %v3304
    %v3449 = vmul.f32 %v3304, %v3448
    %v3450 = vsub.f32 1.0, %v3449
    %v3451 = vmul.f32 %v3448, %v3450
    %v3452 = vadd.f32 %v3448, %v3451
    %vm3453 = vweird.f32 %v3304
    %vm3454 = vweird.f32 %v3448
    %vm3455 = vmor %vm3453, %vm3454
    %v3456 = vsel %vm3455, %v3448, %v3452
    %v3457 = vand.u32 2147483647, %v3304
    %vm3458 = vcmp.eq.f32.partialorder %v3457, 8.507059e+37
    %v3459 = vand.u32 %v3304, 2147483648
    %v3460 = vor.u32 1.1754944e-38, %v3459
    %v3461 = vsel %vm3458, %v3460, %v3456
    %v3462 = vmul.f32 %v3153, %v3461
    %v3463 = vrcp.pop %v3305
    %v3464 = vmul.f32 %v3305, %v3463
    %v3465 = vsub.f32 1.0, %v3464
    %v3466 = vmul.f32 %v3463, %v3465
    %v3467 = vadd.f32 %v3463, %v3466
    %vm3468 = vweird.f32 %v3305
    %vm3469 = vweird.f32 %v3463
    %vm3470 = vmor %vm3468, %vm3469
    %v3471 = vsel %vm3470, %v3463, %v3467
    %v3472 = vand.u32 2147483647, %v3305
    %vm3473 = vcmp.eq.f32.partialorder %v3472, 8.507059e+37
    %v3474 = vand.u32 %v3305, 2147483648
    %v3475 = vor.u32 1.1754944e-38, %v3474
    %v3476 = vsel %vm3473, %v3475, %v3471
    %v3477 = vmul.f32 %v3155, %v3476
    %v3478 = vrcp.pop %v3306
    %v3479 = vmul.f32 %v3306, %v3478
    %v3480 = vsub.f32 1.0, %v3479
    %v3481 = vmul.f32 %v3478, %v3480
    %v3482 = vadd.f32 %v3478, %v3481
    %vm3483 = vweird.f32 %v3306
    %vm3484 = vweird.f32 %v3478
    %vm3485 = vmor %vm3483, %vm3484
    %v3486 = vsel %vm3485, %v3478, %v3482
    %v3487 = vand.u32 2147483647, %v3306
    %vm3488 = vcmp.eq.f32.partialorder %v3487, 8.507059e+37
    %v3489 = vand.u32 %v3306, 2147483648
    %v3490 = vor.u32 1.1754944e-38, %v3489
    %v3491 = vsel %vm3488, %v3490, %v3486
    %v3492 = vmul.f32 %v3157, %v3491
    %v3493 = vrcp.pop %v3307
    %v3494 = vmul.f32 %v3307, %v3493
    %v3495 = vsub.f32 1.0, %v3494
    %v3496 = vmul.f32 %v3493, %v3495
    %v3497 = vadd.f32 %v3493, %v3496
    %vm3498 = vweird.f32 %v3307
    %vm3499 = vweird.f32 %v3493
    %vm3500 = vmor %vm3498, %vm3499
    %v3501 = vsel %vm3500, %v3493, %v3497
    %v3502 = vand.u32 2147483647, %v3307
    %vm3503 = vcmp.eq.f32.partialorder %v3502, 8.507059e+37
    %v3504 = vand.u32 %v3307, 2147483648
    %v3505 = vor.u32 1.1754944e-38, %v3504
    %v3506 = vsel %vm3503, %v3505, %v3501
    %v3507 = vmul.f32 %v3159, %v3506
    %v3508 = vrcp.pop %v3308
    %v3509 = vmul.f32 %v3308, %v3508
    %v3510 = vsub.f32 1.0, %v3509
    %v3511 = vmul.f32 %v3508, %v3510
    %v3512 = vadd.f32 %v3508, %v3511
    %vm3513 = vweird.f32 %v3308
    %vm3514 = vweird.f32 %v3508
    %vm3515 = vmor %vm3513, %vm3514
    %v3516 = vsel %vm3515, %v3508, %v3512
    %v3517 = vand.u32 2147483647, %v3308
    %vm3518 = vcmp.eq.f32.partialorder %v3517, 8.507059e+37
    %v3519 = vand.u32 %v3308, 2147483648
    %v3520 = vor.u32 1.1754944e-38, %v3519
    %v3521 = vsel %vm3518, %v3520, %v3516
    %v3522 = vmul.f32 %v3161, %v3521
    %v3523 = vrcp.pop %v3309
    %v3524 = vmul.f32 %v3309, %v3523
    %v3525 = vsub.f32 1.0, %v3524
    %v3526 = vmul.f32 %v3523, %v3525
    %v3527 = vadd.f32 %v3523, %v3526
    %vm3528 = vweird.f32 %v3309
    %vm3529 = vweird.f32 %v3523
    %vm3530 = vmor %vm3528, %vm3529
    %v3531 = vsel %vm3530, %v3523, %v3527
    %v3532 = vand.u32 2147483647, %v3309
    %vm3533 = vcmp.eq.f32.partialorder %v3532, 8.507059e+37
    %v3534 = vand.u32 %v3309, 2147483648
    %v3535 = vor.u32 1.1754944e-38, %v3534
    %v3536 = vsel %vm3533, %v3535, %v3531
    %v3537 = vmul.f32 %v3163, %v3536
    %v3538 = vrcp.pop %v3310
    %v3539 = vmul.f32 %v3310, %v3538
    %v3540 = vsub.f32 1.0, %v3539
    %v3541 = vmul.f32 %v3538, %v3540
    %v3542 = vadd.f32 %v3538, %v3541
    %vm3543 = vweird.f32 %v3310
    %vm3544 = vweird.f32 %v3538
    %vm3545 = vmor %vm3543, %vm3544
    %v3546 = vsel %vm3545, %v3538, %v3542
    %v3547 = vand.u32 2147483647, %v3310
    %vm3548 = vcmp.eq.f32.partialorder %v3547, 8.507059e+37
    %v3549 = vand.u32 %v3310, 2147483648
    %v3550 = vor.u32 1.1754944e-38, %v3549
    %v3551 = vsel %vm3548, %v3550, %v3546
    %v3552 = vmul.f32 %v3165, %v3551
    %v3553 = vrcp.pop %v3311
    %v3554 = vmul.f32 %v3311, %v3553
    %v3555 = vsub.f32 1.0, %v3554
    %v3556 = vmul.f32 %v3553, %v3555
    %v3557 = vadd.f32 %v3553, %v3556
    %vm3558 = vweird.f32 %v3311
    %vm3559 = vweird.f32 %v3553
    %vm3560 = vmor %vm3558, %vm3559
    %v3561 = vsel %vm3560, %v3553, %v3557
    %v3562 = vand.u32 2147483647, %v3311
    %vm3563 = vcmp.eq.f32.partialorder %v3562, 8.507059e+37
    %v3564 = vand.u32 %v3311, 2147483648
    %v3565 = vor.u32 1.1754944e-38, %v3564
    %v3566 = vsel %vm3563, %v3565, %v3561
    %v3567 = vmul.f32 %v3167, %v3566
    %v3568 = vmul.f32 %v3342, %v1646
    %v3569 = vmul.f32 %v3357, %v1647
    %v3570 = vmul.f32 %v3372, %v1655
    %v3571 = vmul.f32 %v3387, %v1656
    %v3572 = vadd.f32 %v3568, %v3570
    %v3573 = vadd.f32 %v3569, %v3571
    %v3574 = vmul.f32 %v3402, %v1666
    %v3575 = vmul.f32 %v3417, %v1667
    %v3576 = vadd.f32 %v3572, %v3574
    %v3577 = vadd.f32 %v3573, %v3575
    %v3578 = vmul.f32 %v3432, %v1677
    %v3579 = vmul.f32 %v3447, %v1678
    %v3580 = vadd.f32 %v3576, %v3578
    %v3581 = vadd.f32 %v3577, %v3579
    %v3582 = vmul.f32 %v3462, %v1688
    %v3583 = vmul.f32 %v3477, %v1689
    %v3584 = vadd.f32 %v3580, %v3582
    %v3585 = vadd.f32 %v3581, %v3583
    %v3586 = vmul.f32 %v3492, %v1699
    %v3587 = vmul.f32 %v3507, %v1700
    %v3588 = vadd.f32 %v3584, %v3586
    %v3589 = vadd.f32 %v3585, %v3587
    %v3590 = vmul.f32 %v3522, %v1710
    %v3591 = vmul.f32 %v3537, %v1711
    %v3592 = vadd.f32 %v3588, %v3590
    %v3593 = vadd.f32 %v3589, %v3591
    %v3594 = vmul.f32 %v3552, %v1721
    %v3595 = vmul.f32 %v3567, %v1722
    %v3596 = vadd.f32 %v3592, %v3594
    %v3597 = vadd.f32 %v3593, %v3595
    %3600 = vset.pattern.permute.xlu0 0
    %3601 = vperm.xlu0 %3600, %v3596
    %v3602 = vpop.permute.xlu0 %3601
    %3603 = vset.pattern.permute.xlu0 0
    %3604 = vperm.xlu0 %3603, %v3597
    %v3605 = vpop.permute.xlu0 %3604
    %v3606 = vperm.slane %v3602, %v1097
    %v3607 = vperm.slane %v3605, %v1097
    %v3608 = vsel %vm904, %v3607, %v3606
    %s3610 = scalar_lea.vmem %s11, 4
    %3611 = vst.msk [vmem:[%s3610] sm:$0x3] %vm473, %v3608
    %v3612 = vlaneseq
    %v3613 = vshrl.u32 %v3612, 7
    %3615 = vset.pattern.permute.xlu0 %v3613
    %3616 = vperm.xlu0 %3615, %v2942
    %v3617 = vpop.permute.xlu0 %3616
    %v3618 = vlaneseq
    %v3619 = vshrl.u32 %v3618, 7
    %v3620 = vadd.s32 %v3619, 8
    %3621 = vset.pattern.permute.xlu0 %v3620
    %3622 = vperm.xlu0 %3621, %v2942
    %v3623 = vpop.permute.xlu0 %3622
    %v3624 = vlaneseq
    %v3625 = vshrl.u32 %v3624, 7
    %3627 = vset.pattern.permute.xlu0 %v3625
    %3628 = vperm.xlu0 %3627, %v2943
    %v3629 = vpop.permute.xlu0 %3628
    %v3630 = vlaneseq
    %v3631 = vshrl.u32 %v3630, 7
    %v3632 = vadd.s32 %v3631, 8
    %3633 = vset.pattern.permute.xlu0 %v3632
    %3634 = vperm.xlu0 %3633, %v2943
    %v3635 = vpop.permute.xlu0 %3634
    %v3636 = vmul.f32 %v215, %v3617
    %v3637 = vmul.f32 %v230, %v3623
    %v3638 = vmul.f32 %v245, %v3617
    %v3639 = vmul.f32 %v260, %v3623
    %v3640 = vmul.f32 %v275, %v3617
    %v3641 = vmul.f32 %v290, %v3623
    %v3642 = vmul.f32 %v305, %v3617
    %v3643 = vmul.f32 %v320, %v3623
    %v3644 = vmul.f32 %v335, %v3629
    %v3645 = vmul.f32 %v350, %v3635
    %v3646 = vmul.f32 %v365, %v3629
    %v3647 = vmul.f32 %v380, %v3635
    %v3648 = vmul.f32 %v395, %v3629
    %v3649 = vmul.f32 %v410, %v3635
    %v3650 = vmul.f32 %v425, %v3629
    %v3651 = vmul.f32 %v440, %v3635
    %v3652 = vsel %vm56, %v3636, 0.0
    %v3653 = vsel %vm56, %v3637, 0.0
    %v3654 = vadd.f32 %v3652, %v3653
    %v3655 = vrot.slane %v3654, 4
    %v3656 = vadd.f32 %v3654, %v3655
    %v3657 = vrot.slane %v3656, 2
    %v3658 = vadd.f32 %v3656, %v3657
    %v3659 = vrot.slane %v3658, 1
    %v3660 = vadd.f32 %v3658, %v3659
    %v3661 = vsel %vm56, %v3638, 0.0
    %v3662 = vsel %vm56, %v3639, 0.0
    %v3663 = vadd.f32 %v3661, %v3662
    %v3664 = vrot.slane %v3663, 4
    %v3665 = vadd.f32 %v3663, %v3664
    %v3666 = vrot.slane %v3665, 2
    %v3667 = vadd.f32 %v3665, %v3666
    %v3668 = vrot.slane %v3667, 1
    %v3669 = vadd.f32 %v3667, %v3668
    %v3670 = vsel %vm56, %v3640, 0.0
    %v3671 = vsel %vm56, %v3641, 0.0
    %v3672 = vadd.f32 %v3670, %v3671
    %v3673 = vrot.slane %v3672, 4
    %v3674 = vadd.f32 %v3672, %v3673
    %v3675 = vrot.slane %v3674, 2
    %v3676 = vadd.f32 %v3674, %v3675
    %v3677 = vrot.slane %v3676, 1
    %v3678 = vadd.f32 %v3676, %v3677
    %v3679 = vsel %vm56, %v3642, 0.0
    %v3680 = vsel %vm56, %v3643, 0.0
    %v3681 = vadd.f32 %v3679, %v3680
    %v3682 = vrot.slane %v3681, 4
    %v3683 = vadd.f32 %v3681, %v3682
    %v3684 = vrot.slane %v3683, 2
    %v3685 = vadd.f32 %v3683, %v3684
    %v3686 = vrot.slane %v3685, 1
    %v3687 = vadd.f32 %v3685, %v3686
    %v3688 = vsel %vm56, %v3644, 0.0
    %v3689 = vsel %vm56, %v3645, 0.0
    %v3690 = vadd.f32 %v3688, %v3689
    %v3691 = vrot.slane %v3690, 4
    %v3692 = vadd.f32 %v3690, %v3691
    %v3693 = vrot.slane %v3692, 2
    %v3694 = vadd.f32 %v3692, %v3693
    %v3695 = vrot.slane %v3694, 1
    %v3696 = vadd.f32 %v3694, %v3695
    %v3697 = vsel %vm56, %v3646, 0.0
    %v3698 = vsel %vm56, %v3647, 0.0
    %v3699 = vadd.f32 %v3697, %v3698
    %v3700 = vrot.slane %v3699, 4
    %v3701 = vadd.f32 %v3699, %v3700
    %v3702 = vrot.slane %v3701, 2
    %v3703 = vadd.f32 %v3701, %v3702
    %v3704 = vrot.slane %v3703, 1
    %v3705 = vadd.f32 %v3703, %v3704
    %v3706 = vsel %vm56, %v3648, 0.0
    %v3707 = vsel %vm56, %v3649, 0.0
    %v3708 = vadd.f32 %v3706, %v3707
    %v3709 = vrot.slane %v3708, 4
    %v3710 = vadd.f32 %v3708, %v3709
    %v3711 = vrot.slane %v3710, 2
    %v3712 = vadd.f32 %v3710, %v3711
    %v3713 = vrot.slane %v3712, 1
    %v3714 = vadd.f32 %v3712, %v3713
    %v3715 = vsel %vm56, %v3650, 0.0
    %v3716 = vsel %vm56, %v3651, 0.0
    %v3717 = vadd.f32 %v3715, %v3716
    %v3718 = vrot.slane %v3717, 4
    %v3719 = vadd.f32 %v3717, %v3718
    %v3720 = vrot.slane %v3719, 2
    %v3721 = vadd.f32 %v3719, %v3720
    %v3722 = vrot.slane %v3721, 1
    %v3723 = vadd.f32 %v3721, %v3722
    %v3724 = vperm.slane %v605, 0
    %v3725 = vlaneseq
    %v3726 = vshrl.u32 %v3725, 7
    %3728 = vset.pattern.permute.xlu0 %v3726
    %3729 = vperm.xlu0 %3728, %v3724
    %v3730 = vpop.permute.xlu0 %3729
    %v3731 = vperm.slane %v605, 1
    %v3732 = vlaneseq
    %v3733 = vshrl.u32 %v3732, 7
    %3735 = vset.pattern.permute.xlu0 %v3733
    %3736 = vperm.xlu0 %3735, %v3731
    %v3737 = vpop.permute.xlu0 %3736
    %v3740 = vrot.slane %v3730, 1
    %v3741 = vrot.slane %v3730, 2
    %v3742 = vrot.slane %v3730, 3
    %v3743 = vrot.slane %v3737, 1
    %v3744 = vrot.slane %v3737, 2
    %v3745 = vrot.slane %v3737, 3
    %v3754 = vmul.f32 %v3660, %v3730
    %v3755 = vmul.f32 %v3669, %v3740
    %v3756 = vmul.f32 %v3678, %v3741
    %v3757 = vmul.f32 %v3687, %v3742
    %v3758 = vmul.f32 %v3696, %v3737
    %v3759 = vmul.f32 %v3705, %v3743
    %v3760 = vmul.f32 %v3714, %v3744
    %v3761 = vmul.f32 %v3723, %v3745
    %v3770 = vrot.slane %v3755, 7
    %v3771 = vsel %vm904, %v3770, %v3754
    %v3772 = vrot.slane %v3756, 6
    %v3773 = vsel %vm907, %v3772, %v3771
    %v3774 = vrot.slane %v3757, 5
    %v3775 = vsel %vm910, %v3774, %v3773
    %v3776 = vrot.slane %v3759, 7
    %v3777 = vsel %vm904, %v3776, %v3758
    %v3778 = vrot.slane %v3760, 6
    %v3779 = vsel %vm907, %v3778, %v3777
    %v3780 = vrot.slane %v3761, 5
    %v3781 = vsel %vm910, %v3780, %v3779
    %v3784 = vsel %vm920, %v3775, 0.0
    %v3785 = vrot.slane %v3784, 4
    %v3786 = vadd.f32 %v3784, %v3785
    %v3787 = vrot.slane %v3786, 2
    %v3788 = vadd.f32 %v3786, %v3787
    %v3789 = vrot.slane %v3788, 1
    %v3790 = vadd.f32 %v3788, %v3789
    %v3791 = vsel %vm920, %v3781, 0.0
    %v3792 = vrot.slane %v3791, 4
    %v3793 = vadd.f32 %v3791, %v3792
    %v3794 = vrot.slane %v3793, 2
    %v3795 = vadd.f32 %v3793, %v3794
    %v3796 = vrot.slane %v3795, 1
    %v3797 = vadd.f32 %v3795, %v3796
    %v3798 = vadd.f32 %v3790, 1e-06
    %v3799 = vadd.f32 %v3797, 1e-06
    %v3800 = vlog2.pop %v3798
    %v3801 = vmul.f32 %v3800, 0.6931472
    %v3802 = vlog2.pop %v3799
    %v3803 = vmul.f32 %v3802, 0.6931472
    %v3805 = vrot.slane %v460, 1
    %v3808 = vadd.f32 %v3801, %v460
    %v3809 = vadd.f32 %v3803, %v3805
    %v3812 = vrot.slane %v3809, 7
    %v3813 = vsel %vm904, %v3812, %v3808
    %v3815 = vsel %vm952, %v3813, -inf
    %3816 = vmax.xlane.f32.xlu0 %v3815
    %v3817 = vpop.xlane.xlu0 %3816
    %v3819 = vrot.slane %v3817, 1
    %v3822 = vsub.f32 %v3808, %v3817
    %v3823 = vsub.f32 %v3809, %v3819
    %v3824 = vmul.f32 %v3822, 1.442695
    %v3825 = vpow.pop %v3824
    %v3826 = vmul.f32 %v3823, 1.442695
    %v3827 = vpow.pop %v3826
    %v3830 = vrot.slane %v3827, 7
    %v3831 = vsel %vm904, %v3830, %v3825
    %v3833 = vsel %vm952, %v3831, 0.0
    %3834 = vadd.xlane.f32.xlu0 %v3833
    %v3835 = vpop.xlane.xlu0 %3834
    %v3837 = vrot.slane %v3835, 1
    %v3840 = vrcp.pop %v3835
    %v3841 = vmul.f32 %v3835, %v3840
    %v3842 = vsub.f32 1.0, %v3841
    %v3843 = vmul.f32 %v3840, %v3842
    %v3844 = vadd.f32 %v3840, %v3843
    %vm3845 = vweird.f32 %v3835
    %vm3846 = vweird.f32 %v3840
    %vm3847 = vmor %vm3845, %vm3846
    %v3848 = vsel %vm3847, %v3840, %v3844
    %v3849 = vand.u32 2147483647, %v3835
    %vm3850 = vcmp.eq.f32.partialorder %v3849, 8.507059e+37
    %v3851 = vand.u32 %v3835, 2147483648
    %v3852 = vor.u32 1.1754944e-38, %v3851
    %v3853 = vsel %vm3850, %v3852, %v3848
    %v3854 = vmul.f32 %v3825, %v3853
    %v3855 = vrcp.pop %v3837
    %v3856 = vmul.f32 %v3837, %v3855
    %v3857 = vsub.f32 1.0, %v3856
    %v3858 = vmul.f32 %v3855, %v3857
    %v3859 = vadd.f32 %v3855, %v3858
    %vm3860 = vweird.f32 %v3837
    %vm3861 = vweird.f32 %v3855
    %vm3862 = vmor %vm3860, %vm3861
    %v3863 = vsel %vm3862, %v3855, %v3859
    %v3864 = vand.u32 2147483647, %v3837
    %vm3865 = vcmp.eq.f32.partialorder %v3864, 8.507059e+37
    %v3866 = vand.u32 %v3837, 2147483648
    %v3867 = vor.u32 1.1754944e-38, %v3866
    %v3868 = vsel %vm3865, %v3867, %v3863
    %v3869 = vmul.f32 %v3827, %v3868
    %v3872 = vrot.slane %v3869, 7
    %v3873 = vsel %vm904, %v3872, %v3854
    %s3875 = scalar_lea.vmem [#allocation3], 6
    %3876 = vst.msk [vmem:[%s3875] sm:$0x3] %vm952, %v3873
    %v3877 = vperm.slane %v3854, 0
    %v3878 = vperm.slane %v3869, 0
    %v3879 = vmul.f32 %v441, %v3877
    %v3880 = vmul.f32 %v442, %v3878
    %v3881 = vmul.f32 %v443, %v3877
    %v3882 = vmul.f32 %v444, %v3878
    %v3883 = vmul.f32 %v445, %v3877
    %v3884 = vmul.f32 %v446, %v3878
    %v3885 = vmul.f32 %v447, %v3877
    %v3886 = vmul.f32 %v448, %v3878
    %v3887 = vmul.f32 %v449, %v3877
    %v3888 = vmul.f32 %v450, %v3878
    %v3889 = vmul.f32 %v451, %v3877
    %v3890 = vmul.f32 %v452, %v3878
    %v3891 = vmul.f32 %v453, %v3877
    %v3892 = vmul.f32 %v454, %v3878
    %v3893 = vmul.f32 %v455, %v3877
    %v3894 = vmul.f32 %v456, %v3878
    %v3895 = vsel %vm920, %v3879, 0.0
    %3896 = vadd.xlane.f32.xlu0 %v3895
    %v3897 = vpop.xlane.xlu0 %3896
    %v3898 = vsel %vm920, %v3880, 0.0
    %3899 = vadd.xlane.f32.xlu0 %v3898
    %v3900 = vpop.xlane.xlu0 %3899
    %v3901 = vsel %vm920, %v3881, 0.0
    %3902 = vadd.xlane.f32.xlu0 %v3901
    %v3903 = vpop.xlane.xlu0 %3902
    %v3904 = vsel %vm920, %v3882, 0.0
    %3905 = vadd.xlane.f32.xlu0 %v3904
    %v3906 = vpop.xlane.xlu0 %3905
    %v3907 = vsel %vm920, %v3883, 0.0
    %3908 = vadd.xlane.f32.xlu0 %v3907
    %v3909 = vpop.xlane.xlu0 %3908
    %v3910 = vsel %vm920, %v3884, 0.0
    %3911 = vadd.xlane.f32.xlu0 %v3910
    %v3912 = vpop.xlane.xlu0 %3911
    %v3913 = vsel %vm920, %v3885, 0.0
    %3914 = vadd.xlane.f32.xlu0 %v3913
    %v3915 = vpop.xlane.xlu0 %3914
    %v3916 = vsel %vm920, %v3886, 0.0
    %3917 = vadd.xlane.f32.xlu0 %v3916
    %v3918 = vpop.xlane.xlu0 %3917
    %v3919 = vsel %vm920, %v3887, 0.0
    %3920 = vadd.xlane.f32.xlu0 %v3919
    %v3921 = vpop.xlane.xlu0 %3920
    %v3922 = vsel %vm920, %v3888, 0.0
    %3923 = vadd.xlane.f32.xlu0 %v3922
    %v3924 = vpop.xlane.xlu0 %3923
    %v3925 = vsel %vm920, %v3889, 0.0
    %3926 = vadd.xlane.f32.xlu0 %v3925
    %v3927 = vpop.xlane.xlu0 %3926
    %v3928 = vsel %vm920, %v3890, 0.0
    %3929 = vadd.xlane.f32.xlu0 %v3928
    %v3930 = vpop.xlane.xlu0 %3929
    %v3931 = vsel %vm920, %v3891, 0.0
    %3932 = vadd.xlane.f32.xlu0 %v3931
    %v3933 = vpop.xlane.xlu0 %3932
    %v3934 = vsel %vm920, %v3892, 0.0
    %3935 = vadd.xlane.f32.xlu0 %v3934
    %v3936 = vpop.xlane.xlu0 %3935
    %v3937 = vsel %vm920, %v3893, 0.0
    %3938 = vadd.xlane.f32.xlu0 %v3937
    %v3939 = vpop.xlane.xlu0 %3938
    %v3940 = vsel %vm920, %v3894, 0.0
    %3941 = vadd.xlane.f32.xlu0 %v3940
    %v3942 = vpop.xlane.xlu0 %3941
    %v3959 = vperm.slane %v3897, %v1097
    %v3960 = vperm.slane %v3900, %v1097
    %v3961 = vperm.slane %v3903, %v1097
    %v3962 = vperm.slane %v3906, %v1097
    %v3963 = vperm.slane %v3909, %v1097
    %v3964 = vperm.slane %v3912, %v1097
    %v3965 = vperm.slane %v3915, %v1097
    %v3966 = vperm.slane %v3918, %v1097
    %v3967 = vperm.slane %v3921, %v1097
    %v3968 = vperm.slane %v3924, %v1097
    %v3969 = vperm.slane %v3927, %v1097
    %v3970 = vperm.slane %v3930, %v1097
    %v3971 = vperm.slane %v3933, %v1097
    %v3972 = vperm.slane %v3936, %v1097
    %v3973 = vperm.slane %v3939, %v1097
    %v3974 = vperm.slane %v3942, %v1097
    %v3975 = vsel %vm904, %v3960, %v3959
    %v3976 = vsel %vm904, %v3962, %v3961
    %v3977 = vsel %vm904, %v3964, %v3963
    %v3978 = vsel %vm904, %v3966, %v3965
    %v3979 = vsel %vm904, %v3968, %v3967
    %v3980 = vsel %vm904, %v3970, %v3969
    %v3981 = vsel %vm904, %v3972, %v3971
    %v3982 = vsel %vm904, %v3974, %v3973
    %v3991 = vsel %vm473, %v3975, -inf
    %3992 = vmax.xlane.f32.xlu0 %v3991
    %v3993 = vpop.xlane.xlu0 %3992
    %v3994 = vsel %vm473, %v3976, -inf
    %3995 = vmax.xlane.f32.xlu0 %v3994
    %v3996 = vpop.xlane.xlu0 %3995
    %v3997 = vsel %vm473, %v3977, -inf
    %3998 = vmax.xlane.f32.xlu0 %v3997
    %v3999 = vpop.xlane.xlu0 %3998
    %v4000 = vsel %vm473, %v3978, -inf
    %4001 = vmax.xlane.f32.xlu0 %v4000
    %v4002 = vpop.xlane.xlu0 %4001
    %v4003 = vsel %vm473, %v3979, -inf
    %4004 = vmax.xlane.f32.xlu0 %v4003
    %v4005 = vpop.xlane.xlu0 %4004
    %v4006 = vsel %vm473, %v3980, -inf
    %4007 = vmax.xlane.f32.xlu0 %v4006
    %v4008 = vpop.xlane.xlu0 %4007
    %v4009 = vsel %vm473, %v3981, -inf
    %4010 = vmax.xlane.f32.xlu0 %v4009
    %v4011 = vpop.xlane.xlu0 %4010
    %v4012 = vsel %vm473, %v3982, -inf
    %4013 = vmax.xlane.f32.xlu0 %v4012
    %v4014 = vpop.xlane.xlu0 %4013
    %v4023 = vperm.slane %v3993, 0
    %v4024 = vperm.slane %v3993, 1
    %v4025 = vperm.slane %v3996, 0
    %v4026 = vperm.slane %v3996, 1
    %v4027 = vperm.slane %v3999, 0
    %v4028 = vperm.slane %v3999, 1
    %v4029 = vperm.slane %v4002, 0
    %v4030 = vperm.slane %v4002, 1
    %v4031 = vperm.slane %v4005, 0
    %v4032 = vperm.slane %v4005, 1
    %v4033 = vperm.slane %v4008, 0
    %v4034 = vperm.slane %v4008, 1
    %v4035 = vperm.slane %v4011, 0
    %v4036 = vperm.slane %v4011, 1
    %v4037 = vperm.slane %v4014, 0
    %v4038 = vperm.slane %v4014, 1
    %v4055 = vsub.f32 %v3897, %v4023
    %v4056 = vsub.f32 %v3900, %v4024
    %v4057 = vsub.f32 %v3903, %v4025
    %v4058 = vsub.f32 %v3906, %v4026
    %v4059 = vsub.f32 %v3909, %v4027
    %v4060 = vsub.f32 %v3912, %v4028
    %v4061 = vsub.f32 %v3915, %v4029
    %v4062 = vsub.f32 %v3918, %v4030
    %v4063 = vsub.f32 %v3921, %v4031
    %v4064 = vsub.f32 %v3924, %v4032
    %v4065 = vsub.f32 %v3927, %v4033
    %v4066 = vsub.f32 %v3930, %v4034
    %v4067 = vsub.f32 %v3933, %v4035
    %v4068 = vsub.f32 %v3936, %v4036
    %v4069 = vsub.f32 %v3939, %v4037
    %v4070 = vsub.f32 %v3942, %v4038
    %v4071 = vmul.f32 %v4055, 1.442695
    %v4072 = vpow.pop %v4071
    %v4073 = vmul.f32 %v4056, 1.442695
    %v4074 = vpow.pop %v4073
    %v4075 = vmul.f32 %v4057, 1.442695
    %v4076 = vpow.pop %v4075
    %v4077 = vmul.f32 %v4058, 1.442695
    %v4078 = vpow.pop %v4077
    %v4079 = vmul.f32 %v4059, 1.442695
    %v4080 = vpow.pop %v4079
    %v4081 = vmul.f32 %v4060, 1.442695
    %v4082 = vpow.pop %v4081
    %v4083 = vmul.f32 %v4061, 1.442695
    %v4084 = vpow.pop %v4083
    %v4085 = vmul.f32 %v4062, 1.442695
    %v4086 = vpow.pop %v4085
    %v4087 = vmul.f32 %v4063, 1.442695
    %v4088 = vpow.pop %v4087
    %v4089 = vmul.f32 %v4064, 1.442695
    %v4090 = vpow.pop %v4089
    %v4091 = vmul.f32 %v4065, 1.442695
    %v4092 = vpow.pop %v4091
    %v4093 = vmul.f32 %v4066, 1.442695
    %v4094 = vpow.pop %v4093
    %v4095 = vmul.f32 %v4067, 1.442695
    %v4096 = vpow.pop %v4095
    %v4097 = vmul.f32 %v4068, 1.442695
    %v4098 = vpow.pop %v4097
    %v4099 = vmul.f32 %v4069, 1.442695
    %v4100 = vpow.pop %v4099
    %v4101 = vmul.f32 %v4070, 1.442695
    %v4102 = vpow.pop %v4101
    %4119 = vset.pattern.permute.xlu0 0
    %4120 = vperm.xlu0 %4119, %v4072
    %v4121 = vpop.permute.xlu0 %4120
    %4122 = vset.pattern.permute.xlu0 0
    %4123 = vperm.xlu0 %4122, %v4074
    %v4124 = vpop.permute.xlu0 %4123
    %4125 = vset.pattern.permute.xlu0 0
    %4126 = vperm.xlu0 %4125, %v4076
    %v4127 = vpop.permute.xlu0 %4126
    %4128 = vset.pattern.permute.xlu0 0
    %4129 = vperm.xlu0 %4128, %v4078
    %v4130 = vpop.permute.xlu0 %4129
    %4131 = vset.pattern.permute.xlu0 0
    %4132 = vperm.xlu0 %4131, %v4080
    %v4133 = vpop.permute.xlu0 %4132
    %4134 = vset.pattern.permute.xlu0 0
    %4135 = vperm.xlu0 %4134, %v4082
    %v4136 = vpop.permute.xlu0 %4135
    %4137 = vset.pattern.permute.xlu0 0
    %4138 = vperm.xlu0 %4137, %v4084
    %v4139 = vpop.permute.xlu0 %4138
    %4140 = vset.pattern.permute.xlu0 0
    %4141 = vperm.xlu0 %4140, %v4086
    %v4142 = vpop.permute.xlu0 %4141
    %4143 = vset.pattern.permute.xlu0 0
    %4144 = vperm.xlu0 %4143, %v4088
    %v4145 = vpop.permute.xlu0 %4144
    %4146 = vset.pattern.permute.xlu0 0
    %4147 = vperm.xlu0 %4146, %v4090
    %v4148 = vpop.permute.xlu0 %4147
    %4149 = vset.pattern.permute.xlu0 0
    %4150 = vperm.xlu0 %4149, %v4092
    %v4151 = vpop.permute.xlu0 %4150
    %4152 = vset.pattern.permute.xlu0 0
    %4153 = vperm.xlu0 %4152, %v4094
    %v4154 = vpop.permute.xlu0 %4153
    %4155 = vset.pattern.permute.xlu0 0
    %4156 = vperm.xlu0 %4155, %v4096
    %v4157 = vpop.permute.xlu0 %4156
    %4158 = vset.pattern.permute.xlu0 0
    %4159 = vperm.xlu0 %4158, %v4098
    %v4160 = vpop.permute.xlu0 %4159
    %4161 = vset.pattern.permute.xlu0 0
    %4162 = vperm.xlu0 %4161, %v4100
    %v4163 = vpop.permute.xlu0 %4162
    %4164 = vset.pattern.permute.xlu0 0
    %4165 = vperm.xlu0 %4164, %v4102
    %v4166 = vpop.permute.xlu0 %4165
    %v4167 = vperm.slane %v4121, %v1097
    %v4168 = vperm.slane %v4124, %v1097
    %v4169 = vperm.slane %v4127, %v1097
    %v4170 = vperm.slane %v4130, %v1097
    %v4171 = vperm.slane %v4133, %v1097
    %v4172 = vperm.slane %v4136, %v1097
    %v4173 = vperm.slane %v4139, %v1097
    %v4174 = vperm.slane %v4142, %v1097
    %v4175 = vperm.slane %v4145, %v1097
    %v4176 = vperm.slane %v4148, %v1097
    %v4177 = vperm.slane %v4151, %v1097
    %v4178 = vperm.slane %v4154, %v1097
    %v4179 = vperm.slane %v4157, %v1097
    %v4180 = vperm.slane %v4160, %v1097
    %v4181 = vperm.slane %v4163, %v1097
    %v4182 = vperm.slane %v4166, %v1097
    %v4183 = vsel %vm904, %v4168, %v4167
    %v4184 = vsel %vm904, %v4170, %v4169
    %v4185 = vsel %vm904, %v4172, %v4171
    %v4186 = vsel %vm904, %v4174, %v4173
    %v4187 = vsel %vm904, %v4176, %v4175
    %v4188 = vsel %vm904, %v4178, %v4177
    %v4189 = vsel %vm904, %v4180, %v4179
    %v4190 = vsel %vm904, %v4182, %v4181
    %v4199 = vsel %vm473, %v4183, 0.0
    %4200 = vadd.xlane.f32.xlu0 %v4199
    %v4201 = vpop.xlane.xlu0 %4200
    %v4202 = vsel %vm473, %v4184, 0.0
    %4203 = vadd.xlane.f32.xlu0 %v4202
    %v4204 = vpop.xlane.xlu0 %4203
    %v4205 = vsel %vm473, %v4185, 0.0
    %4206 = vadd.xlane.f32.xlu0 %v4205
    %v4207 = vpop.xlane.xlu0 %4206
    %v4208 = vsel %vm473, %v4186, 0.0
    %4209 = vadd.xlane.f32.xlu0 %v4208
    %v4210 = vpop.xlane.xlu0 %4209
    %v4211 = vsel %vm473, %v4187, 0.0
    %4212 = vadd.xlane.f32.xlu0 %v4211
    %v4213 = vpop.xlane.xlu0 %4212
    %v4214 = vsel %vm473, %v4188, 0.0
    %4215 = vadd.xlane.f32.xlu0 %v4214
    %v4216 = vpop.xlane.xlu0 %4215
    %v4217 = vsel %vm473, %v4189, 0.0
    %4218 = vadd.xlane.f32.xlu0 %v4217
    %v4219 = vpop.xlane.xlu0 %4218
    %v4220 = vsel %vm473, %v4190, 0.0
    %4221 = vadd.xlane.f32.xlu0 %v4220
    %v4222 = vpop.xlane.xlu0 %4221
    %v4231 = vperm.slane %v4201, 0
    %v4232 = vperm.slane %v4201, 1
    %v4233 = vperm.slane %v4204, 0
    %v4234 = vperm.slane %v4204, 1
    %v4235 = vperm.slane %v4207, 0
    %v4236 = vperm.slane %v4207, 1
    %v4237 = vperm.slane %v4210, 0
    %v4238 = vperm.slane %v4210, 1
    %v4239 = vperm.slane %v4213, 0
    %v4240 = vperm.slane %v4213, 1
    %v4241 = vperm.slane %v4216, 0
    %v4242 = vperm.slane %v4216, 1
    %v4243 = vperm.slane %v4219, 0
    %v4244 = vperm.slane %v4219, 1
    %v4245 = vperm.slane %v4222, 0
    %v4246 = vperm.slane %v4222, 1
    %v4263 = vrcp.pop %v4231
    %v4264 = vmul.f32 %v4231, %v4263
    %v4265 = vsub.f32 1.0, %v4264
    %v4266 = vmul.f32 %v4263, %v4265
    %v4267 = vadd.f32 %v4263, %v4266
    %vm4268 = vweird.f32 %v4231
    %vm4269 = vweird.f32 %v4263
    %vm4270 = vmor %vm4268, %vm4269
    %v4271 = vsel %vm4270, %v4263, %v4267
    %v4272 = vand.u32 2147483647, %v4231
    %vm4273 = vcmp.eq.f32.partialorder %v4272, 8.507059e+37
    %v4274 = vand.u32 %v4231, 2147483648
    %v4275 = vor.u32 1.1754944e-38, %v4274
    %v4276 = vsel %vm4273, %v4275, %v4271
    %v4277 = vmul.f32 %v4072, %v4276
    %v4278 = vrcp.pop %v4232
    %v4279 = vmul.f32 %v4232, %v4278
    %v4280 = vsub.f32 1.0, %v4279
    %v4281 = vmul.f32 %v4278, %v4280
    %v4282 = vadd.f32 %v4278, %v4281
    %vm4283 = vweird.f32 %v4232
    %vm4284 = vweird.f32 %v4278
    %vm4285 = vmor %vm4283, %vm4284
    %v4286 = vsel %vm4285, %v4278, %v4282
    %v4287 = vand.u32 2147483647, %v4232
    %vm4288 = vcmp.eq.f32.partialorder %v4287, 8.507059e+37
    %v4289 = vand.u32 %v4232, 2147483648
    %v4290 = vor.u32 1.1754944e-38, %v4289
    %v4291 = vsel %vm4288, %v4290, %v4286
    %v4292 = vmul.f32 %v4074, %v4291
    %v4293 = vrcp.pop %v4233
    %v4294 = vmul.f32 %v4233, %v4293
    %v4295 = vsub.f32 1.0, %v4294
    %v4296 = vmul.f32 %v4293, %v4295
    %v4297 = vadd.f32 %v4293, %v4296
    %vm4298 = vweird.f32 %v4233
    %vm4299 = vweird.f32 %v4293
    %vm4300 = vmor %vm4298, %vm4299
    %v4301 = vsel %vm4300, %v4293, %v4297
    %v4302 = vand.u32 2147483647, %v4233
    %vm4303 = vcmp.eq.f32.partialorder %v4302, 8.507059e+37
    %v4304 = vand.u32 %v4233, 2147483648
    %v4305 = vor.u32 1.1754944e-38, %v4304
    %v4306 = vsel %vm4303, %v4305, %v4301
    %v4307 = vmul.f32 %v4076, %v4306
    %v4308 = vrcp.pop %v4234
    %v4309 = vmul.f32 %v4234, %v4308
    %v4310 = vsub.f32 1.0, %v4309
    %v4311 = vmul.f32 %v4308, %v4310
    %v4312 = vadd.f32 %v4308, %v4311
    %vm4313 = vweird.f32 %v4234
    %vm4314 = vweird.f32 %v4308
    %vm4315 = vmor %vm4313, %vm4314
    %v4316 = vsel %vm4315, %v4308, %v4312
    %v4317 = vand.u32 2147483647, %v4234
    %vm4318 = vcmp.eq.f32.partialorder %v4317, 8.507059e+37
    %v4319 = vand.u32 %v4234, 2147483648
    %v4320 = vor.u32 1.1754944e-38, %v4319
    %v4321 = vsel %vm4318, %v4320, %v4316
    %v4322 = vmul.f32 %v4078, %v4321
    %v4323 = vrcp.pop %v4235
    %v4324 = vmul.f32 %v4235, %v4323
    %v4325 = vsub.f32 1.0, %v4324
    %v4326 = vmul.f32 %v4323, %v4325
    %v4327 = vadd.f32 %v4323, %v4326
    %vm4328 = vweird.f32 %v4235
    %vm4329 = vweird.f32 %v4323
    %vm4330 = vmor %vm4328, %vm4329
    %v4331 = vsel %vm4330, %v4323, %v4327
    %v4332 = vand.u32 2147483647, %v4235
    %vm4333 = vcmp.eq.f32.partialorder %v4332, 8.507059e+37
    %v4334 = vand.u32 %v4235, 2147483648
    %v4335 = vor.u32 1.1754944e-38, %v4334
    %v4336 = vsel %vm4333, %v4335, %v4331
    %v4337 = vmul.f32 %v4080, %v4336
    %v4338 = vrcp.pop %v4236
    %v4339 = vmul.f32 %v4236, %v4338
    %v4340 = vsub.f32 1.0, %v4339
    %v4341 = vmul.f32 %v4338, %v4340
    %v4342 = vadd.f32 %v4338, %v4341
    %vm4343 = vweird.f32 %v4236
    %vm4344 = vweird.f32 %v4338
    %vm4345 = vmor %vm4343, %vm4344
    %v4346 = vsel %vm4345, %v4338, %v4342
    %v4347 = vand.u32 2147483647, %v4236
    %vm4348 = vcmp.eq.f32.partialorder %v4347, 8.507059e+37
    %v4349 = vand.u32 %v4236, 2147483648
    %v4350 = vor.u32 1.1754944e-38, %v4349
    %v4351 = vsel %vm4348, %v4350, %v4346
    %v4352 = vmul.f32 %v4082, %v4351
    %v4353 = vrcp.pop %v4237
    %v4354 = vmul.f32 %v4237, %v4353
    %v4355 = vsub.f32 1.0, %v4354
    %v4356 = vmul.f32 %v4353, %v4355
    %v4357 = vadd.f32 %v4353, %v4356
    %vm4358 = vweird.f32 %v4237
    %vm4359 = vweird.f32 %v4353
    %vm4360 = vmor %vm4358, %vm4359
    %v4361 = vsel %vm4360, %v4353, %v4357
    %v4362 = vand.u32 2147483647, %v4237
    %vm4363 = vcmp.eq.f32.partialorder %v4362, 8.507059e+37
    %v4364 = vand.u32 %v4237, 2147483648
    %v4365 = vor.u32 1.1754944e-38, %v4364
    %v4366 = vsel %vm4363, %v4365, %v4361
    %v4367 = vmul.f32 %v4084, %v4366
    %v4368 = vrcp.pop %v4238
    %v4369 = vmul.f32 %v4238, %v4368
    %v4370 = vsub.f32 1.0, %v4369
    %v4371 = vmul.f32 %v4368, %v4370
    %v4372 = vadd.f32 %v4368, %v4371
    %vm4373 = vweird.f32 %v4238
    %vm4374 = vweird.f32 %v4368
    %vm4375 = vmor %vm4373, %vm4374
    %v4376 = vsel %vm4375, %v4368, %v4372
    %v4377 = vand.u32 2147483647, %v4238
    %vm4378 = vcmp.eq.f32.partialorder %v4377, 8.507059e+37
    %v4379 = vand.u32 %v4238, 2147483648
    %v4380 = vor.u32 1.1754944e-38, %v4379
    %v4381 = vsel %vm4378, %v4380, %v4376
    %v4382 = vmul.f32 %v4086, %v4381
    %v4383 = vrcp.pop %v4239
    %v4384 = vmul.f32 %v4239, %v4383
    %v4385 = vsub.f32 1.0, %v4384
    %v4386 = vmul.f32 %v4383, %v4385
    %v4387 = vadd.f32 %v4383, %v4386
    %vm4388 = vweird.f32 %v4239
    %vm4389 = vweird.f32 %v4383
    %vm4390 = vmor %vm4388, %vm4389
    %v4391 = vsel %vm4390, %v4383, %v4387
    %v4392 = vand.u32 2147483647, %v4239
    %vm4393 = vcmp.eq.f32.partialorder %v4392, 8.507059e+37
    %v4394 = vand.u32 %v4239, 2147483648
    %v4395 = vor.u32 1.1754944e-38, %v4394
    %v4396 = vsel %vm4393, %v4395, %v4391
    %v4397 = vmul.f32 %v4088, %v4396
    %v4398 = vrcp.pop %v4240
    %v4399 = vmul.f32 %v4240, %v4398
    %v4400 = vsub.f32 1.0, %v4399
    %v4401 = vmul.f32 %v4398, %v4400
    %v4402 = vadd.f32 %v4398, %v4401
    %vm4403 = vweird.f32 %v4240
    %vm4404 = vweird.f32 %v4398
    %vm4405 = vmor %vm4403, %vm4404
    %v4406 = vsel %vm4405, %v4398, %v4402
    %v4407 = vand.u32 2147483647, %v4240
    %vm4408 = vcmp.eq.f32.partialorder %v4407, 8.507059e+37
    %v4409 = vand.u32 %v4240, 2147483648
    %v4410 = vor.u32 1.1754944e-38, %v4409
    %v4411 = vsel %vm4408, %v4410, %v4406
    %v4412 = vmul.f32 %v4090, %v4411
    %v4413 = vrcp.pop %v4241
    %v4414 = vmul.f32 %v4241, %v4413
    %v4415 = vsub.f32 1.0, %v4414
    %v4416 = vmul.f32 %v4413, %v4415
    %v4417 = vadd.f32 %v4413, %v4416
    %vm4418 = vweird.f32 %v4241
    %vm4419 = vweird.f32 %v4413
    %vm4420 = vmor %vm4418, %vm4419
    %v4421 = vsel %vm4420, %v4413, %v4417
    %v4422 = vand.u32 2147483647, %v4241
    %vm4423 = vcmp.eq.f32.partialorder %v4422, 8.507059e+37
    %v4424 = vand.u32 %v4241, 2147483648
    %v4425 = vor.u32 1.1754944e-38, %v4424
    %v4426 = vsel %vm4423, %v4425, %v4421
    %v4427 = vmul.f32 %v4092, %v4426
    %v4428 = vrcp.pop %v4242
    %v4429 = vmul.f32 %v4242, %v4428
    %v4430 = vsub.f32 1.0, %v4429
    %v4431 = vmul.f32 %v4428, %v4430
    %v4432 = vadd.f32 %v4428, %v4431
    %vm4433 = vweird.f32 %v4242
    %vm4434 = vweird.f32 %v4428
    %vm4435 = vmor %vm4433, %vm4434
    %v4436 = vsel %vm4435, %v4428, %v4432
    %v4437 = vand.u32 2147483647, %v4242
    %vm4438 = vcmp.eq.f32.partialorder %v4437, 8.507059e+37
    %v4439 = vand.u32 %v4242, 2147483648
    %v4440 = vor.u32 1.1754944e-38, %v4439
    %v4441 = vsel %vm4438, %v4440, %v4436
    %v4442 = vmul.f32 %v4094, %v4441
    %v4443 = vrcp.pop %v4243
    %v4444 = vmul.f32 %v4243, %v4443
    %v4445 = vsub.f32 1.0, %v4444
    %v4446 = vmul.f32 %v4443, %v4445
    %v4447 = vadd.f32 %v4443, %v4446
    %vm4448 = vweird.f32 %v4243
    %vm4449 = vweird.f32 %v4443
    %vm4450 = vmor %vm4448, %vm4449
    %v4451 = vsel %vm4450, %v4443, %v4447
    %v4452 = vand.u32 2147483647, %v4243
    %vm4453 = vcmp.eq.f32.partialorder %v4452, 8.507059e+37
    %v4454 = vand.u32 %v4243, 2147483648
    %v4455 = vor.u32 1.1754944e-38, %v4454
    %v4456 = vsel %vm4453, %v4455, %v4451
    %v4457 = vmul.f32 %v4096, %v4456
    %v4458 = vrcp.pop %v4244
    %v4459 = vmul.f32 %v4244, %v4458
    %v4460 = vsub.f32 1.0, %v4459
    %v4461 = vmul.f32 %v4458, %v4460
    %v4462 = vadd.f32 %v4458, %v4461
    %vm4463 = vweird.f32 %v4244
    %vm4464 = vweird.f32 %v4458
    %vm4465 = vmor %vm4463, %vm4464
    %v4466 = vsel %vm4465, %v4458, %v4462
    %v4467 = vand.u32 2147483647, %v4244
    %vm4468 = vcmp.eq.f32.partialorder %v4467, 8.507059e+37
    %v4469 = vand.u32 %v4244, 2147483648
    %v4470 = vor.u32 1.1754944e-38, %v4469
    %v4471 = vsel %vm4468, %v4470, %v4466
    %v4472 = vmul.f32 %v4098, %v4471
    %v4473 = vrcp.pop %v4245
    %v4474 = vmul.f32 %v4245, %v4473
    %v4475 = vsub.f32 1.0, %v4474
    %v4476 = vmul.f32 %v4473, %v4475
    %v4477 = vadd.f32 %v4473, %v4476
    %vm4478 = vweird.f32 %v4245
    %vm4479 = vweird.f32 %v4473
    %vm4480 = vmor %vm4478, %vm4479
    %v4481 = vsel %vm4480, %v4473, %v4477
    %v4482 = vand.u32 2147483647, %v4245
    %vm4483 = vcmp.eq.f32.partialorder %v4482, 8.507059e+37
    %v4484 = vand.u32 %v4245, 2147483648
    %v4485 = vor.u32 1.1754944e-38, %v4484
    %v4486 = vsel %vm4483, %v4485, %v4481
    %v4487 = vmul.f32 %v4100, %v4486
    %v4488 = vrcp.pop %v4246
    %v4489 = vmul.f32 %v4246, %v4488
    %v4490 = vsub.f32 1.0, %v4489
    %v4491 = vmul.f32 %v4488, %v4490
    %v4492 = vadd.f32 %v4488, %v4491
    %vm4493 = vweird.f32 %v4246
    %vm4494 = vweird.f32 %v4488
    %vm4495 = vmor %vm4493, %vm4494
    %v4496 = vsel %vm4495, %v4488, %v4492
    %v4497 = vand.u32 2147483647, %v4246
    %vm4498 = vcmp.eq.f32.partialorder %v4497, 8.507059e+37
    %v4499 = vand.u32 %v4246, 2147483648
    %v4500 = vor.u32 1.1754944e-38, %v4499
    %v4501 = vsel %vm4498, %v4500, %v4496
    %v4502 = vmul.f32 %v4102, %v4501
    %v4503 = vmul.f32 %v4277, %v1646
    %v4504 = vmul.f32 %v4292, %v1647
    %v4505 = vmul.f32 %v4307, %v1655
    %v4506 = vmul.f32 %v4322, %v1656
    %v4507 = vadd.f32 %v4503, %v4505
    %v4508 = vadd.f32 %v4504, %v4506
    %v4509 = vmul.f32 %v4337, %v1666
    %v4510 = vmul.f32 %v4352, %v1667
    %v4511 = vadd.f32 %v4507, %v4509
    %v4512 = vadd.f32 %v4508, %v4510
    %v4513 = vmul.f32 %v4367, %v1677
    %v4514 = vmul.f32 %v4382, %v1678
    %v4515 = vadd.f32 %v4511, %v4513
    %v4516 = vadd.f32 %v4512, %v4514
    %v4517 = vmul.f32 %v4397, %v1688
    %v4518 = vmul.f32 %v4412, %v1689
    %v4519 = vadd.f32 %v4515, %v4517
    %v4520 = vadd.f32 %v4516, %v4518
    %v4521 = vmul.f32 %v4427, %v1699
    %v4522 = vmul.f32 %v4442, %v1700
    %v4523 = vadd.f32 %v4519, %v4521
    %v4524 = vadd.f32 %v4520, %v4522
    %v4525 = vmul.f32 %v4457, %v1710
    %v4526 = vmul.f32 %v4472, %v1711
    %v4527 = vadd.f32 %v4523, %v4525
    %v4528 = vadd.f32 %v4524, %v4526
    %v4529 = vmul.f32 %v4487, %v1721
    %v4530 = vmul.f32 %v4502, %v1722
    %v4531 = vadd.f32 %v4527, %v4529
    %v4532 = vadd.f32 %v4528, %v4530
    %4535 = vset.pattern.permute.xlu0 0
    %4536 = vperm.xlu0 %4535, %v4531
    %v4537 = vpop.permute.xlu0 %4536
    %4538 = vset.pattern.permute.xlu0 0
    %4539 = vperm.xlu0 %4538, %v4532
    %v4540 = vpop.permute.xlu0 %4539
    %v4541 = vperm.slane %v4537, %v1097
    %v4542 = vperm.slane %v4540, %v1097
    %v4543 = vsel %vm904, %v4542, %v4541
    %s4545 = scalar_lea.vmem %s11, 6
    %4546 = vst.msk [vmem:[%s4545] sm:$0x3] %vm473, %v4543
    %v4547 = vlaneseq
    %v4548 = vshrl.u32 %v4547, 7
    %4550 = vset.pattern.permute.xlu0 %v4548
    %4551 = vperm.xlu0 %4550, %v3877
    %v4552 = vpop.permute.xlu0 %4551
    %v4553 = vlaneseq
    %v4554 = vshrl.u32 %v4553, 7
    %v4555 = vadd.s32 %v4554, 8
    %4556 = vset.pattern.permute.xlu0 %v4555
    %4557 = vperm.xlu0 %4556, %v3877
    %v4558 = vpop.permute.xlu0 %4557
    %v4559 = vlaneseq
    %v4560 = vshrl.u32 %v4559, 7
    %4562 = vset.pattern.permute.xlu0 %v4560
    %4563 = vperm.xlu0 %4562, %v3878
    %v4564 = vpop.permute.xlu0 %4563
    %v4565 = vlaneseq
    %v4566 = vshrl.u32 %v4565, 7
    %v4567 = vadd.s32 %v4566, 8
    %4568 = vset.pattern.permute.xlu0 %v4567
    %4569 = vperm.xlu0 %4568, %v3878
    %v4570 = vpop.permute.xlu0 %4569
    %v4571 = vmul.f32 %v215, %v4552
    %v4572 = vmul.f32 %v230, %v4558
    %v4573 = vmul.f32 %v245, %v4552
    %v4574 = vmul.f32 %v260, %v4558
    %v4575 = vmul.f32 %v275, %v4552
    %v4576 = vmul.f32 %v290, %v4558
    %v4577 = vmul.f32 %v305, %v4552
    %v4578 = vmul.f32 %v320, %v4558
    %v4579 = vmul.f32 %v335, %v4564
    %v4580 = vmul.f32 %v350, %v4570
    %v4581 = vmul.f32 %v365, %v4564
    %v4582 = vmul.f32 %v380, %v4570
    %v4583 = vmul.f32 %v395, %v4564
    %v4584 = vmul.f32 %v410, %v4570
    %v4585 = vmul.f32 %v425, %v4564
    %v4586 = vmul.f32 %v440, %v4570
    %v4587 = vsel %vm56, %v4571, 0.0
    %v4588 = vsel %vm56, %v4572, 0.0
    %v4589 = vadd.f32 %v4587, %v4588
    %v4590 = vrot.slane %v4589, 4
    %v4591 = vadd.f32 %v4589, %v4590
    %v4592 = vrot.slane %v4591, 2
    %v4593 = vadd.f32 %v4591, %v4592
    %v4594 = vrot.slane %v4593, 1
    %v4595 = vadd.f32 %v4593, %v4594
    %v4596 = vsel %vm56, %v4573, 0.0
    %v4597 = vsel %vm56, %v4574, 0.0
    %v4598 = vadd.f32 %v4596, %v4597
    %v4599 = vrot.slane %v4598, 4
    %v4600 = vadd.f32 %v4598, %v4599
    %v4601 = vrot.slane %v4600, 2
    %v4602 = vadd.f32 %v4600, %v4601
    %v4603 = vrot.slane %v4602, 1
    %v4604 = vadd.f32 %v4602, %v4603
    %v4605 = vsel %vm56, %v4575, 0.0
    %v4606 = vsel %vm56, %v4576, 0.0
    %v4607 = vadd.f32 %v4605, %v4606
    %v4608 = vrot.slane %v4607, 4
    %v4609 = vadd.f32 %v4607, %v4608
    %v4610 = vrot.slane %v4609, 2
    %v4611 = vadd.f32 %v4609, %v4610
    %v4612 = vrot.slane %v4611, 1
    %v4613 = vadd.f32 %v4611, %v4612
    %v4614 = vsel %vm56, %v4577, 0.0
    %v4615 = vsel %vm56, %v4578, 0.0
    %v4616 = vadd.f32 %v4614, %v4615
    %v4617 = vrot.slane %v4616, 4
    %v4618 = vadd.f32 %v4616, %v4617
    %v4619 = vrot.slane %v4618, 2
    %v4620 = vadd.f32 %v4618, %v4619
    %v4621 = vrot.slane %v4620, 1
    %v4622 = vadd.f32 %v4620, %v4621
    %v4623 = vsel %vm56, %v4579, 0.0
    %v4624 = vsel %vm56, %v4580, 0.0
    %v4625 = vadd.f32 %v4623, %v4624
    %v4626 = vrot.slane %v4625, 4
    %v4627 = vadd.f32 %v4625, %v4626
    %v4628 = vrot.slane %v4627, 2
    %v4629 = vadd.f32 %v4627, %v4628
    %v4630 = vrot.slane %v4629, 1
    %v4631 = vadd.f32 %v4629, %v4630
    %v4632 = vsel %vm56, %v4581, 0.0
    %v4633 = vsel %vm56, %v4582, 0.0
    %v4634 = vadd.f32 %v4632, %v4633
    %v4635 = vrot.slane %v4634, 4
    %v4636 = vadd.f32 %v4634, %v4635
    %v4637 = vrot.slane %v4636, 2
    %v4638 = vadd.f32 %v4636, %v4637
    %v4639 = vrot.slane %v4638, 1
    %v4640 = vadd.f32 %v4638, %v4639
    %v4641 = vsel %vm56, %v4583, 0.0
    %v4642 = vsel %vm56, %v4584, 0.0
    %v4643 = vadd.f32 %v4641, %v4642
    %v4644 = vrot.slane %v4643, 4
    %v4645 = vadd.f32 %v4643, %v4644
    %v4646 = vrot.slane %v4645, 2
    %v4647 = vadd.f32 %v4645, %v4646
    %v4648 = vrot.slane %v4647, 1
    %v4649 = vadd.f32 %v4647, %v4648
    %v4650 = vsel %vm56, %v4585, 0.0
    %v4651 = vsel %vm56, %v4586, 0.0
    %v4652 = vadd.f32 %v4650, %v4651
    %v4653 = vrot.slane %v4652, 4
    %v4654 = vadd.f32 %v4652, %v4653
    %v4655 = vrot.slane %v4654, 2
    %v4656 = vadd.f32 %v4654, %v4655
    %v4657 = vrot.slane %v4656, 1
    %v4658 = vadd.f32 %v4656, %v4657
    %v4659 = vperm.slane %v620, 0
    %v4660 = vlaneseq
    %v4661 = vshrl.u32 %v4660, 7
    %4663 = vset.pattern.permute.xlu0 %v4661
    %4664 = vperm.xlu0 %4663, %v4659
    %v4665 = vpop.permute.xlu0 %4664
    %v4666 = vperm.slane %v620, 1
    %v4667 = vlaneseq
    %v4668 = vshrl.u32 %v4667, 7
    %4670 = vset.pattern.permute.xlu0 %v4668
    %4671 = vperm.xlu0 %4670, %v4666
    %v4672 = vpop.permute.xlu0 %4671
    %v4675 = vrot.slane %v4665, 1
    %v4676 = vrot.slane %v4665, 2
    %v4677 = vrot.slane %v4665, 3
    %v4678 = vrot.slane %v4672, 1
    %v4679 = vrot.slane %v4672, 2
    %v4680 = vrot.slane %v4672, 3
    %v4689 = vmul.f32 %v4595, %v4665
    %v4690 = vmul.f32 %v4604, %v4675
    %v4691 = vmul.f32 %v4613, %v4676
    %v4692 = vmul.f32 %v4622, %v4677
    %v4693 = vmul.f32 %v4631, %v4672
    %v4694 = vmul.f32 %v4640, %v4678
    %v4695 = vmul.f32 %v4649, %v4679
    %v4696 = vmul.f32 %v4658, %v4680
    %v4705 = vrot.slane %v4690, 7
    %v4706 = vsel %vm904, %v4705, %v4689
    %v4707 = vrot.slane %v4691, 6
    %v4708 = vsel %vm907, %v4707, %v4706
    %v4709 = vrot.slane %v4692, 5
    %v4710 = vsel %vm910, %v4709, %v4708
    %v4711 = vrot.slane %v4694, 7
    %v4712 = vsel %vm904, %v4711, %v4693
    %v4713 = vrot.slane %v4695, 6
    %v4714 = vsel %vm907, %v4713, %v4712
    %v4715 = vrot.slane %v4696, 5
    %v4716 = vsel %vm910, %v4715, %v4714
    %v4719 = vsel %vm920, %v4710, 0.0
    %v4720 = vrot.slane %v4719, 4
    %v4721 = vadd.f32 %v4719, %v4720
    %v4722 = vrot.slane %v4721, 2
    %v4723 = vadd.f32 %v4721, %v4722
    %v4724 = vrot.slane %v4723, 1
    %v4725 = vadd.f32 %v4723, %v4724
    %v4726 = vsel %vm920, %v4716, 0.0
    %v4727 = vrot.slane %v4726, 4
    %v4728 = vadd.f32 %v4726, %v4727
    %v4729 = vrot.slane %v4728, 2
    %v4730 = vadd.f32 %v4728, %v4729
    %v4731 = vrot.slane %v4730, 1
    %v4732 = vadd.f32 %v4730, %v4731
    %v4733 = vadd.f32 %v4725, 1e-06
    %v4734 = vadd.f32 %v4732, 1e-06
    %v4735 = vlog2.pop %v4733
    %v4736 = vmul.f32 %v4735, 0.6931472
    %v4737 = vlog2.pop %v4734
    %v4738 = vmul.f32 %v4737, 0.6931472
    %v4740 = vrot.slane %v461, 1
    %v4743 = vadd.f32 %v4736, %v461
    %v4744 = vadd.f32 %v4738, %v4740
    %v4747 = vrot.slane %v4744, 7
    %v4748 = vsel %vm904, %v4747, %v4743
    %v4750 = vsel %vm952, %v4748, -inf
    %4751 = vmax.xlane.f32.xlu0 %v4750
    %v4752 = vpop.xlane.xlu0 %4751
    %v4754 = vrot.slane %v4752, 1
    %v4757 = vsub.f32 %v4743, %v4752
    %v4758 = vsub.f32 %v4744, %v4754
    %v4759 = vmul.f32 %v4757, 1.442695
    %v4760 = vpow.pop %v4759
    %v4761 = vmul.f32 %v4758, 1.442695
    %v4762 = vpow.pop %v4761
    %v4765 = vrot.slane %v4762, 7
    %v4766 = vsel %vm904, %v4765, %v4760
    %v4768 = vsel %vm952, %v4766, 0.0
    %4769 = vadd.xlane.f32.xlu0 %v4768
    %v4770 = vpop.xlane.xlu0 %4769
    %v4772 = vrot.slane %v4770, 1
    %v4775 = vrcp.pop %v4770
    %v4776 = vmul.f32 %v4770, %v4775
    %v4777 = vsub.f32 1.0, %v4776
    %v4778 = vmul.f32 %v4775, %v4777
    %v4779 = vadd.f32 %v4775, %v4778
    %vm4780 = vweird.f32 %v4770
    %vm4781 = vweird.f32 %v4775
    %vm4782 = vmor %vm4780, %vm4781
    %v4783 = vsel %vm4782, %v4775, %v4779
    %v4784 = vand.u32 2147483647, %v4770
    %vm4785 = vcmp.eq.f32.partialorder %v4784, 8.507059e+37
    %v4786 = vand.u32 %v4770, 2147483648
    %v4787 = vor.u32 1.1754944e-38, %v4786
    %v4788 = vsel %vm4785, %v4787, %v4783
    %v4789 = vmul.f32 %v4760, %v4788
    %v4790 = vrcp.pop %v4772
    %v4791 = vmul.f32 %v4772, %v4790
    %v4792 = vsub.f32 1.0, %v4791
    %v4793 = vmul.f32 %v4790, %v4792
    %v4794 = vadd.f32 %v4790, %v4793
    %vm4795 = vweird.f32 %v4772
    %vm4796 = vweird.f32 %v4790
    %vm4797 = vmor %vm4795, %vm4796
    %v4798 = vsel %vm4797, %v4790, %v4794
    %v4799 = vand.u32 2147483647, %v4772
    %vm4800 = vcmp.eq.f32.partialorder %v4799, 8.507059e+37
    %v4801 = vand.u32 %v4772, 2147483648
    %v4802 = vor.u32 1.1754944e-38, %v4801
    %v4803 = vsel %vm4800, %v4802, %v4798
    %v4804 = vmul.f32 %v4762, %v4803
    %v4807 = vrot.slane %v4804, 7
    %v4808 = vsel %vm904, %v4807, %v4789
    %s4810 = scalar_lea.vmem [#allocation3], 8
    %4811 = vst.msk [vmem:[%s4810] sm:$0x3] %vm952, %v4808
    %v4812 = vperm.slane %v4789, 0
    %v4813 = vperm.slane %v4804, 0
    %v4814 = vmul.f32 %v441, %v4812
    %v4815 = vmul.f32 %v442, %v4813
    %v4816 = vmul.f32 %v443, %v4812
    %v4817 = vmul.f32 %v444, %v4813
    %v4818 = vmul.f32 %v445, %v4812
    %v4819 = vmul.f32 %v446, %v4813
    %v4820 = vmul.f32 %v447, %v4812
    %v4821 = vmul.f32 %v448, %v4813
    %v4822 = vmul.f32 %v449, %v4812
    %v4823 = vmul.f32 %v450, %v4813
    %v4824 = vmul.f32 %v451, %v4812
    %v4825 = vmul.f32 %v452, %v4813
    %v4826 = vmul.f32 %v453, %v4812
    %v4827 = vmul.f32 %v454, %v4813
    %v4828 = vmul.f32 %v455, %v4812
    %v4829 = vmul.f32 %v456, %v4813
    %v4830 = vsel %vm920, %v4814, 0.0
    %4831 = vadd.xlane.f32.xlu0 %v4830
    %v4832 = vpop.xlane.xlu0 %4831
    %v4833 = vsel %vm920, %v4815, 0.0
    %4834 = vadd.xlane.f32.xlu0 %v4833
    %v4835 = vpop.xlane.xlu0 %4834
    %v4836 = vsel %vm920, %v4816, 0.0
    %4837 = vadd.xlane.f32.xlu0 %v4836
    %v4838 = vpop.xlane.xlu0 %4837
    %v4839 = vsel %vm920, %v4817, 0.0
    %4840 = vadd.xlane.f32.xlu0 %v4839
    %v4841 = vpop.xlane.xlu0 %4840
    %v4842 = vsel %vm920, %v4818, 0.0
    %4843 = vadd.xlane.f32.xlu0 %v4842
    %v4844 = vpop.xlane.xlu0 %4843
    %v4845 = vsel %vm920, %v4819, 0.0
    %4846 = vadd.xlane.f32.xlu0 %v4845
    %v4847 = vpop.xlane.xlu0 %4846
    %v4848 = vsel %vm920, %v4820, 0.0
    %4849 = vadd.xlane.f32.xlu0 %v4848
    %v4850 = vpop.xlane.xlu0 %4849
    %v4851 = vsel %vm920, %v4821, 0.0
    %4852 = vadd.xlane.f32.xlu0 %v4851
    %v4853 = vpop.xlane.xlu0 %4852
    %v4854 = vsel %vm920, %v4822, 0.0
    %4855 = vadd.xlane.f32.xlu0 %v4854
    %v4856 = vpop.xlane.xlu0 %4855
    %v4857 = vsel %vm920, %v4823, 0.0
    %4858 = vadd.xlane.f32.xlu0 %v4857
    %v4859 = vpop.xlane.xlu0 %4858
    %v4860 = vsel %vm920, %v4824, 0.0
    %4861 = vadd.xlane.f32.xlu0 %v4860
    %v4862 = vpop.xlane.xlu0 %4861
    %v4863 = vsel %vm920, %v4825, 0.0
    %4864 = vadd.xlane.f32.xlu0 %v4863
    %v4865 = vpop.xlane.xlu0 %4864
    %v4866 = vsel %vm920, %v4826, 0.0
    %4867 = vadd.xlane.f32.xlu0 %v4866
    %v4868 = vpop.xlane.xlu0 %4867
    %v4869 = vsel %vm920, %v4827, 0.0
    %4870 = vadd.xlane.f32.xlu0 %v4869
    %v4871 = vpop.xlane.xlu0 %4870
    %v4872 = vsel %vm920, %v4828, 0.0
    %4873 = vadd.xlane.f32.xlu0 %v4872
    %v4874 = vpop.xlane.xlu0 %4873
    %v4875 = vsel %vm920, %v4829, 0.0
    %4876 = vadd.xlane.f32.xlu0 %v4875
    %v4877 = vpop.xlane.xlu0 %4876
    %v4894 = vperm.slane %v4832, %v1097
    %v4895 = vperm.slane %v4835, %v1097
    %v4896 = vperm.slane %v4838, %v1097
    %v4897 = vperm.slane %v4841, %v1097
    %v4898 = vperm.slane %v4844, %v1097
    %v4899 = vperm.slane %v4847, %v1097
    %v4900 = vperm.slane %v4850, %v1097
    %v4901 = vperm.slane %v4853, %v1097
    %v4902 = vperm.slane %v4856, %v1097
    %v4903 = vperm.slane %v4859, %v1097
    %v4904 = vperm.slane %v4862, %v1097
    %v4905 = vperm.slane %v4865, %v1097
    %v4906 = vperm.slane %v4868, %v1097
    %v4907 = vperm.slane %v4871, %v1097
    %v4908 = vperm.slane %v4874, %v1097
    %v4909 = vperm.slane %v4877, %v1097
    %v4910 = vsel %vm904, %v4895, %v4894
    %v4911 = vsel %vm904, %v4897, %v4896
    %v4912 = vsel %vm904, %v4899, %v4898
    %v4913 = vsel %vm904, %v4901, %v4900
    %v4914 = vsel %vm904, %v4903, %v4902
    %v4915 = vsel %vm904, %v4905, %v4904
    %v4916 = vsel %vm904, %v4907, %v4906
    %v4917 = vsel %vm904, %v4909, %v4908
    %v4926 = vsel %vm473, %v4910, -inf
    %4927 = vmax.xlane.f32.xlu0 %v4926
    %v4928 = vpop.xlane.xlu0 %4927
    %v4929 = vsel %vm473, %v4911, -inf
    %4930 = vmax.xlane.f32.xlu0 %v4929
    %v4931 = vpop.xlane.xlu0 %4930
    %v4932 = vsel %vm473, %v4912, -inf
    %4933 = vmax.xlane.f32.xlu0 %v4932
    %v4934 = vpop.xlane.xlu0 %4933
    %v4935 = vsel %vm473, %v4913, -inf
    %4936 = vmax.xlane.f32.xlu0 %v4935
    %v4937 = vpop.xlane.xlu0 %4936
    %v4938 = vsel %vm473, %v4914, -inf
    %4939 = vmax.xlane.f32.xlu0 %v4938
    %v4940 = vpop.xlane.xlu0 %4939
    %v4941 = vsel %vm473, %v4915, -inf
    %4942 = vmax.xlane.f32.xlu0 %v4941
    %v4943 = vpop.xlane.xlu0 %4942
    %v4944 = vsel %vm473, %v4916, -inf
    %4945 = vmax.xlane.f32.xlu0 %v4944
    %v4946 = vpop.xlane.xlu0 %4945
    %v4947 = vsel %vm473, %v4917, -inf
    %4948 = vmax.xlane.f32.xlu0 %v4947
    %v4949 = vpop.xlane.xlu0 %4948
    %v4958 = vperm.slane %v4928, 0
    %v4959 = vperm.slane %v4928, 1
    %v4960 = vperm.slane %v4931, 0
    %v4961 = vperm.slane %v4931, 1
    %v4962 = vperm.slane %v4934, 0
    %v4963 = vperm.slane %v4934, 1
    %v4964 = vperm.slane %v4937, 0
    %v4965 = vperm.slane %v4937, 1
    %v4966 = vperm.slane %v4940, 0
    %v4967 = vperm.slane %v4940, 1
    %v4968 = vperm.slane %v4943, 0
    %v4969 = vperm.slane %v4943, 1
    %v4970 = vperm.slane %v4946, 0
    %v4971 = vperm.slane %v4946, 1
    %v4972 = vperm.slane %v4949, 0
    %v4973 = vperm.slane %v4949, 1
    %v4990 = vsub.f32 %v4832, %v4958
    %v4991 = vsub.f32 %v4835, %v4959
    %v4992 = vsub.f32 %v4838, %v4960
    %v4993 = vsub.f32 %v4841, %v4961
    %v4994 = vsub.f32 %v4844, %v4962
    %v4995 = vsub.f32 %v4847, %v4963
    %v4996 = vsub.f32 %v4850, %v4964
    %v4997 = vsub.f32 %v4853, %v4965
    %v4998 = vsub.f32 %v4856, %v4966
    %v4999 = vsub.f32 %v4859, %v4967
    %v5000 = vsub.f32 %v4862, %v4968
    %v5001 = vsub.f32 %v4865, %v4969
    %v5002 = vsub.f32 %v4868, %v4970
    %v5003 = vsub.f32 %v4871, %v4971
    %v5004 = vsub.f32 %v4874, %v4972
    %v5005 = vsub.f32 %v4877, %v4973
    %v5006 = vmul.f32 %v4990, 1.442695
    %v5007 = vpow.pop %v5006
    %v5008 = vmul.f32 %v4991, 1.442695
    %v5009 = vpow.pop %v5008
    %v5010 = vmul.f32 %v4992, 1.442695
    %v5011 = vpow.pop %v5010
    %v5012 = vmul.f32 %v4993, 1.442695
    %v5013 = vpow.pop %v5012
    %v5014 = vmul.f32 %v4994, 1.442695
    %v5015 = vpow.pop %v5014
    %v5016 = vmul.f32 %v4995, 1.442695
    %v5017 = vpow.pop %v5016
    %v5018 = vmul.f32 %v4996, 1.442695
    %v5019 = vpow.pop %v5018
    %v5020 = vmul.f32 %v4997, 1.442695
    %v5021 = vpow.pop %v5020
    %v5022 = vmul.f32 %v4998, 1.442695
    %v5023 = vpow.pop %v5022
    %v5024 = vmul.f32 %v4999, 1.442695
    %v5025 = vpow.pop %v5024
    %v5026 = vmul.f32 %v5000, 1.442695
    %v5027 = vpow.pop %v5026
    %v5028 = vmul.f32 %v5001, 1.442695
    %v5029 = vpow.pop %v5028
    %v5030 = vmul.f32 %v5002, 1.442695
    %v5031 = vpow.pop %v5030
    %v5032 = vmul.f32 %v5003, 1.442695
    %v5033 = vpow.pop %v5032
    %v5034 = vmul.f32 %v5004, 1.442695
    %v5035 = vpow.pop %v5034
    %v5036 = vmul.f32 %v5005, 1.442695
    %v5037 = vpow.pop %v5036
    %5054 = vset.pattern.permute.xlu0 0
    %5055 = vperm.xlu0 %5054, %v5007
    %v5056 = vpop.permute.xlu0 %5055
    %5057 = vset.pattern.permute.xlu0 0
    %5058 = vperm.xlu0 %5057, %v5009
    %v5059 = vpop.permute.xlu0 %5058
    %5060 = vset.pattern.permute.xlu0 0
    %5061 = vperm.xlu0 %5060, %v5011
    %v5062 = vpop.permute.xlu0 %5061
    %5063 = vset.pattern.permute.xlu0 0
    %5064 = vperm.xlu0 %5063, %v5013
    %v5065 = vpop.permute.xlu0 %5064
    %5066 = vset.pattern.permute.xlu0 0
    %5067 = vperm.xlu0 %5066, %v5015
    %v5068 = vpop.permute.xlu0 %5067
    %5069 = vset.pattern.permute.xlu0 0
    %5070 = vperm.xlu0 %5069, %v5017
    %v5071 = vpop.permute.xlu0 %5070
    %5072 = vset.pattern.permute.xlu0 0
    %5073 = vperm.xlu0 %5072, %v5019
    %v5074 = vpop.permute.xlu0 %5073
    %5075 = vset.pattern.permute.xlu0 0
    %5076 = vperm.xlu0 %5075, %v5021
    %v5077 = vpop.permute.xlu0 %5076
    %5078 = vset.pattern.permute.xlu0 0
    %5079 = vperm.xlu0 %5078, %v5023
    %v5080 = vpop.permute.xlu0 %5079
    %5081 = vset.pattern.permute.xlu0 0
    %5082 = vperm.xlu0 %5081, %v5025
    %v5083 = vpop.permute.xlu0 %5082
    %5084 = vset.pattern.permute.xlu0 0
    %5085 = vperm.xlu0 %5084, %v5027
    %v5086 = vpop.permute.xlu0 %5085
    %5087 = vset.pattern.permute.xlu0 0
    %5088 = vperm.xlu0 %5087, %v5029
    %v5089 = vpop.permute.xlu0 %5088
    %5090 = vset.pattern.permute.xlu0 0
    %5091 = vperm.xlu0 %5090, %v5031
    %v5092 = vpop.permute.xlu0 %5091
    %5093 = vset.pattern.permute.xlu0 0
    %5094 = vperm.xlu0 %5093, %v5033
    %v5095 = vpop.permute.xlu0 %5094
    %5096 = vset.pattern.permute.xlu0 0
    %5097 = vperm.xlu0 %5096, %v5035
    %v5098 = vpop.permute.xlu0 %5097
    %5099 = vset.pattern.permute.xlu0 0
    %5100 = vperm.xlu0 %5099, %v5037
    %v5101 = vpop.permute.xlu0 %5100
    %v5102 = vperm.slane %v5056, %v1097
    %v5103 = vperm.slane %v5059, %v1097
    %v5104 = vperm.slane %v5062, %v1097
    %v5105 = vperm.slane %v5065, %v1097
    %v5106 = vperm.slane %v5068, %v1097
    %v5107 = vperm.slane %v5071, %v1097
    %v5108 = vperm.slane %v5074, %v1097
    %v5109 = vperm.slane %v5077, %v1097
    %v5110 = vperm.slane %v5080, %v1097
    %v5111 = vperm.slane %v5083, %v1097
    %v5112 = vperm.slane %v5086, %v1097
    %v5113 = vperm.slane %v5089, %v1097
    %v5114 = vperm.slane %v5092, %v1097
    %v5115 = vperm.slane %v5095, %v1097
    %v5116 = vperm.slane %v5098, %v1097
    %v5117 = vperm.slane %v5101, %v1097
    %v5118 = vsel %vm904, %v5103, %v5102
    %v5119 = vsel %vm904, %v5105, %v5104
    %v5120 = vsel %vm904, %v5107, %v5106
    %v5121 = vsel %vm904, %v5109, %v5108
    %v5122 = vsel %vm904, %v5111, %v5110
    %v5123 = vsel %vm904, %v5113, %v5112
    %v5124 = vsel %vm904, %v5115, %v5114
    %v5125 = vsel %vm904, %v5117, %v5116
    %v5134 = vsel %vm473, %v5118, 0.0
    %5135 = vadd.xlane.f32.xlu0 %v5134
    %v5136 = vpop.xlane.xlu0 %5135
    %v5137 = vsel %vm473, %v5119, 0.0
    %5138 = vadd.xlane.f32.xlu0 %v5137
    %v5139 = vpop.xlane.xlu0 %5138
    %v5140 = vsel %vm473, %v5120, 0.0
    %5141 = vadd.xlane.f32.xlu0 %v5140
    %v5142 = vpop.xlane.xlu0 %5141
    %v5143 = vsel %vm473, %v5121, 0.0
    %5144 = vadd.xlane.f32.xlu0 %v5143
    %v5145 = vpop.xlane.xlu0 %5144
    %v5146 = vsel %vm473, %v5122, 0.0
    %5147 = vadd.xlane.f32.xlu0 %v5146
    %v5148 = vpop.xlane.xlu0 %5147
    %v5149 = vsel %vm473, %v5123, 0.0
    %5150 = vadd.xlane.f32.xlu0 %v5149
    %v5151 = vpop.xlane.xlu0 %5150
    %v5152 = vsel %vm473, %v5124, 0.0
    %5153 = vadd.xlane.f32.xlu0 %v5152
    %v5154 = vpop.xlane.xlu0 %5153
    %v5155 = vsel %vm473, %v5125, 0.0
    %5156 = vadd.xlane.f32.xlu0 %v5155
    %v5157 = vpop.xlane.xlu0 %5156
    %v5166 = vperm.slane %v5136, 0
    %v5167 = vperm.slane %v5136, 1
    %v5168 = vperm.slane %v5139, 0
    %v5169 = vperm.slane %v5139, 1
    %v5170 = vperm.slane %v5142, 0
    %v5171 = vperm.slane %v5142, 1
    %v5172 = vperm.slane %v5145, 0
    %v5173 = vperm.slane %v5145, 1
    %v5174 = vperm.slane %v5148, 0
    %v5175 = vperm.slane %v5148, 1
    %v5176 = vperm.slane %v5151, 0
    %v5177 = vperm.slane %v5151, 1
    %v5178 = vperm.slane %v5154, 0
    %v5179 = vperm.slane %v5154, 1
    %v5180 = vperm.slane %v5157, 0
    %v5181 = vperm.slane %v5157, 1
    %v5198 = vrcp.pop %v5166
    %v5199 = vmul.f32 %v5166, %v5198
    %v5200 = vsub.f32 1.0, %v5199
    %v5201 = vmul.f32 %v5198, %v5200
    %v5202 = vadd.f32 %v5198, %v5201
    %vm5203 = vweird.f32 %v5166
    %vm5204 = vweird.f32 %v5198
    %vm5205 = vmor %vm5203, %vm5204
    %v5206 = vsel %vm5205, %v5198, %v5202
    %v5207 = vand.u32 2147483647, %v5166
    %vm5208 = vcmp.eq.f32.partialorder %v5207, 8.507059e+37
    %v5209 = vand.u32 %v5166, 2147483648
    %v5210 = vor.u32 1.1754944e-38, %v5209
    %v5211 = vsel %vm5208, %v5210, %v5206
    %v5212 = vmul.f32 %v5007, %v5211
    %v5213 = vrcp.pop %v5167
    %v5214 = vmul.f32 %v5167, %v5213
    %v5215 = vsub.f32 1.0, %v5214
    %v5216 = vmul.f32 %v5213, %v5215
    %v5217 = vadd.f32 %v5213, %v5216
    %vm5218 = vweird.f32 %v5167
    %vm5219 = vweird.f32 %v5213
    %vm5220 = vmor %vm5218, %vm5219
    %v5221 = vsel %vm5220, %v5213, %v5217
    %v5222 = vand.u32 2147483647, %v5167
    %vm5223 = vcmp.eq.f32.partialorder %v5222, 8.507059e+37
    %v5224 = vand.u32 %v5167, 2147483648
    %v5225 = vor.u32 1.1754944e-38, %v5224
    %v5226 = vsel %vm5223, %v5225, %v5221
    %v5227 = vmul.f32 %v5009, %v5226
    %v5228 = vrcp.pop %v5168
    %v5229 = vmul.f32 %v5168, %v5228
    %v5230 = vsub.f32 1.0, %v5229
    %v5231 = vmul.f32 %v5228, %v5230
    %v5232 = vadd.f32 %v5228, %v5231
    %vm5233 = vweird.f32 %v5168
    %vm5234 = vweird.f32 %v5228
    %vm5235 = vmor %vm5233, %vm5234
    %v5236 = vsel %vm5235, %v5228, %v5232
    %v5237 = vand.u32 2147483647, %v5168
    %vm5238 = vcmp.eq.f32.partialorder %v5237, 8.507059e+37
    %v5239 = vand.u32 %v5168, 2147483648
    %v5240 = vor.u32 1.1754944e-38, %v5239
    %v5241 = vsel %vm5238, %v5240, %v5236
    %v5242 = vmul.f32 %v5011, %v5241
    %v5243 = vrcp.pop %v5169
    %v5244 = vmul.f32 %v5169, %v5243
    %v5245 = vsub.f32 1.0, %v5244
    %v5246 = vmul.f32 %v5243, %v5245
    %v5247 = vadd.f32 %v5243, %v5246
    %vm5248 = vweird.f32 %v5169
    %vm5249 = vweird.f32 %v5243
    %vm5250 = vmor %vm5248, %vm5249
    %v5251 = vsel %vm5250, %v5243, %v5247
    %v5252 = vand.u32 2147483647, %v5169
    %vm5253 = vcmp.eq.f32.partialorder %v5252, 8.507059e+37
    %v5254 = vand.u32 %v5169, 2147483648
    %v5255 = vor.u32 1.1754944e-38, %v5254
    %v5256 = vsel %vm5253, %v5255, %v5251
    %v5257 = vmul.f32 %v5013, %v5256
    %v5258 = vrcp.pop %v5170
    %v5259 = vmul.f32 %v5170, %v5258
    %v5260 = vsub.f32 1.0, %v5259
    %v5261 = vmul.f32 %v5258, %v5260
    %v5262 = vadd.f32 %v5258, %v5261
    %vm5263 = vweird.f32 %v5170
    %vm5264 = vweird.f32 %v5258
    %vm5265 = vmor %vm5263, %vm5264
    %v5266 = vsel %vm5265, %v5258, %v5262
    %v5267 = vand.u32 2147483647, %v5170
    %vm5268 = vcmp.eq.f32.partialorder %v5267, 8.507059e+37
    %v5269 = vand.u32 %v5170, 2147483648
    %v5270 = vor.u32 1.1754944e-38, %v5269
    %v5271 = vsel %vm5268, %v5270, %v5266
    %v5272 = vmul.f32 %v5015, %v5271
    %v5273 = vrcp.pop %v5171
    %v5274 = vmul.f32 %v5171, %v5273
    %v5275 = vsub.f32 1.0, %v5274
    %v5276 = vmul.f32 %v5273, %v5275
    %v5277 = vadd.f32 %v5273, %v5276
    %vm5278 = vweird.f32 %v5171
    %vm5279 = vweird.f32 %v5273
    %vm5280 = vmor %vm5278, %vm5279
    %v5281 = vsel %vm5280, %v5273, %v5277
    %v5282 = vand.u32 2147483647, %v5171
    %vm5283 = vcmp.eq.f32.partialorder %v5282, 8.507059e+37
    %v5284 = vand.u32 %v5171, 2147483648
    %v5285 = vor.u32 1.1754944e-38, %v5284
    %v5286 = vsel %vm5283, %v5285, %v5281
    %v5287 = vmul.f32 %v5017, %v5286
    %v5288 = vrcp.pop %v5172
    %v5289 = vmul.f32 %v5172, %v5288
    %v5290 = vsub.f32 1.0, %v5289
    %v5291 = vmul.f32 %v5288, %v5290
    %v5292 = vadd.f32 %v5288, %v5291
    %vm5293 = vweird.f32 %v5172
    %vm5294 = vweird.f32 %v5288
    %vm5295 = vmor %vm5293, %vm5294
    %v5296 = vsel %vm5295, %v5288, %v5292
    %v5297 = vand.u32 2147483647, %v5172
    %vm5298 = vcmp.eq.f32.partialorder %v5297, 8.507059e+37
    %v5299 = vand.u32 %v5172, 2147483648
    %v5300 = vor.u32 1.1754944e-38, %v5299
    %v5301 = vsel %vm5298, %v5300, %v5296
    %v5302 = vmul.f32 %v5019, %v5301
    %v5303 = vrcp.pop %v5173
    %v5304 = vmul.f32 %v5173, %v5303
    %v5305 = vsub.f32 1.0, %v5304
    %v5306 = vmul.f32 %v5303, %v5305
    %v5307 = vadd.f32 %v5303, %v5306
    %vm5308 = vweird.f32 %v5173
    %vm5309 = vweird.f32 %v5303
    %vm5310 = vmor %vm5308, %vm5309
    %v5311 = vsel %vm5310, %v5303, %v5307
    %v5312 = vand.u32 2147483647, %v5173
    %vm5313 = vcmp.eq.f32.partialorder %v5312, 8.507059e+37
    %v5314 = vand.u32 %v5173, 2147483648
    %v5315 = vor.u32 1.1754944e-38, %v5314
    %v5316 = vsel %vm5313, %v5315, %v5311
    %v5317 = vmul.f32 %v5021, %v5316
    %v5318 = vrcp.pop %v5174
    %v5319 = vmul.f32 %v5174, %v5318
    %v5320 = vsub.f32 1.0, %v5319
    %v5321 = vmul.f32 %v5318, %v5320
    %v5322 = vadd.f32 %v5318, %v5321
    %vm5323 = vweird.f32 %v5174
    %vm5324 = vweird.f32 %v5318
    %vm5325 = vmor %vm5323, %vm5324
    %v5326 = vsel %vm5325, %v5318, %v5322
    %v5327 = vand.u32 2147483647, %v5174
    %vm5328 = vcmp.eq.f32.partialorder %v5327, 8.507059e+37
    %v5329 = vand.u32 %v5174, 2147483648
    %v5330 = vor.u32 1.1754944e-38, %v5329
    %v5331 = vsel %vm5328, %v5330, %v5326
    %v5332 = vmul.f32 %v5023, %v5331
    %v5333 = vrcp.pop %v5175
    %v5334 = vmul.f32 %v5175, %v5333
    %v5335 = vsub.f32 1.0, %v5334
    %v5336 = vmul.f32 %v5333, %v5335
    %v5337 = vadd.f32 %v5333, %v5336
    %vm5338 = vweird.f32 %v5175
    %vm5339 = vweird.f32 %v5333
    %vm5340 = vmor %vm5338, %vm5339
    %v5341 = vsel %vm5340, %v5333, %v5337
    %v5342 = vand.u32 2147483647, %v5175
    %vm5343 = vcmp.eq.f32.partialorder %v5342, 8.507059e+37
    %v5344 = vand.u32 %v5175, 2147483648
    %v5345 = vor.u32 1.1754944e-38, %v5344
    %v5346 = vsel %vm5343, %v5345, %v5341
    %v5347 = vmul.f32 %v5025, %v5346
    %v5348 = vrcp.pop %v5176
    %v5349 = vmul.f32 %v5176, %v5348
    %v5350 = vsub.f32 1.0, %v5349
    %v5351 = vmul.f32 %v5348, %v5350
    %v5352 = vadd.f32 %v5348, %v5351
    %vm5353 = vweird.f32 %v5176
    %vm5354 = vweird.f32 %v5348
    %vm5355 = vmor %vm5353, %vm5354
    %v5356 = vsel %vm5355, %v5348, %v5352
    %v5357 = vand.u32 2147483647, %v5176
    %vm5358 = vcmp.eq.f32.partialorder %v5357, 8.507059e+37
    %v5359 = vand.u32 %v5176, 2147483648
    %v5360 = vor.u32 1.1754944e-38, %v5359
    %v5361 = vsel %vm5358, %v5360, %v5356
    %v5362 = vmul.f32 %v5027, %v5361
    %v5363 = vrcp.pop %v5177
    %v5364 = vmul.f32 %v5177, %v5363
    %v5365 = vsub.f32 1.0, %v5364
    %v5366 = vmul.f32 %v5363, %v5365
    %v5367 = vadd.f32 %v5363, %v5366
    %vm5368 = vweird.f32 %v5177
    %vm5369 = vweird.f32 %v5363
    %vm5370 = vmor %vm5368, %vm5369
    %v5371 = vsel %vm5370, %v5363, %v5367
    %v5372 = vand.u32 2147483647, %v5177
    %vm5373 = vcmp.eq.f32.partialorder %v5372, 8.507059e+37
    %v5374 = vand.u32 %v5177, 2147483648
    %v5375 = vor.u32 1.1754944e-38, %v5374
    %v5376 = vsel %vm5373, %v5375, %v5371
    %v5377 = vmul.f32 %v5029, %v5376
    %v5378 = vrcp.pop %v5178
    %v5379 = vmul.f32 %v5178, %v5378
    %v5380 = vsub.f32 1.0, %v5379
    %v5381 = vmul.f32 %v5378, %v5380
    %v5382 = vadd.f32 %v5378, %v5381
    %vm5383 = vweird.f32 %v5178
    %vm5384 = vweird.f32 %v5378
    %vm5385 = vmor %vm5383, %vm5384
    %v5386 = vsel %vm5385, %v5378, %v5382
    %v5387 = vand.u32 2147483647, %v5178
    %vm5388 = vcmp.eq.f32.partialorder %v5387, 8.507059e+37
    %v5389 = vand.u32 %v5178, 2147483648
    %v5390 = vor.u32 1.1754944e-38, %v5389
    %v5391 = vsel %vm5388, %v5390, %v5386
    %v5392 = vmul.f32 %v5031, %v5391
    %v5393 = vrcp.pop %v5179
    %v5394 = vmul.f32 %v5179, %v5393
    %v5395 = vsub.f32 1.0, %v5394
    %v5396 = vmul.f32 %v5393, %v5395
    %v5397 = vadd.f32 %v5393, %v5396
    %vm5398 = vweird.f32 %v5179
    %vm5399 = vweird.f32 %v5393
    %vm5400 = vmor %vm5398, %vm5399
    %v5401 = vsel %vm5400, %v5393, %v5397
    %v5402 = vand.u32 2147483647, %v5179
    %vm5403 = vcmp.eq.f32.partialorder %v5402, 8.507059e+37
    %v5404 = vand.u32 %v5179, 2147483648
    %v5405 = vor.u32 1.1754944e-38, %v5404
    %v5406 = vsel %vm5403, %v5405, %v5401
    %v5407 = vmul.f32 %v5033, %v5406
    %v5408 = vrcp.pop %v5180
    %v5409 = vmul.f32 %v5180, %v5408
    %v5410 = vsub.f32 1.0, %v5409
    %v5411 = vmul.f32 %v5408, %v5410
    %v5412 = vadd.f32 %v5408, %v5411
    %vm5413 = vweird.f32 %v5180
    %vm5414 = vweird.f32 %v5408
    %vm5415 = vmor %vm5413, %vm5414
    %v5416 = vsel %vm5415, %v5408, %v5412
    %v5417 = vand.u32 2147483647, %v5180
    %vm5418 = vcmp.eq.f32.partialorder %v5417, 8.507059e+37
    %v5419 = vand.u32 %v5180, 2147483648
    %v5420 = vor.u32 1.1754944e-38, %v5419
    %v5421 = vsel %vm5418, %v5420, %v5416
    %v5422 = vmul.f32 %v5035, %v5421
    %v5423 = vrcp.pop %v5181
    %v5424 = vmul.f32 %v5181, %v5423
    %v5425 = vsub.f32 1.0, %v5424
    %v5426 = vmul.f32 %v5423, %v5425
    %v5427 = vadd.f32 %v5423, %v5426
    %vm5428 = vweird.f32 %v5181
    %vm5429 = vweird.f32 %v5423
    %vm5430 = vmor %vm5428, %vm5429
    %v5431 = vsel %vm5430, %v5423, %v5427
    %v5432 = vand.u32 2147483647, %v5181
    %vm5433 = vcmp.eq.f32.partialorder %v5432, 8.507059e+37
    %v5434 = vand.u32 %v5181, 2147483648
    %v5435 = vor.u32 1.1754944e-38, %v5434
    %v5436 = vsel %vm5433, %v5435, %v5431
    %v5437 = vmul.f32 %v5037, %v5436
    %v5438 = vmul.f32 %v5212, %v1646
    %v5439 = vmul.f32 %v5227, %v1647
    %v5440 = vmul.f32 %v5242, %v1655
    %v5441 = vmul.f32 %v5257, %v1656
    %v5442 = vadd.f32 %v5438, %v5440
    %v5443 = vadd.f32 %v5439, %v5441
    %v5444 = vmul.f32 %v5272, %v1666
    %v5445 = vmul.f32 %v5287, %v1667
    %v5446 = vadd.f32 %v5442, %v5444
    %v5447 = vadd.f32 %v5443, %v5445
    %v5448 = vmul.f32 %v5302, %v1677
    %v5449 = vmul.f32 %v5317, %v1678
    %v5450 = vadd.f32 %v5446, %v5448
    %v5451 = vadd.f32 %v5447, %v5449
    %v5452 = vmul.f32 %v5332, %v1688
    %v5453 = vmul.f32 %v5347, %v1689
    %v5454 = vadd.f32 %v5450, %v5452
    %v5455 = vadd.f32 %v5451, %v5453
    %v5456 = vmul.f32 %v5362, %v1699
    %v5457 = vmul.f32 %v5377, %v1700
    %v5458 = vadd.f32 %v5454, %v5456
    %v5459 = vadd.f32 %v5455, %v5457
    %v5460 = vmul.f32 %v5392, %v1710
    %v5461 = vmul.f32 %v5407, %v1711
    %v5462 = vadd.f32 %v5458, %v5460
    %v5463 = vadd.f32 %v5459, %v5461
    %v5464 = vmul.f32 %v5422, %v1721
    %v5465 = vmul.f32 %v5437, %v1722
    %v5466 = vadd.f32 %v5462, %v5464
    %v5467 = vadd.f32 %v5463, %v5465
    %5470 = vset.pattern.permute.xlu0 0
    %5471 = vperm.xlu0 %5470, %v5466
    %v5472 = vpop.permute.xlu0 %5471
    %5473 = vset.pattern.permute.xlu0 0
    %5474 = vperm.xlu0 %5473, %v5467
    %v5475 = vpop.permute.xlu0 %5474
    %v5476 = vperm.slane %v5472, %v1097
    %v5477 = vperm.slane %v5475, %v1097
    %v5478 = vsel %vm904, %v5477, %v5476
    %s5480 = scalar_lea.vmem %s11, 8
    %5481 = vst.msk [vmem:[%s5480] sm:$0x3] %vm473, %v5478
    %v5482 = vlaneseq
    %v5483 = vshrl.u32 %v5482, 7
    %5485 = vset.pattern.permute.xlu0 %v5483
    %5486 = vperm.xlu0 %5485, %v4812
    %v5487 = vpop.permute.xlu0 %5486
    %v5488 = vlaneseq
    %v5489 = vshrl.u32 %v5488, 7
    %v5490 = vadd.s32 %v5489, 8
    %5491 = vset.pattern.permute.xlu0 %v5490
    %5492 = vperm.xlu0 %5491, %v4812
    %v5493 = vpop.permute.xlu0 %5492
    %v5494 = vlaneseq
    %v5495 = vshrl.u32 %v5494, 7
    %5497 = vset.pattern.permute.xlu0 %v5495
    %5498 = vperm.xlu0 %5497, %v4813
    %v5499 = vpop.permute.xlu0 %5498
    %v5500 = vlaneseq
    %v5501 = vshrl.u32 %v5500, 7
    %v5502 = vadd.s32 %v5501, 8
    %5503 = vset.pattern.permute.xlu0 %v5502
    %5504 = vperm.xlu0 %5503, %v4813
    %v5505 = vpop.permute.xlu0 %5504
    %v5506 = vmul.f32 %v215, %v5487
    %v5507 = vmul.f32 %v230, %v5493
    %v5508 = vmul.f32 %v245, %v5487
    %v5509 = vmul.f32 %v260, %v5493
    %v5510 = vmul.f32 %v275, %v5487
    %v5511 = vmul.f32 %v290, %v5493
    %v5512 = vmul.f32 %v305, %v5487
    %v5513 = vmul.f32 %v320, %v5493
    %v5514 = vmul.f32 %v335, %v5499
    %v5515 = vmul.f32 %v350, %v5505
    %v5516 = vmul.f32 %v365, %v5499
    %v5517 = vmul.f32 %v380, %v5505
    %v5518 = vmul.f32 %v395, %v5499
    %v5519 = vmul.f32 %v410, %v5505
    %v5520 = vmul.f32 %v425, %v5499
    %v5521 = vmul.f32 %v440, %v5505
    %v5522 = vsel %vm56, %v5506, 0.0
    %v5523 = vsel %vm56, %v5507, 0.0
    %v5524 = vadd.f32 %v5522, %v5523
    %v5525 = vrot.slane %v5524, 4
    %v5526 = vadd.f32 %v5524, %v5525
    %v5527 = vrot.slane %v5526, 2
    %v5528 = vadd.f32 %v5526, %v5527
    %v5529 = vrot.slane %v5528, 1
    %v5530 = vadd.f32 %v5528, %v5529
    %v5531 = vsel %vm56, %v5508, 0.0
    %v5532 = vsel %vm56, %v5509, 0.0
    %v5533 = vadd.f32 %v5531, %v5532
    %v5534 = vrot.slane %v5533, 4
    %v5535 = vadd.f32 %v5533, %v5534
    %v5536 = vrot.slane %v5535, 2
    %v5537 = vadd.f32 %v5535, %v5536
    %v5538 = vrot.slane %v5537, 1
    %v5539 = vadd.f32 %v5537, %v5538
    %v5540 = vsel %vm56, %v5510, 0.0
    %v5541 = vsel %vm56, %v5511, 0.0
    %v5542 = vadd.f32 %v5540, %v5541
    %v5543 = vrot.slane %v5542, 4
    %v5544 = vadd.f32 %v5542, %v5543
    %v5545 = vrot.slane %v5544, 2
    %v5546 = vadd.f32 %v5544, %v5545
    %v5547 = vrot.slane %v5546, 1
    %v5548 = vadd.f32 %v5546, %v5547
    %v5549 = vsel %vm56, %v5512, 0.0
    %v5550 = vsel %vm56, %v5513, 0.0
    %v5551 = vadd.f32 %v5549, %v5550
    %v5552 = vrot.slane %v5551, 4
    %v5553 = vadd.f32 %v5551, %v5552
    %v5554 = vrot.slane %v5553, 2
    %v5555 = vadd.f32 %v5553, %v5554
    %v5556 = vrot.slane %v5555, 1
    %v5557 = vadd.f32 %v5555, %v5556
    %v5558 = vsel %vm56, %v5514, 0.0
    %v5559 = vsel %vm56, %v5515, 0.0
    %v5560 = vadd.f32 %v5558, %v5559
    %v5561 = vrot.slane %v5560, 4
    %v5562 = vadd.f32 %v5560, %v5561
    %v5563 = vrot.slane %v5562, 2
    %v5564 = vadd.f32 %v5562, %v5563
    %v5565 = vrot.slane %v5564, 1
    %v5566 = vadd.f32 %v5564, %v5565
    %v5567 = vsel %vm56, %v5516, 0.0
    %v5568 = vsel %vm56, %v5517, 0.0
    %v5569 = vadd.f32 %v5567, %v5568
    %v5570 = vrot.slane %v5569, 4
    %v5571 = vadd.f32 %v5569, %v5570
    %v5572 = vrot.slane %v5571, 2
    %v5573 = vadd.f32 %v5571, %v5572
    %v5574 = vrot.slane %v5573, 1
    %v5575 = vadd.f32 %v5573, %v5574
    %v5576 = vsel %vm56, %v5518, 0.0
    %v5577 = vsel %vm56, %v5519, 0.0
    %v5578 = vadd.f32 %v5576, %v5577
    %v5579 = vrot.slane %v5578, 4
    %v5580 = vadd.f32 %v5578, %v5579
    %v5581 = vrot.slane %v5580, 2
    %v5582 = vadd.f32 %v5580, %v5581
    %v5583 = vrot.slane %v5582, 1
    %v5584 = vadd.f32 %v5582, %v5583
    %v5585 = vsel %vm56, %v5520, 0.0
    %v5586 = vsel %vm56, %v5521, 0.0
    %v5587 = vadd.f32 %v5585, %v5586
    %v5588 = vrot.slane %v5587, 4
    %v5589 = vadd.f32 %v5587, %v5588
    %v5590 = vrot.slane %v5589, 2
    %v5591 = vadd.f32 %v5589, %v5590
    %v5592 = vrot.slane %v5591, 1
    %v5593 = vadd.f32 %v5591, %v5592
    %v5594 = vperm.slane %v635, 0
    %v5595 = vlaneseq
    %v5596 = vshrl.u32 %v5595, 7
    %5598 = vset.pattern.permute.xlu0 %v5596
    %5599 = vperm.xlu0 %5598, %v5594
    %v5600 = vpop.permute.xlu0 %5599
    %v5601 = vperm.slane %v635, 1
    %v5602 = vlaneseq
    %v5603 = vshrl.u32 %v5602, 7
    %5605 = vset.pattern.permute.xlu0 %v5603
    %5606 = vperm.xlu0 %5605, %v5601
    %v5607 = vpop.permute.xlu0 %5606
    %v5610 = vrot.slane %v5600, 1
    %v5611 = vrot.slane %v5600, 2
    %v5612 = vrot.slane %v5600, 3
    %v5613 = vrot.slane %v5607, 1
    %v5614 = vrot.slane %v5607, 2
    %v5615 = vrot.slane %v5607, 3
    %v5624 = vmul.f32 %v5530, %v5600
    %v5625 = vmul.f32 %v5539, %v5610
    %v5626 = vmul.f32 %v5548, %v5611
    %v5627 = vmul.f32 %v5557, %v5612
    %v5628 = vmul.f32 %v5566, %v5607
    %v5629 = vmul.f32 %v5575, %v5613
    %v5630 = vmul.f32 %v5584, %v5614
    %v5631 = vmul.f32 %v5593, %v5615
    %v5640 = vrot.slane %v5625, 7
    %v5641 = vsel %vm904, %v5640, %v5624
    %v5642 = vrot.slane %v5626, 6
    %v5643 = vsel %vm907, %v5642, %v5641
    %v5644 = vrot.slane %v5627, 5
    %v5645 = vsel %vm910, %v5644, %v5643
    %v5646 = vrot.slane %v5629, 7
    %v5647 = vsel %vm904, %v5646, %v5628
    %v5648 = vrot.slane %v5630, 6
    %v5649 = vsel %vm907, %v5648, %v5647
    %v5650 = vrot.slane %v5631, 5
    %v5651 = vsel %vm910, %v5650, %v5649
    %v5654 = vsel %vm920, %v5645, 0.0
    %v5655 = vrot.slane %v5654, 4
    %v5656 = vadd.f32 %v5654, %v5655
    %v5657 = vrot.slane %v5656, 2
    %v5658 = vadd.f32 %v5656, %v5657
    %v5659 = vrot.slane %v5658, 1
    %v5660 = vadd.f32 %v5658, %v5659
    %v5661 = vsel %vm920, %v5651, 0.0
    %v5662 = vrot.slane %v5661, 4
    %v5663 = vadd.f32 %v5661, %v5662
    %v5664 = vrot.slane %v5663, 2
    %v5665 = vadd.f32 %v5663, %v5664
    %v5666 = vrot.slane %v5665, 1
    %v5667 = vadd.f32 %v5665, %v5666
    %v5668 = vadd.f32 %v5660, 1e-06
    %v5669 = vadd.f32 %v5667, 1e-06
    %v5670 = vlog2.pop %v5668
    %v5671 = vmul.f32 %v5670, 0.6931472
    %v5672 = vlog2.pop %v5669
    %v5673 = vmul.f32 %v5672, 0.6931472
    %v5675 = vrot.slane %v462, 1
    %v5678 = vadd.f32 %v5671, %v462
    %v5679 = vadd.f32 %v5673, %v5675
    %v5682 = vrot.slane %v5679, 7
    %v5683 = vsel %vm904, %v5682, %v5678
    %v5685 = vsel %vm952, %v5683, -inf
    %5686 = vmax.xlane.f32.xlu0 %v5685
    %v5687 = vpop.xlane.xlu0 %5686
    %v5689 = vrot.slane %v5687, 1
    %v5692 = vsub.f32 %v5678, %v5687
    %v5693 = vsub.f32 %v5679, %v5689
    %v5694 = vmul.f32 %v5692, 1.442695
    %v5695 = vpow.pop %v5694
    %v5696 = vmul.f32 %v5693, 1.442695
    %v5697 = vpow.pop %v5696
    %v5700 = vrot.slane %v5697, 7
    %v5701 = vsel %vm904, %v5700, %v5695
    %v5703 = vsel %vm952, %v5701, 0.0
    %5704 = vadd.xlane.f32.xlu0 %v5703
    %v5705 = vpop.xlane.xlu0 %5704
    %v5707 = vrot.slane %v5705, 1
    %v5710 = vrcp.pop %v5705
    %v5711 = vmul.f32 %v5705, %v5710
    %v5712 = vsub.f32 1.0, %v5711
    %v5713 = vmul.f32 %v5710, %v5712
    %v5714 = vadd.f32 %v5710, %v5713
    %vm5715 = vweird.f32 %v5705
    %vm5716 = vweird.f32 %v5710
    %vm5717 = vmor %vm5715, %vm5716
    %v5718 = vsel %vm5717, %v5710, %v5714
    %v5719 = vand.u32 2147483647, %v5705
    %vm5720 = vcmp.eq.f32.partialorder %v5719, 8.507059e+37
    %v5721 = vand.u32 %v5705, 2147483648
    %v5722 = vor.u32 1.1754944e-38, %v5721
    %v5723 = vsel %vm5720, %v5722, %v5718
    %v5724 = vmul.f32 %v5695, %v5723
    %v5725 = vrcp.pop %v5707
    %v5726 = vmul.f32 %v5707, %v5725
    %v5727 = vsub.f32 1.0, %v5726
    %v5728 = vmul.f32 %v5725, %v5727
    %v5729 = vadd.f32 %v5725, %v5728
    %vm5730 = vweird.f32 %v5707
    %vm5731 = vweird.f32 %v5725
    %vm5732 = vmor %vm5730, %vm5731
    %v5733 = vsel %vm5732, %v5725, %v5729
    %v5734 = vand.u32 2147483647, %v5707
    %vm5735 = vcmp.eq.f32.partialorder %v5734, 8.507059e+37
    %v5736 = vand.u32 %v5707, 2147483648
    %v5737 = vor.u32 1.1754944e-38, %v5736
    %v5738 = vsel %vm5735, %v5737, %v5733
    %v5739 = vmul.f32 %v5697, %v5738
    %v5742 = vrot.slane %v5739, 7
    %v5743 = vsel %vm904, %v5742, %v5724
    %s5745 = scalar_lea.vmem [#allocation3], 10
    %5746 = vst.msk [vmem:[%s5745] sm:$0x3] %vm952, %v5743
    %v5747 = vperm.slane %v5724, 0
    %v5748 = vperm.slane %v5739, 0
    %v5749 = vmul.f32 %v441, %v5747
    %v5750 = vmul.f32 %v442, %v5748
    %v5751 = vmul.f32 %v443, %v5747
    %v5752 = vmul.f32 %v444, %v5748
    %v5753 = vmul.f32 %v445, %v5747
    %v5754 = vmul.f32 %v446, %v5748
    %v5755 = vmul.f32 %v447, %v5747
    %v5756 = vmul.f32 %v448, %v5748
    %v5757 = vmul.f32 %v449, %v5747
    %v5758 = vmul.f32 %v450, %v5748
    %v5759 = vmul.f32 %v451, %v5747
    %v5760 = vmul.f32 %v452, %v5748
    %v5761 = vmul.f32 %v453, %v5747
    %v5762 = vmul.f32 %v454, %v5748
    %v5763 = vmul.f32 %v455, %v5747
    %v5764 = vmul.f32 %v456, %v5748
    %v5765 = vsel %vm920, %v5749, 0.0
    %5766 = vadd.xlane.f32.xlu0 %v5765
    %v5767 = vpop.xlane.xlu0 %5766
    %v5768 = vsel %vm920, %v5750, 0.0
    %5769 = vadd.xlane.f32.xlu0 %v5768
    %v5770 = vpop.xlane.xlu0 %5769
    %v5771 = vsel %vm920, %v5751, 0.0
    %5772 = vadd.xlane.f32.xlu0 %v5771
    %v5773 = vpop.xlane.xlu0 %5772
    %v5774 = vsel %vm920, %v5752, 0.0
    %5775 = vadd.xlane.f32.xlu0 %v5774
    %v5776 = vpop.xlane.xlu0 %5775
    %v5777 = vsel %vm920, %v5753, 0.0
    %5778 = vadd.xlane.f32.xlu0 %v5777
    %v5779 = vpop.xlane.xlu0 %5778
    %v5780 = vsel %vm920, %v5754, 0.0
    %5781 = vadd.xlane.f32.xlu0 %v5780
    %v5782 = vpop.xlane.xlu0 %5781
    %v5783 = vsel %vm920, %v5755, 0.0
    %5784 = vadd.xlane.f32.xlu0 %v5783
    %v5785 = vpop.xlane.xlu0 %5784
    %v5786 = vsel %vm920, %v5756, 0.0
    %5787 = vadd.xlane.f32.xlu0 %v5786
    %v5788 = vpop.xlane.xlu0 %5787
    %v5789 = vsel %vm920, %v5757, 0.0
    %5790 = vadd.xlane.f32.xlu0 %v5789
    %v5791 = vpop.xlane.xlu0 %5790
    %v5792 = vsel %vm920, %v5758, 0.0
    %5793 = vadd.xlane.f32.xlu0 %v5792
    %v5794 = vpop.xlane.xlu0 %5793
    %v5795 = vsel %vm920, %v5759, 0.0
    %5796 = vadd.xlane.f32.xlu0 %v5795
    %v5797 = vpop.xlane.xlu0 %5796
    %v5798 = vsel %vm920, %v5760, 0.0
    %5799 = vadd.xlane.f32.xlu0 %v5798
    %v5800 = vpop.xlane.xlu0 %5799
    %v5801 = vsel %vm920, %v5761, 0.0
    %5802 = vadd.xlane.f32.xlu0 %v5801
    %v5803 = vpop.xlane.xlu0 %5802
    %v5804 = vsel %vm920, %v5762, 0.0
    %5805 = vadd.xlane.f32.xlu0 %v5804
    %v5806 = vpop.xlane.xlu0 %5805
    %v5807 = vsel %vm920, %v5763, 0.0
    %5808 = vadd.xlane.f32.xlu0 %v5807
    %v5809 = vpop.xlane.xlu0 %5808
    %v5810 = vsel %vm920, %v5764, 0.0
    %5811 = vadd.xlane.f32.xlu0 %v5810
    %v5812 = vpop.xlane.xlu0 %5811
    %v5829 = vperm.slane %v5767, %v1097
    %v5830 = vperm.slane %v5770, %v1097
    %v5831 = vperm.slane %v5773, %v1097
    %v5832 = vperm.slane %v5776, %v1097
    %v5833 = vperm.slane %v5779, %v1097
    %v5834 = vperm.slane %v5782, %v1097
    %v5835 = vperm.slane %v5785, %v1097
    %v5836 = vperm.slane %v5788, %v1097
    %v5837 = vperm.slane %v5791, %v1097
    %v5838 = vperm.slane %v5794, %v1097
    %v5839 = vperm.slane %v5797, %v1097
    %v5840 = vperm.slane %v5800, %v1097
    %v5841 = vperm.slane %v5803, %v1097
    %v5842 = vperm.slane %v5806, %v1097
    %v5843 = vperm.slane %v5809, %v1097
    %v5844 = vperm.slane %v5812, %v1097
    %v5845 = vsel %vm904, %v5830, %v5829
    %v5846 = vsel %vm904, %v5832, %v5831
    %v5847 = vsel %vm904, %v5834, %v5833
    %v5848 = vsel %vm904, %v5836, %v5835
    %v5849 = vsel %vm904, %v5838, %v5837
    %v5850 = vsel %vm904, %v5840, %v5839
    %v5851 = vsel %vm904, %v5842, %v5841
    %v5852 = vsel %vm904, %v5844, %v5843
    %v5861 = vsel %vm473, %v5845, -inf
    %5862 = vmax.xlane.f32.xlu0 %v5861
    %v5863 = vpop.xlane.xlu0 %5862
    %v5864 = vsel %vm473, %v5846, -inf
    %5865 = vmax.xlane.f32.xlu0 %v5864
    %v5866 = vpop.xlane.xlu0 %5865
    %v5867 = vsel %vm473, %v5847, -inf
    %5868 = vmax.xlane.f32.xlu0 %v5867
    %v5869 = vpop.xlane.xlu0 %5868
    %v5870 = vsel %vm473, %v5848, -inf
    %5871 = vmax.xlane.f32.xlu0 %v5870
    %v5872 = vpop.xlane.xlu0 %5871
    %v5873 = vsel %vm473, %v5849, -inf
    %5874 = vmax.xlane.f32.xlu0 %v5873
    %v5875 = vpop.xlane.xlu0 %5874
    %v5876 = vsel %vm473, %v5850, -inf
    %5877 = vmax.xlane.f32.xlu0 %v5876
    %v5878 = vpop.xlane.xlu0 %5877
    %v5879 = vsel %vm473, %v5851, -inf
    %5880 = vmax.xlane.f32.xlu0 %v5879
    %v5881 = vpop.xlane.xlu0 %5880
    %v5882 = vsel %vm473, %v5852, -inf
    %5883 = vmax.xlane.f32.xlu0 %v5882
    %v5884 = vpop.xlane.xlu0 %5883
    %v5893 = vperm.slane %v5863, 0
    %v5894 = vperm.slane %v5863, 1
    %v5895 = vperm.slane %v5866, 0
    %v5896 = vperm.slane %v5866, 1
    %v5897 = vperm.slane %v5869, 0
    %v5898 = vperm.slane %v5869, 1
    %v5899 = vperm.slane %v5872, 0
    %v5900 = vperm.slane %v5872, 1
    %v5901 = vperm.slane %v5875, 0
    %v5902 = vperm.slane %v5875, 1
    %v5903 = vperm.slane %v5878, 0
    %v5904 = vperm.slane %v5878, 1
    %v5905 = vperm.slane %v5881, 0
    %v5906 = vperm.slane %v5881, 1
    %v5907 = vperm.slane %v5884, 0
    %v5908 = vperm.slane %v5884, 1
    %v5925 = vsub.f32 %v5767, %v5893
    %v5926 = vsub.f32 %v5770, %v5894
    %v5927 = vsub.f32 %v5773, %v5895
    %v5928 = vsub.f32 %v5776, %v5896
    %v5929 = vsub.f32 %v5779, %v5897
    %v5930 = vsub.f32 %v5782, %v5898
    %v5931 = vsub.f32 %v5785, %v5899
    %v5932 = vsub.f32 %v5788, %v5900
    %v5933 = vsub.f32 %v5791, %v5901
    %v5934 = vsub.f32 %v5794, %v5902
    %v5935 = vsub.f32 %v5797, %v5903
    %v5936 = vsub.f32 %v5800, %v5904
    %v5937 = vsub.f32 %v5803, %v5905
    %v5938 = vsub.f32 %v5806, %v5906
    %v5939 = vsub.f32 %v5809, %v5907
    %v5940 = vsub.f32 %v5812, %v5908
    %v5941 = vmul.f32 %v5925, 1.442695
    %v5942 = vpow.pop %v5941
    %v5943 = vmul.f32 %v5926, 1.442695
    %v5944 = vpow.pop %v5943
    %v5945 = vmul.f32 %v5927, 1.442695
    %v5946 = vpow.pop %v5945
    %v5947 = vmul.f32 %v5928, 1.442695
    %v5948 = vpow.pop %v5947
    %v5949 = vmul.f32 %v5929, 1.442695
    %v5950 = vpow.pop %v5949
    %v5951 = vmul.f32 %v5930, 1.442695
    %v5952 = vpow.pop %v5951
    %v5953 = vmul.f32 %v5931, 1.442695
    %v5954 = vpow.pop %v5953
    %v5955 = vmul.f32 %v5932, 1.442695
    %v5956 = vpow.pop %v5955
    %v5957 = vmul.f32 %v5933, 1.442695
    %v5958 = vpow.pop %v5957
    %v5959 = vmul.f32 %v5934, 1.442695
    %v5960 = vpow.pop %v5959
    %v5961 = vmul.f32 %v5935, 1.442695
    %v5962 = vpow.pop %v5961
    %v5963 = vmul.f32 %v5936, 1.442695
    %v5964 = vpow.pop %v5963
    %v5965 = vmul.f32 %v5937, 1.442695
    %v5966 = vpow.pop %v5965
    %v5967 = vmul.f32 %v5938, 1.442695
    %v5968 = vpow.pop %v5967
    %v5969 = vmul.f32 %v5939, 1.442695
    %v5970 = vpow.pop %v5969
    %v5971 = vmul.f32 %v5940, 1.442695
    %v5972 = vpow.pop %v5971
    %5989 = vset.pattern.permute.xlu0 0
    %5990 = vperm.xlu0 %5989, %v5942
    %v5991 = vpop.permute.xlu0 %5990
    %5992 = vset.pattern.permute.xlu0 0
    %5993 = vperm.xlu0 %5992, %v5944
    %v5994 = vpop.permute.xlu0 %5993
    %5995 = vset.pattern.permute.xlu0 0
    %5996 = vperm.xlu0 %5995, %v5946
    %v5997 = vpop.permute.xlu0 %5996
    %5998 = vset.pattern.permute.xlu0 0
    %5999 = vperm.xlu0 %5998, %v5948
    %v6000 = vpop.permute.xlu0 %5999
    %6001 = vset.pattern.permute.xlu0 0
    %6002 = vperm.xlu0 %6001, %v5950
    %v6003 = vpop.permute.xlu0 %6002
    %6004 = vset.pattern.permute.xlu0 0
    %6005 = vperm.xlu0 %6004, %v5952
    %v6006 = vpop.permute.xlu0 %6005
    %6007 = vset.pattern.permute.xlu0 0
    %6008 = vperm.xlu0 %6007, %v5954
    %v6009 = vpop.permute.xlu0 %6008
    %6010 = vset.pattern.permute.xlu0 0
    %6011 = vperm.xlu0 %6010, %v5956
    %v6012 = vpop.permute.xlu0 %6011
    %6013 = vset.pattern.permute.xlu0 0
    %6014 = vperm.xlu0 %6013, %v5958
    %v6015 = vpop.permute.xlu0 %6014
    %6016 = vset.pattern.permute.xlu0 0
    %6017 = vperm.xlu0 %6016, %v5960
    %v6018 = vpop.permute.xlu0 %6017
    %6019 = vset.pattern.permute.xlu0 0
    %6020 = vperm.xlu0 %6019, %v5962
    %v6021 = vpop.permute.xlu0 %6020
    %6022 = vset.pattern.permute.xlu0 0
    %6023 = vperm.xlu0 %6022, %v5964
    %v6024 = vpop.permute.xlu0 %6023
    %6025 = vset.pattern.permute.xlu0 0
    %6026 = vperm.xlu0 %6025, %v5966
    %v6027 = vpop.permute.xlu0 %6026
    %6028 = vset.pattern.permute.xlu0 0
    %6029 = vperm.xlu0 %6028, %v5968
    %v6030 = vpop.permute.xlu0 %6029
    %6031 = vset.pattern.permute.xlu0 0
    %6032 = vperm.xlu0 %6031, %v5970
    %v6033 = vpop.permute.xlu0 %6032
    %6034 = vset.pattern.permute.xlu0 0
    %6035 = vperm.xlu0 %6034, %v5972
    %v6036 = vpop.permute.xlu0 %6035
    %v6037 = vperm.slane %v5991, %v1097
    %v6038 = vperm.slane %v5994, %v1097
    %v6039 = vperm.slane %v5997, %v1097
    %v6040 = vperm.slane %v6000, %v1097
    %v6041 = vperm.slane %v6003, %v1097
    %v6042 = vperm.slane %v6006, %v1097
    %v6043 = vperm.slane %v6009, %v1097
    %v6044 = vperm.slane %v6012, %v1097
    %v6045 = vperm.slane %v6015, %v1097
    %v6046 = vperm.slane %v6018, %v1097
    %v6047 = vperm.slane %v6021, %v1097
    %v6048 = vperm.slane %v6024, %v1097
    %v6049 = vperm.slane %v6027, %v1097
    %v6050 = vperm.slane %v6030, %v1097
    %v6051 = vperm.slane %v6033, %v1097
    %v6052 = vperm.slane %v6036, %v1097
    %v6053 = vsel %vm904, %v6038, %v6037
    %v6054 = vsel %vm904, %v6040, %v6039
    %v6055 = vsel %vm904, %v6042, %v6041
    %v6056 = vsel %vm904, %v6044, %v6043
    %v6057 = vsel %vm904, %v6046, %v6045
    %v6058 = vsel %vm904, %v6048, %v6047
    %v6059 = vsel %vm904, %v6050, %v6049
    %v6060 = vsel %vm904, %v6052, %v6051
    %v6069 = vsel %vm473, %v6053, 0.0
    %6070 = vadd.xlane.f32.xlu0 %v6069
    %v6071 = vpop.xlane.xlu0 %6070
    %v6072 = vsel %vm473, %v6054, 0.0
    %6073 = vadd.xlane.f32.xlu0 %v6072
    %v6074 = vpop.xlane.xlu0 %6073
    %v6075 = vsel %vm473, %v6055, 0.0
    %6076 = vadd.xlane.f32.xlu0 %v6075
    %v6077 = vpop.xlane.xlu0 %6076
    %v6078 = vsel %vm473, %v6056, 0.0
    %6079 = vadd.xlane.f32.xlu0 %v6078
    %v6080 = vpop.xlane.xlu0 %6079
    %v6081 = vsel %vm473, %v6057, 0.0
    %6082 = vadd.xlane.f32.xlu0 %v6081
    %v6083 = vpop.xlane.xlu0 %6082
    %v6084 = vsel %vm473, %v6058, 0.0
    %6085 = vadd.xlane.f32.xlu0 %v6084
    %v6086 = vpop.xlane.xlu0 %6085
    %v6087 = vsel %vm473, %v6059, 0.0
    %6088 = vadd.xlane.f32.xlu0 %v6087
    %v6089 = vpop.xlane.xlu0 %6088
    %v6090 = vsel %vm473, %v6060, 0.0
    %6091 = vadd.xlane.f32.xlu0 %v6090
    %v6092 = vpop.xlane.xlu0 %6091
    %v6101 = vperm.slane %v6071, 0
    %v6102 = vperm.slane %v6071, 1
    %v6103 = vperm.slane %v6074, 0
    %v6104 = vperm.slane %v6074, 1
    %v6105 = vperm.slane %v6077, 0
    %v6106 = vperm.slane %v6077, 1
    %v6107 = vperm.slane %v6080, 0
    %v6108 = vperm.slane %v6080, 1
    %v6109 = vperm.slane %v6083, 0
    %v6110 = vperm.slane %v6083, 1
    %v6111 = vperm.slane %v6086, 0
    %v6112 = vperm.slane %v6086, 1
    %v6113 = vperm.slane %v6089, 0
    %v6114 = vperm.slane %v6089, 1
    %v6115 = vperm.slane %v6092, 0
    %v6116 = vperm.slane %v6092, 1
    %v6133 = vrcp.pop %v6101
    %v6134 = vmul.f32 %v6101, %v6133
    %v6135 = vsub.f32 1.0, %v6134
    %v6136 = vmul.f32 %v6133, %v6135
    %v6137 = vadd.f32 %v6133, %v6136
    %vm6138 = vweird.f32 %v6101
    %vm6139 = vweird.f32 %v6133
    %vm6140 = vmor %vm6138, %vm6139
    %v6141 = vsel %vm6140, %v6133, %v6137
    %v6142 = vand.u32 2147483647, %v6101
    %vm6143 = vcmp.eq.f32.partialorder %v6142, 8.507059e+37
    %v6144 = vand.u32 %v6101, 2147483648
    %v6145 = vor.u32 1.1754944e-38, %v6144
    %v6146 = vsel %vm6143, %v6145, %v6141
    %v6147 = vmul.f32 %v5942, %v6146
    %v6148 = vrcp.pop %v6102
    %v6149 = vmul.f32 %v6102, %v6148
    %v6150 = vsub.f32 1.0, %v6149
    %v6151 = vmul.f32 %v6148, %v6150
    %v6152 = vadd.f32 %v6148, %v6151
    %vm6153 = vweird.f32 %v6102
    %vm6154 = vweird.f32 %v6148
    %vm6155 = vmor %vm6153, %vm6154
    %v6156 = vsel %vm6155, %v6148, %v6152
    %v6157 = vand.u32 2147483647, %v6102
    %vm6158 = vcmp.eq.f32.partialorder %v6157, 8.507059e+37
    %v6159 = vand.u32 %v6102, 2147483648
    %v6160 = vor.u32 1.1754944e-38, %v6159
    %v6161 = vsel %vm6158, %v6160, %v6156
    %v6162 = vmul.f32 %v5944, %v6161
    %v6163 = vrcp.pop %v6103
    %v6164 = vmul.f32 %v6103, %v6163
    %v6165 = vsub.f32 1.0, %v6164
    %v6166 = vmul.f32 %v6163, %v6165
    %v6167 = vadd.f32 %v6163, %v6166
    %vm6168 = vweird.f32 %v6103
    %vm6169 = vweird.f32 %v6163
    %vm6170 = vmor %vm6168, %vm6169
    %v6171 = vsel %vm6170, %v6163, %v6167
    %v6172 = vand.u32 2147483647, %v6103
    %vm6173 = vcmp.eq.f32.partialorder %v6172, 8.507059e+37
    %v6174 = vand.u32 %v6103, 2147483648
    %v6175 = vor.u32 1.1754944e-38, %v6174
    %v6176 = vsel %vm6173, %v6175, %v6171
    %v6177 = vmul.f32 %v5946, %v6176
    %v6178 = vrcp.pop %v6104
    %v6179 = vmul.f32 %v6104, %v6178
    %v6180 = vsub.f32 1.0, %v6179
    %v6181 = vmul.f32 %v6178, %v6180
    %v6182 = vadd.f32 %v6178, %v6181
    %vm6183 = vweird.f32 %v6104
    %vm6184 = vweird.f32 %v6178
    %vm6185 = vmor %vm6183, %vm6184
    %v6186 = vsel %vm6185, %v6178, %v6182
    %v6187 = vand.u32 2147483647, %v6104
    %vm6188 = vcmp.eq.f32.partialorder %v6187, 8.507059e+37
    %v6189 = vand.u32 %v6104, 2147483648
    %v6190 = vor.u32 1.1754944e-38, %v6189
    %v6191 = vsel %vm6188, %v6190, %v6186
    %v6192 = vmul.f32 %v5948, %v6191
    %v6193 = vrcp.pop %v6105
    %v6194 = vmul.f32 %v6105, %v6193
    %v6195 = vsub.f32 1.0, %v6194
    %v6196 = vmul.f32 %v6193, %v6195
    %v6197 = vadd.f32 %v6193, %v6196
    %vm6198 = vweird.f32 %v6105
    %vm6199 = vweird.f32 %v6193
    %vm6200 = vmor %vm6198, %vm6199
    %v6201 = vsel %vm6200, %v6193, %v6197
    %v6202 = vand.u32 2147483647, %v6105
    %vm6203 = vcmp.eq.f32.partialorder %v6202, 8.507059e+37
    %v6204 = vand.u32 %v6105, 2147483648
    %v6205 = vor.u32 1.1754944e-38, %v6204
    %v6206 = vsel %vm6203, %v6205, %v6201
    %v6207 = vmul.f32 %v5950, %v6206
    %v6208 = vrcp.pop %v6106
    %v6209 = vmul.f32 %v6106, %v6208
    %v6210 = vsub.f32 1.0, %v6209
    %v6211 = vmul.f32 %v6208, %v6210
    %v6212 = vadd.f32 %v6208, %v6211
    %vm6213 = vweird.f32 %v6106
    %vm6214 = vweird.f32 %v6208
    %vm6215 = vmor %vm6213, %vm6214
    %v6216 = vsel %vm6215, %v6208, %v6212
    %v6217 = vand.u32 2147483647, %v6106
    %vm6218 = vcmp.eq.f32.partialorder %v6217, 8.507059e+37
    %v6219 = vand.u32 %v6106, 2147483648
    %v6220 = vor.u32 1.1754944e-38, %v6219
    %v6221 = vsel %vm6218, %v6220, %v6216
    %v6222 = vmul.f32 %v5952, %v6221
    %v6223 = vrcp.pop %v6107
    %v6224 = vmul.f32 %v6107, %v6223
    %v6225 = vsub.f32 1.0, %v6224
    %v6226 = vmul.f32 %v6223, %v6225
    %v6227 = vadd.f32 %v6223, %v6226
    %vm6228 = vweird.f32 %v6107
    %vm6229 = vweird.f32 %v6223
    %vm6230 = vmor %vm6228, %vm6229
    %v6231 = vsel %vm6230, %v6223, %v6227
    %v6232 = vand.u32 2147483647, %v6107
    %vm6233 = vcmp.eq.f32.partialorder %v6232, 8.507059e+37
    %v6234 = vand.u32 %v6107, 2147483648
    %v6235 = vor.u32 1.1754944e-38, %v6234
    %v6236 = vsel %vm6233, %v6235, %v6231
    %v6237 = vmul.f32 %v5954, %v6236
    %v6238 = vrcp.pop %v6108
    %v6239 = vmul.f32 %v6108, %v6238
    %v6240 = vsub.f32 1.0, %v6239
    %v6241 = vmul.f32 %v6238, %v6240
    %v6242 = vadd.f32 %v6238, %v6241
    %vm6243 = vweird.f32 %v6108
    %vm6244 = vweird.f32 %v6238
    %vm6245 = vmor %vm6243, %vm6244
    %v6246 = vsel %vm6245, %v6238, %v6242
    %v6247 = vand.u32 2147483647, %v6108
    %vm6248 = vcmp.eq.f32.partialorder %v6247, 8.507059e+37
    %v6249 = vand.u32 %v6108, 2147483648
    %v6250 = vor.u32 1.1754944e-38, %v6249
    %v6251 = vsel %vm6248, %v6250, %v6246
    %v6252 = vmul.f32 %v5956, %v6251
    %v6253 = vrcp.pop %v6109
    %v6254 = vmul.f32 %v6109, %v6253
    %v6255 = vsub.f32 1.0, %v6254
    %v6256 = vmul.f32 %v6253, %v6255
    %v6257 = vadd.f32 %v6253, %v6256
    %vm6258 = vweird.f32 %v6109
    %vm6259 = vweird.f32 %v6253
    %vm6260 = vmor %vm6258, %vm6259
    %v6261 = vsel %vm6260, %v6253, %v6257
    %v6262 = vand.u32 2147483647, %v6109
    %vm6263 = vcmp.eq.f32.partialorder %v6262, 8.507059e+37
    %v6264 = vand.u32 %v6109, 2147483648
    %v6265 = vor.u32 1.1754944e-38, %v6264
    %v6266 = vsel %vm6263, %v6265, %v6261
    %v6267 = vmul.f32 %v5958, %v6266
    %v6268 = vrcp.pop %v6110
    %v6269 = vmul.f32 %v6110, %v6268
    %v6270 = vsub.f32 1.0, %v6269
    %v6271 = vmul.f32 %v6268, %v6270
    %v6272 = vadd.f32 %v6268, %v6271
    %vm6273 = vweird.f32 %v6110
    %vm6274 = vweird.f32 %v6268
    %vm6275 = vmor %vm6273, %vm6274
    %v6276 = vsel %vm6275, %v6268, %v6272
    %v6277 = vand.u32 2147483647, %v6110
    %vm6278 = vcmp.eq.f32.partialorder %v6277, 8.507059e+37
    %v6279 = vand.u32 %v6110, 2147483648
    %v6280 = vor.u32 1.1754944e-38, %v6279
    %v6281 = vsel %vm6278, %v6280, %v6276
    %v6282 = vmul.f32 %v5960, %v6281
    %v6283 = vrcp.pop %v6111
    %v6284 = vmul.f32 %v6111, %v6283
    %v6285 = vsub.f32 1.0, %v6284
    %v6286 = vmul.f32 %v6283, %v6285
    %v6287 = vadd.f32 %v6283, %v6286
    %vm6288 = vweird.f32 %v6111
    %vm6289 = vweird.f32 %v6283
    %vm6290 = vmor %vm6288, %vm6289
    %v6291 = vsel %vm6290, %v6283, %v6287
    %v6292 = vand.u32 2147483647, %v6111
    %vm6293 = vcmp.eq.f32.partialorder %v6292, 8.507059e+37
    %v6294 = vand.u32 %v6111, 2147483648
    %v6295 = vor.u32 1.1754944e-38, %v6294
    %v6296 = vsel %vm6293, %v6295, %v6291
    %v6297 = vmul.f32 %v5962, %v6296
    %v6298 = vrcp.pop %v6112
    %v6299 = vmul.f32 %v6112, %v6298
    %v6300 = vsub.f32 1.0, %v6299
    %v6301 = vmul.f32 %v6298, %v6300
    %v6302 = vadd.f32 %v6298, %v6301
    %vm6303 = vweird.f32 %v6112
    %vm6304 = vweird.f32 %v6298
    %vm6305 = vmor %vm6303, %vm6304
    %v6306 = vsel %vm6305, %v6298, %v6302
    %v6307 = vand.u32 2147483647, %v6112
    %vm6308 = vcmp.eq.f32.partialorder %v6307, 8.507059e+37
    %v6309 = vand.u32 %v6112, 2147483648
    %v6310 = vor.u32 1.1754944e-38, %v6309
    %v6311 = vsel %vm6308, %v6310, %v6306
    %v6312 = vmul.f32 %v5964, %v6311
    %v6313 = vrcp.pop %v6113
    %v6314 = vmul.f32 %v6113, %v6313
    %v6315 = vsub.f32 1.0, %v6314
    %v6316 = vmul.f32 %v6313, %v6315
    %v6317 = vadd.f32 %v6313, %v6316
    %vm6318 = vweird.f32 %v6113
    %vm6319 = vweird.f32 %v6313
    %vm6320 = vmor %vm6318, %vm6319
    %v6321 = vsel %vm6320, %v6313, %v6317
    %v6322 = vand.u32 2147483647, %v6113
    %vm6323 = vcmp.eq.f32.partialorder %v6322, 8.507059e+37
    %v6324 = vand.u32 %v6113, 2147483648
    %v6325 = vor.u32 1.1754944e-38, %v6324
    %v6326 = vsel %vm6323, %v6325, %v6321
    %v6327 = vmul.f32 %v5966, %v6326
    %v6328 = vrcp.pop %v6114
    %v6329 = vmul.f32 %v6114, %v6328
    %v6330 = vsub.f32 1.0, %v6329
    %v6331 = vmul.f32 %v6328, %v6330
    %v6332 = vadd.f32 %v6328, %v6331
    %vm6333 = vweird.f32 %v6114
    %vm6334 = vweird.f32 %v6328
    %vm6335 = vmor %vm6333, %vm6334
    %v6336 = vsel %vm6335, %v6328, %v6332
    %v6337 = vand.u32 2147483647, %v6114
    %vm6338 = vcmp.eq.f32.partialorder %v6337, 8.507059e+37
    %v6339 = vand.u32 %v6114, 2147483648
    %v6340 = vor.u32 1.1754944e-38, %v6339
    %v6341 = vsel %vm6338, %v6340, %v6336
    %v6342 = vmul.f32 %v5968, %v6341
    %v6343 = vrcp.pop %v6115
    %v6344 = vmul.f32 %v6115, %v6343
    %v6345 = vsub.f32 1.0, %v6344
    %v6346 = vmul.f32 %v6343, %v6345
    %v6347 = vadd.f32 %v6343, %v6346
    %vm6348 = vweird.f32 %v6115
    %vm6349 = vweird.f32 %v6343
    %vm6350 = vmor %vm6348, %vm6349
    %v6351 = vsel %vm6350, %v6343, %v6347
    %v6352 = vand.u32 2147483647, %v6115
    %vm6353 = vcmp.eq.f32.partialorder %v6352, 8.507059e+37
    %v6354 = vand.u32 %v6115, 2147483648
    %v6355 = vor.u32 1.1754944e-38, %v6354
    %v6356 = vsel %vm6353, %v6355, %v6351
    %v6357 = vmul.f32 %v5970, %v6356
    %v6358 = vrcp.pop %v6116
    %v6359 = vmul.f32 %v6116, %v6358
    %v6360 = vsub.f32 1.0, %v6359
    %v6361 = vmul.f32 %v6358, %v6360
    %v6362 = vadd.f32 %v6358, %v6361
    %vm6363 = vweird.f32 %v6116
    %vm6364 = vweird.f32 %v6358
    %vm6365 = vmor %vm6363, %vm6364
    %v6366 = vsel %vm6365, %v6358, %v6362
    %v6367 = vand.u32 2147483647, %v6116
    %vm6368 = vcmp.eq.f32.partialorder %v6367, 8.507059e+37
    %v6369 = vand.u32 %v6116, 2147483648
    %v6370 = vor.u32 1.1754944e-38, %v6369
    %v6371 = vsel %vm6368, %v6370, %v6366
    %v6372 = vmul.f32 %v5972, %v6371
    %v6373 = vmul.f32 %v6147, %v1646
    %v6374 = vmul.f32 %v6162, %v1647
    %v6375 = vmul.f32 %v6177, %v1655
    %v6376 = vmul.f32 %v6192, %v1656
    %v6377 = vadd.f32 %v6373, %v6375
    %v6378 = vadd.f32 %v6374, %v6376
    %v6379 = vmul.f32 %v6207, %v1666
    %v6380 = vmul.f32 %v6222, %v1667
    %v6381 = vadd.f32 %v6377, %v6379
    %v6382 = vadd.f32 %v6378, %v6380
    %v6383 = vmul.f32 %v6237, %v1677
    %v6384 = vmul.f32 %v6252, %v1678
    %v6385 = vadd.f32 %v6381, %v6383
    %v6386 = vadd.f32 %v6382, %v6384
    %v6387 = vmul.f32 %v6267, %v1688
    %v6388 = vmul.f32 %v6282, %v1689
    %v6389 = vadd.f32 %v6385, %v6387
    %v6390 = vadd.f32 %v6386, %v6388
    %v6391 = vmul.f32 %v6297, %v1699
    %v6392 = vmul.f32 %v6312, %v1700
    %v6393 = vadd.f32 %v6389, %v6391
    %v6394 = vadd.f32 %v6390, %v6392
    %v6395 = vmul.f32 %v6327, %v1710
    %v6396 = vmul.f32 %v6342, %v1711
    %v6397 = vadd.f32 %v6393, %v6395
    %v6398 = vadd.f32 %v6394, %v6396
    %v6399 = vmul.f32 %v6357, %v1721
    %v6400 = vmul.f32 %v6372, %v1722
    %v6401 = vadd.f32 %v6397, %v6399
    %v6402 = vadd.f32 %v6398, %v6400
    %6405 = vset.pattern.permute.xlu0 0
    %6406 = vperm.xlu0 %6405, %v6401
    %v6407 = vpop.permute.xlu0 %6406
    %6408 = vset.pattern.permute.xlu0 0
    %6409 = vperm.xlu0 %6408, %v6402
    %v6410 = vpop.permute.xlu0 %6409
    %v6411 = vperm.slane %v6407, %v1097
    %v6412 = vperm.slane %v6410, %v1097
    %v6413 = vsel %vm904, %v6412, %v6411
    %s6415 = scalar_lea.vmem %s11, 10
    %6416 = vst.msk [vmem:[%s6415] sm:$0x3] %vm473, %v6413
    %v6417 = vlaneseq
    %v6418 = vshrl.u32 %v6417, 7
    %6420 = vset.pattern.permute.xlu0 %v6418
    %6421 = vperm.xlu0 %6420, %v5747
    %v6422 = vpop.permute.xlu0 %6421
    %v6423 = vlaneseq
    %v6424 = vshrl.u32 %v6423, 7
    %v6425 = vadd.s32 %v6424, 8
    %6426 = vset.pattern.permute.xlu0 %v6425
    %6427 = vperm.xlu0 %6426, %v5747
    %v6428 = vpop.permute.xlu0 %6427
    %v6429 = vlaneseq
    %v6430 = vshrl.u32 %v6429, 7
    %6432 = vset.pattern.permute.xlu0 %v6430
    %6433 = vperm.xlu0 %6432, %v5748
    %v6434 = vpop.permute.xlu0 %6433
    %v6435 = vlaneseq
    %v6436 = vshrl.u32 %v6435, 7
    %v6437 = vadd.s32 %v6436, 8
    %6438 = vset.pattern.permute.xlu0 %v6437
    %6439 = vperm.xlu0 %6438, %v5748
    %v6440 = vpop.permute.xlu0 %6439
    %v6441 = vmul.f32 %v215, %v6422
    %v6442 = vmul.f32 %v230, %v6428
    %v6443 = vmul.f32 %v245, %v6422
    %v6444 = vmul.f32 %v260, %v6428
    %v6445 = vmul.f32 %v275, %v6422
    %v6446 = vmul.f32 %v290, %v6428
    %v6447 = vmul.f32 %v305, %v6422
    %v6448 = vmul.f32 %v320, %v6428
    %v6449 = vmul.f32 %v335, %v6434
    %v6450 = vmul.f32 %v350, %v6440
    %v6451 = vmul.f32 %v365, %v6434
    %v6452 = vmul.f32 %v380, %v6440
    %v6453 = vmul.f32 %v395, %v6434
    %v6454 = vmul.f32 %v410, %v6440
    %v6455 = vmul.f32 %v425, %v6434
    %v6456 = vmul.f32 %v440, %v6440
    %v6457 = vsel %vm56, %v6441, 0.0
    %v6458 = vsel %vm56, %v6442, 0.0
    %v6459 = vadd.f32 %v6457, %v6458
    %v6460 = vrot.slane %v6459, 4
    %v6461 = vadd.f32 %v6459, %v6460
    %v6462 = vrot.slane %v6461, 2
    %v6463 = vadd.f32 %v6461, %v6462
    %v6464 = vrot.slane %v6463, 1
    %v6465 = vadd.f32 %v6463, %v6464
    %v6466 = vsel %vm56, %v6443, 0.0
    %v6467 = vsel %vm56, %v6444, 0.0
    %v6468 = vadd.f32 %v6466, %v6467
    %v6469 = vrot.slane %v6468, 4
    %v6470 = vadd.f32 %v6468, %v6469
    %v6471 = vrot.slane %v6470, 2
    %v6472 = vadd.f32 %v6470, %v6471
    %v6473 = vrot.slane %v6472, 1
    %v6474 = vadd.f32 %v6472, %v6473
    %v6475 = vsel %vm56, %v6445, 0.0
    %v6476 = vsel %vm56, %v6446, 0.0
    %v6477 = vadd.f32 %v6475, %v6476
    %v6478 = vrot.slane %v6477, 4
    %v6479 = vadd.f32 %v6477, %v6478
    %v6480 = vrot.slane %v6479, 2
    %v6481 = vadd.f32 %v6479, %v6480
    %v6482 = vrot.slane %v6481, 1
    %v6483 = vadd.f32 %v6481, %v6482
    %v6484 = vsel %vm56, %v6447, 0.0
    %v6485 = vsel %vm56, %v6448, 0.0
    %v6486 = vadd.f32 %v6484, %v6485
    %v6487 = vrot.slane %v6486, 4
    %v6488 = vadd.f32 %v6486, %v6487
    %v6489 = vrot.slane %v6488, 2
    %v6490 = vadd.f32 %v6488, %v6489
    %v6491 = vrot.slane %v6490, 1
    %v6492 = vadd.f32 %v6490, %v6491
    %v6493 = vsel %vm56, %v6449, 0.0
    %v6494 = vsel %vm56, %v6450, 0.0
    %v6495 = vadd.f32 %v6493, %v6494
    %v6496 = vrot.slane %v6495, 4
    %v6497 = vadd.f32 %v6495, %v6496
    %v6498 = vrot.slane %v6497, 2
    %v6499 = vadd.f32 %v6497, %v6498
    %v6500 = vrot.slane %v6499, 1
    %v6501 = vadd.f32 %v6499, %v6500
    %v6502 = vsel %vm56, %v6451, 0.0
    %v6503 = vsel %vm56, %v6452, 0.0
    %v6504 = vadd.f32 %v6502, %v6503
    %v6505 = vrot.slane %v6504, 4
    %v6506 = vadd.f32 %v6504, %v6505
    %v6507 = vrot.slane %v6506, 2
    %v6508 = vadd.f32 %v6506, %v6507
    %v6509 = vrot.slane %v6508, 1
    %v6510 = vadd.f32 %v6508, %v6509
    %v6511 = vsel %vm56, %v6453, 0.0
    %v6512 = vsel %vm56, %v6454, 0.0
    %v6513 = vadd.f32 %v6511, %v6512
    %v6514 = vrot.slane %v6513, 4
    %v6515 = vadd.f32 %v6513, %v6514
    %v6516 = vrot.slane %v6515, 2
    %v6517 = vadd.f32 %v6515, %v6516
    %v6518 = vrot.slane %v6517, 1
    %v6519 = vadd.f32 %v6517, %v6518
    %v6520 = vsel %vm56, %v6455, 0.0
    %v6521 = vsel %vm56, %v6456, 0.0
    %v6522 = vadd.f32 %v6520, %v6521
    %v6523 = vrot.slane %v6522, 4
    %v6524 = vadd.f32 %v6522, %v6523
    %v6525 = vrot.slane %v6524, 2
    %v6526 = vadd.f32 %v6524, %v6525
    %v6527 = vrot.slane %v6526, 1
    %v6528 = vadd.f32 %v6526, %v6527
    %v6529 = vperm.slane %v650, 0
    %v6530 = vlaneseq
    %v6531 = vshrl.u32 %v6530, 7
    %6533 = vset.pattern.permute.xlu0 %v6531
    %6534 = vperm.xlu0 %6533, %v6529
    %v6535 = vpop.permute.xlu0 %6534
    %v6536 = vperm.slane %v650, 1
    %v6537 = vlaneseq
    %v6538 = vshrl.u32 %v6537, 7
    %6540 = vset.pattern.permute.xlu0 %v6538
    %6541 = vperm.xlu0 %6540, %v6536
    %v6542 = vpop.permute.xlu0 %6541
    %v6545 = vrot.slane %v6535, 1
    %v6546 = vrot.slane %v6535, 2
    %v6547 = vrot.slane %v6535, 3
    %v6548 = vrot.slane %v6542, 1
    %v6549 = vrot.slane %v6542, 2
    %v6550 = vrot.slane %v6542, 3
    %v6559 = vmul.f32 %v6465, %v6535
    %v6560 = vmul.f32 %v6474, %v6545
    %v6561 = vmul.f32 %v6483, %v6546
    %v6562 = vmul.f32 %v6492, %v6547
    %v6563 = vmul.f32 %v6501, %v6542
    %v6564 = vmul.f32 %v6510, %v6548
    %v6565 = vmul.f32 %v6519, %v6549
    %v6566 = vmul.f32 %v6528, %v6550
    %v6575 = vrot.slane %v6560, 7
    %v6576 = vsel %vm904, %v6575, %v6559
    %v6577 = vrot.slane %v6561, 6
    %v6578 = vsel %vm907, %v6577, %v6576
    %v6579 = vrot.slane %v6562, 5
    %v6580 = vsel %vm910, %v6579, %v6578
    %v6581 = vrot.slane %v6564, 7
    %v6582 = vsel %vm904, %v6581, %v6563
    %v6583 = vrot.slane %v6565, 6
    %v6584 = vsel %vm907, %v6583, %v6582
    %v6585 = vrot.slane %v6566, 5
    %v6586 = vsel %vm910, %v6585, %v6584
    %v6589 = vsel %vm920, %v6580, 0.0
    %v6590 = vrot.slane %v6589, 4
    %v6591 = vadd.f32 %v6589, %v6590
    %v6592 = vrot.slane %v6591, 2
    %v6593 = vadd.f32 %v6591, %v6592
    %v6594 = vrot.slane %v6593, 1
    %v6595 = vadd.f32 %v6593, %v6594
    %v6596 = vsel %vm920, %v6586, 0.0
    %v6597 = vrot.slane %v6596, 4
    %v6598 = vadd.f32 %v6596, %v6597
    %v6599 = vrot.slane %v6598, 2
    %v6600 = vadd.f32 %v6598, %v6599
    %v6601 = vrot.slane %v6600, 1
    %v6602 = vadd.f32 %v6600, %v6601
    %v6603 = vadd.f32 %v6595, 1e-06
    %v6604 = vadd.f32 %v6602, 1e-06
    %v6605 = vlog2.pop %v6603
    %v6606 = vmul.f32 %v6605, 0.6931472
    %v6607 = vlog2.pop %v6604
    %v6608 = vmul.f32 %v6607, 0.6931472
    %v6610 = vrot.slane %v463, 1
    %v6613 = vadd.f32 %v6606, %v463
    %v6614 = vadd.f32 %v6608, %v6610
    %v6617 = vrot.slane %v6614, 7
    %v6618 = vsel %vm904, %v6617, %v6613
    %v6620 = vsel %vm952, %v6618, -inf
    %6621 = vmax.xlane.f32.xlu0 %v6620
    %v6622 = vpop.xlane.xlu0 %6621
    %v6624 = vrot.slane %v6622, 1
    %v6627 = vsub.f32 %v6613, %v6622
    %v6628 = vsub.f32 %v6614, %v6624
    %v6629 = vmul.f32 %v6627, 1.442695
    %v6630 = vpow.pop %v6629
    %v6631 = vmul.f32 %v6628, 1.442695
    %v6632 = vpow.pop %v6631
    %v6635 = vrot.slane %v6632, 7
    %v6636 = vsel %vm904, %v6635, %v6630
    %v6638 = vsel %vm952, %v6636, 0.0
    %6639 = vadd.xlane.f32.xlu0 %v6638
    %v6640 = vpop.xlane.xlu0 %6639
    %v6642 = vrot.slane %v6640, 1
    %v6645 = vrcp.pop %v6640
    %v6646 = vmul.f32 %v6640, %v6645
    %v6647 = vsub.f32 1.0, %v6646
    %v6648 = vmul.f32 %v6645, %v6647
    %v6649 = vadd.f32 %v6645, %v6648
    %vm6650 = vweird.f32 %v6640
    %vm6651 = vweird.f32 %v6645
    %vm6652 = vmor %vm6650, %vm6651
    %v6653 = vsel %vm6652, %v6645, %v6649
    %v6654 = vand.u32 2147483647, %v6640
    %vm6655 = vcmp.eq.f32.partialorder %v6654, 8.507059e+37
    %v6656 = vand.u32 %v6640, 2147483648
    %v6657 = vor.u32 1.1754944e-38, %v6656
    %v6658 = vsel %vm6655, %v6657, %v6653
    %v6659 = vmul.f32 %v6630, %v6658
    %v6660 = vrcp.pop %v6642
    %v6661 = vmul.f32 %v6642, %v6660
    %v6662 = vsub.f32 1.0, %v6661
    %v6663 = vmul.f32 %v6660, %v6662
    %v6664 = vadd.f32 %v6660, %v6663
    %vm6665 = vweird.f32 %v6642
    %vm6666 = vweird.f32 %v6660
    %vm6667 = vmor %vm6665, %vm6666
    %v6668 = vsel %vm6667, %v6660, %v6664
    %v6669 = vand.u32 2147483647, %v6642
    %vm6670 = vcmp.eq.f32.partialorder %v6669, 8.507059e+37
    %v6671 = vand.u32 %v6642, 2147483648
    %v6672 = vor.u32 1.1754944e-38, %v6671
    %v6673 = vsel %vm6670, %v6672, %v6668
    %v6674 = vmul.f32 %v6632, %v6673
    %v6677 = vrot.slane %v6674, 7
    %v6678 = vsel %vm904, %v6677, %v6659
    %s6680 = scalar_lea.vmem [#allocation3], 12
    %6681 = vst.msk [vmem:[%s6680] sm:$0x3] %vm952, %v6678
    %v6682 = vperm.slane %v6659, 0
    %v6683 = vperm.slane %v6674, 0
    %v6684 = vmul.f32 %v441, %v6682
    %v6685 = vmul.f32 %v442, %v6683
    %v6686 = vmul.f32 %v443, %v6682
    %v6687 = vmul.f32 %v444, %v6683
    %v6688 = vmul.f32 %v445, %v6682
    %v6689 = vmul.f32 %v446, %v6683
    %v6690 = vmul.f32 %v447, %v6682
    %v6691 = vmul.f32 %v448, %v6683
    %v6692 = vmul.f32 %v449, %v6682
    %v6693 = vmul.f32 %v450, %v6683
    %v6694 = vmul.f32 %v451, %v6682
    %v6695 = vmul.f32 %v452, %v6683
    %v6696 = vmul.f32 %v453, %v6682
    %v6697 = vmul.f32 %v454, %v6683
    %v6698 = vmul.f32 %v455, %v6682
    %v6699 = vmul.f32 %v456, %v6683
    %v6700 = vsel %vm920, %v6684, 0.0
    %6701 = vadd.xlane.f32.xlu0 %v6700
    %v6702 = vpop.xlane.xlu0 %6701
    %v6703 = vsel %vm920, %v6685, 0.0
    %6704 = vadd.xlane.f32.xlu0 %v6703
    %v6705 = vpop.xlane.xlu0 %6704
    %v6706 = vsel %vm920, %v6686, 0.0
    %6707 = vadd.xlane.f32.xlu0 %v6706
    %v6708 = vpop.xlane.xlu0 %6707
    %v6709 = vsel %vm920, %v6687, 0.0
    %6710 = vadd.xlane.f32.xlu0 %v6709
    %v6711 = vpop.xlane.xlu0 %6710
    %v6712 = vsel %vm920, %v6688, 0.0
    %6713 = vadd.xlane.f32.xlu0 %v6712
    %v6714 = vpop.xlane.xlu0 %6713
    %v6715 = vsel %vm920, %v6689, 0.0
    %6716 = vadd.xlane.f32.xlu0 %v6715
    %v6717 = vpop.xlane.xlu0 %6716
    %v6718 = vsel %vm920, %v6690, 0.0
    %6719 = vadd.xlane.f32.xlu0 %v6718
    %v6720 = vpop.xlane.xlu0 %6719
    %v6721 = vsel %vm920, %v6691, 0.0
    %6722 = vadd.xlane.f32.xlu0 %v6721
    %v6723 = vpop.xlane.xlu0 %6722
    %v6724 = vsel %vm920, %v6692, 0.0
    %6725 = vadd.xlane.f32.xlu0 %v6724
    %v6726 = vpop.xlane.xlu0 %6725
    %v6727 = vsel %vm920, %v6693, 0.0
    %6728 = vadd.xlane.f32.xlu0 %v6727
    %v6729 = vpop.xlane.xlu0 %6728
    %v6730 = vsel %vm920, %v6694, 0.0
    %6731 = vadd.xlane.f32.xlu0 %v6730
    %v6732 = vpop.xlane.xlu0 %6731
    %v6733 = vsel %vm920, %v6695, 0.0
    %6734 = vadd.xlane.f32.xlu0 %v6733
    %v6735 = vpop.xlane.xlu0 %6734
    %v6736 = vsel %vm920, %v6696, 0.0
    %6737 = vadd.xlane.f32.xlu0 %v6736
    %v6738 = vpop.xlane.xlu0 %6737
    %v6739 = vsel %vm920, %v6697, 0.0
    %6740 = vadd.xlane.f32.xlu0 %v6739
    %v6741 = vpop.xlane.xlu0 %6740
    %v6742 = vsel %vm920, %v6698, 0.0
    %6743 = vadd.xlane.f32.xlu0 %v6742
    %v6744 = vpop.xlane.xlu0 %6743
    %v6745 = vsel %vm920, %v6699, 0.0
    %6746 = vadd.xlane.f32.xlu0 %v6745
    %v6747 = vpop.xlane.xlu0 %6746
    %v6764 = vperm.slane %v6702, %v1097
    %v6765 = vperm.slane %v6705, %v1097
    %v6766 = vperm.slane %v6708, %v1097
    %v6767 = vperm.slane %v6711, %v1097
    %v6768 = vperm.slane %v6714, %v1097
    %v6769 = vperm.slane %v6717, %v1097
    %v6770 = vperm.slane %v6720, %v1097
    %v6771 = vperm.slane %v6723, %v1097
    %v6772 = vperm.slane %v6726, %v1097
    %v6773 = vperm.slane %v6729, %v1097
    %v6774 = vperm.slane %v6732, %v1097
    %v6775 = vperm.slane %v6735, %v1097
    %v6776 = vperm.slane %v6738, %v1097
    %v6777 = vperm.slane %v6741, %v1097
    %v6778 = vperm.slane %v6744, %v1097
    %v6779 = vperm.slane %v6747, %v1097
    %v6780 = vsel %vm904, %v6765, %v6764
    %v6781 = vsel %vm904, %v6767, %v6766
    %v6782 = vsel %vm904, %v6769, %v6768
    %v6783 = vsel %vm904, %v6771, %v6770
    %v6784 = vsel %vm904, %v6773, %v6772
    %v6785 = vsel %vm904, %v6775, %v6774
    %v6786 = vsel %vm904, %v6777, %v6776
    %v6787 = vsel %vm904, %v6779, %v6778
    %v6796 = vsel %vm473, %v6780, -inf
    %6797 = vmax.xlane.f32.xlu0 %v6796
    %v6798 = vpop.xlane.xlu0 %6797
    %v6799 = vsel %vm473, %v6781, -inf
    %6800 = vmax.xlane.f32.xlu0 %v6799
    %v6801 = vpop.xlane.xlu0 %6800
    %v6802 = vsel %vm473, %v6782, -inf
    %6803 = vmax.xlane.f32.xlu0 %v6802
    %v6804 = vpop.xlane.xlu0 %6803
    %v6805 = vsel %vm473, %v6783, -inf
    %6806 = vmax.xlane.f32.xlu0 %v6805
    %v6807 = vpop.xlane.xlu0 %6806
    %v6808 = vsel %vm473, %v6784, -inf
    %6809 = vmax.xlane.f32.xlu0 %v6808
    %v6810 = vpop.xlane.xlu0 %6809
    %v6811 = vsel %vm473, %v6785, -inf
    %6812 = vmax.xlane.f32.xlu0 %v6811
    %v6813 = vpop.xlane.xlu0 %6812
    %v6814 = vsel %vm473, %v6786, -inf
    %6815 = vmax.xlane.f32.xlu0 %v6814
    %v6816 = vpop.xlane.xlu0 %6815
    %v6817 = vsel %vm473, %v6787, -inf
    %6818 = vmax.xlane.f32.xlu0 %v6817
    %v6819 = vpop.xlane.xlu0 %6818
    %v6828 = vperm.slane %v6798, 0
    %v6829 = vperm.slane %v6798, 1
    %v6830 = vperm.slane %v6801, 0
    %v6831 = vperm.slane %v6801, 1
    %v6832 = vperm.slane %v6804, 0
    %v6833 = vperm.slane %v6804, 1
    %v6834 = vperm.slane %v6807, 0
    %v6835 = vperm.slane %v6807, 1
    %v6836 = vperm.slane %v6810, 0
    %v6837 = vperm.slane %v6810, 1
    %v6838 = vperm.slane %v6813, 0
    %v6839 = vperm.slane %v6813, 1
    %v6840 = vperm.slane %v6816, 0
    %v6841 = vperm.slane %v6816, 1
    %v6842 = vperm.slane %v6819, 0
    %v6843 = vperm.slane %v6819, 1
    %v6860 = vsub.f32 %v6702, %v6828
    %v6861 = vsub.f32 %v6705, %v6829
    %v6862 = vsub.f32 %v6708, %v6830
    %v6863 = vsub.f32 %v6711, %v6831
    %v6864 = vsub.f32 %v6714, %v6832
    %v6865 = vsub.f32 %v6717, %v6833
    %v6866 = vsub.f32 %v6720, %v6834
    %v6867 = vsub.f32 %v6723, %v6835
    %v6868 = vsub.f32 %v6726, %v6836
    %v6869 = vsub.f32 %v6729, %v6837
    %v6870 = vsub.f32 %v6732, %v6838
    %v6871 = vsub.f32 %v6735, %v6839
    %v6872 = vsub.f32 %v6738, %v6840
    %v6873 = vsub.f32 %v6741, %v6841
    %v6874 = vsub.f32 %v6744, %v6842
    %v6875 = vsub.f32 %v6747, %v6843
    %v6876 = vmul.f32 %v6860, 1.442695
    %v6877 = vpow.pop %v6876
    %v6878 = vmul.f32 %v6861, 1.442695
    %v6879 = vpow.pop %v6878
    %v6880 = vmul.f32 %v6862, 1.442695
    %v6881 = vpow.pop %v6880
    %v6882 = vmul.f32 %v6863, 1.442695
    %v6883 = vpow.pop %v6882
    %v6884 = vmul.f32 %v6864, 1.442695
    %v6885 = vpow.pop %v6884
    %v6886 = vmul.f32 %v6865, 1.442695
    %v6887 = vpow.pop %v6886
    %v6888 = vmul.f32 %v6866, 1.442695
    %v6889 = vpow.pop %v6888
    %v6890 = vmul.f32 %v6867, 1.442695
    %v6891 = vpow.pop %v6890
    %v6892 = vmul.f32 %v6868, 1.442695
    %v6893 = vpow.pop %v6892
    %v6894 = vmul.f32 %v6869, 1.442695
    %v6895 = vpow.pop %v6894
    %v6896 = vmul.f32 %v6870, 1.442695
    %v6897 = vpow.pop %v6896
    %v6898 = vmul.f32 %v6871, 1.442695
    %v6899 = vpow.pop %v6898
    %v6900 = vmul.f32 %v6872, 1.442695
    %v6901 = vpow.pop %v6900
    %v6902 = vmul.f32 %v6873, 1.442695
    %v6903 = vpow.pop %v6902
    %v6904 = vmul.f32 %v6874, 1.442695
    %v6905 = vpow.pop %v6904
    %v6906 = vmul.f32 %v6875, 1.442695
    %v6907 = vpow.pop %v6906
    %6924 = vset.pattern.permute.xlu0 0
    %6925 = vperm.xlu0 %6924, %v6877
    %v6926 = vpop.permute.xlu0 %6925
    %6927 = vset.pattern.permute.xlu0 0
    %6928 = vperm.xlu0 %6927, %v6879
    %v6929 = vpop.permute.xlu0 %6928
    %6930 = vset.pattern.permute.xlu0 0
    %6931 = vperm.xlu0 %6930, %v6881
    %v6932 = vpop.permute.xlu0 %6931
    %6933 = vset.pattern.permute.xlu0 0
    %6934 = vperm.xlu0 %6933, %v6883
    %v6935 = vpop.permute.xlu0 %6934
    %6936 = vset.pattern.permute.xlu0 0
    %6937 = vperm.xlu0 %6936, %v6885
    %v6938 = vpop.permute.xlu0 %6937
    %6939 = vset.pattern.permute.xlu0 0
    %6940 = vperm.xlu0 %6939, %v6887
    %v6941 = vpop.permute.xlu0 %6940
    %6942 = vset.pattern.permute.xlu0 0
    %6943 = vperm.xlu0 %6942, %v6889
    %v6944 = vpop.permute.xlu0 %6943
    %6945 = vset.pattern.permute.xlu0 0
    %6946 = vperm.xlu0 %6945, %v6891
    %v6947 = vpop.permute.xlu0 %6946
    %6948 = vset.pattern.permute.xlu0 0
    %6949 = vperm.xlu0 %6948, %v6893
    %v6950 = vpop.permute.xlu0 %6949
    %6951 = vset.pattern.permute.xlu0 0
    %6952 = vperm.xlu0 %6951, %v6895
    %v6953 = vpop.permute.xlu0 %6952
    %6954 = vset.pattern.permute.xlu0 0
    %6955 = vperm.xlu0 %6954, %v6897
    %v6956 = vpop.permute.xlu0 %6955
    %6957 = vset.pattern.permute.xlu0 0
    %6958 = vperm.xlu0 %6957, %v6899
    %v6959 = vpop.permute.xlu0 %6958
    %6960 = vset.pattern.permute.xlu0 0
    %6961 = vperm.xlu0 %6960, %v6901
    %v6962 = vpop.permute.xlu0 %6961
    %6963 = vset.pattern.permute.xlu0 0
    %6964 = vperm.xlu0 %6963, %v6903
    %v6965 = vpop.permute.xlu0 %6964
    %6966 = vset.pattern.permute.xlu0 0
    %6967 = vperm.xlu0 %6966, %v6905
    %v6968 = vpop.permute.xlu0 %6967
    %6969 = vset.pattern.permute.xlu0 0
    %6970 = vperm.xlu0 %6969, %v6907
    %v6971 = vpop.permute.xlu0 %6970
    %v6972 = vperm.slane %v6926, %v1097
    %v6973 = vperm.slane %v6929, %v1097
    %v6974 = vperm.slane %v6932, %v1097
    %v6975 = vperm.slane %v6935, %v1097
    %v6976 = vperm.slane %v6938, %v1097
    %v6977 = vperm.slane %v6941, %v1097
    %v6978 = vperm.slane %v6944, %v1097
    %v6979 = vperm.slane %v6947, %v1097
    %v6980 = vperm.slane %v6950, %v1097
    %v6981 = vperm.slane %v6953, %v1097
    %v6982 = vperm.slane %v6956, %v1097
    %v6983 = vperm.slane %v6959, %v1097
    %v6984 = vperm.slane %v6962, %v1097
    %v6985 = vperm.slane %v6965, %v1097
    %v6986 = vperm.slane %v6968, %v1097
    %v6987 = vperm.slane %v6971, %v1097
    %v6988 = vsel %vm904, %v6973, %v6972
    %v6989 = vsel %vm904, %v6975, %v6974
    %v6990 = vsel %vm904, %v6977, %v6976
    %v6991 = vsel %vm904, %v6979, %v6978
    %v6992 = vsel %vm904, %v6981, %v6980
    %v6993 = vsel %vm904, %v6983, %v6982
    %v6994 = vsel %vm904, %v6985, %v6984
    %v6995 = vsel %vm904, %v6987, %v6986
    %v7004 = vsel %vm473, %v6988, 0.0
    %7005 = vadd.xlane.f32.xlu0 %v7004
    %v7006 = vpop.xlane.xlu0 %7005
    %v7007 = vsel %vm473, %v6989, 0.0
    %7008 = vadd.xlane.f32.xlu0 %v7007
    %v7009 = vpop.xlane.xlu0 %7008
    %v7010 = vsel %vm473, %v6990, 0.0
    %7011 = vadd.xlane.f32.xlu0 %v7010
    %v7012 = vpop.xlane.xlu0 %7011
    %v7013 = vsel %vm473, %v6991, 0.0
    %7014 = vadd.xlane.f32.xlu0 %v7013
    %v7015 = vpop.xlane.xlu0 %7014
    %v7016 = vsel %vm473, %v6992, 0.0
    %7017 = vadd.xlane.f32.xlu0 %v7016
    %v7018 = vpop.xlane.xlu0 %7017
    %v7019 = vsel %vm473, %v6993, 0.0
    %7020 = vadd.xlane.f32.xlu0 %v7019
    %v7021 = vpop.xlane.xlu0 %7020
    %v7022 = vsel %vm473, %v6994, 0.0
    %7023 = vadd.xlane.f32.xlu0 %v7022
    %v7024 = vpop.xlane.xlu0 %7023
    %v7025 = vsel %vm473, %v6995, 0.0
    %7026 = vadd.xlane.f32.xlu0 %v7025
    %v7027 = vpop.xlane.xlu0 %7026
    %v7036 = vperm.slane %v7006, 0
    %v7037 = vperm.slane %v7006, 1
    %v7038 = vperm.slane %v7009, 0
    %v7039 = vperm.slane %v7009, 1
    %v7040 = vperm.slane %v7012, 0
    %v7041 = vperm.slane %v7012, 1
    %v7042 = vperm.slane %v7015, 0
    %v7043 = vperm.slane %v7015, 1
    %v7044 = vperm.slane %v7018, 0
    %v7045 = vperm.slane %v7018, 1
    %v7046 = vperm.slane %v7021, 0
    %v7047 = vperm.slane %v7021, 1
    %v7048 = vperm.slane %v7024, 0
    %v7049 = vperm.slane %v7024, 1
    %v7050 = vperm.slane %v7027, 0
    %v7051 = vperm.slane %v7027, 1
    %v7068 = vrcp.pop %v7036
    %v7069 = vmul.f32 %v7036, %v7068
    %v7070 = vsub.f32 1.0, %v7069
    %v7071 = vmul.f32 %v7068, %v7070
    %v7072 = vadd.f32 %v7068, %v7071
    %vm7073 = vweird.f32 %v7036
    %vm7074 = vweird.f32 %v7068
    %vm7075 = vmor %vm7073, %vm7074
    %v7076 = vsel %vm7075, %v7068, %v7072
    %v7077 = vand.u32 2147483647, %v7036
    %vm7078 = vcmp.eq.f32.partialorder %v7077, 8.507059e+37
    %v7079 = vand.u32 %v7036, 2147483648
    %v7080 = vor.u32 1.1754944e-38, %v7079
    %v7081 = vsel %vm7078, %v7080, %v7076
    %v7082 = vmul.f32 %v6877, %v7081
    %v7083 = vrcp.pop %v7037
    %v7084 = vmul.f32 %v7037, %v7083
    %v7085 = vsub.f32 1.0, %v7084
    %v7086 = vmul.f32 %v7083, %v7085
    %v7087 = vadd.f32 %v7083, %v7086
    %vm7088 = vweird.f32 %v7037
    %vm7089 = vweird.f32 %v7083
    %vm7090 = vmor %vm7088, %vm7089
    %v7091 = vsel %vm7090, %v7083, %v7087
    %v7092 = vand.u32 2147483647, %v7037
    %vm7093 = vcmp.eq.f32.partialorder %v7092, 8.507059e+37
    %v7094 = vand.u32 %v7037, 2147483648
    %v7095 = vor.u32 1.1754944e-38, %v7094
    %v7096 = vsel %vm7093, %v7095, %v7091
    %v7097 = vmul.f32 %v6879, %v7096
    %v7098 = vrcp.pop %v7038
    %v7099 = vmul.f32 %v7038, %v7098
    %v7100 = vsub.f32 1.0, %v7099
    %v7101 = vmul.f32 %v7098, %v7100
    %v7102 = vadd.f32 %v7098, %v7101
    %vm7103 = vweird.f32 %v7038
    %vm7104 = vweird.f32 %v7098
    %vm7105 = vmor %vm7103, %vm7104
    %v7106 = vsel %vm7105, %v7098, %v7102
    %v7107 = vand.u32 2147483647, %v7038
    %vm7108 = vcmp.eq.f32.partialorder %v7107, 8.507059e+37
    %v7109 = vand.u32 %v7038, 2147483648
    %v7110 = vor.u32 1.1754944e-38, %v7109
    %v7111 = vsel %vm7108, %v7110, %v7106
    %v7112 = vmul.f32 %v6881, %v7111
    %v7113 = vrcp.pop %v7039
    %v7114 = vmul.f32 %v7039, %v7113
    %v7115 = vsub.f32 1.0, %v7114
    %v7116 = vmul.f32 %v7113, %v7115
    %v7117 = vadd.f32 %v7113, %v7116
    %vm7118 = vweird.f32 %v7039
    %vm7119 = vweird.f32 %v7113
    %vm7120 = vmor %vm7118, %vm7119
    %v7121 = vsel %vm7120, %v7113, %v7117
    %v7122 = vand.u32 2147483647, %v7039
    %vm7123 = vcmp.eq.f32.partialorder %v7122, 8.507059e+37
    %v7124 = vand.u32 %v7039, 2147483648
    %v7125 = vor.u32 1.1754944e-38, %v7124
    %v7126 = vsel %vm7123, %v7125, %v7121
    %v7127 = vmul.f32 %v6883, %v7126
    %v7128 = vrcp.pop %v7040
    %v7129 = vmul.f32 %v7040, %v7128
    %v7130 = vsub.f32 1.0, %v7129
    %v7131 = vmul.f32 %v7128, %v7130
    %v7132 = vadd.f32 %v7128, %v7131
    %vm7133 = vweird.f32 %v7040
    %vm7134 = vweird.f32 %v7128
    %vm7135 = vmor %vm7133, %vm7134
    %v7136 = vsel %vm7135, %v7128, %v7132
    %v7137 = vand.u32 2147483647, %v7040
    %vm7138 = vcmp.eq.f32.partialorder %v7137, 8.507059e+37
    %v7139 = vand.u32 %v7040, 2147483648
    %v7140 = vor.u32 1.1754944e-38, %v7139
    %v7141 = vsel %vm7138, %v7140, %v7136
    %v7142 = vmul.f32 %v6885, %v7141
    %v7143 = vrcp.pop %v7041
    %v7144 = vmul.f32 %v7041, %v7143
    %v7145 = vsub.f32 1.0, %v7144
    %v7146 = vmul.f32 %v7143, %v7145
    %v7147 = vadd.f32 %v7143, %v7146
    %vm7148 = vweird.f32 %v7041
    %vm7149 = vweird.f32 %v7143
    %vm7150 = vmor %vm7148, %vm7149
    %v7151 = vsel %vm7150, %v7143, %v7147
    %v7152 = vand.u32 2147483647, %v7041
    %vm7153 = vcmp.eq.f32.partialorder %v7152, 8.507059e+37
    %v7154 = vand.u32 %v7041, 2147483648
    %v7155 = vor.u32 1.1754944e-38, %v7154
    %v7156 = vsel %vm7153, %v7155, %v7151
    %v7157 = vmul.f32 %v6887, %v7156
    %v7158 = vrcp.pop %v7042
    %v7159 = vmul.f32 %v7042, %v7158
    %v7160 = vsub.f32 1.0, %v7159
    %v7161 = vmul.f32 %v7158, %v7160
    %v7162 = vadd.f32 %v7158, %v7161
    %vm7163 = vweird.f32 %v7042
    %vm7164 = vweird.f32 %v7158
    %vm7165 = vmor %vm7163, %vm7164
    %v7166 = vsel %vm7165, %v7158, %v7162
    %v7167 = vand.u32 2147483647, %v7042
    %vm7168 = vcmp.eq.f32.partialorder %v7167, 8.507059e+37
    %v7169 = vand.u32 %v7042, 2147483648
    %v7170 = vor.u32 1.1754944e-38, %v7169
    %v7171 = vsel %vm7168, %v7170, %v7166
    %v7172 = vmul.f32 %v6889, %v7171
    %v7173 = vrcp.pop %v7043
    %v7174 = vmul.f32 %v7043, %v7173
    %v7175 = vsub.f32 1.0, %v7174
    %v7176 = vmul.f32 %v7173, %v7175
    %v7177 = vadd.f32 %v7173, %v7176
    %vm7178 = vweird.f32 %v7043
    %vm7179 = vweird.f32 %v7173
    %vm7180 = vmor %vm7178, %vm7179
    %v7181 = vsel %vm7180, %v7173, %v7177
    %v7182 = vand.u32 2147483647, %v7043
    %vm7183 = vcmp.eq.f32.partialorder %v7182, 8.507059e+37
    %v7184 = vand.u32 %v7043, 2147483648
    %v7185 = vor.u32 1.1754944e-38, %v7184
    %v7186 = vsel %vm7183, %v7185, %v7181
    %v7187 = vmul.f32 %v6891, %v7186
    %v7188 = vrcp.pop %v7044
    %v7189 = vmul.f32 %v7044, %v7188
    %v7190 = vsub.f32 1.0, %v7189
    %v7191 = vmul.f32 %v7188, %v7190
    %v7192 = vadd.f32 %v7188, %v7191
    %vm7193 = vweird.f32 %v7044
    %vm7194 = vweird.f32 %v7188
    %vm7195 = vmor %vm7193, %vm7194
    %v7196 = vsel %vm7195, %v7188, %v7192
    %v7197 = vand.u32 2147483647, %v7044
    %vm7198 = vcmp.eq.f32.partialorder %v7197, 8.507059e+37
    %v7199 = vand.u32 %v7044, 2147483648
    %v7200 = vor.u32 1.1754944e-38, %v7199
    %v7201 = vsel %vm7198, %v7200, %v7196
    %v7202 = vmul.f32 %v6893, %v7201
    %v7203 = vrcp.pop %v7045
    %v7204 = vmul.f32 %v7045, %v7203
    %v7205 = vsub.f32 1.0, %v7204
    %v7206 = vmul.f32 %v7203, %v7205
    %v7207 = vadd.f32 %v7203, %v7206
    %vm7208 = vweird.f32 %v7045
    %vm7209 = vweird.f32 %v7203
    %vm7210 = vmor %vm7208, %vm7209
    %v7211 = vsel %vm7210, %v7203, %v7207
    %v7212 = vand.u32 2147483647, %v7045
    %vm7213 = vcmp.eq.f32.partialorder %v7212, 8.507059e+37
    %v7214 = vand.u32 %v7045, 2147483648
    %v7215 = vor.u32 1.1754944e-38, %v7214
    %v7216 = vsel %vm7213, %v7215, %v7211
    %v7217 = vmul.f32 %v6895, %v7216
    %v7218 = vrcp.pop %v7046
    %v7219 = vmul.f32 %v7046, %v7218
    %v7220 = vsub.f32 1.0, %v7219
    %v7221 = vmul.f32 %v7218, %v7220
    %v7222 = vadd.f32 %v7218, %v7221
    %vm7223 = vweird.f32 %v7046
    %vm7224 = vweird.f32 %v7218
    %vm7225 = vmor %vm7223, %vm7224
    %v7226 = vsel %vm7225, %v7218, %v7222
    %v7227 = vand.u32 2147483647, %v7046
    %vm7228 = vcmp.eq.f32.partialorder %v7227, 8.507059e+37
    %v7229 = vand.u32 %v7046, 2147483648
    %v7230 = vor.u32 1.1754944e-38, %v7229
    %v7231 = vsel %vm7228, %v7230, %v7226
    %v7232 = vmul.f32 %v6897, %v7231
    %v7233 = vrcp.pop %v7047
    %v7234 = vmul.f32 %v7047, %v7233
    %v7235 = vsub.f32 1.0, %v7234
    %v7236 = vmul.f32 %v7233, %v7235
    %v7237 = vadd.f32 %v7233, %v7236
    %vm7238 = vweird.f32 %v7047
    %vm7239 = vweird.f32 %v7233
    %vm7240 = vmor %vm7238, %vm7239
    %v7241 = vsel %vm7240, %v7233, %v7237
    %v7242 = vand.u32 2147483647, %v7047
    %vm7243 = vcmp.eq.f32.partialorder %v7242, 8.507059e+37
    %v7244 = vand.u32 %v7047, 2147483648
    %v7245 = vor.u32 1.1754944e-38, %v7244
    %v7246 = vsel %vm7243, %v7245, %v7241
    %v7247 = vmul.f32 %v6899, %v7246
    %v7248 = vrcp.pop %v7048
    %v7249 = vmul.f32 %v7048, %v7248
    %v7250 = vsub.f32 1.0, %v7249
    %v7251 = vmul.f32 %v7248, %v7250
    %v7252 = vadd.f32 %v7248, %v7251
    %vm7253 = vweird.f32 %v7048
    %vm7254 = vweird.f32 %v7248
    %vm7255 = vmor %vm7253, %vm7254
    %v7256 = vsel %vm7255, %v7248, %v7252
    %v7257 = vand.u32 2147483647, %v7048
    %vm7258 = vcmp.eq.f32.partialorder %v7257, 8.507059e+37
    %v7259 = vand.u32 %v7048, 2147483648
    %v7260 = vor.u32 1.1754944e-38, %v7259
    %v7261 = vsel %vm7258, %v7260, %v7256
    %v7262 = vmul.f32 %v6901, %v7261
    %v7263 = vrcp.pop %v7049
    %v7264 = vmul.f32 %v7049, %v7263
    %v7265 = vsub.f32 1.0, %v7264
    %v7266 = vmul.f32 %v7263, %v7265
    %v7267 = vadd.f32 %v7263, %v7266
    %vm7268 = vweird.f32 %v7049
    %vm7269 = vweird.f32 %v7263
    %vm7270 = vmor %vm7268, %vm7269
    %v7271 = vsel %vm7270, %v7263, %v7267
    %v7272 = vand.u32 2147483647, %v7049
    %vm7273 = vcmp.eq.f32.partialorder %v7272, 8.507059e+37
    %v7274 = vand.u32 %v7049, 2147483648
    %v7275 = vor.u32 1.1754944e-38, %v7274
    %v7276 = vsel %vm7273, %v7275, %v7271
    %v7277 = vmul.f32 %v6903, %v7276
    %v7278 = vrcp.pop %v7050
    %v7279 = vmul.f32 %v7050, %v7278
    %v7280 = vsub.f32 1.0, %v7279
    %v7281 = vmul.f32 %v7278, %v7280
    %v7282 = vadd.f32 %v7278, %v7281
    %vm7283 = vweird.f32 %v7050
    %vm7284 = vweird.f32 %v7278
    %vm7285 = vmor %vm7283, %vm7284
    %v7286 = vsel %vm7285, %v7278, %v7282
    %v7287 = vand.u32 2147483647, %v7050
    %vm7288 = vcmp.eq.f32.partialorder %v7287, 8.507059e+37
    %v7289 = vand.u32 %v7050, 2147483648
    %v7290 = vor.u32 1.1754944e-38, %v7289
    %v7291 = vsel %vm7288, %v7290, %v7286
    %v7292 = vmul.f32 %v6905, %v7291
    %v7293 = vrcp.pop %v7051
    %v7294 = vmul.f32 %v7051, %v7293
    %v7295 = vsub.f32 1.0, %v7294
    %v7296 = vmul.f32 %v7293, %v7295
    %v7297 = vadd.f32 %v7293, %v7296
    %vm7298 = vweird.f32 %v7051
    %vm7299 = vweird.f32 %v7293
    %vm7300 = vmor %vm7298, %vm7299
    %v7301 = vsel %vm7300, %v7293, %v7297
    %v7302 = vand.u32 2147483647, %v7051
    %vm7303 = vcmp.eq.f32.partialorder %v7302, 8.507059e+37
    %v7304 = vand.u32 %v7051, 2147483648
    %v7305 = vor.u32 1.1754944e-38, %v7304
    %v7306 = vsel %vm7303, %v7305, %v7301
    %v7307 = vmul.f32 %v6907, %v7306
    %v7308 = vmul.f32 %v7082, %v1646
    %v7309 = vmul.f32 %v7097, %v1647
    %v7310 = vmul.f32 %v7112, %v1655
    %v7311 = vmul.f32 %v7127, %v1656
    %v7312 = vadd.f32 %v7308, %v7310
    %v7313 = vadd.f32 %v7309, %v7311
    %v7314 = vmul.f32 %v7142, %v1666
    %v7315 = vmul.f32 %v7157, %v1667
    %v7316 = vadd.f32 %v7312, %v7314
    %v7317 = vadd.f32 %v7313, %v7315
    %v7318 = vmul.f32 %v7172, %v1677
    %v7319 = vmul.f32 %v7187, %v1678
    %v7320 = vadd.f32 %v7316, %v7318
    %v7321 = vadd.f32 %v7317, %v7319
    %v7322 = vmul.f32 %v7202, %v1688
    %v7323 = vmul.f32 %v7217, %v1689
    %v7324 = vadd.f32 %v7320, %v7322
    %v7325 = vadd.f32 %v7321, %v7323
    %v7326 = vmul.f32 %v7232, %v1699
    %v7327 = vmul.f32 %v7247, %v1700
    %v7328 = vadd.f32 %v7324, %v7326
    %v7329 = vadd.f32 %v7325, %v7327
    %v7330 = vmul.f32 %v7262, %v1710
    %v7331 = vmul.f32 %v7277, %v1711
    %v7332 = vadd.f32 %v7328, %v7330
    %v7333 = vadd.f32 %v7329, %v7331
    %v7334 = vmul.f32 %v7292, %v1721
    %v7335 = vmul.f32 %v7307, %v1722
    %v7336 = vadd.f32 %v7332, %v7334
    %v7337 = vadd.f32 %v7333, %v7335
    %7340 = vset.pattern.permute.xlu0 0
    %7341 = vperm.xlu0 %7340, %v7336
    %v7342 = vpop.permute.xlu0 %7341
    %7343 = vset.pattern.permute.xlu0 0
    %7344 = vperm.xlu0 %7343, %v7337
    %v7345 = vpop.permute.xlu0 %7344
    %v7346 = vperm.slane %v7342, %v1097
    %v7347 = vperm.slane %v7345, %v1097
    %v7348 = vsel %vm904, %v7347, %v7346
    %s7350 = scalar_lea.vmem %s11, 12
    %7351 = vst.msk [vmem:[%s7350] sm:$0x3] %vm473, %v7348
    %v7352 = vlaneseq
    %v7353 = vshrl.u32 %v7352, 7
    %7355 = vset.pattern.permute.xlu0 %v7353
    %7356 = vperm.xlu0 %7355, %v6682
    %v7357 = vpop.permute.xlu0 %7356
    %v7358 = vlaneseq
    %v7359 = vshrl.u32 %v7358, 7
    %v7360 = vadd.s32 %v7359, 8
    %7361 = vset.pattern.permute.xlu0 %v7360
    %7362 = vperm.xlu0 %7361, %v6682
    %v7363 = vpop.permute.xlu0 %7362
    %v7364 = vlaneseq
    %v7365 = vshrl.u32 %v7364, 7
    %7367 = vset.pattern.permute.xlu0 %v7365
    %7368 = vperm.xlu0 %7367, %v6683
    %v7369 = vpop.permute.xlu0 %7368
    %v7370 = vlaneseq
    %v7371 = vshrl.u32 %v7370, 7
    %v7372 = vadd.s32 %v7371, 8
    %7373 = vset.pattern.permute.xlu0 %v7372
    %7374 = vperm.xlu0 %7373, %v6683
    %v7375 = vpop.permute.xlu0 %7374
    %v7376 = vmul.f32 %v215, %v7357
    %v7377 = vmul.f32 %v230, %v7363
    %v7378 = vmul.f32 %v245, %v7357
    %v7379 = vmul.f32 %v260, %v7363
    %v7380 = vmul.f32 %v275, %v7357
    %v7381 = vmul.f32 %v290, %v7363
    %v7382 = vmul.f32 %v305, %v7357
    %v7383 = vmul.f32 %v320, %v7363
    %v7384 = vmul.f32 %v335, %v7369
    %v7385 = vmul.f32 %v350, %v7375
    %v7386 = vmul.f32 %v365, %v7369
    %v7387 = vmul.f32 %v380, %v7375
    %v7388 = vmul.f32 %v395, %v7369
    %v7389 = vmul.f32 %v410, %v7375
    %v7390 = vmul.f32 %v425, %v7369
    %v7391 = vmul.f32 %v440, %v7375
    %v7392 = vsel %vm56, %v7376, 0.0
    %v7393 = vsel %vm56, %v7377, 0.0
    %v7394 = vadd.f32 %v7392, %v7393
    %v7395 = vrot.slane %v7394, 4
    %v7396 = vadd.f32 %v7394, %v7395
    %v7397 = vrot.slane %v7396, 2
    %v7398 = vadd.f32 %v7396, %v7397
    %v7399 = vrot.slane %v7398, 1
    %v7400 = vadd.f32 %v7398, %v7399
    %v7401 = vsel %vm56, %v7378, 0.0
    %v7402 = vsel %vm56, %v7379, 0.0
    %v7403 = vadd.f32 %v7401, %v7402
    %v7404 = vrot.slane %v7403, 4
    %v7405 = vadd.f32 %v7403, %v7404
    %v7406 = vrot.slane %v7405, 2
    %v7407 = vadd.f32 %v7405, %v7406
    %v7408 = vrot.slane %v7407, 1
    %v7409 = vadd.f32 %v7407, %v7408
    %v7410 = vsel %vm56, %v7380, 0.0
    %v7411 = vsel %vm56, %v7381, 0.0
    %v7412 = vadd.f32 %v7410, %v7411
    %v7413 = vrot.slane %v7412, 4
    %v7414 = vadd.f32 %v7412, %v7413
    %v7415 = vrot.slane %v7414, 2
    %v7416 = vadd.f32 %v7414, %v7415
    %v7417 = vrot.slane %v7416, 1
    %v7418 = vadd.f32 %v7416, %v7417
    %v7419 = vsel %vm56, %v7382, 0.0
    %v7420 = vsel %vm56, %v7383, 0.0
    %v7421 = vadd.f32 %v7419, %v7420
    %v7422 = vrot.slane %v7421, 4
    %v7423 = vadd.f32 %v7421, %v7422
    %v7424 = vrot.slane %v7423, 2
    %v7425 = vadd.f32 %v7423, %v7424
    %v7426 = vrot.slane %v7425, 1
    %v7427 = vadd.f32 %v7425, %v7426
    %v7428 = vsel %vm56, %v7384, 0.0
    %v7429 = vsel %vm56, %v7385, 0.0
    %v7430 = vadd.f32 %v7428, %v7429
    %v7431 = vrot.slane %v7430, 4
    %v7432 = vadd.f32 %v7430, %v7431
    %v7433 = vrot.slane %v7432, 2
    %v7434 = vadd.f32 %v7432, %v7433
    %v7435 = vrot.slane %v7434, 1
    %v7436 = vadd.f32 %v7434, %v7435
    %v7437 = vsel %vm56, %v7386, 0.0
    %v7438 = vsel %vm56, %v7387, 0.0
    %v7439 = vadd.f32 %v7437, %v7438
    %v7440 = vrot.slane %v7439, 4
    %v7441 = vadd.f32 %v7439, %v7440
    %v7442 = vrot.slane %v7441, 2
    %v7443 = vadd.f32 %v7441, %v7442
    %v7444 = vrot.slane %v7443, 1
    %v7445 = vadd.f32 %v7443, %v7444
    %v7446 = vsel %vm56, %v7388, 0.0
    %v7447 = vsel %vm56, %v7389, 0.0
    %v7448 = vadd.f32 %v7446, %v7447
    %v7449 = vrot.slane %v7448, 4
    %v7450 = vadd.f32 %v7448, %v7449
    %v7451 = vrot.slane %v7450, 2
    %v7452 = vadd.f32 %v7450, %v7451
    %v7453 = vrot.slane %v7452, 1
    %v7454 = vadd.f32 %v7452, %v7453
    %v7455 = vsel %vm56, %v7390, 0.0
    %v7456 = vsel %vm56, %v7391, 0.0
    %v7457 = vadd.f32 %v7455, %v7456
    %v7458 = vrot.slane %v7457, 4
    %v7459 = vadd.f32 %v7457, %v7458
    %v7460 = vrot.slane %v7459, 2
    %v7461 = vadd.f32 %v7459, %v7460
    %v7462 = vrot.slane %v7461, 1
    %v7463 = vadd.f32 %v7461, %v7462
    %v7464 = vperm.slane %v665, 0
    %v7465 = vlaneseq
    %v7466 = vshrl.u32 %v7465, 7
    %7468 = vset.pattern.permute.xlu0 %v7466
    %7469 = vperm.xlu0 %7468, %v7464
    %v7470 = vpop.permute.xlu0 %7469
    %v7471 = vperm.slane %v665, 1
    %v7472 = vlaneseq
    %v7473 = vshrl.u32 %v7472, 7
    %7475 = vset.pattern.permute.xlu0 %v7473
    %7476 = vperm.xlu0 %7475, %v7471
    %v7477 = vpop.permute.xlu0 %7476
    %v7480 = vrot.slane %v7470, 1
    %v7481 = vrot.slane %v7470, 2
    %v7482 = vrot.slane %v7470, 3
    %v7483 = vrot.slane %v7477, 1
    %v7484 = vrot.slane %v7477, 2
    %v7485 = vrot.slane %v7477, 3
    %v7494 = vmul.f32 %v7400, %v7470
    %v7495 = vmul.f32 %v7409, %v7480
    %v7496 = vmul.f32 %v7418, %v7481
    %v7497 = vmul.f32 %v7427, %v7482
    %v7498 = vmul.f32 %v7436, %v7477
    %v7499 = vmul.f32 %v7445, %v7483
    %v7500 = vmul.f32 %v7454, %v7484
    %v7501 = vmul.f32 %v7463, %v7485
    %v7510 = vrot.slane %v7495, 7
    %v7511 = vsel %vm904, %v7510, %v7494
    %v7512 = vrot.slane %v7496, 6
    %v7513 = vsel %vm907, %v7512, %v7511
    %v7514 = vrot.slane %v7497, 5
    %v7515 = vsel %vm910, %v7514, %v7513
    %v7516 = vrot.slane %v7499, 7
    %v7517 = vsel %vm904, %v7516, %v7498
    %v7518 = vrot.slane %v7500, 6
    %v7519 = vsel %vm907, %v7518, %v7517
    %v7520 = vrot.slane %v7501, 5
    %v7521 = vsel %vm910, %v7520, %v7519
    %v7524 = vsel %vm920, %v7515, 0.0
    %v7525 = vrot.slane %v7524, 4
    %v7526 = vadd.f32 %v7524, %v7525
    %v7527 = vrot.slane %v7526, 2
    %v7528 = vadd.f32 %v7526, %v7527
    %v7529 = vrot.slane %v7528, 1
    %v7530 = vadd.f32 %v7528, %v7529
    %v7531 = vsel %vm920, %v7521, 0.0
    %v7532 = vrot.slane %v7531, 4
    %v7533 = vadd.f32 %v7531, %v7532
    %v7534 = vrot.slane %v7533, 2
    %v7535 = vadd.f32 %v7533, %v7534
    %v7536 = vrot.slane %v7535, 1
    %v7537 = vadd.f32 %v7535, %v7536
    %v7538 = vadd.f32 %v7530, 1e-06
    %v7539 = vadd.f32 %v7537, 1e-06
    %v7540 = vlog2.pop %v7538
    %v7541 = vmul.f32 %v7540, 0.6931472
    %v7542 = vlog2.pop %v7539
    %v7543 = vmul.f32 %v7542, 0.6931472
    %v7545 = vrot.slane %v464, 1
    %v7548 = vadd.f32 %v7541, %v464
    %v7549 = vadd.f32 %v7543, %v7545
    %v7552 = vrot.slane %v7549, 7
    %v7553 = vsel %vm904, %v7552, %v7548
    %v7555 = vsel %vm952, %v7553, -inf
    %7556 = vmax.xlane.f32.xlu0 %v7555
    %v7557 = vpop.xlane.xlu0 %7556
    %v7559 = vrot.slane %v7557, 1
    %v7562 = vsub.f32 %v7548, %v7557
    %v7563 = vsub.f32 %v7549, %v7559
    %v7564 = vmul.f32 %v7562, 1.442695
    %v7565 = vpow.pop %v7564
    %v7566 = vmul.f32 %v7563, 1.442695
    %v7567 = vpow.pop %v7566
    %v7570 = vrot.slane %v7567, 7
    %v7571 = vsel %vm904, %v7570, %v7565
    %v7573 = vsel %vm952, %v7571, 0.0
    %7574 = vadd.xlane.f32.xlu0 %v7573
    %v7575 = vpop.xlane.xlu0 %7574
    %v7577 = vrot.slane %v7575, 1
    %v7580 = vrcp.pop %v7575
    %v7581 = vmul.f32 %v7575, %v7580
    %v7582 = vsub.f32 1.0, %v7581
    %v7583 = vmul.f32 %v7580, %v7582
    %v7584 = vadd.f32 %v7580, %v7583
    %vm7585 = vweird.f32 %v7575
    %vm7586 = vweird.f32 %v7580
    %vm7587 = vmor %vm7585, %vm7586
    %v7588 = vsel %vm7587, %v7580, %v7584
    %v7589 = vand.u32 2147483647, %v7575
    %vm7590 = vcmp.eq.f32.partialorder %v7589, 8.507059e+37
    %v7591 = vand.u32 %v7575, 2147483648
    %v7592 = vor.u32 1.1754944e-38, %v7591
    %v7593 = vsel %vm7590, %v7592, %v7588
    %v7594 = vmul.f32 %v7565, %v7593
    %v7595 = vrcp.pop %v7577
    %v7596 = vmul.f32 %v7577, %v7595
    %v7597 = vsub.f32 1.0, %v7596
    %v7598 = vmul.f32 %v7595, %v7597
    %v7599 = vadd.f32 %v7595, %v7598
    %vm7600 = vweird.f32 %v7577
    %vm7601 = vweird.f32 %v7595
    %vm7602 = vmor %vm7600, %vm7601
    %v7603 = vsel %vm7602, %v7595, %v7599
    %v7604 = vand.u32 2147483647, %v7577
    %vm7605 = vcmp.eq.f32.partialorder %v7604, 8.507059e+37
    %v7606 = vand.u32 %v7577, 2147483648
    %v7607 = vor.u32 1.1754944e-38, %v7606
    %v7608 = vsel %vm7605, %v7607, %v7603
    %v7609 = vmul.f32 %v7567, %v7608
    %v7612 = vrot.slane %v7609, 7
    %v7613 = vsel %vm904, %v7612, %v7594
    %s7615 = scalar_lea.vmem [#allocation3], 14
    %7616 = vst.msk [vmem:[%s7615] sm:$0x3] %vm952, %v7613
    %v7617 = vperm.slane %v7594, 0
    %v7618 = vperm.slane %v7609, 0
    %v7619 = vmul.f32 %v441, %v7617
    %v7620 = vmul.f32 %v442, %v7618
    %v7621 = vmul.f32 %v443, %v7617
    %v7622 = vmul.f32 %v444, %v7618
    %v7623 = vmul.f32 %v445, %v7617
    %v7624 = vmul.f32 %v446, %v7618
    %v7625 = vmul.f32 %v447, %v7617
    %v7626 = vmul.f32 %v448, %v7618
    %v7627 = vmul.f32 %v449, %v7617
    %v7628 = vmul.f32 %v450, %v7618
    %v7629 = vmul.f32 %v451, %v7617
    %v7630 = vmul.f32 %v452, %v7618
    %v7631 = vmul.f32 %v453, %v7617
    %v7632 = vmul.f32 %v454, %v7618
    %v7633 = vmul.f32 %v455, %v7617
    %v7634 = vmul.f32 %v456, %v7618
    %v7635 = vsel %vm920, %v7619, 0.0
    %7636 = vadd.xlane.f32.xlu0 %v7635
    %v7637 = vpop.xlane.xlu0 %7636
    %v7638 = vsel %vm920, %v7620, 0.0
    %7639 = vadd.xlane.f32.xlu0 %v7638
    %v7640 = vpop.xlane.xlu0 %7639
    %v7641 = vsel %vm920, %v7621, 0.0
    %7642 = vadd.xlane.f32.xlu0 %v7641
    %v7643 = vpop.xlane.xlu0 %7642
    %v7644 = vsel %vm920, %v7622, 0.0
    %7645 = vadd.xlane.f32.xlu0 %v7644
    %v7646 = vpop.xlane.xlu0 %7645
    %v7647 = vsel %vm920, %v7623, 0.0
    %7648 = vadd.xlane.f32.xlu0 %v7647
    %v7649 = vpop.xlane.xlu0 %7648
    %v7650 = vsel %vm920, %v7624, 0.0
    %7651 = vadd.xlane.f32.xlu0 %v7650
    %v7652 = vpop.xlane.xlu0 %7651
    %v7653 = vsel %vm920, %v7625, 0.0
    %7654 = vadd.xlane.f32.xlu0 %v7653
    %v7655 = vpop.xlane.xlu0 %7654
    %v7656 = vsel %vm920, %v7626, 0.0
    %7657 = vadd.xlane.f32.xlu0 %v7656
    %v7658 = vpop.xlane.xlu0 %7657
    %v7659 = vsel %vm920, %v7627, 0.0
    %7660 = vadd.xlane.f32.xlu0 %v7659
    %v7661 = vpop.xlane.xlu0 %7660
    %v7662 = vsel %vm920, %v7628, 0.0
    %7663 = vadd.xlane.f32.xlu0 %v7662
    %v7664 = vpop.xlane.xlu0 %7663
    %v7665 = vsel %vm920, %v7629, 0.0
    %7666 = vadd.xlane.f32.xlu0 %v7665
    %v7667 = vpop.xlane.xlu0 %7666
    %v7668 = vsel %vm920, %v7630, 0.0
    %7669 = vadd.xlane.f32.xlu0 %v7668
    %v7670 = vpop.xlane.xlu0 %7669
    %v7671 = vsel %vm920, %v7631, 0.0
    %7672 = vadd.xlane.f32.xlu0 %v7671
    %v7673 = vpop.xlane.xlu0 %7672
    %v7674 = vsel %vm920, %v7632, 0.0
    %7675 = vadd.xlane.f32.xlu0 %v7674
    %v7676 = vpop.xlane.xlu0 %7675
    %v7677 = vsel %vm920, %v7633, 0.0
    %7678 = vadd.xlane.f32.xlu0 %v7677
    %v7679 = vpop.xlane.xlu0 %7678
    %v7680 = vsel %vm920, %v7634, 0.0
    %7681 = vadd.xlane.f32.xlu0 %v7680
    %v7682 = vpop.xlane.xlu0 %7681
    %v7699 = vperm.slane %v7637, %v1097
    %v7700 = vperm.slane %v7640, %v1097
    %v7701 = vperm.slane %v7643, %v1097
    %v7702 = vperm.slane %v7646, %v1097
    %v7703 = vperm.slane %v7649, %v1097
    %v7704 = vperm.slane %v7652, %v1097
    %v7705 = vperm.slane %v7655, %v1097
    %v7706 = vperm.slane %v7658, %v1097
    %v7707 = vperm.slane %v7661, %v1097
    %v7708 = vperm.slane %v7664, %v1097
    %v7709 = vperm.slane %v7667, %v1097
    %v7710 = vperm.slane %v7670, %v1097
    %v7711 = vperm.slane %v7673, %v1097
    %v7712 = vperm.slane %v7676, %v1097
    %v7713 = vperm.slane %v7679, %v1097
    %v7714 = vperm.slane %v7682, %v1097
    %v7715 = vsel %vm904, %v7700, %v7699
    %v7716 = vsel %vm904, %v7702, %v7701
    %v7717 = vsel %vm904, %v7704, %v7703
    %v7718 = vsel %vm904, %v7706, %v7705
    %v7719 = vsel %vm904, %v7708, %v7707
    %v7720 = vsel %vm904, %v7710, %v7709
    %v7721 = vsel %vm904, %v7712, %v7711
    %v7722 = vsel %vm904, %v7714, %v7713
    %v7731 = vsel %vm473, %v7715, -inf
    %7732 = vmax.xlane.f32.xlu0 %v7731
    %v7733 = vpop.xlane.xlu0 %7732
    %v7734 = vsel %vm473, %v7716, -inf
    %7735 = vmax.xlane.f32.xlu0 %v7734
    %v7736 = vpop.xlane.xlu0 %7735
    %v7737 = vsel %vm473, %v7717, -inf
    %7738 = vmax.xlane.f32.xlu0 %v7737
    %v7739 = vpop.xlane.xlu0 %7738
    %v7740 = vsel %vm473, %v7718, -inf
    %7741 = vmax.xlane.f32.xlu0 %v7740
    %v7742 = vpop.xlane.xlu0 %7741
    %v7743 = vsel %vm473, %v7719, -inf
    %7744 = vmax.xlane.f32.xlu0 %v7743
    %v7745 = vpop.xlane.xlu0 %7744
    %v7746 = vsel %vm473, %v7720, -inf
    %7747 = vmax.xlane.f32.xlu0 %v7746
    %v7748 = vpop.xlane.xlu0 %7747
    %v7749 = vsel %vm473, %v7721, -inf
    %7750 = vmax.xlane.f32.xlu0 %v7749
    %v7751 = vpop.xlane.xlu0 %7750
    %v7752 = vsel %vm473, %v7722, -inf
    %7753 = vmax.xlane.f32.xlu0 %v7752
    %v7754 = vpop.xlane.xlu0 %7753
    %v7763 = vperm.slane %v7733, 0
    %v7764 = vperm.slane %v7733, 1
    %v7765 = vperm.slane %v7736, 0
    %v7766 = vperm.slane %v7736, 1
    %v7767 = vperm.slane %v7739, 0
    %v7768 = vperm.slane %v7739, 1
    %v7769 = vperm.slane %v7742, 0
    %v7770 = vperm.slane %v7742, 1
    %v7771 = vperm.slane %v7745, 0
    %v7772 = vperm.slane %v7745, 1
    %v7773 = vperm.slane %v7748, 0
    %v7774 = vperm.slane %v7748, 1
    %v7775 = vperm.slane %v7751, 0
    %v7776 = vperm.slane %v7751, 1
    %v7777 = vperm.slane %v7754, 0
    %v7778 = vperm.slane %v7754, 1
    %v7795 = vsub.f32 %v7637, %v7763
    %v7796 = vsub.f32 %v7640, %v7764
    %v7797 = vsub.f32 %v7643, %v7765
    %v7798 = vsub.f32 %v7646, %v7766
    %v7799 = vsub.f32 %v7649, %v7767
    %v7800 = vsub.f32 %v7652, %v7768
    %v7801 = vsub.f32 %v7655, %v7769
    %v7802 = vsub.f32 %v7658, %v7770
    %v7803 = vsub.f32 %v7661, %v7771
    %v7804 = vsub.f32 %v7664, %v7772
    %v7805 = vsub.f32 %v7667, %v7773
    %v7806 = vsub.f32 %v7670, %v7774
    %v7807 = vsub.f32 %v7673, %v7775
    %v7808 = vsub.f32 %v7676, %v7776
    %v7809 = vsub.f32 %v7679, %v7777
    %v7810 = vsub.f32 %v7682, %v7778
    %v7811 = vmul.f32 %v7795, 1.442695
    %v7812 = vpow.pop %v7811
    %v7813 = vmul.f32 %v7796, 1.442695
    %v7814 = vpow.pop %v7813
    %v7815 = vmul.f32 %v7797, 1.442695
    %v7816 = vpow.pop %v7815
    %v7817 = vmul.f32 %v7798, 1.442695
    %v7818 = vpow.pop %v7817
    %v7819 = vmul.f32 %v7799, 1.442695
    %v7820 = vpow.pop %v7819
    %v7821 = vmul.f32 %v7800, 1.442695
    %v7822 = vpow.pop %v7821
    %v7823 = vmul.f32 %v7801, 1.442695
    %v7824 = vpow.pop %v7823
    %v7825 = vmul.f32 %v7802, 1.442695
    %v7826 = vpow.pop %v7825
    %v7827 = vmul.f32 %v7803, 1.442695
    %v7828 = vpow.pop %v7827
    %v7829 = vmul.f32 %v7804, 1.442695
    %v7830 = vpow.pop %v7829
    %v7831 = vmul.f32 %v7805, 1.442695
    %v7832 = vpow.pop %v7831
    %v7833 = vmul.f32 %v7806, 1.442695
    %v7834 = vpow.pop %v7833
    %v7835 = vmul.f32 %v7807, 1.442695
    %v7836 = vpow.pop %v7835
    %v7837 = vmul.f32 %v7808, 1.442695
    %v7838 = vpow.pop %v7837
    %v7839 = vmul.f32 %v7809, 1.442695
    %v7840 = vpow.pop %v7839
    %v7841 = vmul.f32 %v7810, 1.442695
    %v7842 = vpow.pop %v7841
    %7859 = vset.pattern.permute.xlu0 0
    %7860 = vperm.xlu0 %7859, %v7812
    %v7861 = vpop.permute.xlu0 %7860
    %7862 = vset.pattern.permute.xlu0 0
    %7863 = vperm.xlu0 %7862, %v7814
    %v7864 = vpop.permute.xlu0 %7863
    %7865 = vset.pattern.permute.xlu0 0
    %7866 = vperm.xlu0 %7865, %v7816
    %v7867 = vpop.permute.xlu0 %7866
    %7868 = vset.pattern.permute.xlu0 0
    %7869 = vperm.xlu0 %7868, %v7818
    %v7870 = vpop.permute.xlu0 %7869
    %7871 = vset.pattern.permute.xlu0 0
    %7872 = vperm.xlu0 %7871, %v7820
    %v7873 = vpop.permute.xlu0 %7872
    %7874 = vset.pattern.permute.xlu0 0
    %7875 = vperm.xlu0 %7874, %v7822
    %v7876 = vpop.permute.xlu0 %7875
    %7877 = vset.pattern.permute.xlu0 0
    %7878 = vperm.xlu0 %7877, %v7824
    %v7879 = vpop.permute.xlu0 %7878
    %7880 = vset.pattern.permute.xlu0 0
    %7881 = vperm.xlu0 %7880, %v7826
    %v7882 = vpop.permute.xlu0 %7881
    %7883 = vset.pattern.permute.xlu0 0
    %7884 = vperm.xlu0 %7883, %v7828
    %v7885 = vpop.permute.xlu0 %7884
    %7886 = vset.pattern.permute.xlu0 0
    %7887 = vperm.xlu0 %7886, %v7830
    %v7888 = vpop.permute.xlu0 %7887
    %7889 = vset.pattern.permute.xlu0 0
    %7890 = vperm.xlu0 %7889, %v7832
    %v7891 = vpop.permute.xlu0 %7890
    %7892 = vset.pattern.permute.xlu0 0
    %7893 = vperm.xlu0 %7892, %v7834
    %v7894 = vpop.permute.xlu0 %7893
    %7895 = vset.pattern.permute.xlu0 0
    %7896 = vperm.xlu0 %7895, %v7836
    %v7897 = vpop.permute.xlu0 %7896
    %7898 = vset.pattern.permute.xlu0 0
    %7899 = vperm.xlu0 %7898, %v7838
    %v7900 = vpop.permute.xlu0 %7899
    %7901 = vset.pattern.permute.xlu0 0
    %7902 = vperm.xlu0 %7901, %v7840
    %v7903 = vpop.permute.xlu0 %7902
    %7904 = vset.pattern.permute.xlu0 0
    %7905 = vperm.xlu0 %7904, %v7842
    %v7906 = vpop.permute.xlu0 %7905
    %v7907 = vperm.slane %v7861, %v1097
    %v7908 = vperm.slane %v7864, %v1097
    %v7909 = vperm.slane %v7867, %v1097
    %v7910 = vperm.slane %v7870, %v1097
    %v7911 = vperm.slane %v7873, %v1097
    %v7912 = vperm.slane %v7876, %v1097
    %v7913 = vperm.slane %v7879, %v1097
    %v7914 = vperm.slane %v7882, %v1097
    %v7915 = vperm.slane %v7885, %v1097
    %v7916 = vperm.slane %v7888, %v1097
    %v7917 = vperm.slane %v7891, %v1097
    %v7918 = vperm.slane %v7894, %v1097
    %v7919 = vperm.slane %v7897, %v1097
    %v7920 = vperm.slane %v7900, %v1097
    %v7921 = vperm.slane %v7903, %v1097
    %v7922 = vperm.slane %v7906, %v1097
    %v7923 = vsel %vm904, %v7908, %v7907
    %v7924 = vsel %vm904, %v7910, %v7909
    %v7925 = vsel %vm904, %v7912, %v7911
    %v7926 = vsel %vm904, %v7914, %v7913
    %v7927 = vsel %vm904, %v7916, %v7915
    %v7928 = vsel %vm904, %v7918, %v7917
    %v7929 = vsel %vm904, %v7920, %v7919
    %v7930 = vsel %vm904, %v7922, %v7921
    %v7939 = vsel %vm473, %v7923, 0.0
    %7940 = vadd.xlane.f32.xlu0 %v7939
    %v7941 = vpop.xlane.xlu0 %7940
    %v7942 = vsel %vm473, %v7924, 0.0
    %7943 = vadd.xlane.f32.xlu0 %v7942
    %v7944 = vpop.xlane.xlu0 %7943
    %v7945 = vsel %vm473, %v7925, 0.0
    %7946 = vadd.xlane.f32.xlu0 %v7945
    %v7947 = vpop.xlane.xlu0 %7946
    %v7948 = vsel %vm473, %v7926, 0.0
    %7949 = vadd.xlane.f32.xlu0 %v7948
    %v7950 = vpop.xlane.xlu0 %7949
    %v7951 = vsel %vm473, %v7927, 0.0
    %7952 = vadd.xlane.f32.xlu0 %v7951
    %v7953 = vpop.xlane.xlu0 %7952
    %v7954 = vsel %vm473, %v7928, 0.0
    %7955 = vadd.xlane.f32.xlu0 %v7954
    %v7956 = vpop.xlane.xlu0 %7955
    %v7957 = vsel %vm473, %v7929, 0.0
    %7958 = vadd.xlane.f32.xlu0 %v7957
    %v7959 = vpop.xlane.xlu0 %7958
    %v7960 = vsel %vm473, %v7930, 0.0
    %7961 = vadd.xlane.f32.xlu0 %v7960
    %v7962 = vpop.xlane.xlu0 %7961
    %v7971 = vperm.slane %v7941, 0
    %v7972 = vperm.slane %v7941, 1
    %v7973 = vperm.slane %v7944, 0
    %v7974 = vperm.slane %v7944, 1
    %v7975 = vperm.slane %v7947, 0
    %v7976 = vperm.slane %v7947, 1
    %v7977 = vperm.slane %v7950, 0
    %v7978 = vperm.slane %v7950, 1
    %v7979 = vperm.slane %v7953, 0
    %v7980 = vperm.slane %v7953, 1
    %v7981 = vperm.slane %v7956, 0
    %v7982 = vperm.slane %v7956, 1
    %v7983 = vperm.slane %v7959, 0
    %v7984 = vperm.slane %v7959, 1
    %v7985 = vperm.slane %v7962, 0
    %v7986 = vperm.slane %v7962, 1
    %v8003 = vrcp.pop %v7971
    %v8004 = vmul.f32 %v7971, %v8003
    %v8005 = vsub.f32 1.0, %v8004
    %v8006 = vmul.f32 %v8003, %v8005
    %v8007 = vadd.f32 %v8003, %v8006
    %vm8008 = vweird.f32 %v7971
    %vm8009 = vweird.f32 %v8003
    %vm8010 = vmor %vm8008, %vm8009
    %v8011 = vsel %vm8010, %v8003, %v8007
    %v8012 = vand.u32 2147483647, %v7971
    %vm8013 = vcmp.eq.f32.partialorder %v8012, 8.507059e+37
    %v8014 = vand.u32 %v7971, 2147483648
    %v8015 = vor.u32 1.1754944e-38, %v8014
    %v8016 = vsel %vm8013, %v8015, %v8011
    %v8017 = vmul.f32 %v7812, %v8016
    %v8018 = vrcp.pop %v7972
    %v8019 = vmul.f32 %v7972, %v8018
    %v8020 = vsub.f32 1.0, %v8019
    %v8021 = vmul.f32 %v8018, %v8020
    %v8022 = vadd.f32 %v8018, %v8021
    %vm8023 = vweird.f32 %v7972
    %vm8024 = vweird.f32 %v8018
    %vm8025 = vmor %vm8023, %vm8024
    %v8026 = vsel %vm8025, %v8018, %v8022
    %v8027 = vand.u32 2147483647, %v7972
    %vm8028 = vcmp.eq.f32.partialorder %v8027, 8.507059e+37
    %v8029 = vand.u32 %v7972, 2147483648
    %v8030 = vor.u32 1.1754944e-38, %v8029
    %v8031 = vsel %vm8028, %v8030, %v8026
    %v8032 = vmul.f32 %v7814, %v8031
    %v8033 = vrcp.pop %v7973
    %v8034 = vmul.f32 %v7973, %v8033
    %v8035 = vsub.f32 1.0, %v8034
    %v8036 = vmul.f32 %v8033, %v8035
    %v8037 = vadd.f32 %v8033, %v8036
    %vm8038 = vweird.f32 %v7973
    %vm8039 = vweird.f32 %v8033
    %vm8040 = vmor %vm8038, %vm8039
    %v8041 = vsel %vm8040, %v8033, %v8037
    %v8042 = vand.u32 2147483647, %v7973
    %vm8043 = vcmp.eq.f32.partialorder %v8042, 8.507059e+37
    %v8044 = vand.u32 %v7973, 2147483648
    %v8045 = vor.u32 1.1754944e-38, %v8044
    %v8046 = vsel %vm8043, %v8045, %v8041
    %v8047 = vmul.f32 %v7816, %v8046
    %v8048 = vrcp.pop %v7974
    %v8049 = vmul.f32 %v7974, %v8048
    %v8050 = vsub.f32 1.0, %v8049
    %v8051 = vmul.f32 %v8048, %v8050
    %v8052 = vadd.f32 %v8048, %v8051
    %vm8053 = vweird.f32 %v7974
    %vm8054 = vweird.f32 %v8048
    %vm8055 = vmor %vm8053, %vm8054
    %v8056 = vsel %vm8055, %v8048, %v8052
    %v8057 = vand.u32 2147483647, %v7974
    %vm8058 = vcmp.eq.f32.partialorder %v8057, 8.507059e+37
    %v8059 = vand.u32 %v7974, 2147483648
    %v8060 = vor.u32 1.1754944e-38, %v8059
    %v8061 = vsel %vm8058, %v8060, %v8056
    %v8062 = vmul.f32 %v7818, %v8061
    %v8063 = vrcp.pop %v7975
    %v8064 = vmul.f32 %v7975, %v8063
    %v8065 = vsub.f32 1.0, %v8064
    %v8066 = vmul.f32 %v8063, %v8065
    %v8067 = vadd.f32 %v8063, %v8066
    %vm8068 = vweird.f32 %v7975
    %vm8069 = vweird.f32 %v8063
    %vm8070 = vmor %vm8068, %vm8069
    %v8071 = vsel %vm8070, %v8063, %v8067
    %v8072 = vand.u32 2147483647, %v7975
    %vm8073 = vcmp.eq.f32.partialorder %v8072, 8.507059e+37
    %v8074 = vand.u32 %v7975, 2147483648
    %v8075 = vor.u32 1.1754944e-38, %v8074
    %v8076 = vsel %vm8073, %v8075, %v8071
    %v8077 = vmul.f32 %v7820, %v8076
    %v8078 = vrcp.pop %v7976
    %v8079 = vmul.f32 %v7976, %v8078
    %v8080 = vsub.f32 1.0, %v8079
    %v8081 = vmul.f32 %v8078, %v8080
    %v8082 = vadd.f32 %v8078, %v8081
    %vm8083 = vweird.f32 %v7976
    %vm8084 = vweird.f32 %v8078
    %vm8085 = vmor %vm8083, %vm8084
    %v8086 = vsel %vm8085, %v8078, %v8082
    %v8087 = vand.u32 2147483647, %v7976
    %vm8088 = vcmp.eq.f32.partialorder %v8087, 8.507059e+37
    %v8089 = vand.u32 %v7976, 2147483648
    %v8090 = vor.u32 1.1754944e-38, %v8089
    %v8091 = vsel %vm8088, %v8090, %v8086
    %v8092 = vmul.f32 %v7822, %v8091
    %v8093 = vrcp.pop %v7977
    %v8094 = vmul.f32 %v7977, %v8093
    %v8095 = vsub.f32 1.0, %v8094
    %v8096 = vmul.f32 %v8093, %v8095
    %v8097 = vadd.f32 %v8093, %v8096
    %vm8098 = vweird.f32 %v7977
    %vm8099 = vweird.f32 %v8093
    %vm8100 = vmor %vm8098, %vm8099
    %v8101 = vsel %vm8100, %v8093, %v8097
    %v8102 = vand.u32 2147483647, %v7977
    %vm8103 = vcmp.eq.f32.partialorder %v8102, 8.507059e+37
    %v8104 = vand.u32 %v7977, 2147483648
    %v8105 = vor.u32 1.1754944e-38, %v8104
    %v8106 = vsel %vm8103, %v8105, %v8101
    %v8107 = vmul.f32 %v7824, %v8106
    %v8108 = vrcp.pop %v7978
    %v8109 = vmul.f32 %v7978, %v8108
    %v8110 = vsub.f32 1.0, %v8109
    %v8111 = vmul.f32 %v8108, %v8110
    %v8112 = vadd.f32 %v8108, %v8111
    %vm8113 = vweird.f32 %v7978
    %vm8114 = vweird.f32 %v8108
    %vm8115 = vmor %vm8113, %vm8114
    %v8116 = vsel %vm8115, %v8108, %v8112
    %v8117 = vand.u32 2147483647, %v7978
    %vm8118 = vcmp.eq.f32.partialorder %v8117, 8.507059e+37
    %v8119 = vand.u32 %v7978, 2147483648
    %v8120 = vor.u32 1.1754944e-38, %v8119
    %v8121 = vsel %vm8118, %v8120, %v8116
    %v8122 = vmul.f32 %v7826, %v8121
    %v8123 = vrcp.pop %v7979
    %v8124 = vmul.f32 %v7979, %v8123
    %v8125 = vsub.f32 1.0, %v8124
    %v8126 = vmul.f32 %v8123, %v8125
    %v8127 = vadd.f32 %v8123, %v8126
    %vm8128 = vweird.f32 %v7979
    %vm8129 = vweird.f32 %v8123
    %vm8130 = vmor %vm8128, %vm8129
    %v8131 = vsel %vm8130, %v8123, %v8127
    %v8132 = vand.u32 2147483647, %v7979
    %vm8133 = vcmp.eq.f32.partialorder %v8132, 8.507059e+37
    %v8134 = vand.u32 %v7979, 2147483648
    %v8135 = vor.u32 1.1754944e-38, %v8134
    %v8136 = vsel %vm8133, %v8135, %v8131
    %v8137 = vmul.f32 %v7828, %v8136
    %v8138 = vrcp.pop %v7980
    %v8139 = vmul.f32 %v7980, %v8138
    %v8140 = vsub.f32 1.0, %v8139
    %v8141 = vmul.f32 %v8138, %v8140
    %v8142 = vadd.f32 %v8138, %v8141
    %vm8143 = vweird.f32 %v7980
    %vm8144 = vweird.f32 %v8138
    %vm8145 = vmor %vm8143, %vm8144
    %v8146 = vsel %vm8145, %v8138, %v8142
    %v8147 = vand.u32 2147483647, %v7980
    %vm8148 = vcmp.eq.f32.partialorder %v8147, 8.507059e+37
    %v8149 = vand.u32 %v7980, 2147483648
    %v8150 = vor.u32 1.1754944e-38, %v8149
    %v8151 = vsel %vm8148, %v8150, %v8146
    %v8152 = vmul.f32 %v7830, %v8151
    %v8153 = vrcp.pop %v7981
    %v8154 = vmul.f32 %v7981, %v8153
    %v8155 = vsub.f32 1.0, %v8154
    %v8156 = vmul.f32 %v8153, %v8155
    %v8157 = vadd.f32 %v8153, %v8156
    %vm8158 = vweird.f32 %v7981
    %vm8159 = vweird.f32 %v8153
    %vm8160 = vmor %vm8158, %vm8159
    %v8161 = vsel %vm8160, %v8153, %v8157
    %v8162 = vand.u32 2147483647, %v7981
    %vm8163 = vcmp.eq.f32.partialorder %v8162, 8.507059e+37
    %v8164 = vand.u32 %v7981, 2147483648
    %v8165 = vor.u32 1.1754944e-38, %v8164
    %v8166 = vsel %vm8163, %v8165, %v8161
    %v8167 = vmul.f32 %v7832, %v8166
    %v8168 = vrcp.pop %v7982
    %v8169 = vmul.f32 %v7982, %v8168
    %v8170 = vsub.f32 1.0, %v8169
    %v8171 = vmul.f32 %v8168, %v8170
    %v8172 = vadd.f32 %v8168, %v8171
    %vm8173 = vweird.f32 %v7982
    %vm8174 = vweird.f32 %v8168
    %vm8175 = vmor %vm8173, %vm8174
    %v8176 = vsel %vm8175, %v8168, %v8172
    %v8177 = vand.u32 2147483647, %v7982
    %vm8178 = vcmp.eq.f32.partialorder %v8177, 8.507059e+37
    %v8179 = vand.u32 %v7982, 2147483648
    %v8180 = vor.u32 1.1754944e-38, %v8179
    %v8181 = vsel %vm8178, %v8180, %v8176
    %v8182 = vmul.f32 %v7834, %v8181
    %v8183 = vrcp.pop %v7983
    %v8184 = vmul.f32 %v7983, %v8183
    %v8185 = vsub.f32 1.0, %v8184
    %v8186 = vmul.f32 %v8183, %v8185
    %v8187 = vadd.f32 %v8183, %v8186
    %vm8188 = vweird.f32 %v7983
    %vm8189 = vweird.f32 %v8183
    %vm8190 = vmor %vm8188, %vm8189
    %v8191 = vsel %vm8190, %v8183, %v8187
    %v8192 = vand.u32 2147483647, %v7983
    %vm8193 = vcmp.eq.f32.partialorder %v8192, 8.507059e+37
    %v8194 = vand.u32 %v7983, 2147483648
    %v8195 = vor.u32 1.1754944e-38, %v8194
    %v8196 = vsel %vm8193, %v8195, %v8191
    %v8197 = vmul.f32 %v7836, %v8196
    %v8198 = vrcp.pop %v7984
    %v8199 = vmul.f32 %v7984, %v8198
    %v8200 = vsub.f32 1.0, %v8199
    %v8201 = vmul.f32 %v8198, %v8200
    %v8202 = vadd.f32 %v8198, %v8201
    %vm8203 = vweird.f32 %v7984
    %vm8204 = vweird.f32 %v8198
    %vm8205 = vmor %vm8203, %vm8204
    %v8206 = vsel %vm8205, %v8198, %v8202
    %v8207 = vand.u32 2147483647, %v7984
    %vm8208 = vcmp.eq.f32.partialorder %v8207, 8.507059e+37
    %v8209 = vand.u32 %v7984, 2147483648
    %v8210 = vor.u32 1.1754944e-38, %v8209
    %v8211 = vsel %vm8208, %v8210, %v8206
    %v8212 = vmul.f32 %v7838, %v8211
    %v8213 = vrcp.pop %v7985
    %v8214 = vmul.f32 %v7985, %v8213
    %v8215 = vsub.f32 1.0, %v8214
    %v8216 = vmul.f32 %v8213, %v8215
    %v8217 = vadd.f32 %v8213, %v8216
    %vm8218 = vweird.f32 %v7985
    %vm8219 = vweird.f32 %v8213
    %vm8220 = vmor %vm8218, %vm8219
    %v8221 = vsel %vm8220, %v8213, %v8217
    %v8222 = vand.u32 2147483647, %v7985
    %vm8223 = vcmp.eq.f32.partialorder %v8222, 8.507059e+37
    %v8224 = vand.u32 %v7985, 2147483648
    %v8225 = vor.u32 1.1754944e-38, %v8224
    %v8226 = vsel %vm8223, %v8225, %v8221
    %v8227 = vmul.f32 %v7840, %v8226
    %v8228 = vrcp.pop %v7986
    %v8229 = vmul.f32 %v7986, %v8228
    %v8230 = vsub.f32 1.0, %v8229
    %v8231 = vmul.f32 %v8228, %v8230
    %v8232 = vadd.f32 %v8228, %v8231
    %vm8233 = vweird.f32 %v7986
    %vm8234 = vweird.f32 %v8228
    %vm8235 = vmor %vm8233, %vm8234
    %v8236 = vsel %vm8235, %v8228, %v8232
    %v8237 = vand.u32 2147483647, %v7986
    %vm8238 = vcmp.eq.f32.partialorder %v8237, 8.507059e+37
    %v8239 = vand.u32 %v7986, 2147483648
    %v8240 = vor.u32 1.1754944e-38, %v8239
    %v8241 = vsel %vm8238, %v8240, %v8236
    %v8242 = vmul.f32 %v7842, %v8241
    %v8243 = vmul.f32 %v8017, %v1646
    %v8244 = vmul.f32 %v8032, %v1647
    %v8245 = vmul.f32 %v8047, %v1655
    %v8246 = vmul.f32 %v8062, %v1656
    %v8247 = vadd.f32 %v8243, %v8245
    %v8248 = vadd.f32 %v8244, %v8246
    %v8249 = vmul.f32 %v8077, %v1666
    %v8250 = vmul.f32 %v8092, %v1667
    %v8251 = vadd.f32 %v8247, %v8249
    %v8252 = vadd.f32 %v8248, %v8250
    %v8253 = vmul.f32 %v8107, %v1677
    %v8254 = vmul.f32 %v8122, %v1678
    %v8255 = vadd.f32 %v8251, %v8253
    %v8256 = vadd.f32 %v8252, %v8254
    %v8257 = vmul.f32 %v8137, %v1688
    %v8258 = vmul.f32 %v8152, %v1689
    %v8259 = vadd.f32 %v8255, %v8257
    %v8260 = vadd.f32 %v8256, %v8258
    %v8261 = vmul.f32 %v8167, %v1699
    %v8262 = vmul.f32 %v8182, %v1700
    %v8263 = vadd.f32 %v8259, %v8261
    %v8264 = vadd.f32 %v8260, %v8262
    %v8265 = vmul.f32 %v8197, %v1710
    %v8266 = vmul.f32 %v8212, %v1711
    %v8267 = vadd.f32 %v8263, %v8265
    %v8268 = vadd.f32 %v8264, %v8266
    %v8269 = vmul.f32 %v8227, %v1721
    %v8270 = vmul.f32 %v8242, %v1722
    %v8271 = vadd.f32 %v8267, %v8269
    %v8272 = vadd.f32 %v8268, %v8270
    %8275 = vset.pattern.permute.xlu0 0
    %8276 = vperm.xlu0 %8275, %v8271
    %v8277 = vpop.permute.xlu0 %8276
    %8278 = vset.pattern.permute.xlu0 0
    %8279 = vperm.xlu0 %8278, %v8272
    %v8280 = vpop.permute.xlu0 %8279
    %v8281 = vperm.slane %v8277, %v1097
    %v8282 = vperm.slane %v8280, %v1097
    %v8283 = vsel %vm904, %v8282, %v8281
    %s8285 = scalar_lea.vmem %s11, 14
    %8286 = vst.msk [vmem:[%s8285] sm:$0x3] %vm473, %v8283
    // Predicated region
    $region42: #{hyper_qmdp_forward.1} parent=1 // pred_check
      _
    $region43: #{hyper_qmdp_forward.1} parent=1 // pred_check_branch
      %8288 = sbr.rel (0) target = $region45
    $region44: #{hyper_qmdp_forward.1} parent=1 // pred_region
      %8290 = vsyncadd [#allocation4], 0
      %s8291 = sshll.u32 [#allocation3], 4
      %s8292 = int_to_ptr.vmem [resolvable:$true] %s8291
      %s8293 = sshll.u32 %s10, 4
      %s8294 = int_to_ptr.hbm [resolvable:$true] %s8293
      %8299 = dma.vmem_to_hbm [thread:$0]  %s8292, 256, %s8294, [#allocation4], 32, 32, 2
    $region45: #{hyper_qmdp_forward.1} parent=1 // pred_fallthru
      _
    // Predicated region
    $region46: #{hyper_qmdp_forward.1} parent=1 // pred_check
      _
    $region47: #{hyper_qmdp_forward.1} parent=1 // pred_check_branch
      %8301 = sbr.rel (0) target = $region49
    $region48: #{hyper_qmdp_forward.1} parent=1 // pred_region
      _
    $region49: #{hyper_qmdp_forward.1} parent=1 // pred_fallthru
      _
    // Predicated region
    $region50: #{hyper_qmdp_forward.1} parent=1 // pred_check
      _
    $region51: #{hyper_qmdp_forward.1} parent=1 // pred_check_branch
      %8303 = sbr.rel (0) target = $region53
    $region52: #{hyper_qmdp_forward.1} parent=1 // pred_region
      %8305 = dma.done [#allocation4], 256
    $region53: #{hyper_qmdp_forward.1} parent=1 // pred_fallthru
      _
    // Predicated region
    $region54: #{hyper_qmdp_forward.1} parent=1 // pred_check
      _
    $region55: #{hyper_qmdp_forward.1} parent=1 // pred_check_branch
      %8307 = sbr.rel (0) target = $region57
    $region56: #{hyper_qmdp_forward.1} parent=1 // pred_region
      _
    $region57: #{hyper_qmdp_forward.1} parent=1 // pred_fallthru
      _
    %8308 = vsyncpa [#allocation4], 1

</llo_original>
